<compile_context>
chip_gen: v6e
topology: v6e:2x2x1
jax: 0.10.0
libtpu: 0.0.40
codegen_flags: <defaults>
</compile_context>

<pallas_src>
import jax
import jax.numpy as jnp
import numpy as np
from jax.experimental import pallas as pl
from jax.experimental.pallas import tpu as pltpu


# ----------------------------- Pallas kernels ------------------------------

def _conv_bias_relu_kernel(x_ref, w_ref, b_ref, o_ref):
    """Fused 3x3 conv (3 row-shifted matmuls) + bias + ReLU for one image.

    x_ref: (1, (H+2)*W, 3*Cin) bf16  H-zero-padded rows, dx-unrolled channels
    w_ref: (3, 3*Cin, Cout)    bf16  one (3*Cin, Cout) matmul operand per dy
    b_ref: (1, Cout)           f32
    o_ref: (1, H*W, Cout)      f32
    """
    M = o_ref.shape[1]                    # H*W
    Cout = o_ref.shape[2]
    W = (x_ref.shape[1] - M) // 2         # padded rows = (H+2)*W = M + 2*W

    acc = jnp.zeros((M, Cout), jnp.float32)
    for dy in range(3):                   # static unroll: 3 bf16 MXU matmuls
        lhs = x_ref[0, pl.ds(dy * W, M), :]
        acc = acc + jnp.dot(lhs, w_ref[dy], preferred_element_type=jnp.float32)
    acc = acc + b_ref[...]                # f32 bias add
    o_ref[0] = jnp.maximum(acc, 0.0).astype(o_ref.dtype)   # fused ReLU


def _maxpool2x2_kernel(x_ref, o_ref):
    """2x2/stride-2 max pool from a single input block.

    x_ref: (1, Ho, 2, Wo, 2*C)  free row-major regrouping of (1, H, W, C)
    o_ref: (1, Ho, Wo, C)
    """
    C = o_ref.shape[3]
    a = x_ref[0, :, 0, :, :]              # rows 2*ho     -> (Ho, Wo, 2C)
    b = x_ref[0, :, 1, :, :]              # rows 2*ho + 1 -> (Ho, Wo, 2C)
    m = jnp.maximum(a, b)                 # pooled over the H direction
    # lanes [0:C] = column 2*wo, lanes [C:2C] = column 2*wo + 1
    o_ref[0] = jnp.maximum(m[:, :, :C], m[:, :, C:]).astype(o_ref.dtype)


# ------------------------------ op wrappers --------------------------------

def conv3x3_bias_relu(x, w, b):
    """3x3 conv (stride 1, pad 1) + bias + ReLU.

    x: (N, H, W, Cin) f32 NHWC; w: torch-layout (Cout, Cin, 3, 3); b: (Cout,).
    """
    N, H, W, Cin = x.shape
    Cout = w.shape[0]
    K = 3 * Cin
    M = H * W

    # dx (column) unroll in XLA: 3x traffic instead of the old 9x im2col, and
    # it makes the contraction dim lane-dense (K = 3*Cin).
    xw = jnp.pad(x, ((0, 0), (0, 0), (1, 1), (0, 0)))
    cols = jnp.concatenate([xw[:, :, dx:dx + W, :] for dx in range(3)], axis=-1)
    # dy handled in-kernel via row-shifted pl.ds windows of the H-padded rows.
    xh = jnp.pad(cols, ((0, 0), (1, 1), (0, 0), (0, 0)))        # (N, H+2, W, 3Cin)
    lhs = xh.reshape(N, (H + 2) * W, K).astype(jnp.bfloat16)    # bf16 MXU operand

    # (Cout, Cin, 3, 3) -> (dy, dx*Cin + c, Cout), matching the lhs K ordering.
    w3 = jnp.transpose(w, (2, 3, 1, 0)).reshape(3, K, Cout).astype(jnp.bfloat16)
    b_row = b.reshape(1, Cout).astype(jnp.float32)

    out = pl.pallas_call(
        _conv_bias_relu_kernel,
        out_shape=jax.ShapeDtypeStruct((N, M, Cout), jnp.float32),
        grid=(N,),
        in_specs=[
            pl.BlockSpec((1, (H + 2) * W, K), lambda n: (n, 0, 0)),
            pl.BlockSpec((3, K, Cout), lambda n: (0, 0, 0)),
            pl.BlockSpec((1, Cout), lambda n: (0, 0)),
        ],
        out_specs=pl.BlockSpec((1, M, Cout), lambda n: (n, 0, 0)),
        compiler_params=pltpu.CompilerParams(dimension_semantics=("parallel",)),
    )(lhs, w3, b_row)
    return out.reshape(N, H, W, Cout)


def maxpool_2x2(x):
    """2x2 max pool, stride 2; single-input in-kernel reduction."""
    N, H, W, C = x.shape
    Ho, Wo = H // 2, W // 2
    xr = x.reshape(N, Ho, 2, Wo, 2 * C)   # free row-major regrouping
    return pl.pallas_call(
        _maxpool2x2_kernel,
        out_shape=jax.ShapeDtypeStruct((N, Ho, Wo, C), x.dtype),
        grid=(N,),
        in_specs=[pl.BlockSpec((1, Ho, 2, Wo, 2 * C), lambda n: (n, 0, 0, 0, 0))],
        out_specs=pl.BlockSpec((1, Ho, Wo, C), lambda n: (n, 0, 0, 0)),
        compiler_params=pltpu.CompilerParams(dimension_semantics=("parallel",)),
    )(xr)


# --------------------------- VGG features module ---------------------------

# Scaled-down VGG16 `features` config (channels shrunk 8x for a small demo).
# Module indices mirror torchvision VGG16 (conv,relu pairs + 'M' pools), so
# indices 3 / 8 / 15 / 22 land on relu1_2 / relu2_2 / relu3_3 / relu4_3.
VGG_CFG = [8, 8, 'M', 16, 16, 'M', 32, 32, 32, 'M', 64, 64, 64]
LAYER_NAME_MAPPING = {'3': 'relu1_2', '8': 'relu2_2', '15': 'relu3_3', '22': 'relu4_3'}


def make_params(key, in_ch=3):
    """Deterministic conv parameter init: list of (w, b) in torch layout."""
    params = []
    c = in_ch
    for v in VGG_CFG:
        if v == 'M':
            continue
        key, kw, kb = jax.random.split(key, 3)
        w = jax.random.normal(kw, (v, c, 3, 3), jnp.float32) / jnp.sqrt(9.0 * c)
        b = 0.01 * jax.random.normal(kb, (v,), jnp.float32)
        params.append((w, b))
        c = v
    return params


def vgg_forward(x_nchw, params):
    """Reproduces VGG.forward: run every features module, capture the 4 relus."""
    x = jnp.transpose(x_nchw, (0, 2, 3, 1))     # NCHW -> NHWC (channels on lanes)
    outs = []
    idx = 0
    pi = 0
    for v in VGG_CFG:
        if v == 'M':
            x = maxpool_2x2(x)
            idx += 1
        else:
            w, b = params[pi]
            pi += 1
            x = conv3x3_bias_relu(x, w, b)      # conv module idx, relu module idx+1 (fused)
            if str(idx + 1) in LAYER_NAME_MAPPING:
                outs.append(jnp.transpose(x, (0, 3, 1, 2)))   # back to NCHW
            idx += 2
    return outs


# ------------------------- pure-JAX reference check -------------------------

def _ref_forward(x_nchw, params):
    """lax-based reference with the same bf16 operand quantization."""
    x = x_nchw
    outs = []
    idx = 0
    pi = 0
    for v in VGG_CFG:
        if v == 'M':
            x = jax.lax.reduce_window(x, -jnp.inf, jax.lax.max,
                                      (1, 1, 2, 2), (1, 1, 2, 2), 'VALID')
            idx += 1
        else:
            w, b = params[pi]
            pi += 1
            xq = x.astype(jnp.bfloat16).astype(jnp.float32)
            wq = w.astype(jnp.bfloat16).astype(jnp.float32)
            y = jax.lax.conv_general_dilated(
                xq, wq, (1, 1), 'SAME',
                dimension_numbers=('NCHW', 'OIHW', 'NCHW'),
                precision=jax.lax.Precision.HIGHEST)
            x = jnp.maximum(y + b.reshape(1, -1, 1, 1), 0.0)
            if str(idx + 1) in LAYER_NAME_MAPPING:
                outs.append(x)
            idx += 2
    return outs


# --------------------------------- main -------------------------------------

if __name__ == "__main__":
    root = jax.random.PRNGKey(0)
    kparams, kx = jax.random.split(root)
    params = make_params(kparams, in_ch=3)

    x = jax.random.normal(kx, (2, 3, 16, 16), jnp.float32)   # NCHW like PyTorch

    fwd = jax.jit(vgg_forward)
    outs = jax.block_until_ready(fwd(x, params))

    expected = [(2, 8, 16, 16), (2, 16, 8, 8), (2, 32, 4, 4), (2, 64, 2, 2)]
    assert [tuple(o.shape) for o in outs] == expected, [o.shape for o in outs]
    assert all(bool(jnp.all(o >= 0)) for o in outs)          # relu outputs >= 0

    refs = _ref_forward(x, params)
    for o, r in zip(outs, refs):
        err = float(np.max(np.abs(np.asarray(o) - np.asarray(r))))
        assert np.allclose(np.asarray(o), np.asarray(r), atol=5e-2, rtol=5e-2), err

    print("KERNEL_OK")
</pallas_src>

<mosaic_0001>
module attributes {stable_mosaic.version = 11 : i64} {
  func.func @_conv_bias_relu_kernel(%arg0: i32, %arg1: memref<1x288x9xbf16, #tpu.memory_space<vmem>>, %arg2: memref<3x9x8xbf16, #tpu.memory_space<vmem>>, %arg3: memref<1x8xf32, #tpu.memory_space<vmem>>, %arg4: memref<1x256x8xf32, #tpu.memory_space<vmem>>) attributes {dimension_semantics = [#tpu.dimension_semantics<parallel>], iteration_bounds = array<i64: 2>, scalar_prefetch = 0 : i64, scratch_operands = 0 : i64, tpu.core_type = #tpu.core_type<tc>, window_params = [{transform_indices = @transform_0, window_bounds = array<i64: 1, 288, 9>}, {pipeline_mode = #tpu.pipeline_mode<synchronous>, transform_indices = @transform_1, window_bounds = array<i64: 3, 9, 8>}, {pipeline_mode = #tpu.pipeline_mode<synchronous>, transform_indices = @transform_2, window_bounds = array<i64: 1, 8>}, {transform_indices = @transform_3, window_bounds = array<i64: 1, 256, 8>}]} {
    %cst = arith.constant 0.000000e+00 : f32
    %0 = vector.broadcast %cst : f32 to vector<256x8xf32>
    %c0 = arith.constant 0 : index
    %c0_0 = arith.constant 0 : index
    %c0_1 = arith.constant 0 : index
    %1 = vector.load %arg1[%c0, %c0_0, %c0_1] : memref<1x288x9xbf16, #tpu.memory_space<vmem>>, vector<1x256x9xbf16>
    %2 = vector.shape_cast %1 : vector<1x256x9xbf16> to vector<256x9xbf16>
    %c0_2 = arith.constant 0 : index
    %c0_3 = arith.constant 0 : index
    %c0_4 = arith.constant 0 : index
    %3 = vector.load %arg2[%c0_2, %c0_3, %c0_4] : memref<3x9x8xbf16, #tpu.memory_space<vmem>>, vector<1x9x8xbf16>
    %4 = vector.shape_cast %3 : vector<1x9x8xbf16> to vector<9x8xbf16>
    %cst_5 = arith.constant dense<0.000000e+00> : vector<256x8xf32>
    %5 = tpu.matmul %2, %4, %cst_5 {dimension_numbers = #tpu.dot_dimension_numbers<[1], [0], [0], [1], [0, 0, 1, 1], [], []>} : vector<256x9xbf16>, vector<9x8xbf16>, vector<256x8xf32> -> vector<256x8xf32>
    %6 = arith.addf %0, %5 : vector<256x8xf32>
    %c0_6 = arith.constant 0 : index
    %c16 = arith.constant 16 : index
    %c0_7 = arith.constant 0 : index
    %7 = vector.load %arg1[%c0_6, %c16, %c0_7] : memref<1x288x9xbf16, #tpu.memory_space<vmem>>, vector<1x256x9xbf16>
    %8 = vector.shape_cast %7 : vector<1x256x9xbf16> to vector<256x9xbf16>
    %c1 = arith.constant 1 : index
    %c0_8 = arith.constant 0 : index
    %c0_9 = arith.constant 0 : index
    %9 = vector.load %arg2[%c1, %c0_8, %c0_9] : memref<3x9x8xbf16, #tpu.memory_space<vmem>>, vector<1x9x8xbf16>
    %10 = vector.shape_cast %9 : vector<1x9x8xbf16> to vector<9x8xbf16>
    %cst_10 = arith.constant dense<0.000000e+00> : vector<256x8xf32>
    %11 = tpu.matmul %8, %10, %cst_10 {dimension_numbers = #tpu.dot_dimension_numbers<[1], [0], [0], [1], [0, 0, 1, 1], [], []>} : vector<256x9xbf16>, vector<9x8xbf16>, vector<256x8xf32> -> vector<256x8xf32>
    %12 = arith.addf %6, %11 : vector<256x8xf32>
    %c0_11 = arith.constant 0 : index
    %c32 = arith.constant 32 : index
    %c0_12 = arith.constant 0 : index
    %13 = vector.load %arg1[%c0_11, %c32, %c0_12] : memref<1x288x9xbf16, #tpu.memory_space<vmem>>, vector<1x256x9xbf16>
    %14 = vector.shape_cast %13 : vector<1x256x9xbf16> to vector<256x9xbf16>
    %c2 = arith.constant 2 : index
    %c0_13 = arith.constant 0 : index
    %c0_14 = arith.constant 0 : index
    %15 = vector.load %arg2[%c2, %c0_13, %c0_14] : memref<3x9x8xbf16, #tpu.memory_space<vmem>>, vector<1x9x8xbf16>
    %16 = vector.shape_cast %15 : vector<1x9x8xbf16> to vector<9x8xbf16>
    %cst_15 = arith.constant dense<0.000000e+00> : vector<256x8xf32>
    %17 = tpu.matmul %14, %16, %cst_15 {dimension_numbers = #tpu.dot_dimension_numbers<[1], [0], [0], [1], [0, 0, 1, 1], [], []>} : vector<256x9xbf16>, vector<9x8xbf16>, vector<256x8xf32> -> vector<256x8xf32>
    %18 = arith.addf %12, %17 : vector<256x8xf32>
    %c0_16 = arith.constant 0 : index
    %c0_17 = arith.constant 0 : index
    %19 = vector.load %arg3[%c0_16, %c0_17] : memref<1x8xf32, #tpu.memory_space<vmem>>, vector<1x8xf32>
    %20 = vector.broadcast %19 : vector<1x8xf32> to vector<256x8xf32>
    %21 = arith.addf %18, %20 : vector<256x8xf32>
    %cst_18 = arith.constant 0.000000e+00 : f32
    %22 = vector.broadcast %cst_18 : f32 to vector<256x8xf32>
    %23 = arith.maximumf %21, %22 : vector<256x8xf32>
    %c0_19 = arith.constant 0 : index
    %c0_20 = arith.constant 0 : index
    %c0_21 = arith.constant 0 : index
    %24 = vector.load %arg4[%c0_19, %c0_20, %c0_21] : memref<1x256x8xf32, #tpu.memory_space<vmem>>, vector<1x256x8xf32>
    %25 = vector.shape_cast %24 : vector<1x256x8xf32> to vector<256x8xf32>
    %26 = vector.shape_cast %23 : vector<256x8xf32> to vector<1x256x8xf32>
    tpu.vector_store %arg4[%c0_19, %c0_20, %c0_21], %26 {strides = array<i32>} : memref<1x256x8xf32, #tpu.memory_space<vmem>>, vector<1x256x8xf32>,
    return
  }
  func.func @transform_0(%arg0: i32) -> (i32, i32, i32) {
    %c0_i32 = arith.constant 0 : i32
    %c0_i32_0 = arith.constant 0 : i32
    %c0_i32_1 = arith.constant 0 : i32
    return %arg0, %c0_i32, %c0_i32_0 : i32, i32, i32
  }
  func.func @transform_1(%arg0: i32) -> (i32, i32, i32) {
    %c0_i32 = arith.constant 0 : i32
    %c0_i32_0 = arith.constant 0 : i32
    %c0_i32_1 = arith.constant 0 : i32
    %c0_i32_2 = arith.constant 0 : i32
    return %c0_i32, %c0_i32_0, %c0_i32_1 : i32, i32, i32
  }
  func.func @transform_2(%arg0: i32) -> (i32, i32) {
    %c0_i32 = arith.constant 0 : i32
    %c0_i32_0 = arith.constant 0 : i32
    %c0_i32_1 = arith.constant 0 : i32
    return %c0_i32, %c0_i32_0 : i32, i32
  }
  func.func @transform_3(%arg0: i32) -> (i32, i32, i32) {
    %c0_i32 = arith.constant 0 : i32
    %c0_i32_0 = arith.constant 0 : i32
    %c0_i32_1 = arith.constant 0 : i32
    return %arg0, %c0_i32, %c0_i32_0 : i32, i32, i32
  }
}

module attributes {stable_mosaic.version = 11 : i64} {
  func.func @_conv_bias_relu_kernel(%arg0: i32, %arg1: memref<1x288x24xbf16, #tpu.memory_space<vmem>>, %arg2: memref<3x24x8xbf16, #tpu.memory_space<vmem>>, %arg3: memref<1x8xf32, #tpu.memory_space<vmem>>, %arg4: memref<1x256x8xf32, #tpu.memory_space<vmem>>) attributes {dimension_semantics = [#tpu.dimension_semantics<parallel>], iteration_bounds = array<i64: 2>, scalar_prefetch = 0 : i64, scratch_operands = 0 : i64, tpu.core_type = #tpu.core_type<tc>, window_params = [{transform_indices = @transform_0, window_bounds = array<i64: 1, 288, 24>}, {pipeline_mode = #tpu.pipeline_mode<synchronous>, transform_indices = @transform_1, window_bounds = array<i64: 3, 24, 8>}, {pipeline_mode = #tpu.pipeline_mode<synchronous>, transform_indices = @transform_2, window_bounds = array<i64: 1, 8>}, {transform_indices = @transform_3, window_bounds = array<i64: 1, 256, 8>}]} {
    %cst = arith.constant 0.000000e+00 : f32
    %0 = vector.broadcast %cst : f32 to vector<256x8xf32>
    %c0 = arith.constant 0 : index
    %c0_0 = arith.constant 0 : index
    %c0_1 = arith.constant 0 : index
    %1 = vector.load %arg1[%c0, %c0_0, %c0_1] : memref<1x288x24xbf16, #tpu.memory_space<vmem>>, vector<1x256x24xbf16>
    %2 = vector.shape_cast %1 : vector<1x256x24xbf16> to vector<256x24xbf16>
    %c0_2 = arith.constant 0 : index
    %c0_3 = arith.constant 0 : index
    %c0_4 = arith.constant 0 : index
    %3 = vector.load %arg2[%c0_2, %c0_3, %c0_4] : memref<3x24x8xbf16, #tpu.memory_space<vmem>>, vector<1x24x8xbf16>
    %4 = vector.shape_cast %3 : vector<1x24x8xbf16> to vector<24x8xbf16>
    %cst_5 = arith.constant dense<0.000000e+00> : vector<256x8xf32>
    %5 = tpu.matmul %2, %4, %cst_5 {dimension_numbers = #tpu.dot_dimension_numbers<[1], [0], [0], [1], [0, 0, 1, 1], [], []>} : vector<256x24xbf16>, vector<24x8xbf16>, vector<256x8xf32> -> vector<256x8xf32>
    %6 = arith.addf %0, %5 : vector<256x8xf32>
    %c0_6 = arith.constant 0 : index
    %c16 = arith.constant 16 : index
    %c0_7 = arith.constant 0 : index
    %7 = vector.load %arg1[%c0_6, %c16, %c0_7] : memref<1x288x24xbf16, #tpu.memory_space<vmem>>, vector<1x256x24xbf16>
    %8 = vector.shape_cast %7 : vector<1x256x24xbf16> to vector<256x24xbf16>
    %c1 = arith.constant 1 : index
    %c0_8 = arith.constant 0 : index
    %c0_9 = arith.constant 0 : index
    %9 = vector.load %arg2[%c1, %c0_8, %c0_9] : memref<3x24x8xbf16, #tpu.memory_space<vmem>>, vector<1x24x8xbf16>
    %10 = vector.shape_cast %9 : vector<1x24x8xbf16> to vector<24x8xbf16>
    %cst_10 = arith.constant dense<0.000000e+00> : vector<256x8xf32>
    %11 = tpu.matmul %8, %10, %cst_10 {dimension_numbers = #tpu.dot_dimension_numbers<[1], [0], [0], [1], [0, 0, 1, 1], [], []>} : vector<256x24xbf16>, vector<24x8xbf16>, vector<256x8xf32> -> vector<256x8xf32>
    %12 = arith.addf %6, %11 : vector<256x8xf32>
    %c0_11 = arith.constant 0 : index
    %c32 = arith.constant 32 : index
    %c0_12 = arith.constant 0 : index
    %13 = vector.load %arg1[%c0_11, %c32, %c0_12] : memref<1x288x24xbf16, #tpu.memory_space<vmem>>, vector<1x256x24xbf16>
    %14 = vector.shape_cast %13 : vector<1x256x24xbf16> to vector<256x24xbf16>
    %c2 = arith.constant 2 : index
    %c0_13 = arith.constant 0 : index
    %c0_14 = arith.constant 0 : index
    %15 = vector.load %arg2[%c2, %c0_13, %c0_14] : memref<3x24x8xbf16, #tpu.memory_space<vmem>>, vector<1x24x8xbf16>
    %16 = vector.shape_cast %15 : vector<1x24x8xbf16> to vector<24x8xbf16>
    %cst_15 = arith.constant dense<0.000000e+00> : vector<256x8xf32>
    %17 = tpu.matmul %14, %16, %cst_15 {dimension_numbers = #tpu.dot_dimension_numbers<[1], [0], [0], [1], [0, 0, 1, 1], [], []>} : vector<256x24xbf16>, vector<24x8xbf16>, vector<256x8xf32> -> vector<256x8xf32>
    %18 = arith.addf %12, %17 : vector<256x8xf32>
    %c0_16 = arith.constant 0 : index
    %c0_17 = arith.constant 0 : index
    %19 = vector.load %arg3[%c0_16, %c0_17] : memref<1x8xf32, #tpu.memory_space<vmem>>, vector<1x8xf32>
    %20 = vector.broadcast %19 : vector<1x8xf32> to vector<256x8xf32>
    %21 = arith.addf %18, %20 : vector<256x8xf32>
    %cst_18 = arith.constant 0.000000e+00 : f32
    %22 = vector.broadcast %cst_18 : f32 to vector<256x8xf32>
    %23 = arith.maximumf %21, %22 : vector<256x8xf32>
    %c0_19 = arith.constant 0 : index
    %c0_20 = arith.constant 0 : index
    %c0_21 = arith.constant 0 : index
    %24 = vector.load %arg4[%c0_19, %c0_20, %c0_21] : memref<1x256x8xf32, #tpu.memory_space<vmem>>, vector<1x256x8xf32>
    %25 = vector.shape_cast %24 : vector<1x256x8xf32> to vector<256x8xf32>
    %26 = vector.shape_cast %23 : vector<256x8xf32> to vector<1x256x8xf32>
    tpu.vector_store %arg4[%c0_19, %c0_20, %c0_21], %26 {strides = array<i32>} : memref<1x256x8xf32, #tpu.memory_space<vmem>>, vector<1x256x8xf32>,
    return
  }
  func.func @transform_0(%arg0: i32) -> (i32, i32, i32) {
    %c0_i32 = arith.constant 0 : i32
    %c0_i32_0 = arith.constant 0 : i32
    %c0_i32_1 = arith.constant 0 : i32
    return %arg0, %c0_i32, %c0_i32_0 : i32, i32, i32
  }
  func.func @transform_1(%arg0: i32) -> (i32, i32, i32) {
    %c0_i32 = arith.constant 0 : i32
    %c0_i32_0 = arith.constant 0 : i32
    %c0_i32_1 = arith.constant 0 : i32
    %c0_i32_2 = arith.constant 0 : i32
    return %c0_i32, %c0_i32_0, %c0_i32_1 : i32, i32, i32
  }
  func.func @transform_2(%arg0: i32) -> (i32, i32) {
    %c0_i32 = arith.constant 0 : i32
    %c0_i32_0 = arith.constant 0 : i32
    %c0_i32_1 = arith.constant 0 : i32
    return %c0_i32, %c0_i32_0 : i32, i32
  }
  func.func @transform_3(%arg0: i32) -> (i32, i32, i32) {
    %c0_i32 = arith.constant 0 : i32
    %c0_i32_0 = arith.constant 0 : i32
    %c0_i32_1 = arith.constant 0 : i32
    return %arg0, %c0_i32, %c0_i32_0 : i32, i32, i32
  }
}

module attributes {stable_mosaic.version = 11 : i64} {
  func.func @_maxpool2x2_kernel(%arg0: i32, %arg1: memref<1x8x2x8x16xf32, #tpu.memory_space<vmem>>, %arg2: memref<1x8x8x8xf32, #tpu.memory_space<vmem>>) attributes {dimension_semantics = [#tpu.dimension_semantics<parallel>], iteration_bounds = array<i64: 2>, scalar_prefetch = 0 : i64, scratch_operands = 0 : i64, tpu.core_type = #tpu.core_type<tc>, window_params = [{transform_indices = @transform_0, window_bounds = array<i64: 1, 8, 2, 8, 16>}, {transform_indices = @transform_1, window_bounds = array<i64: 1, 8, 8, 8>}]} {
    %c0 = arith.constant 0 : index
    %c0_0 = arith.constant 0 : index
    %c0_1 = arith.constant 0 : index
    %c0_2 = arith.constant 0 : index
    %c0_3 = arith.constant 0 : index
    %0 = vector.load %arg1[%c0, %c0_0, %c0_1, %c0_2, %c0_3] : memref<1x8x2x8x16xf32, #tpu.memory_space<vmem>>, vector<1x8x1x8x16xf32>
    %1 = vector.shape_cast %0 : vector<1x8x1x8x16xf32> to vector<8x8x16xf32>
    %c0_4 = arith.constant 0 : index
    %c0_5 = arith.constant 0 : index
    %c1 = arith.constant 1 : index
    %c0_6 = arith.constant 0 : index
    %c0_7 = arith.constant 0 : index
    %2 = vector.load %arg1[%c0_4, %c0_5, %c1, %c0_6, %c0_7] : memref<1x8x2x8x16xf32, #tpu.memory_space<vmem>>, vector<1x8x1x8x16xf32>
    %3 = vector.shape_cast %2 : vector<1x8x1x8x16xf32> to vector<8x8x16xf32>
    %4 = arith.maximumf %1, %3 : vector<8x8x16xf32>
    %5 = vector.extract_strided_slice %4 {offsets = [0, 0, 0], sizes = [8, 8, 8], strides = [1, 1, 1]} : vector<8x8x16xf32> to vector<8x8x8xf32>
    %6 = vector.extract_strided_slice %4 {offsets = [0, 0, 8], sizes = [8, 8, 8], strides = [1, 1, 1]} : vector<8x8x16xf32> to vector<8x8x8xf32>
    %7 = arith.maximumf %5, %6 : vector<8x8x8xf32>
    %c0_8 = arith.constant 0 : index
    %c0_9 = arith.constant 0 : index
    %c0_10 = arith.constant 0 : index
    %c0_11 = arith.constant 0 : index
    %8 = vector.load %arg2[%c0_8, %c0_9, %c0_10, %c0_11] : memref<1x8x8x8xf32, #tpu.memory_space<vmem>>, vector<1x8x8x8xf32>
    %9 = vector.shape_cast %8 : vector<1x8x8x8xf32> to vector<8x8x8xf32>
    %10 = vector.shape_cast %7 : vector<8x8x8xf32> to vector<1x8x8x8xf32>
    tpu.vector_store %arg2[%c0_8, %c0_9, %c0_10, %c0_11], %10 {strides = array<i32>} : memref<1x8x8x8xf32, #tpu.memory_space<vmem>>, vector<1x8x8x8xf32>,
    return
  }
  func.func @transform_0(%arg0: i32) -> (i32, i32, i32, i32, i32) {
    %c0_i32 = arith.constant 0 : i32
    %c0_i32_0 = arith.constant 0 : i32
    %c0_i32_1 = arith.constant 0 : i32
    %c0_i32_2 = arith.constant 0 : i32
    %c0_i32_3 = arith.constant 0 : i32
    return %arg0, %c0_i32, %c0_i32_0, %c0_i32_1, %c0_i32_2 : i32, i32, i32, i32, i32
  }
  func.func @transform_1(%arg0: i32) -> (i32, i32, i32, i32) {
    %c0_i32 = arith.constant 0 : i32
    %c0_i32_0 = arith.constant 0 : i32
    %c0_i32_1 = arith.constant 0 : i32
    %c0_i32_2 = arith.constant 0 : i32
    return %arg0, %c0_i32, %c0_i32_0, %c0_i32_1 : i32, i32, i32, i32
  }
}

module attributes {stable_mosaic.version = 11 : i64} {
  func.func @_conv_bias_relu_kernel(%arg0: i32, %arg1: memref<1x80x24xbf16, #tpu.memory_space<vmem>>, %arg2: memref<3x24x16xbf16, #tpu.memory_space<vmem>>, %arg3: memref<1x16xf32, #tpu.memory_space<vmem>>, %arg4: memref<1x64x16xf32, #tpu.memory_space<vmem>>) attributes {dimension_semantics = [#tpu.dimension_semantics<parallel>], iteration_bounds = array<i64: 2>, scalar_prefetch = 0 : i64, scratch_operands = 0 : i64, tpu.core_type = #tpu.core_type<tc>, window_params = [{transform_indices = @transform_0, window_bounds = array<i64: 1, 80, 24>}, {pipeline_mode = #tpu.pipeline_mode<synchronous>, transform_indices = @transform_1, window_bounds = array<i64: 3, 24, 16>}, {pipeline_mode = #tpu.pipeline_mode<synchronous>, transform_indices = @transform_2, window_bounds = array<i64: 1, 16>}, {transform_indices = @transform_3, window_bounds = array<i64: 1, 64, 16>}]} {
    %cst = arith.constant 0.000000e+00 : f32
    %0 = vector.broadcast %cst : f32 to vector<64x16xf32>
    %c0 = arith.constant 0 : index
    %c0_0 = arith.constant 0 : index
    %c0_1 = arith.constant 0 : index
    %1 = vector.load %arg1[%c0, %c0_0, %c0_1] : memref<1x80x24xbf16, #tpu.memory_space<vmem>>, vector<1x64x24xbf16>
    %2 = vector.shape_cast %1 : vector<1x64x24xbf16> to vector<64x24xbf16>
    %c0_2 = arith.constant 0 : index
    %c0_3 = arith.constant 0 : index
    %c0_4 = arith.constant 0 : index
    %3 = vector.load %arg2[%c0_2, %c0_3, %c0_4] : memref<3x24x16xbf16, #tpu.memory_space<vmem>>, vector<1x24x16xbf16>
    %4 = vector.shape_cast %3 : vector<1x24x16xbf16> to vector<24x16xbf16>
    %cst_5 = arith.constant dense<0.000000e+00> : vector<64x16xf32>
    %5 = tpu.matmul %2, %4, %cst_5 {dimension_numbers = #tpu.dot_dimension_numbers<[1], [0], [0], [1], [0, 0, 1, 1], [], []>} : vector<64x24xbf16>, vector<24x16xbf16>, vector<64x16xf32> -> vector<64x16xf32>
    %6 = arith.addf %0, %5 : vector<64x16xf32>
    %c0_6 = arith.constant 0 : index
    %c8 = arith.constant 8 : index
    %c0_7 = arith.constant 0 : index
    %7 = vector.load %arg1[%c0_6, %c8, %c0_7] : memref<1x80x24xbf16, #tpu.memory_space<vmem>>, vector<1x64x24xbf16>
    %8 = vector.shape_cast %7 : vector<1x64x24xbf16> to vector<64x24xbf16>
    %c1 = arith.constant 1 : index
    %c0_8 = arith.constant 0 : index
    %c0_9 = arith.constant 0 : index
    %9 = vector.load %arg2[%c1, %c0_8, %c0_9] : memref<3x24x16xbf16, #tpu.memory_space<vmem>>, vector<1x24x16xbf16>
    %10 = vector.shape_cast %9 : vector<1x24x16xbf16> to vector<24x16xbf16>
    %cst_10 = arith.constant dense<0.000000e+00> : vector<64x16xf32>
    %11 = tpu.matmul %8, %10, %cst_10 {dimension_numbers = #tpu.dot_dimension_numbers<[1], [0], [0], [1], [0, 0, 1, 1], [], []>} : vector<64x24xbf16>, vector<24x16xbf16>, vector<64x16xf32> -> vector<64x16xf32>
    %12 = arith.addf %6, %11 : vector<64x16xf32>
    %c0_11 = arith.constant 0 : index
    %c16 = arith.constant 16 : index
    %c0_12 = arith.constant 0 : index
    %13 = vector.load %arg1[%c0_11, %c16, %c0_12] : memref<1x80x24xbf16, #tpu.memory_space<vmem>>, vector<1x64x24xbf16>
    %14 = vector.shape_cast %13 : vector<1x64x24xbf16> to vector<64x24xbf16>
    %c2 = arith.constant 2 : index
    %c0_13 = arith.constant 0 : index
    %c0_14 = arith.constant 0 : index
    %15 = vector.load %arg2[%c2, %c0_13, %c0_14] : memref<3x24x16xbf16, #tpu.memory_space<vmem>>, vector<1x24x16xbf16>
    %16 = vector.shape_cast %15 : vector<1x24x16xbf16> to vector<24x16xbf16>
    %cst_15 = arith.constant dense<0.000000e+00> : vector<64x16xf32>
    %17 = tpu.matmul %14, %16, %cst_15 {dimension_numbers = #tpu.dot_dimension_numbers<[1], [0], [0], [1], [0, 0, 1, 1], [], []>} : vector<64x24xbf16>, vector<24x16xbf16>, vector<64x16xf32> -> vector<64x16xf32>
    %18 = arith.addf %12, %17 : vector<64x16xf32>
    %c0_16 = arith.constant 0 : index
    %c0_17 = arith.constant 0 : index
    %19 = vector.load %arg3[%c0_16, %c0_17] : memref<1x16xf32, #tpu.memory_space<vmem>>, vector<1x16xf32>
    %20 = vector.broadcast %19 : vector<1x16xf32> to vector<64x16xf32>
    %21 = arith.addf %18, %20 : vector<64x16xf32>
    %cst_18 = arith.constant 0.000000e+00 : f32
    %22 = vector.broadcast %cst_18 : f32 to vector<64x16xf32>
    %23 = arith.maximumf %21, %22 : vector<64x16xf32>
    %c0_19 = arith.constant 0 : index
    %c0_20 = arith.constant 0 : index
    %c0_21 = arith.constant 0 : index
    %24 = vector.load %arg4[%c0_19, %c0_20, %c0_21] : memref<1x64x16xf32, #tpu.memory_space<vmem>>, vector<1x64x16xf32>
    %25 = vector.shape_cast %24 : vector<1x64x16xf32> to vector<64x16xf32>
    %26 = vector.shape_cast %23 : vector<64x16xf32> to vector<1x64x16xf32>
    tpu.vector_store %arg4[%c0_19, %c0_20, %c0_21], %26 {strides = array<i32>} : memref<1x64x16xf32, #tpu.memory_space<vmem>>, vector<1x64x16xf32>,
    return
  }
  func.func @transform_0(%arg0: i32) -> (i32, i32, i32) {
    %c0_i32 = arith.constant 0 : i32
    %c0_i32_0 = arith.constant 0 : i32
    %c0_i32_1 = arith.constant 0 : i32
    return %arg0, %c0_i32, %c0_i32_0 : i32, i32, i32
  }
  func.func @transform_1(%arg0: i32) -> (i32, i32, i32) {
    %c0_i32 = arith.constant 0 : i32
    %c0_i32_0 = arith.constant 0 : i32
    %c0_i32_1 = arith.constant 0 : i32
    %c0_i32_2 = arith.constant 0 : i32
    return %c0_i32, %c0_i32_0, %c0_i32_1 : i32, i32, i32
  }
  func.func @transform_2(%arg0: i32) -> (i32, i32) {
    %c0_i32 = arith.constant 0 : i32
    %c0_i32_0 = arith.constant 0 : i32
    %c0_i32_1 = arith.constant 0 : i32
    return %c0_i32, %c0_i32_0 : i32, i32
  }
  func.func @transform_3(%arg0: i32) -> (i32, i32, i32) {
    %c0_i32 = arith.constant 0 : i32
    %c0_i32_0 = arith.constant 0 : i32
    %c0_i32_1 = arith.constant 0 : i32
    return %arg0, %c0_i32, %c0_i32_0 : i32, i32, i32
  }
}

module attributes {stable_mosaic.version = 11 : i64} {
  func.func @_conv_bias_relu_kernel(%arg0: i32, %arg1: memref<1x80x48xbf16, #tpu.memory_space<vmem>>, %arg2: memref<3x48x16xbf16, #tpu.memory_space<vmem>>, %arg3: memref<1x16xf32, #tpu.memory_space<vmem>>, %arg4: memref<1x64x16xf32, #tpu.memory_space<vmem>>) attributes {dimension_semantics = [#tpu.dimension_semantics<parallel>], iteration_bounds = array<i64: 2>, scalar_prefetch = 0 : i64, scratch_operands = 0 : i64, tpu.core_type = #tpu.core_type<tc>, window_params = [{transform_indices = @transform_0, window_bounds = array<i64: 1, 80, 48>}, {pipeline_mode = #tpu.pipeline_mode<synchronous>, transform_indices = @transform_1, window_bounds = array<i64: 3, 48, 16>}, {pipeline_mode = #tpu.pipeline_mode<synchronous>, transform_indices = @transform_2, window_bounds = array<i64: 1, 16>}, {transform_indices = @transform_3, window_bounds = array<i64: 1, 64, 16>}]} {
    %cst = arith.constant 0.000000e+00 : f32
    %0 = vector.broadcast %cst : f32 to vector<64x16xf32>
    %c0 = arith.constant 0 : index
    %c0_0 = arith.constant 0 : index
    %c0_1 = arith.constant 0 : index
    %1 = vector.load %arg1[%c0, %c0_0, %c0_1] : memref<1x80x48xbf16, #tpu.memory_space<vmem>>, vector<1x64x48xbf16>
    %2 = vector.shape_cast %1 : vector<1x64x48xbf16> to vector<64x48xbf16>
    %c0_2 = arith.constant 0 : index
    %c0_3 = arith.constant 0 : index
    %c0_4 = arith.constant 0 : index
    %3 = vector.load %arg2[%c0_2, %c0_3, %c0_4] : memref<3x48x16xbf16, #tpu.memory_space<vmem>>, vector<1x48x16xbf16>
    %4 = vector.shape_cast %3 : vector<1x48x16xbf16> to vector<48x16xbf16>
    %cst_5 = arith.constant dense<0.000000e+00> : vector<64x16xf32>
    %5 = tpu.matmul %2, %4, %cst_5 {dimension_numbers = #tpu.dot_dimension_numbers<[1], [0], [0], [1], [0, 0, 1, 1], [], []>} : vector<64x48xbf16>, vector<48x16xbf16>, vector<64x16xf32> -> vector<64x16xf32>
    %6 = arith.addf %0, %5 : vector<64x16xf32>
    %c0_6 = arith.constant 0 : index
    %c8 = arith.constant 8 : index
    %c0_7 = arith.constant 0 : index
    %7 = vector.load %arg1[%c0_6, %c8, %c0_7] : memref<1x80x48xbf16, #tpu.memory_space<vmem>>, vector<1x64x48xbf16>
    %8 = vector.shape_cast %7 : vector<1x64x48xbf16> to vector<64x48xbf16>
    %c1 = arith.constant 1 : index
    %c0_8 = arith.constant 0 : index
    %c0_9 = arith.constant 0 : index
    %9 = vector.load %arg2[%c1, %c0_8, %c0_9] : memref<3x48x16xbf16, #tpu.memory_space<vmem>>, vector<1x48x16xbf16>
    %10 = vector.shape_cast %9 : vector<1x48x16xbf16> to vector<48x16xbf16>
    %cst_10 = arith.constant dense<0.000000e+00> : vector<64x16xf32>
    %11 = tpu.matmul %8, %10, %cst_10 {dimension_numbers = #tpu.dot_dimension_numbers<[1], [0], [0], [1], [0, 0, 1, 1], [], []>} : vector<64x48xbf16>, vector<48x16xbf16>, vector<64x16xf32> -> vector<64x16xf32>
    %12 = arith.addf %6, %11 : vector<64x16xf32>
    %c0_11 = arith.constant 0 : index
    %c16 = arith.constant 16 : index
    %c0_12 = arith.constant 0 : index
    %13 = vector.load %arg1[%c0_11, %c16, %c0_12] : memref<1x80x48xbf16, #tpu.memory_space<vmem>>, vector<1x64x48xbf16>
    %14 = vector.shape_cast %13 : vector<1x64x48xbf16> to vector<64x48xbf16>
    %c2 = arith.constant 2 : index
    %c0_13 = arith.constant 0 : index
    %c0_14 = arith.constant 0 : index
    %15 = vector.load %arg2[%c2, %c0_13, %c0_14] : memref<3x48x16xbf16, #tpu.memory_space<vmem>>, vector<1x48x16xbf16>
    %16 = vector.shape_cast %15 : vector<1x48x16xbf16> to vector<48x16xbf16>
    %cst_15 = arith.constant dense<0.000000e+00> : vector<64x16xf32>
    %17 = tpu.matmul %14, %16, %cst_15 {dimension_numbers = #tpu.dot_dimension_numbers<[1], [0], [0], [1], [0, 0, 1, 1], [], []>} : vector<64x48xbf16>, vector<48x16xbf16>, vector<64x16xf32> -> vector<64x16xf32>
    %18 = arith.addf %12, %17 : vector<64x16xf32>
    %c0_16 = arith.constant 0 : index
    %c0_17 = arith.constant 0 : index
    %19 = vector.load %arg3[%c0_16, %c0_17] : memref<1x16xf32, #tpu.memory_space<vmem>>, vector<1x16xf32>
    %20 = vector.broadcast %19 : vector<1x16xf32> to vector<64x16xf32>
    %21 = arith.addf %18, %20 : vector<64x16xf32>
    %cst_18 = arith.constant 0.000000e+00 : f32
    %22 = vector.broadcast %cst_18 : f32 to vector<64x16xf32>
    %23 = arith.maximumf %21, %22 : vector<64x16xf32>
    %c0_19 = arith.constant 0 : index
    %c0_20 = arith.constant 0 : index
    %c0_21 = arith.constant 0 : index
    %24 = vector.load %arg4[%c0_19, %c0_20, %c0_21] : memref<1x64x16xf32, #tpu.memory_space<vmem>>, vector<1x64x16xf32>
    %25 = vector.shape_cast %24 : vector<1x64x16xf32> to vector<64x16xf32>
    %26 = vector.shape_cast %23 : vector<64x16xf32> to vector<1x64x16xf32>
    tpu.vector_store %arg4[%c0_19, %c0_20, %c0_21], %26 {strides = array<i32>} : memref<1x64x16xf32, #tpu.memory_space<vmem>>, vector<1x64x16xf32>,
    return
  }
  func.func @transform_0(%arg0: i32) -> (i32, i32, i32) {
    %c0_i32 = arith.constant 0 : i32
    %c0_i32_0 = arith.constant 0 : i32
    %c0_i32_1 = arith.constant 0 : i32
    return %arg0, %c0_i32, %c0_i32_0 : i32, i32, i32
  }
  func.func @transform_1(%arg0: i32) -> (i32, i32, i32) {
    %c0_i32 = arith.constant 0 : i32
    %c0_i32_0 = arith.constant 0 : i32
    %c0_i32_1 = arith.constant 0 : i32
    %c0_i32_2 = arith.constant 0 : i32
    return %c0_i32, %c0_i32_0, %c0_i32_1 : i32, i32, i32
  }
  func.func @transform_2(%arg0: i32) -> (i32, i32) {
    %c0_i32 = arith.constant 0 : i32
    %c0_i32_0 = arith.constant 0 : i32
    %c0_i32_1 = arith.constant 0 : i32
    return %c0_i32, %c0_i32_0 : i32, i32
  }
  func.func @transform_3(%arg0: i32) -> (i32, i32, i32) {
    %c0_i32 = arith.constant 0 : i32
    %c0_i32_0 = arith.constant 0 : i32
    %c0_i32_1 = arith.constant 0 : i32
    return %arg0, %c0_i32, %c0_i32_0 : i32, i32, i32
  }
}

module attributes {stable_mosaic.version = 11 : i64} {
  func.func @_maxpool2x2_kernel(%arg0: i32, %arg1: memref<1x4x2x4x32xf32, #tpu.memory_space<vmem>>, %arg2: memref<1x4x4x16xf32, #tpu.memory_space<vmem>>) attributes {dimension_semantics = [#tpu.dimension_semantics<parallel>], iteration_bounds = array<i64: 2>, scalar_prefetch = 0 : i64, scratch_operands = 0 : i64, tpu.core_type = #tpu.core_type<tc>, window_params = [{transform_indices = @transform_0, window_bounds = array<i64: 1, 4, 2, 4, 32>}, {transform_indices = @transform_1, window_bounds = array<i64: 1, 4, 4, 16>}]} {
    %c0 = arith.constant 0 : index
    %c0_0 = arith.constant 0 : index
    %c0_1 = arith.constant 0 : index
    %c0_2 = arith.constant 0 : index
    %c0_3 = arith.constant 0 : index
    %0 = vector.load %arg1[%c0, %c0_0, %c0_1, %c0_2, %c0_3] : memref<1x4x2x4x32xf32, #tpu.memory_space<vmem>>, vector<1x4x1x4x32xf32>
    %1 = vector.shape_cast %0 : vector<1x4x1x4x32xf32> to vector<4x4x32xf32>
    %c0_4 = arith.constant 0 : index
    %c0_5 = arith.constant 0 : index
    %c1 = arith.constant 1 : index
    %c0_6 = arith.constant 0 : index
    %c0_7 = arith.constant 0 : index
    %2 = vector.load %arg1[%c0_4, %c0_5, %c1, %c0_6, %c0_7] : memref<1x4x2x4x32xf32, #tpu.memory_space<vmem>>, vector<1x4x1x4x32xf32>
    %3 = vector.shape_cast %2 : vector<1x4x1x4x32xf32> to vector<4x4x32xf32>
    %4 = arith.maximumf %1, %3 : vector<4x4x32xf32>
    %5 = vector.extract_strided_slice %4 {offsets = [0, 0, 0], sizes = [4, 4, 16], strides = [1, 1, 1]} : vector<4x4x32xf32> to vector<4x4x16xf32>
    %6 = vector.extract_strided_slice %4 {offsets = [0, 0, 16], sizes = [4, 4, 16], strides = [1, 1, 1]} : vector<4x4x32xf32> to vector<4x4x16xf32>
    %7 = arith.maximumf %5, %6 : vector<4x4x16xf32>
    %c0_8 = arith.constant 0 : index
    %c0_9 = arith.constant 0 : index
    %c0_10 = arith.constant 0 : index
    %c0_11 = arith.constant 0 : index
    %8 = vector.load %arg2[%c0_8, %c0_9, %c0_10, %c0_11] : memref<1x4x4x16xf32, #tpu.memory_space<vmem>>, vector<1x4x4x16xf32>
    %9 = vector.shape_cast %8 : vector<1x4x4x16xf32> to vector<4x4x16xf32>
    %10 = vector.shape_cast %7 : vector<4x4x16xf32> to vector<1x4x4x16xf32>
    tpu.vector_store %arg2[%c0_8, %c0_9, %c0_10, %c0_11], %10 {strides = array<i32>} : memref<1x4x4x16xf32, #tpu.memory_space<vmem>>, vector<1x4x4x16xf32>,
    return
  }
  func.func @transform_0(%arg0: i32) -> (i32, i32, i32, i32, i32) {
    %c0_i32 = arith.constant 0 : i32
    %c0_i32_0 = arith.constant 0 : i32
    %c0_i32_1 = arith.constant 0 : i32
    %c0_i32_2 = arith.constant 0 : i32
    %c0_i32_3 = arith.constant 0 : i32
    return %arg0, %c0_i32, %c0_i32_0, %c0_i32_1, %c0_i32_2 : i32, i32, i32, i32, i32
  }
  func.func @transform_1(%arg0: i32) -> (i32, i32, i32, i32) {
    %c0_i32 = arith.constant 0 : i32
    %c0_i32_0 = arith.constant 0 : i32
    %c0_i32_1 = arith.constant 0 : i32
    %c0_i32_2 = arith.constant 0 : i32
    return %arg0, %c0_i32, %c0_i32_0, %c0_i32_1 : i32, i32, i32, i32
  }
}

module attributes {stable_mosaic.version = 11 : i64} {
  func.func @_conv_bias_relu_kernel(%arg0: i32, %arg1: memref<1x24x48xbf16, #tpu.memory_space<vmem>>, %arg2: memref<3x48x32xbf16, #tpu.memory_space<vmem>>, %arg3: memref<1x32xf32, #tpu.memory_space<vmem>>, %arg4: memref<1x16x32xf32, #tpu.memory_space<vmem>>) attributes {dimension_semantics = [#tpu.dimension_semantics<parallel>], iteration_bounds = array<i64: 2>, scalar_prefetch = 0 : i64, scratch_operands = 0 : i64, tpu.core_type = #tpu.core_type<tc>, window_params = [{transform_indices = @transform_0, window_bounds = array<i64: 1, 24, 48>}, {pipeline_mode = #tpu.pipeline_mode<synchronous>, transform_indices = @transform_1, window_bounds = array<i64: 3, 48, 32>}, {pipeline_mode = #tpu.pipeline_mode<synchronous>, transform_indices = @transform_2, window_bounds = array<i64: 1, 32>}, {transform_indices = @transform_3, window_bounds = array<i64: 1, 16, 32>}]} {
    %cst = arith.constant 0.000000e+00 : f32
    %0 = vector.broadcast %cst : f32 to vector<16x32xf32>
    %c0 = arith.constant 0 : index
    %c0_0 = arith.constant 0 : index
    %c0_1 = arith.constant 0 : index
    %1 = vector.load %arg1[%c0, %c0_0, %c0_1] : memref<1x24x48xbf16, #tpu.memory_space<vmem>>, vector<1x16x48xbf16>
    %2 = vector.shape_cast %1 : vector<1x16x48xbf16> to vector<16x48xbf16>
    %c0_2 = arith.constant 0 : index
    %c0_3 = arith.constant 0 : index
    %c0_4 = arith.constant 0 : index
    %3 = vector.load %arg2[%c0_2, %c0_3, %c0_4] : memref<3x48x32xbf16, #tpu.memory_space<vmem>>, vector<1x48x32xbf16>
    %4 = vector.shape_cast %3 : vector<1x48x32xbf16> to vector<48x32xbf16>
    %cst_5 = arith.constant dense<0.000000e+00> : vector<16x32xf32>
    %5 = tpu.matmul %2, %4, %cst_5 {dimension_numbers = #tpu.dot_dimension_numbers<[1], [0], [0], [1], [0, 0, 1, 1], [], []>} : vector<16x48xbf16>, vector<48x32xbf16>, vector<16x32xf32> -> vector<16x32xf32>
    %6 = arith.addf %0, %5 : vector<16x32xf32>
    %c0_6 = arith.constant 0 : index
    %c4 = arith.constant 4 : index
    %c0_7 = arith.constant 0 : index
    %7 = vector.load %arg1[%c0_6, %c4, %c0_7] : memref<1x24x48xbf16, #tpu.memory_space<vmem>>, vector<1x16x48xbf16>
    %8 = vector.shape_cast %7 : vector<1x16x48xbf16> to vector<16x48xbf16>
    %c1 = arith.constant 1 : index
    %c0_8 = arith.constant 0 : index
    %c0_9 = arith.constant 0 : index
    %9 = vector.load %arg2[%c1, %c0_8, %c0_9] : memref<3x48x32xbf16, #tpu.memory_space<vmem>>, vector<1x48x32xbf16>
    %10 = vector.shape_cast %9 : vector<1x48x32xbf16> to vector<48x32xbf16>
    %cst_10 = arith.constant dense<0.000000e+00> : vector<16x32xf32>
    %11 = tpu.matmul %8, %10, %cst_10 {dimension_numbers = #tpu.dot_dimension_numbers<[1], [0], [0], [1], [0, 0, 1, 1], [], []>} : vector<16x48xbf16>, vector<48x32xbf16>, vector<16x32xf32> -> vector<16x32xf32>
    %12 = arith.addf %6, %11 : vector<16x32xf32>
    %c0_11 = arith.constant 0 : index
    %c8 = arith.constant 8 : index
    %c0_12 = arith.constant 0 : index
    %13 = vector.load %arg1[%c0_11, %c8, %c0_12] : memref<1x24x48xbf16, #tpu.memory_space<vmem>>, vector<1x16x48xbf16>
    %14 = vector.shape_cast %13 : vector<1x16x48xbf16> to vector<16x48xbf16>
    %c2 = arith.constant 2 : index
    %c0_13 = arith.constant 0 : index
    %c0_14 = arith.constant 0 : index
    %15 = vector.load %arg2[%c2, %c0_13, %c0_14] : memref<3x48x32xbf16, #tpu.memory_space<vmem>>, vector<1x48x32xbf16>
    %16 = vector.shape_cast %15 : vector<1x48x32xbf16> to vector<48x32xbf16>
    %cst_15 = arith.constant dense<0.000000e+00> : vector<16x32xf32>
    %17 = tpu.matmul %14, %16, %cst_15 {dimension_numbers = #tpu.dot_dimension_numbers<[1], [0], [0], [1], [0, 0, 1, 1], [], []>} : vector<16x48xbf16>, vector<48x32xbf16>, vector<16x32xf32> -> vector<16x32xf32>
    %18 = arith.addf %12, %17 : vector<16x32xf32>
    %c0_16 = arith.constant 0 : index
    %c0_17 = arith.constant 0 : index
    %19 = vector.load %arg3[%c0_16, %c0_17] : memref<1x32xf32, #tpu.memory_space<vmem>>, vector<1x32xf32>
    %20 = vector.broadcast %19 : vector<1x32xf32> to vector<16x32xf32>
    %21 = arith.addf %18, %20 : vector<16x32xf32>
    %cst_18 = arith.constant 0.000000e+00 : f32
    %22 = vector.broadcast %cst_18 : f32 to vector<16x32xf32>
    %23 = arith.maximumf %21, %22 : vector<16x32xf32>
    %c0_19 = arith.constant 0 : index
    %c0_20 = arith.constant 0 : index
    %c0_21 = arith.constant 0 : index
    %24 = vector.load %arg4[%c0_19, %c0_20, %c0_21] : memref<1x16x32xf32, #tpu.memory_space<vmem>>, vector<1x16x32xf32>
    %25 = vector.shape_cast %24 : vector<1x16x32xf32> to vector<16x32xf32>
    %26 = vector.shape_cast %23 : vector<16x32xf32> to vector<1x16x32xf32>
    tpu.vector_store %arg4[%c0_19, %c0_20, %c0_21], %26 {strides = array<i32>} : memref<1x16x32xf32, #tpu.memory_space<vmem>>, vector<1x16x32xf32>,
    return
  }
  func.func @transform_0(%arg0: i32) -> (i32, i32, i32) {
    %c0_i32 = arith.constant 0 : i32
    %c0_i32_0 = arith.constant 0 : i32
    %c0_i32_1 = arith.constant 0 : i32
    return %arg0, %c0_i32, %c0_i32_0 : i32, i32, i32
  }
  func.func @transform_1(%arg0: i32) -> (i32, i32, i32) {
    %c0_i32 = arith.constant 0 : i32
    %c0_i32_0 = arith.constant 0 : i32
    %c0_i32_1 = arith.constant 0 : i32
    %c0_i32_2 = arith.constant 0 : i32
    return %c0_i32, %c0_i32_0, %c0_i32_1 : i32, i32, i32
  }
  func.func @transform_2(%arg0: i32) -> (i32, i32) {
    %c0_i32 = arith.constant 0 : i32
    %c0_i32_0 = arith.constant 0 : i32
    %c0_i32_1 = arith.constant 0 : i32
    return %c0_i32, %c0_i32_0 : i32, i32
  }
  func.func @transform_3(%arg0: i32) -> (i32, i32, i32) {
    %c0_i32 = arith.constant 0 : i32
    %c0_i32_0 = arith.constant 0 : i32
    %c0_i32_1 = arith.constant 0 : i32
    return %arg0, %c0_i32, %c0_i32_0 : i32, i32, i32
  }
}

module attributes {stable_mosaic.version = 11 : i64} {
  func.func @_conv_bias_relu_kernel(%arg0: i32, %arg1: memref<1x24x96xbf16, #tpu.memory_space<vmem>>, %arg2: memref<3x96x32xbf16, #tpu.memory_space<vmem>>, %arg3: memref<1x32xf32, #tpu.memory_space<vmem>>, %arg4: memref<1x16x32xf32, #tpu.memory_space<vmem>>) attributes {dimension_semantics = [#tpu.dimension_semantics<parallel>], iteration_bounds = array<i64: 2>, scalar_prefetch = 0 : i64, scratch_operands = 0 : i64, tpu.core_type = #tpu.core_type<tc>, window_params = [{transform_indices = @transform_0, window_bounds = array<i64: 1, 24, 96>}, {pipeline_mode = #tpu.pipeline_mode<synchronous>, transform_indices = @transform_1, window_bounds = array<i64: 3, 96, 32>}, {pipeline_mode = #tpu.pipeline_mode<synchronous>, transform_indices = @transform_2, window_bounds = array<i64: 1, 32>}, {transform_indices = @transform_3, window_bounds = array<i64: 1, 16, 32>}]} {
    %cst = arith.constant 0.000000e+00 : f32
    %0 = vector.broadcast %cst : f32 to vector<16x32xf32>
    %c0 = arith.constant 0 : index
    %c0_0 = arith.constant 0 : index
    %c0_1 = arith.constant 0 : index
    %1 = vector.load %arg1[%c0, %c0_0, %c0_1] : memref<1x24x96xbf16, #tpu.memory_space<vmem>>, vector<1x16x96xbf16>
    %2 = vector.shape_cast %1 : vector<1x16x96xbf16> to vector<16x96xbf16>
    %c0_2 = arith.constant 0 : index
    %c0_3 = arith.constant 0 : index
    %c0_4 = arith.constant 0 : index
    %3 = vector.load %arg2[%c0_2, %c0_3, %c0_4] : memref<3x96x32xbf16, #tpu.memory_space<vmem>>, vector<1x96x32xbf16>
    %4 = vector.shape_cast %3 : vector<1x96x32xbf16> to vector<96x32xbf16>
    %cst_5 = arith.constant dense<0.000000e+00> : vector<16x32xf32>
    %5 = tpu.matmul %2, %4, %cst_5 {dimension_numbers = #tpu.dot_dimension_numbers<[1], [0], [0], [1], [0, 0, 1, 1], [], []>} : vector<16x96xbf16>, vector<96x32xbf16>, vector<16x32xf32> -> vector<16x32xf32>
    %6 = arith.addf %0, %5 : vector<16x32xf32>
    %c0_6 = arith.constant 0 : index
    %c4 = arith.constant 4 : index
    %c0_7 = arith.constant 0 : index
    %7 = vector.load %arg1[%c0_6, %c4, %c0_7] : memref<1x24x96xbf16, #tpu.memory_space<vmem>>, vector<1x16x96xbf16>
    %8 = vector.shape_cast %7 : vector<1x16x96xbf16> to vector<16x96xbf16>
    %c1 = arith.constant 1 : index
    %c0_8 = arith.constant 0 : index
    %c0_9 = arith.constant 0 : index
    %9 = vector.load %arg2[%c1, %c0_8, %c0_9] : memref<3x96x32xbf16, #tpu.memory_space<vmem>>, vector<1x96x32xbf16>
    %10 = vector.shape_cast %9 : vector<1x96x32xbf16> to vector<96x32xbf16>
    %cst_10 = arith.constant dense<0.000000e+00> : vector<16x32xf32>
    %11 = tpu.matmul %8, %10, %cst_10 {dimension_numbers = #tpu.dot_dimension_numbers<[1], [0], [0], [1], [0, 0, 1, 1], [], []>} : vector<16x96xbf16>, vector<96x32xbf16>, vector<16x32xf32> -> vector<16x32xf32>
    %12 = arith.addf %6, %11 : vector<16x32xf32>
    %c0_11 = arith.constant 0 : index
    %c8 = arith.constant 8 : index
    %c0_12 = arith.constant 0 : index
    %13 = vector.load %arg1[%c0_11, %c8, %c0_12] : memref<1x24x96xbf16, #tpu.memory_space<vmem>>, vector<1x16x96xbf16>
    %14 = vector.shape_cast %13 : vector<1x16x96xbf16> to vector<16x96xbf16>
    %c2 = arith.constant 2 : index
    %c0_13 = arith.constant 0 : index
    %c0_14 = arith.constant 0 : index
    %15 = vector.load %arg2[%c2, %c0_13, %c0_14] : memref<3x96x32xbf16, #tpu.memory_space<vmem>>, vector<1x96x32xbf16>
    %16 = vector.shape_cast %15 : vector<1x96x32xbf16> to vector<96x32xbf16>
    %cst_15 = arith.constant dense<0.000000e+00> : vector<16x32xf32>
    %17 = tpu.matmul %14, %16, %cst_15 {dimension_numbers = #tpu.dot_dimension_numbers<[1], [0], [0], [1], [0, 0, 1, 1], [], []>} : vector<16x96xbf16>, vector<96x32xbf16>, vector<16x32xf32> -> vector<16x32xf32>
    %18 = arith.addf %12, %17 : vector<16x32xf32>
    %c0_16 = arith.constant 0 : index
    %c0_17 = arith.constant 0 : index
    %19 = vector.load %arg3[%c0_16, %c0_17] : memref<1x32xf32, #tpu.memory_space<vmem>>, vector<1x32xf32>
    %20 = vector.broadcast %19 : vector<1x32xf32> to vector<16x32xf32>
    %21 = arith.addf %18, %20 : vector<16x32xf32>
    %cst_18 = arith.constant 0.000000e+00 : f32
    %22 = vector.broadcast %cst_18 : f32 to vector<16x32xf32>
    %23 = arith.maximumf %21, %22 : vector<16x32xf32>
    %c0_19 = arith.constant 0 : index
    %c0_20 = arith.constant 0 : index
    %c0_21 = arith.constant 0 : index
    %24 = vector.load %arg4[%c0_19, %c0_20, %c0_21] : memref<1x16x32xf32, #tpu.memory_space<vmem>>, vector<1x16x32xf32>
    %25 = vector.shape_cast %24 : vector<1x16x32xf32> to vector<16x32xf32>
    %26 = vector.shape_cast %23 : vector<16x32xf32> to vector<1x16x32xf32>
    tpu.vector_store %arg4[%c0_19, %c0_20, %c0_21], %26 {strides = array<i32>} : memref<1x16x32xf32, #tpu.memory_space<vmem>>, vector<1x16x32xf32>,
    return
  }
  func.func @transform_0(%arg0: i32) -> (i32, i32, i32) {
    %c0_i32 = arith.constant 0 : i32
    %c0_i32_0 = arith.constant 0 : i32
    %c0_i32_1 = arith.constant 0 : i32
    return %arg0, %c0_i32, %c0_i32_0 : i32, i32, i32
  }
  func.func @transform_1(%arg0: i32) -> (i32, i32, i32) {
    %c0_i32 = arith.constant 0 : i32
    %c0_i32_0 = arith.constant 0 : i32
    %c0_i32_1 = arith.constant 0 : i32
    %c0_i32_2 = arith.constant 0 : i32
    return %c0_i32, %c0_i32_0, %c0_i32_1 : i32, i32, i32
  }
  func.func @transform_2(%arg0: i32) -> (i32, i32) {
    %c0_i32 = arith.constant 0 : i32
    %c0_i32_0 = arith.constant 0 : i32
    %c0_i32_1 = arith.constant 0 : i32
    return %c0_i32, %c0_i32_0 : i32, i32
  }
  func.func @transform_3(%arg0: i32) -> (i32, i32, i32) {
    %c0_i32 = arith.constant 0 : i32
    %c0_i32_0 = arith.constant 0 : i32
    %c0_i32_1 = arith.constant 0 : i32
    return %arg0, %c0_i32, %c0_i32_0 : i32, i32, i32
  }
}

module attributes {stable_mosaic.version = 11 : i64} {
  func.func @_maxpool2x2_kernel(%arg0: i32, %arg1: memref<1x2x2x2x64xf32, #tpu.memory_space<vmem>>, %arg2: memref<1x2x2x32xf32, #tpu.memory_space<vmem>>) attributes {dimension_semantics = [#tpu.dimension_semantics<parallel>], iteration_bounds = array<i64: 2>, scalar_prefetch = 0 : i64, scratch_operands = 0 : i64, tpu.core_type = #tpu.core_type<tc>, window_params = [{transform_indices = @transform_0, window_bounds = array<i64: 1, 2, 2, 2, 64>}, {transform_indices = @transform_1, window_bounds = array<i64: 1, 2, 2, 32>}]} {
    %c0 = arith.constant 0 : index
    %c0_0 = arith.constant 0 : index
    %c0_1 = arith.constant 0 : index
    %c0_2 = arith.constant 0 : index
    %c0_3 = arith.constant 0 : index
    %0 = vector.load %arg1[%c0, %c0_0, %c0_1, %c0_2, %c0_3] : memref<1x2x2x2x64xf32, #tpu.memory_space<vmem>>, vector<1x2x1x2x64xf32>
    %1 = vector.shape_cast %0 : vector<1x2x1x2x64xf32> to vector<2x2x64xf32>
    %c0_4 = arith.constant 0 : index
    %c0_5 = arith.constant 0 : index
    %c1 = arith.constant 1 : index
    %c0_6 = arith.constant 0 : index
    %c0_7 = arith.constant 0 : index
    %2 = vector.load %arg1[%c0_4, %c0_5, %c1, %c0_6, %c0_7] : memref<1x2x2x2x64xf32, #tpu.memory_space<vmem>>, vector<1x2x1x2x64xf32>
    %3 = vector.shape_cast %2 : vector<1x2x1x2x64xf32> to vector<2x2x64xf32>
    %4 = arith.maximumf %1, %3 : vector<2x2x64xf32>
    %5 = vector.extract_strided_slice %4 {offsets = [0, 0, 0], sizes = [2, 2, 32], strides = [1, 1, 1]} : vector<2x2x64xf32> to vector<2x2x32xf32>
    %6 = vector.extract_strided_slice %4 {offsets = [0, 0, 32], sizes = [2, 2, 32], strides = [1, 1, 1]} : vector<2x2x64xf32> to vector<2x2x32xf32>
    %7 = arith.maximumf %5, %6 : vector<2x2x32xf32>
    %c0_8 = arith.constant 0 : index
    %c0_9 = arith.constant 0 : index
    %c0_10 = arith.constant 0 : index
    %c0_11 = arith.constant 0 : index
    %8 = vector.load %arg2[%c0_8, %c0_9, %c0_10, %c0_11] : memref<1x2x2x32xf32, #tpu.memory_space<vmem>>, vector<1x2x2x32xf32>
    %9 = vector.shape_cast %8 : vector<1x2x2x32xf32> to vector<2x2x32xf32>
    %10 = vector.shape_cast %7 : vector<2x2x32xf32> to vector<1x2x2x32xf32>
    tpu.vector_store %arg2[%c0_8, %c0_9, %c0_10, %c0_11], %10 {strides = array<i32>} : memref<1x2x2x32xf32, #tpu.memory_space<vmem>>, vector<1x2x2x32xf32>,
    return
  }
  func.func @transform_0(%arg0: i32) -> (i32, i32, i32, i32, i32) {
    %c0_i32 = arith.constant 0 : i32
    %c0_i32_0 = arith.constant 0 : i32
    %c0_i32_1 = arith.constant 0 : i32
    %c0_i32_2 = arith.constant 0 : i32
    %c0_i32_3 = arith.constant 0 : i32
    return %arg0, %c0_i32, %c0_i32_0, %c0_i32_1, %c0_i32_2 : i32, i32, i32, i32, i32
  }
  func.func @transform_1(%arg0: i32) -> (i32, i32, i32, i32) {
    %c0_i32 = arith.constant 0 : i32
    %c0_i32_0 = arith.constant 0 : i32
    %c0_i32_1 = arith.constant 0 : i32
    %c0_i32_2 = arith.constant 0 : i32
    return %arg0, %c0_i32, %c0_i32_0, %c0_i32_1 : i32, i32, i32, i32
  }
}

module attributes {stable_mosaic.version = 11 : i64} {
  func.func @_conv_bias_relu_kernel(%arg0: i32, %arg1: memref<1x8x192xbf16, #tpu.memory_space<vmem>>, %arg2: memref<3x192x64xbf16, #tpu.memory_space<vmem>>, %arg3: memref<1x64xf32, #tpu.memory_space<vmem>>, %arg4: memref<1x4x64xf32, #tpu.memory_space<vmem>>) attributes {dimension_semantics = [#tpu.dimension_semantics<parallel>], iteration_bounds = array<i64: 2>, scalar_prefetch = 0 : i64, scratch_operands = 0 : i64, tpu.core_type = #tpu.core_type<tc>, window_params = [{transform_indices = @transform_0, window_bounds = array<i64: 1, 8, 192>}, {pipeline_mode = #tpu.pipeline_mode<synchronous>, transform_indices = @transform_1, window_bounds = array<i64: 3, 192, 64>}, {pipeline_mode = #tpu.pipeline_mode<synchronous>, transform_indices = @transform_2, window_bounds = array<i64: 1, 64>}, {transform_indices = @transform_3, window_bounds = array<i64: 1, 4, 64>}]} {
    %cst = arith.constant 0.000000e+00 : f32
    %0 = vector.broadcast %cst : f32 to vector<4x64xf32>
    %c0 = arith.constant 0 : index
    %c0_0 = arith.constant 0 : index
    %c0_1 = arith.constant 0 : index
    %1 = vector.load %arg1[%c0, %c0_0, %c0_1] : memref<1x8x192xbf16, #tpu.memory_space<vmem>>, vector<1x4x192xbf16>
    %2 = vector.shape_cast %1 : vector<1x4x192xbf16> to vector<4x192xbf16>
    %c0_2 = arith.constant 0 : index
    %c0_3 = arith.constant 0 : index
    %c0_4 = arith.constant 0 : index
    %3 = vector.load %arg2[%c0_2, %c0_3, %c0_4] : memref<3x192x64xbf16, #tpu.memory_space<vmem>>, vector<1x192x64xbf16>
    %4 = vector.shape_cast %3 : vector<1x192x64xbf16> to vector<192x64xbf16>
    %cst_5 = arith.constant dense<0.000000e+00> : vector<4x64xf32>
    %5 = tpu.matmul %2, %4, %cst_5 {dimension_numbers = #tpu.dot_dimension_numbers<[1], [0], [0], [1], [0, 0, 1, 1], [], []>} : vector<4x192xbf16>, vector<192x64xbf16>, vector<4x64xf32> -> vector<4x64xf32>
    %6 = arith.addf %0, %5 : vector<4x64xf32>
    %c0_6 = arith.constant 0 : index
    %c2 = arith.constant 2 : index
    %c0_7 = arith.constant 0 : index
    %7 = vector.load %arg1[%c0_6, %c2, %c0_7] : memref<1x8x192xbf16, #tpu.memory_space<vmem>>, vector<1x4x192xbf16>
    %8 = vector.shape_cast %7 : vector<1x4x192xbf16> to vector<4x192xbf16>
    %c1 = arith.constant 1 : index
    %c0_8 = arith.constant 0 : index
    %c0_9 = arith.constant 0 : index
    %9 = vector.load %arg2[%c1, %c0_8, %c0_9] : memref<3x192x64xbf16, #tpu.memory_space<vmem>>, vector<1x192x64xbf16>
    %10 = vector.shape_cast %9 : vector<1x192x64xbf16> to vector<192x64xbf16>
    %cst_10 = arith.constant dense<0.000000e+00> : vector<4x64xf32>
    %11 = tpu.matmul %8, %10, %cst_10 {dimension_numbers = #tpu.dot_dimension_numbers<[1], [0], [0], [1], [0, 0, 1, 1], [], []>} : vector<4x192xbf16>, vector<192x64xbf16>, vector<4x64xf32> -> vector<4x64xf32>
    %12 = arith.addf %6, %11 : vector<4x64xf32>
    %c0_11 = arith.constant 0 : index
    %c4 = arith.constant 4 : index
    %c0_12 = arith.constant 0 : index
    %13 = vector.load %arg1[%c0_11, %c4, %c0_12] : memref<1x8x192xbf16, #tpu.memory_space<vmem>>, vector<1x4x192xbf16>
    %14 = vector.shape_cast %13 : vector<1x4x192xbf16> to vector<4x192xbf16>
    %c2_13 = arith.constant 2 : index
    %c0_14 = arith.constant 0 : index
    %c0_15 = arith.constant 0 : index
    %15 = vector.load %arg2[%c2_13, %c0_14, %c0_15] : memref<3x192x64xbf16, #tpu.memory_space<vmem>>, vector<1x192x64xbf16>
    %16 = vector.shape_cast %15 : vector<1x192x64xbf16> to vector<192x64xbf16>
    %cst_16 = arith.constant dense<0.000000e+00> : vector<4x64xf32>
    %17 = tpu.matmul %14, %16, %cst_16 {dimension_numbers = #tpu.dot_dimension_numbers<[1], [0], [0], [1], [0, 0, 1, 1], [], []>} : vector<4x192xbf16>, vector<192x64xbf16>, vector<4x64xf32> -> vector<4x64xf32>
    %18 = arith.addf %12, %17 : vector<4x64xf32>
    %c0_17 = arith.constant 0 : index
    %c0_18 = arith.constant 0 : index
    %19 = vector.load %arg3[%c0_17, %c0_18] : memref<1x64xf32, #tpu.memory_space<vmem>>, vector<1x64xf32>
    %20 = vector.broadcast %19 : vector<1x64xf32> to vector<4x64xf32>
    %21 = arith.addf %18, %20 : vector<4x64xf32>
    %cst_19 = arith.constant 0.000000e+00 : f32
    %22 = vector.broadcast %cst_19 : f32 to vector<4x64xf32>
    %23 = arith.maximumf %21, %22 : vector<4x64xf32>
    %c0_20 = arith.constant 0 : index
    %c0_21 = arith.constant 0 : index
    %c0_22 = arith.constant 0 : index
    %24 = vector.load %arg4[%c0_20, %c0_21, %c0_22] : memref<1x4x64xf32, #tpu.memory_space<vmem>>, vector<1x4x64xf32>
    %25 = vector.shape_cast %24 : vector<1x4x64xf32> to vector<4x64xf32>
    %26 = vector.shape_cast %23 : vector<4x64xf32> to vector<1x4x64xf32>
    tpu.vector_store %arg4[%c0_20, %c0_21, %c0_22], %26 {strides = array<i32>} : memref<1x4x64xf32, #tpu.memory_space<vmem>>, vector<1x4x64xf32>,
    return
  }
  func.func @transform_0(%arg0: i32) -> (i32, i32, i32) {
    %c0_i32 = arith.constant 0 : i32
    %c0_i32_0 = arith.constant 0 : i32
    %c0_i32_1 = arith.constant 0 : i32
    return %arg0, %c0_i32, %c0_i32_0 : i32, i32, i32
  }
  func.func @transform_1(%arg0: i32) -> (i32, i32, i32) {
    %c0_i32 = arith.constant 0 : i32
    %c0_i32_0 = arith.constant 0 : i32
    %c0_i32_1 = arith.constant 0 : i32
    %c0_i32_2 = arith.constant 0 : i32
    return %c0_i32, %c0_i32_0, %c0_i32_1 : i32, i32, i32
  }
  func.func @transform_2(%arg0: i32) -> (i32, i32) {
    %c0_i32 = arith.constant 0 : i32
    %c0_i32_0 = arith.constant 0 : i32
    %c0_i32_1 = arith.constant 0 : i32
    return %c0_i32, %c0_i32_0 : i32, i32
  }
  func.func @transform_3(%arg0: i32) -> (i32, i32, i32) {
    %c0_i32 = arith.constant 0 : i32
    %c0_i32_0 = arith.constant 0 : i32
    %c0_i32_1 = arith.constant 0 : i32
    return %arg0, %c0_i32, %c0_i32_0 : i32, i32, i32
  }
}

module attributes {stable_mosaic.version = 11 : i64} {
  func.func @_conv_bias_relu_kernel(%arg0: i32, %arg1: memref<1x8x96xbf16, #tpu.memory_space<vmem>>, %arg2: memref<3x96x64xbf16, #tpu.memory_space<vmem>>, %arg3: memref<1x64xf32, #tpu.memory_space<vmem>>, %arg4: memref<1x4x64xf32, #tpu.memory_space<vmem>>) attributes {dimension_semantics = [#tpu.dimension_semantics<parallel>], iteration_bounds = array<i64: 2>, scalar_prefetch = 0 : i64, scratch_operands = 0 : i64, tpu.core_type = #tpu.core_type<tc>, window_params = [{transform_indices = @transform_0, window_bounds = array<i64: 1, 8, 96>}, {pipeline_mode = #tpu.pipeline_mode<synchronous>, transform_indices = @transform_1, window_bounds = array<i64: 3, 96, 64>}, {pipeline_mode = #tpu.pipeline_mode<synchronous>, transform_indices = @transform_2, window_bounds = array<i64: 1, 64>}, {transform_indices = @transform_3, window_bounds = array<i64: 1, 4, 64>}]} {
    %cst = arith.constant 0.000000e+00 : f32
    %0 = vector.broadcast %cst : f32 to vector<4x64xf32>
    %c0 = arith.constant 0 : index
    %c0_0 = arith.constant 0 : index
    %c0_1 = arith.constant 0 : index
    %1 = vector.load %arg1[%c0, %c0_0, %c0_1] : memref<1x8x96xbf16, #tpu.memory_space<vmem>>, vector<1x4x96xbf16>
    %2 = vector.shape_cast %1 : vector<1x4x96xbf16> to vector<4x96xbf16>
    %c0_2 = arith.constant 0 : index
    %c0_3 = arith.constant 0 : index
    %c0_4 = arith.constant 0 : index
    %3 = vector.load %arg2[%c0_2, %c0_3, %c0_4] : memref<3x96x64xbf16, #tpu.memory_space<vmem>>, vector<1x96x64xbf16>
    %4 = vector.shape_cast %3 : vector<1x96x64xbf16> to vector<96x64xbf16>
    %cst_5 = arith.constant dense<0.000000e+00> : vector<4x64xf32>
    %5 = tpu.matmul %2, %4, %cst_5 {dimension_numbers = #tpu.dot_dimension_numbers<[1], [0], [0], [1], [0, 0, 1, 1], [], []>} : vector<4x96xbf16>, vector<96x64xbf16>, vector<4x64xf32> -> vector<4x64xf32>
    %6 = arith.addf %0, %5 : vector<4x64xf32>
    %c0_6 = arith.constant 0 : index
    %c2 = arith.constant 2 : index
    %c0_7 = arith.constant 0 : index
    %7 = vector.load %arg1[%c0_6, %c2, %c0_7] : memref<1x8x96xbf16, #tpu.memory_space<vmem>>, vector<1x4x96xbf16>
    %8 = vector.shape_cast %7 : vector<1x4x96xbf16> to vector<4x96xbf16>
    %c1 = arith.constant 1 : index
    %c0_8 = arith.constant 0 : index
    %c0_9 = arith.constant 0 : index
    %9 = vector.load %arg2[%c1, %c0_8, %c0_9] : memref<3x96x64xbf16, #tpu.memory_space<vmem>>, vector<1x96x64xbf16>
    %10 = vector.shape_cast %9 : vector<1x96x64xbf16> to vector<96x64xbf16>
    %cst_10 = arith.constant dense<0.000000e+00> : vector<4x64xf32>
    %11 = tpu.matmul %8, %10, %cst_10 {dimension_numbers = #tpu.dot_dimension_numbers<[1], [0], [0], [1], [0, 0, 1, 1], [], []>} : vector<4x96xbf16>, vector<96x64xbf16>, vector<4x64xf32> -> vector<4x64xf32>
    %12 = arith.addf %6, %11 : vector<4x64xf32>
    %c0_11 = arith.constant 0 : index
    %c4 = arith.constant 4 : index
    %c0_12 = arith.constant 0 : index
    %13 = vector.load %arg1[%c0_11, %c4, %c0_12] : memref<1x8x96xbf16, #tpu.memory_space<vmem>>, vector<1x4x96xbf16>
    %14 = vector.shape_cast %13 : vector<1x4x96xbf16> to vector<4x96xbf16>
    %c2_13 = arith.constant 2 : index
    %c0_14 = arith.constant 0 : index
    %c0_15 = arith.constant 0 : index
    %15 = vector.load %arg2[%c2_13, %c0_14, %c0_15] : memref<3x96x64xbf16, #tpu.memory_space<vmem>>, vector<1x96x64xbf16>
    %16 = vector.shape_cast %15 : vector<1x96x64xbf16> to vector<96x64xbf16>
    %cst_16 = arith.constant dense<0.000000e+00> : vector<4x64xf32>
    %17 = tpu.matmul %14, %16, %cst_16 {dimension_numbers = #tpu.dot_dimension_numbers<[1], [0], [0], [1], [0, 0, 1, 1], [], []>} : vector<4x96xbf16>, vector<96x64xbf16>, vector<4x64xf32> -> vector<4x64xf32>
    %18 = arith.addf %12, %17 : vector<4x64xf32>
    %c0_17 = arith.constant 0 : index
    %c0_18 = arith.constant 0 : index
    %19 = vector.load %arg3[%c0_17, %c0_18] : memref<1x64xf32, #tpu.memory_space<vmem>>, vector<1x64xf32>
    %20 = vector.broadcast %19 : vector<1x64xf32> to vector<4x64xf32>
    %21 = arith.addf %18, %20 : vector<4x64xf32>
    %cst_19 = arith.constant 0.000000e+00 : f32
    %22 = vector.broadcast %cst_19 : f32 to vector<4x64xf32>
    %23 = arith.maximumf %21, %22 : vector<4x64xf32>
    %c0_20 = arith.constant 0 : index
    %c0_21 = arith.constant 0 : index
    %c0_22 = arith.constant 0 : index
    %24 = vector.load %arg4[%c0_20, %c0_21, %c0_22] : memref<1x4x64xf32, #tpu.memory_space<vmem>>, vector<1x4x64xf32>
    %25 = vector.shape_cast %24 : vector<1x4x64xf32> to vector<4x64xf32>
    %26 = vector.shape_cast %23 : vector<4x64xf32> to vector<1x4x64xf32>
    tpu.vector_store %arg4[%c0_20, %c0_21, %c0_22], %26 {strides = array<i32>} : memref<1x4x64xf32, #tpu.memory_space<vmem>>, vector<1x4x64xf32>,
    return
  }
  func.func @transform_0(%arg0: i32) -> (i32, i32, i32) {
    %c0_i32 = arith.constant 0 : i32
    %c0_i32_0 = arith.constant 0 : i32
    %c0_i32_1 = arith.constant 0 : i32
    return %arg0, %c0_i32, %c0_i32_0 : i32, i32, i32
  }
  func.func @transform_1(%arg0: i32) -> (i32, i32, i32) {
    %c0_i32 = arith.constant 0 : i32
    %c0_i32_0 = arith.constant 0 : i32
    %c0_i32_1 = arith.constant 0 : i32
    %c0_i32_2 = arith.constant 0 : i32
    return %c0_i32, %c0_i32_0, %c0_i32_1 : i32, i32, i32
  }
  func.func @transform_2(%arg0: i32) -> (i32, i32) {
    %c0_i32 = arith.constant 0 : i32
    %c0_i32_0 = arith.constant 0 : i32
    %c0_i32_1 = arith.constant 0 : i32
    return %c0_i32, %c0_i32_0 : i32, i32
  }
  func.func @transform_3(%arg0: i32) -> (i32, i32, i32) {
    %c0_i32 = arith.constant 0 : i32
    %c0_i32_0 = arith.constant 0 : i32
    %c0_i32_1 = arith.constant 0 : i32
    return %arg0, %c0_i32, %c0_i32_0 : i32, i32, i32
  }
}

module attributes {stable_mosaic.version = 11 : i64} {
  func.func @_conv_bias_relu_kernel(%arg0: i32, %arg1: memref<1x8x192xbf16, #tpu.memory_space<vmem>>, %arg2: memref<3x192x64xbf16, #tpu.memory_space<vmem>>, %arg3: memref<1x64xf32, #tpu.memory_space<vmem>>, %arg4: memref<1x4x64xf32, #tpu.memory_space<vmem>>) attributes {dimension_semantics = [#tpu.dimension_semantics<parallel>], iteration_bounds = array<i64: 2>, scalar_prefetch = 0 : i64, scratch_operands = 0 : i64, tpu.core_type = #tpu.core_type<tc>, window_params = [{transform_indices = @transform_0, window_bounds = array<i64: 1, 8, 192>}, {pipeline_mode = #tpu.pipeline_mode<synchronous>, transform_indices = @transform_1, window_bounds = array<i64: 3, 192, 64>}, {pipeline_mode = #tpu.pipeline_mode<synchronous>, transform_indices = @transform_2, window_bounds = array<i64: 1, 64>}, {transform_indices = @transform_3, window_bounds = array<i64: 1, 4, 64>}]} {
    %cst = arith.constant 0.000000e+00 : f32
    %0 = vector.broadcast %cst : f32 to vector<4x64xf32>
    %c0 = arith.constant 0 : index
    %c0_0 = arith.constant 0 : index
    %c0_1 = arith.constant 0 : index
    %1 = vector.load %arg1[%c0, %c0_0, %c0_1] : memref<1x8x192xbf16, #tpu.memory_space<vmem>>, vector<1x4x192xbf16>
    %2 = vector.shape_cast %1 : vector<1x4x192xbf16> to vector<4x192xbf16>
    %c0_2 = arith.constant 0 : index
    %c0_3 = arith.constant 0 : index
    %c0_4 = arith.constant 0 : index
    %3 = vector.load %arg2[%c0_2, %c0_3, %c0_4] : memref<3x192x64xbf16, #tpu.memory_space<vmem>>, vector<1x192x64xbf16>
    %4 = vector.shape_cast %3 : vector<1x192x64xbf16> to vector<192x64xbf16>
    %cst_5 = arith.constant dense<0.000000e+00> : vector<4x64xf32>
    %5 = tpu.matmul %2, %4, %cst_5 {dimension_numbers = #tpu.dot_dimension_numbers<[1], [0], [0], [1], [0, 0, 1, 1], [], []>} : vector<4x192xbf16>, vector<192x64xbf16>, vector<4x64xf32> -> vector<4x64xf32>
    %6 = arith.addf %0, %5 : vector<4x64xf32>
    %c0_6 = arith.constant 0 : index
    %c2 = arith.constant 2 : index
    %c0_7 = arith.constant 0 : index
    %7 = vector.load %arg1[%c0_6, %c2, %c0_7] : memref<1x8x192xbf16, #tpu.memory_space<vmem>>, vector<1x4x192xbf16>
    %8 = vector.shape_cast %7 : vector<1x4x192xbf16> to vector<4x192xbf16>
    %c1 = arith.constant 1 : index
    %c0_8 = arith.constant 0 : index
    %c0_9 = arith.constant 0 : index
    %9 = vector.load %arg2[%c1, %c0_8, %c0_9] : memref<3x192x64xbf16, #tpu.memory_space<vmem>>, vector<1x192x64xbf16>
    %10 = vector.shape_cast %9 : vector<1x192x64xbf16> to vector<192x64xbf16>
    %cst_10 = arith.constant dense<0.000000e+00> : vector<4x64xf32>
    %11 = tpu.matmul %8, %10, %cst_10 {dimension_numbers = #tpu.dot_dimension_numbers<[1], [0], [0], [1], [0, 0, 1, 1], [], []>} : vector<4x192xbf16>, vector<192x64xbf16>, vector<4x64xf32> -> vector<4x64xf32>
    %12 = arith.addf %6, %11 : vector<4x64xf32>
    %c0_11 = arith.constant 0 : index
    %c4 = arith.constant 4 : index
    %c0_12 = arith.constant 0 : index
    %13 = vector.load %arg1[%c0_11, %c4, %c0_12] : memref<1x8x192xbf16, #tpu.memory_space<vmem>>, vector<1x4x192xbf16>
    %14 = vector.shape_cast %13 : vector<1x4x192xbf16> to vector<4x192xbf16>
    %c2_13 = arith.constant 2 : index
    %c0_14 = arith.constant 0 : index
    %c0_15 = arith.constant 0 : index
    %15 = vector.load %arg2[%c2_13, %c0_14, %c0_15] : memref<3x192x64xbf16, #tpu.memory_space<vmem>>, vector<1x192x64xbf16>
    %16 = vector.shape_cast %15 : vector<1x192x64xbf16> to vector<192x64xbf16>
    %cst_16 = arith.constant dense<0.000000e+00> : vector<4x64xf32>
    %17 = tpu.matmul %14, %16, %cst_16 {dimension_numbers = #tpu.dot_dimension_numbers<[1], [0], [0], [1], [0, 0, 1, 1], [], []>} : vector<4x192xbf16>, vector<192x64xbf16>, vector<4x64xf32> -> vector<4x64xf32>
    %18 = arith.addf %12, %17 : vector<4x64xf32>
    %c0_17 = arith.constant 0 : index
    %c0_18 = arith.constant 0 : index
    %19 = vector.load %arg3[%c0_17, %c0_18] : memref<1x64xf32, #tpu.memory_space<vmem>>, vector<1x64xf32>
    %20 = vector.broadcast %19 : vector<1x64xf32> to vector<4x64xf32>
    %21 = arith.addf %18, %20 : vector<4x64xf32>
    %cst_19 = arith.constant 0.000000e+00 : f32
    %22 = vector.broadcast %cst_19 : f32 to vector<4x64xf32>
    %23 = arith.maximumf %21, %22 : vector<4x64xf32>
    %c0_20 = arith.constant 0 : index
    %c0_21 = arith.constant 0 : index
    %c0_22 = arith.constant 0 : index
    %24 = vector.load %arg4[%c0_20, %c0_21, %c0_22] : memref<1x4x64xf32, #tpu.memory_space<vmem>>, vector<1x4x64xf32>
    %25 = vector.shape_cast %24 : vector<1x4x64xf32> to vector<4x64xf32>
    %26 = vector.shape_cast %23 : vector<4x64xf32> to vector<1x4x64xf32>
    tpu.vector_store %arg4[%c0_20, %c0_21, %c0_22], %26 {strides = array<i32>} : memref<1x4x64xf32, #tpu.memory_space<vmem>>, vector<1x4x64xf32>,
    return
  }
  func.func @transform_0(%arg0: i32) -> (i32, i32, i32) {
    %c0_i32 = arith.constant 0 : i32
    %c0_i32_0 = arith.constant 0 : i32
    %c0_i32_1 = arith.constant 0 : i32
    return %arg0, %c0_i32, %c0_i32_0 : i32, i32, i32
  }
  func.func @transform_1(%arg0: i32) -> (i32, i32, i32) {
    %c0_i32 = arith.constant 0 : i32
    %c0_i32_0 = arith.constant 0 : i32
    %c0_i32_1 = arith.constant 0 : i32
    %c0_i32_2 = arith.constant 0 : i32
    return %c0_i32, %c0_i32_0, %c0_i32_1 : i32, i32, i32
  }
  func.func @transform_2(%arg0: i32) -> (i32, i32) {
    %c0_i32 = arith.constant 0 : i32
    %c0_i32_0 = arith.constant 0 : i32
    %c0_i32_1 = arith.constant 0 : i32
    return %c0_i32, %c0_i32_0 : i32, i32
  }
  func.func @transform_3(%arg0: i32) -> (i32, i32, i32) {
    %c0_i32 = arith.constant 0 : i32
    %c0_i32_0 = arith.constant 0 : i32
    %c0_i32_1 = arith.constant 0 : i32
    return %arg0, %c0_i32, %c0_i32_0 : i32, i32, i32
  }
}

</mosaic_0001>

<llo_original>
// kernel: vgg_forward.15
$region0: #{vgg_forward.15}
  #allocation0 [shape = 'u32[]', space=smem, size = 0x4, offset = 0x4, fixed_abs, tag = 'smem constant byte address 0x4 - core index']
  #allocation1 [shape = 'u32[144,128]{1,0:T(1,128)}', space=vmem, size = 0x12000, scoped, tag = 'internal scratch']
  %s0 = inlined_call_operand.vmem [shape: f32[2,8,2,8,16], index: 0, kind: input, shape index: {}]
  %s1 = inlined_call_operand.vmem [shape: f32[2,8,8,8], index: 1, kind: output, shape index: {}]
  %s2 = sld [smem:[#allocation0]]
  $region37: #{vgg_forward.15} parent=0
    _
  %s4 = ssub.s32 1, %s2
  %s5 = scalar_select 0, %s4, %s2
  loop: start=0, step=1, limit=4
  $region2: #{vgg_forward.15} parent=0 // loop_pre_header
    _
  $region3: #{vgg_forward.15} parent=0 // loop_header
    %s7 = sphi 0, %s11
    %p8 = scmp.ge.s32.totalorder %s7, 4
    %s17 = sphi 0, %s19
    %s20 = sphi 0, %s17
    %s21 = sphi 0, %s20
    %s37 = sphi 0, %s21
    %s43 = sphi 0, %s45
    %s46 = sphi 0, %s43
    %s47 = sphi 0, %s46
    %s63 = sphi 0, %s47
  $region4: #{vgg_forward.15} parent=0 // loop_header_branch
    %10 = sbr.rel (%p8) target = $region8
  $region5: #{vgg_forward.15} parent=0 // loop_body
    %s12 = ssub.s32 %s7, 1
    %s13 = ssub.s32 %s7, 2
    %s14 = sadd.s32 %s7, 1
    %s15 = ssub.s32 %s7, %s14
    %p16 = scmp.eq.s32.totalorder %s15, 0
    %s18 = sadd.s32 %s17, 1
    %s19 = scalar_select %p16, %s17, %s18
    %p22 = pneg %p16
    %p23 = scmp.eq.s32.totalorder %s7, 1
    %p24 = por %p22, %p23
    %p25 = scmp.ne.s32.totalorder %s17, %s20
    %p26 = scmp.eq.s32.totalorder %s7, 0
    %p27 = por %p25, %p26
    %p28 = scmp.ne.s32.totalorder %s17, %s20
    %p29 = scmp.eq.s32.totalorder %s12, 1
    %p30 = por %p28, %p29
    %p31 = scmp.ne.s32.totalorder %s20, %s21
    %p32 = scmp.eq.s32.totalorder %s12, 0
    %p33 = por %p31, %p32
    %p34 = scmp.ne.s32.totalorder %s20, %s21
    %p35 = scmp.eq.s32.totalorder %s13, 1
    %p36 = por %p34, %p35
    %p38 = scmp.ne.s32.totalorder %s21, %s37
    %p39 = scmp.eq.s32.totalorder %s13, 0
    %p40 = por %p38, %p39
    %s41 = ssub.s32 %s7, %s14
    %p42 = scmp.eq.s32.totalorder %s41, 0
    %s44 = sadd.s32 %s43, 1
    %s45 = scalar_select %p42, %s43, %s44
    %p48 = pneg %p42
    %p49 = scmp.eq.s32.totalorder %s7, 1
    %p50 = por %p48, %p49
    %p51 = scmp.ne.s32.totalorder %s43, %s46
    %p52 = scmp.eq.s32.totalorder %s7, 0
    %p53 = por %p51, %p52
    %p54 = scmp.ne.s32.totalorder %s43, %s46
    %p55 = scmp.eq.s32.totalorder %s12, 1
    %p56 = por %p54, %p55
    %p57 = scmp.ne.s32.totalorder %s46, %s47
    %p58 = scmp.eq.s32.totalorder %s12, 0
    %p59 = por %p57, %p58
    %p60 = scmp.ne.s32.totalorder %s46, %s47
    %p61 = scmp.eq.s32.totalorder %s13, 1
    %p62 = por %p60, %p61
    %p64 = scmp.ne.s32.totalorder %s47, %s63
    %p65 = scmp.eq.s32.totalorder %s13, 0
    %p66 = por %p64, %p65
    %p67 = scmp.le.s32.totalorder 1, %s7
    %p68 = scmp.lt.s32.totalorder %s7, 3
    %p69 = pnand %p67, %p68
    %p70 = pneg %p69
    // Predicated region
    $region9: #{vgg_forward.15} parent=5 // pred_check
      _
    $region10: #{vgg_forward.15} parent=5 // pred_check_branch
      %72 = sbr.rel (%p69) target = $region12
    $region11: #{vgg_forward.15} parent=5 // pred_region
      %s73 = ssub.s32 %s7, 1
    $region12: #{vgg_forward.15} parent=5 // pred_fallthru
      _
    %p74 = scmp.lt.s32.totalorder %s7, 2
    // Predicated region
    $region13: #{vgg_forward.15} parent=5 // pred_check
      %p75 = pneg %p74
    $region14: #{vgg_forward.15} parent=5 // pred_check_branch
      %77 = sbr.rel (%p75) target = $region16
    $region15: #{vgg_forward.15} parent=5 // pred_region
      // Predicated region
      $region17: #{vgg_forward.15} parent=15 // pred_check
        %p78 = pneg %p27
      $region18: #{vgg_forward.15} parent=15 // pred_check_branch
        %80 = sbr.rel (%p78) target = $region20
      $region19: #{vgg_forward.15} parent=15 // pred_region
        %p81 = scmp.lt.s32.totalorder %s7, 1
        %s82 = scalar_select %p81, %s7, 1
        %s83 = smul.addr %s82, 16
        %s84 = smul.addr %s83, 8
        %s85 = scalar_lea.vmem %s0, %s84
      $region20: #{vgg_forward.15} parent=15 // pred_fallthru
        _
    $region16: #{vgg_forward.15} parent=5 // pred_fallthru
      _
    %p86 = scmp.le.s32.totalorder 1, %s7
    %p87 = scmp.lt.s32.totalorder %s7, 3
    %p88 = pnand %p86, %p87
    %p89 = pneg %p88
    // Predicated region
    $region21: #{vgg_forward.15} parent=5 // pred_check
      _
    $region22: #{vgg_forward.15} parent=5 // pred_check_branch
      %91 = sbr.rel (%p88) target = $region24
    $region23: #{vgg_forward.15} parent=5 // pred_region
      %s92 = ssub.s32 %s7, 1
      %p93 = scmp.lt.s32.totalorder %s12, 1
      %s94 = scalar_select %p93, %s12, 1
      %s95 = smul.addr %s94, 16
      %s96 = smul.addr %s95, 8
      %s97 = scalar_lea.vmem %s0, %s96
      %p98 = pneg %p33
      %p99 = pneg %p30
      %p100 = pneg %p59
      %p101 = pneg %p56
      %p102 = scmp.lt.s32.totalorder %s12, 1
      %s103 = scalar_select %p102, %s12, 1
      %s104 = smul.addr %s103, 8
      %s105 = smul.addr %s104, 8
      %s106 = scalar_lea.vmem %s1, %s105
      %p107 = scmp.lt.s32.totalorder %s12, 1
      %s108 = scalar_select %p107, %s12, 1
      %s109 = smul.addr %s108, 16
      %s110 = smul.addr %s109, 8
      %s111 = scalar_lea.vmem %s0, %s110
      %p112 = scmp.lt.s32.totalorder %s12, 1
      %s113 = scalar_select %p112, %s12, 1
      %s114 = smul.addr %s113, 8
      %s115 = smul.addr %s114, 8
      %s116 = scalar_lea.vmem %s1, %s115
      %v117 = vld [vmem:[%s111] sm:$0xff]
      %v118 = vld [vmem:[%s111 + $0x10] sm:$0xff]
      %v119 = vld [vmem:[%s111 + $0x20] sm:$0xff]
      %v120 = vld [vmem:[%s111 + $0x30] sm:$0xff]
      %v121 = vld [vmem:[%s111 + $0x40] sm:$0xff]
      %v122 = vld [vmem:[%s111 + $0x50] sm:$0xff]
      %v123 = vld [vmem:[%s111 + $0x60] sm:$0xff]
      %v124 = vld [vmem:[%s111 + $0x70] sm:$0xff]
      %s125 = scalar_lea.vmem %s111, 8
      %v126 = vld [vmem:[%s125] sm:$0xff]
      %v127 = vld [vmem:[%s125 + $0x10] sm:$0xff]
      %v128 = vld [vmem:[%s125 + $0x20] sm:$0xff]
      %v129 = vld [vmem:[%s125 + $0x30] sm:$0xff]
      %v130 = vld [vmem:[%s125 + $0x40] sm:$0xff]
      %v131 = vld [vmem:[%s125 + $0x50] sm:$0xff]
      %v132 = vld [vmem:[%s125 + $0x60] sm:$0xff]
      %v133 = vld [vmem:[%s125 + $0x70] sm:$0xff]
      %v134 = vmax.f32 %v117, %v126
      %v135 = vmax.f32 %v118, %v127
      %v136 = vmax.f32 %v119, %v128
      %v137 = vmax.f32 %v120, %v129
      %v138 = vmax.f32 %v121, %v130
      %v139 = vmax.f32 %v122, %v131
      %v140 = vmax.f32 %v123, %v132
      %v141 = vmax.f32 %v124, %v133
      %150 = vrot.lane.b32.xlu0 %v134, 120
      %v151 = vpop.permute.xlu0 %150
      %152 = vrot.lane.b32.xlu0 %v135, 120
      %v153 = vpop.permute.xlu0 %152
      %154 = vrot.lane.b32.xlu0 %v136, 120
      %v155 = vpop.permute.xlu0 %154
      %156 = vrot.lane.b32.xlu0 %v137, 120
      %v157 = vpop.permute.xlu0 %156
      %158 = vrot.lane.b32.xlu0 %v138, 120
      %v159 = vpop.permute.xlu0 %158
      %160 = vrot.lane.b32.xlu0 %v139, 120
      %v161 = vpop.permute.xlu0 %160
      %162 = vrot.lane.b32.xlu0 %v140, 120
      %v163 = vpop.permute.xlu0 %162
      %164 = vrot.lane.b32.xlu0 %v141, 120
      %v165 = vpop.permute.xlu0 %164
      %v174 = vmax.f32 %v134, %v151
      %v175 = vmax.f32 %v135, %v153
      %v176 = vmax.f32 %v136, %v155
      %v177 = vmax.f32 %v137, %v157
      %v178 = vmax.f32 %v138, %v159
      %v179 = vmax.f32 %v139, %v161
      %v180 = vmax.f32 %v140, %v163
      %v181 = vmax.f32 %v141, %v165
      %vm182 = vcmask 64512
      %183 = vst.msk [vmem:[%s116] sm:$0xff] %vm182, %v174
      %184 = vst.msk [vmem:[%s116 + $0x8] sm:$0xff] %vm182, %v175
      %185 = vst.msk [vmem:[%s116 + $0x10] sm:$0xff] %vm182, %v176
      %186 = vst.msk [vmem:[%s116 + $0x18] sm:$0xff] %vm182, %v177
      %187 = vst.msk [vmem:[%s116 + $0x20] sm:$0xff] %vm182, %v178
      %188 = vst.msk [vmem:[%s116 + $0x28] sm:$0xff] %vm182, %v179
      %189 = vst.msk [vmem:[%s116 + $0x30] sm:$0xff] %vm182, %v180
      %190 = vst.msk [vmem:[%s116 + $0x38] sm:$0xff] %vm182, %v181
      %p191 = scmp.lt.s32.totalorder %s12, 1
      %s192 = scalar_select %p191, %s12, 1
      %s193 = smul.addr %s192, 8
      %s194 = smul.addr %s193, 8
      %s195 = scalar_lea.vmem %s1, %s194
      // Predicated region
      $region25: #{vgg_forward.15} parent=23 // pred_check
        %p196 = pneg %p56
      $region26: #{vgg_forward.15} parent=23 // pred_check_branch
        %198 = sbr.rel (%p196) target = $region28
      $region27: #{vgg_forward.15} parent=23 // pred_region
        _
      $region28: #{vgg_forward.15} parent=23 // pred_fallthru
        _
    $region24: #{vgg_forward.15} parent=5 // pred_fallthru
      _
    %p199 = scmp.le.s32.totalorder 2, %s7
    // Predicated region
    $region29: #{vgg_forward.15} parent=5 // pred_check
      %p200 = pneg %p199
    $region30: #{vgg_forward.15} parent=5 // pred_check_branch
      %202 = sbr.rel (%p200) target = $region32
    $region31: #{vgg_forward.15} parent=5 // pred_region
      %s203 = ssub.s32 %s7, 2
      // Predicated region
      $region33: #{vgg_forward.15} parent=31 // pred_check
        %p204 = pneg %p62
      $region34: #{vgg_forward.15} parent=31 // pred_check_branch
        %206 = sbr.rel (%p204) target = $region36
      $region35: #{vgg_forward.15} parent=31 // pred_region
        %p207 = scmp.lt.s32.totalorder %s13, 1
        %s208 = scalar_select %p207, %s13, 1
        %s209 = smul.addr %s208, 8
        %s210 = smul.addr %s209, 8
        %s211 = scalar_lea.vmem %s1, %s210
      $region36: #{vgg_forward.15} parent=31 // pred_fallthru
        _
    $region32: #{vgg_forward.15} parent=5 // pred_fallthru
      _
  $region6: #{vgg_forward.15} parent=0 // loop_footer
    %s11 = sadd.s32 1, %s7
  $region7: #{vgg_forward.15} parent=0 // loop_footer_branch
    %6 = sbr.rel target = $region3
  $region8: #{vgg_forward.15} parent=0 // loop_exit
    _

// kernel: vgg_forward.13
$region0: #{vgg_forward.13}
  #allocation0 [shape = 'u32[]', space=smem, size = 0x4, offset = 0x4, fixed_abs, tag = 'smem constant byte address 0x4 - core index']
  #allocation1 [shape = 'u32[144,128]{1,0:T(1,128)}', space=vmem, size = 0x12000, scoped, tag = 'internal scratch']
  %s0 = inlined_call_operand.vmem [shape: bf16[2,288,9], index: 0, kind: input, shape index: {}]
  %s1 = inlined_call_operand.vmem [shape: bf16[3,9,8], index: 1, kind: input, shape index: {}]
  %s2 = inlined_call_operand.vmem [shape: f32[1,8], index: 2, kind: input, shape index: {}]
  %s3 = inlined_call_operand.vmem [shape: f32[2,256,8], index: 3, kind: output, shape index: {}]
  %s4 = sld [smem:[#allocation0]]
  $region45: #{vgg_forward.13} parent=0
    _
  %s6 = ssub.s32 1, %s4
  %s7 = scalar_select 0, %s6, %s4
  loop: start=0, step=1, limit=4
  $region2: #{vgg_forward.13} parent=0 // loop_pre_header
    _
  $region3: #{vgg_forward.13} parent=0 // loop_header
    %s9 = sphi 0, %s13
    %p10 = scmp.ge.s32.totalorder %s9, 4
    %s19 = sphi 0, %s21
    %s22 = sphi 0, %s19
    %s23 = sphi 0, %s22
    %s39 = sphi 0, %s23
    %s43 = sphi 0, %s43
    %s45 = sphi 0, %s43
    %s46 = sphi 0, %s45
    %s60 = sphi 0, %s46
    %s64 = sphi 0, %s64
    %s66 = sphi 0, %s64
    %s67 = sphi 0, %s66
    %s81 = sphi 0, %s67
    %s87 = sphi 0, %s89
    %s90 = sphi 0, %s87
    %s91 = sphi 0, %s90
    %s107 = sphi 0, %s91
  $region4: #{vgg_forward.13} parent=0 // loop_header_branch
    %12 = sbr.rel (%p10) target = $region8
  $region5: #{vgg_forward.13} parent=0 // loop_body
    %s14 = ssub.s32 %s9, 1
    %s15 = ssub.s32 %s9, 2
    %s16 = sadd.s32 %s9, 1
    %s17 = ssub.s32 %s9, %s16
    %p18 = scmp.eq.s32.totalorder %s17, 0
    %s20 = sadd.s32 %s19, 1
    %s21 = scalar_select %p18, %s19, %s20
    %p24 = pneg %p18
    %p25 = scmp.eq.s32.totalorder %s9, 1
    %p26 = por %p24, %p25
    %p27 = scmp.ne.s32.totalorder %s19, %s22
    %p28 = scmp.eq.s32.totalorder %s9, 0
    %p29 = por %p27, %p28
    %p30 = scmp.ne.s32.totalorder %s19, %s22
    %p31 = scmp.eq.s32.totalorder %s14, 1
    %p32 = por %p30, %p31
    %p33 = scmp.ne.s32.totalorder %s22, %s23
    %p34 = scmp.eq.s32.totalorder %s14, 0
    %p35 = por %p33, %p34
    %p36 = scmp.ne.s32.totalorder %s22, %s23
    %p37 = scmp.eq.s32.totalorder %s15, 1
    %p38 = por %p36, %p37
    %p40 = scmp.ne.s32.totalorder %s23, %s39
    %p41 = scmp.eq.s32.totalorder %s15, 0
    %p42 = por %p40, %p41
    %s44 = sadd.s32 %s43, 1
    %p47 = scmp.eq.s32.totalorder %s9, 1
    %p48 = scmp.ne.s32.totalorder %s43, %s45
    %p49 = scmp.eq.s32.totalorder %s9, 0
    %p50 = por %p48, %p49
    %p51 = scmp.ne.s32.totalorder %s43, %s45
    %p52 = scmp.eq.s32.totalorder %s14, 1
    %p53 = por %p51, %p52
    %p54 = scmp.ne.s32.totalorder %s45, %s46
    %p55 = scmp.eq.s32.totalorder %s14, 0
    %p56 = por %p54, %p55
    %p57 = scmp.ne.s32.totalorder %s45, %s46
    %p58 = scmp.eq.s32.totalorder %s15, 1
    %p59 = por %p57, %p58
    %p61 = scmp.ne.s32.totalorder %s46, %s60
    %p62 = scmp.eq.s32.totalorder %s15, 0
    %p63 = por %p61, %p62
    %s65 = sadd.s32 %s64, 1
    %p68 = scmp.eq.s32.totalorder %s9, 1
    %p69 = scmp.ne.s32.totalorder %s64, %s66
    %p70 = scmp.eq.s32.totalorder %s9, 0
    %p71 = por %p69, %p70
    %p72 = scmp.ne.s32.totalorder %s64, %s66
    %p73 = scmp.eq.s32.totalorder %s14, 1
    %p74 = por %p72, %p73
    %p75 = scmp.ne.s32.totalorder %s66, %s67
    %p76 = scmp.eq.s32.totalorder %s14, 0
    %p77 = por %p75, %p76
    %p78 = scmp.ne.s32.totalorder %s66, %s67
    %p79 = scmp.eq.s32.totalorder %s15, 1
    %p80 = por %p78, %p79
    %p82 = scmp.ne.s32.totalorder %s67, %s81
    %p83 = scmp.eq.s32.totalorder %s15, 0
    %p84 = por %p82, %p83
    %s85 = ssub.s32 %s9, %s16
    %p86 = scmp.eq.s32.totalorder %s85, 0
    %s88 = sadd.s32 %s87, 1
    %s89 = scalar_select %p86, %s87, %s88
    %p92 = pneg %p86
    %p93 = scmp.eq.s32.totalorder %s9, 1
    %p94 = por %p92, %p93
    %p95 = scmp.ne.s32.totalorder %s87, %s90
    %p96 = scmp.eq.s32.totalorder %s9, 0
    %p97 = por %p95, %p96
    %p98 = scmp.ne.s32.totalorder %s87, %s90
    %p99 = scmp.eq.s32.totalorder %s14, 1
    %p100 = por %p98, %p99
    %p101 = scmp.ne.s32.totalorder %s90, %s91
    %p102 = scmp.eq.s32.totalorder %s14, 0
    %p103 = por %p101, %p102
    %p104 = scmp.ne.s32.totalorder %s90, %s91
    %p105 = scmp.eq.s32.totalorder %s15, 1
    %p106 = por %p104, %p105
    %p108 = scmp.ne.s32.totalorder %s91, %s107
    %p109 = scmp.eq.s32.totalorder %s15, 0
    %p110 = por %p108, %p109
    %p111 = scmp.le.s32.totalorder 1, %s9
    %p112 = scmp.lt.s32.totalorder %s9, 3
    %p113 = pnand %p111, %p112
    %p114 = pneg %p113
    // Predicated region
    $region9: #{vgg_forward.13} parent=5 // pred_check
      _
    $region10: #{vgg_forward.13} parent=5 // pred_check_branch
      %116 = sbr.rel (%p113) target = $region12
    $region11: #{vgg_forward.13} parent=5 // pred_region
      %s117 = ssub.s32 %s9, 1
      // Predicated region
      $region13: #{vgg_forward.13} parent=11 // pred_check
        %p118 = pneg %p56
      $region14: #{vgg_forward.13} parent=11 // pred_check_branch
        %120 = sbr.rel (%p118) target = $region16
      $region15: #{vgg_forward.13} parent=11 // pred_region
        _
      $region16: #{vgg_forward.13} parent=11 // pred_fallthru
        _
      // Predicated region
      $region17: #{vgg_forward.13} parent=11 // pred_check
        %p121 = pneg %p77
      $region18: #{vgg_forward.13} parent=11 // pred_check_branch
        %123 = sbr.rel (%p121) target = $region20
      $region19: #{vgg_forward.13} parent=11 // pred_region
        _
      $region20: #{vgg_forward.13} parent=11 // pred_fallthru
        _
    $region12: #{vgg_forward.13} parent=5 // pred_fallthru
      _
    %p124 = scmp.lt.s32.totalorder %s9, 2
    // Predicated region
    $region21: #{vgg_forward.13} parent=5 // pred_check
      %p125 = pneg %p124
    $region22: #{vgg_forward.13} parent=5 // pred_check_branch
      %127 = sbr.rel (%p125) target = $region24
    $region23: #{vgg_forward.13} parent=5 // pred_region
      // Predicated region
      $region25: #{vgg_forward.13} parent=23 // pred_check
        %p128 = pneg %p29
      $region26: #{vgg_forward.13} parent=23 // pred_check_branch
        %130 = sbr.rel (%p128) target = $region28
      $region27: #{vgg_forward.13} parent=23 // pred_region
        %p131 = scmp.lt.s32.totalorder %s9, 1
        %s132 = scalar_select %p131, %s9, 1
        %s133 = smul.addr %s132, 36
        %s134 = smul.addr %s133, 4
        %s135 = scalar_lea.vmem %s0, %s134
      $region28: #{vgg_forward.13} parent=23 // pred_fallthru
        _
    $region24: #{vgg_forward.13} parent=5 // pred_fallthru
      _
    %p136 = scmp.le.s32.totalorder 1, %s9
    %p137 = scmp.lt.s32.totalorder %s9, 3
    %p138 = pnand %p136, %p137
    %p139 = pneg %p138
    // Predicated region
    $region29: #{vgg_forward.13} parent=5 // pred_check
      _
    $region30: #{vgg_forward.13} parent=5 // pred_check_branch
      %141 = sbr.rel (%p138) target = $region32
    $region31: #{vgg_forward.13} parent=5 // pred_region
      %s142 = ssub.s32 %s9, 1
      %p143 = scmp.lt.s32.totalorder %s14, 1
      %s144 = scalar_select %p143, %s14, 1
      %s145 = smul.addr %s144, 36
      %s146 = smul.addr %s145, 4
      %s147 = scalar_lea.vmem %s0, %s146
      %p148 = pneg %p35
      %p149 = pneg %p32
      %p150 = pneg %p56
      %p151 = pneg %p53
      %p152 = pneg %p77
      %p153 = pneg %p74
      %p154 = pneg %p103
      %p155 = pneg %p100
      %p156 = scmp.lt.s32.totalorder %s14, 1
      %s157 = scalar_select %p156, %s14, 1
      %s158 = smul.addr %s157, 32
      %s159 = smul.addr %s158, 8
      %s160 = scalar_lea.vmem %s3, %s159
      %p161 = scmp.lt.s32.totalorder %s14, 1
      %s162 = scalar_select %p161, %s14, 1
      %s163 = smul.addr %s162, 36
      %s164 = smul.addr %s163, 4
      %s165 = scalar_lea.vmem %s0, %s164
      %p166 = scmp.lt.s32.totalorder %s14, 1
      %s167 = scalar_select %p166, %s14, 1
      %s168 = smul.addr %s167, 32
      %s169 = smul.addr %s168, 8
      %s170 = scalar_lea.vmem %s3, %s169
      %v172 = vld [vmem:[%s165] sm:$0xf]
      %v173 = vld [vmem:[%s165 + $0x4] sm:$0xf]
      %v174 = vld [vmem:[%s165 + $0x8] sm:$0xf]
      %v175 = vld [vmem:[%s165 + $0xc] sm:$0xf]
      %v176 = vld [vmem:[%s165 + $0x10] sm:$0xf]
      %v177 = vld [vmem:[%s165 + $0x14] sm:$0xf]
      %v178 = vld [vmem:[%s165 + $0x18] sm:$0xf]
      %v179 = vld [vmem:[%s165 + $0x1c] sm:$0xf]
      %v180 = vld [vmem:[%s165 + $0x20] sm:$0xf]
      %v181 = vld [vmem:[%s165 + $0x24] sm:$0xf]
      %v182 = vld [vmem:[%s165 + $0x28] sm:$0xf]
      %v183 = vld [vmem:[%s165 + $0x2c] sm:$0xf]
      %v184 = vld [vmem:[%s165 + $0x30] sm:$0xf]
      %v185 = vld [vmem:[%s165 + $0x34] sm:$0xf]
      %v186 = vld [vmem:[%s165 + $0x38] sm:$0xf]
      %v187 = vld [vmem:[%s165 + $0x3c] sm:$0xf]
      %v188 = vld [vmem:[%s165 + $0x40] sm:$0xf]
      %v189 = vld [vmem:[%s165 + $0x44] sm:$0xf]
      %v190 = vld [vmem:[%s165 + $0x48] sm:$0xf]
      %v191 = vld [vmem:[%s165 + $0x4c] sm:$0xf]
      %v192 = vld [vmem:[%s165 + $0x50] sm:$0xf]
      %v193 = vld [vmem:[%s165 + $0x54] sm:$0xf]
      %v194 = vld [vmem:[%s165 + $0x58] sm:$0xf]
      %v195 = vld [vmem:[%s165 + $0x5c] sm:$0xf]
      %v196 = vld [vmem:[%s165 + $0x60] sm:$0xf]
      %v197 = vld [vmem:[%s165 + $0x64] sm:$0xf]
      %v198 = vld [vmem:[%s165 + $0x68] sm:$0xf]
      %v199 = vld [vmem:[%s165 + $0x6c] sm:$0xf]
      %v200 = vld [vmem:[%s165 + $0x70] sm:$0xf]
      %v201 = vld [vmem:[%s165 + $0x74] sm:$0xf]
      %v202 = vld [vmem:[%s165 + $0x78] sm:$0xf]
      %v203 = vld [vmem:[%s165 + $0x7c] sm:$0xf]
      %v204 = vld [vmem:[%s1] sm:$0xf]
      %v205 = vld [vmem:[%s1 + $0x4] sm:$0x1]
      %v206 = vld [vmem:[%s165 + $0x80] sm:$0xf]
      %v207 = vld [vmem:[%s165 + $0x84] sm:$0xf]
      %s208 = scalar_lea.vmem %s1, 8
      %v209 = vld [vmem:[%s208] sm:$0xf]
      %v210 = vld [vmem:[%s208 + $0x4] sm:$0x1]
      %v243 = vunpack.c.l.b16 %v174
      %v244 = vunpack.c.l.b16 %v175
      %v245 = vunpack.c.l.b16 %v176
      %v246 = vunpack.c.l.b16 %v177
      %v247 = vunpack.c.l.b16 %v178
      %v248 = vunpack.c.l.b16 %v179
      %v249 = vunpack.c.l.b16 %v180
      %v250 = vunpack.c.l.b16 %v181
      %v251 = vunpack.c.l.b16 %v182
      %v252 = vunpack.c.l.b16 %v183
      %v253 = vunpack.c.l.b16 %v184
      %v254 = vunpack.c.l.b16 %v185
      %v255 = vunpack.c.l.b16 %v186
      %v256 = vunpack.c.l.b16 %v187
      %v257 = vunpack.c.l.b16 %v188
      %v258 = vunpack.c.l.b16 %v189
      %v259 = vunpack.c.l.b16 %v190
      %v260 = vunpack.c.l.b16 %v191
      %v261 = vunpack.c.l.b16 %v192
      %v262 = vunpack.c.l.b16 %v193
      %v263 = vunpack.c.l.b16 %v194
      %v264 = vunpack.c.l.b16 %v195
      %v265 = vunpack.c.l.b16 %v196
      %v266 = vunpack.c.l.b16 %v197
      %v267 = vunpack.c.l.b16 %v198
      %v268 = vunpack.c.l.b16 %v199
      %v269 = vunpack.c.l.b16 %v200
      %v270 = vunpack.c.l.b16 %v201
      %v271 = vunpack.c.l.b16 %v202
      %v272 = vunpack.c.l.b16 %v203
      %v273 = vunpack.c.l.b16 %v206
      %v274 = vunpack.c.l.b16 %v207
      %v275 = vpack.c.b16 %v244, %v243
      %v276 = vpack.c.b16 %v246, %v245
      %v277 = vpack.c.b16 %v248, %v247
      %v278 = vpack.c.b16 %v250, %v249
      %v279 = vpack.c.b16 %v252, %v251
      %v280 = vpack.c.b16 %v254, %v253
      %v281 = vpack.c.b16 %v256, %v255
      %v282 = vpack.c.b16 %v258, %v257
      %v283 = vpack.c.b16 %v260, %v259
      %v284 = vpack.c.b16 %v262, %v261
      %v285 = vpack.c.b16 %v264, %v263
      %v286 = vpack.c.b16 %v266, %v265
      %v287 = vpack.c.b16 %v268, %v267
      %v288 = vpack.c.b16 %v270, %v269
      %v289 = vpack.c.b16 %v272, %v271
      %v290 = vpack.c.b16 %v274, %v273
      %v293 = vunpack.c.l.b16 %v209
      %v294 = vunpack.c.l.b16 %v210
      %v295 = vpack.c.b16 %v294, %v293
      %vm296 = vcmask 72704
      %v298 = vsel %vm296, %v275, 0
      %v301 = vsel %vm296, %v276, 0
      %v304 = vsel %vm296, %v277, 0
      %v307 = vsel %vm296, %v278, 0
      %v310 = vsel %vm296, %v279, 0
      %v313 = vsel %vm296, %v280, 0
      %v316 = vsel %vm296, %v281, 0
      %v319 = vsel %vm296, %v282, 0
      %v322 = vsel %vm296, %v283, 0
      %v325 = vsel %vm296, %v284, 0
      %v328 = vsel %vm296, %v285, 0
      %v331 = vsel %vm296, %v286, 0
      %v334 = vsel %vm296, %v287, 0
      %v337 = vsel %vm296, %v288, 0
      %v340 = vsel %vm296, %v289, 0
      %v343 = vsel %vm296, %v290, 0
      %vm345 = vcmask 1043456
      %vm346 = vcmask 1044480
      %v347 = vsel %vm345, 4294967295, 65535
      %v348 = vsel %vm346, %v347, 0
      %v350 = vand.u32 %v295, %v348
      %352 = vmatprep.subr.bf16.mxu0 0
      %353 = vmatpush1.bf16.msra.mxu0 0
      %354 = vmatprep.subr.bf16.mxu0 0
      %355 = vmatpush1.bf16.msra.mxu0 0
      %356 = vmatprep.subr.bf16.mxu0 0
      %357 = vmatpush1.bf16.msra.mxu0 0
      %358 = vmatprep.subr.bf16.mxu0 0
      %359 = vmatpush1.bf16.msra.mxu0 0
      %360 = vmatprep.subr.bf16.mxu0 0
      %361 = vmatpush1.bf16.msra.mxu0 0
      %362 = vmatprep.subr.bf16.mxu0 0
      %363 = vmatpush1.bf16.msra.mxu0 0
      %364 = vmatprep.subr.bf16.mxu0 0
      %365 = vmatpush1.bf16.msra.mxu0 0
      %366 = vmatprep.subr.bf16.mxu0 0
      %367 = vmatpush1.bf16.msra.mxu0 %v350
      %368 = vmatprep.subr.bf16.mxu0 0
      %369 = vmatpush2.bf16.msra.mxu0 0
      %370 = vmatprep.subr.bf16.mxu0 0
      %371 = vmatpush2.bf16.msra.mxu0 0
      %372 = vmatprep.subr.bf16.mxu0 0
      %373 = vmatpush2.bf16.msra.mxu0 0
      %374 = vmatprep.subr.bf16.mxu0 0
      %375 = vmatpush2.bf16.msra.mxu0 0
      %376 = vmatprep.subr.bf16.mxu0 0
      %377 = vmatpush2.bf16.msra.mxu0 0
      %378 = vmatprep.subr.bf16.mxu0 0
      %379 = vmatpush2.bf16.msra.mxu0 0
      %380 = vmatprep.subr.bf16.mxu0 0
      %381 = vmatpush2.bf16.msra.mxu0 0
      %382 = vmatprep.subr.bf16.mxu0 0
      %383 = vmatpush2.bf16.msra.mxu0 0
      %384 = vmatprep.mubr.bf16.mxu0 0
      %385 = vmatmul.mubr.bf16.gmra.mxu0 %v298
      %v386 = vpop.f32.mrf.mxu0
      %v387 = vadd.f32 0.0, %v386
      %v388 = vpop.f32.mrf.mxu0
      %v389 = vpop.f32.mrf.mxu0
      %v390 = vadd.f32 0.0, %v389
      %v391 = vpop.f32.mrf.mxu0
      %392 = vmatprep.mubr.bf16.mxu0 0
      %393 = vmatmul.mubr.bf16.gmra.mxu0 %v301
      %v394 = vpop.f32.mrf.mxu0
      %v395 = vadd.f32 0.0, %v394
      %v396 = vpop.f32.mrf.mxu0
      %v397 = vpop.f32.mrf.mxu0
      %v398 = vadd.f32 0.0, %v397
      %v399 = vpop.f32.mrf.mxu0
      %400 = vmatprep.mubr.bf16.mxu0 0
      %401 = vmatmul.mubr.bf16.gmra.mxu0 %v304
      %v402 = vpop.f32.mrf.mxu0
      %v403 = vadd.f32 0.0, %v402
      %v404 = vpop.f32.mrf.mxu0
      %v405 = vpop.f32.mrf.mxu0
      %v406 = vadd.f32 0.0, %v405
      %v407 = vpop.f32.mrf.mxu0
      %408 = vmatprep.mubr.bf16.mxu0 0
      %409 = vmatmul.mubr.bf16.gmra.mxu0 %v307
      %v410 = vpop.f32.mrf.mxu0
      %v411 = vadd.f32 0.0, %v410
      %v412 = vpop.f32.mrf.mxu0
      %v413 = vpop.f32.mrf.mxu0
      %v414 = vadd.f32 0.0, %v413
      %v415 = vpop.f32.mrf.mxu0
      %416 = vmatprep.mubr.bf16.mxu0 0
      %417 = vmatmul.mubr.bf16.gmra.mxu0 %v310
      %v418 = vpop.f32.mrf.mxu0
      %v419 = vadd.f32 0.0, %v418
      %v420 = vpop.f32.mrf.mxu0
      %v421 = vpop.f32.mrf.mxu0
      %v422 = vadd.f32 0.0, %v421
      %v423 = vpop.f32.mrf.mxu0
      %424 = vmatprep.mubr.bf16.mxu0 0
      %425 = vmatmul.mubr.bf16.gmra.mxu0 %v313
      %v426 = vpop.f32.mrf.mxu0
      %v427 = vadd.f32 0.0, %v426
      %v428 = vpop.f32.mrf.mxu0
      %v429 = vpop.f32.mrf.mxu0
      %v430 = vadd.f32 0.0, %v429
      %v431 = vpop.f32.mrf.mxu0
      %432 = vmatprep.mubr.bf16.mxu0 0
      %433 = vmatmul.mubr.bf16.gmra.mxu0 %v316
      %v434 = vpop.f32.mrf.mxu0
      %v435 = vadd.f32 0.0, %v434
      %v436 = vpop.f32.mrf.mxu0
      %v437 = vpop.f32.mrf.mxu0
      %v438 = vadd.f32 0.0, %v437
      %v439 = vpop.f32.mrf.mxu0
      %440 = vmatprep.mubr.bf16.mxu0 0
      %441 = vmatmul.mubr.bf16.gmra.mxu0 %v319
      %v442 = vpop.f32.mrf.mxu0
      %v443 = vadd.f32 0.0, %v442
      %v444 = vpop.f32.mrf.mxu0
      %v445 = vpop.f32.mrf.mxu0
      %v446 = vadd.f32 0.0, %v445
      %v447 = vpop.f32.mrf.mxu0
      %448 = vmatprep.mubr.bf16.mxu0 0
      %449 = vmatmul.mubr.bf16.gmra.mxu0 %v322
      %v450 = vpop.f32.mrf.mxu0
      %v451 = vadd.f32 0.0, %v450
      %v452 = vpop.f32.mrf.mxu0
      %v453 = vpop.f32.mrf.mxu0
      %v454 = vadd.f32 0.0, %v453
      %v455 = vpop.f32.mrf.mxu0
      %456 = vmatprep.mubr.bf16.mxu0 0
      %457 = vmatmul.mubr.bf16.gmra.mxu0 %v325
      %v458 = vpop.f32.mrf.mxu0
      %v459 = vadd.f32 0.0, %v458
      %v460 = vpop.f32.mrf.mxu0
      %v461 = vpop.f32.mrf.mxu0
      %v462 = vadd.f32 0.0, %v461
      %v463 = vpop.f32.mrf.mxu0
      %464 = vmatprep.mubr.bf16.mxu0 0
      %465 = vmatmul.mubr.bf16.gmra.mxu0 %v328
      %v466 = vpop.f32.mrf.mxu0
      %v467 = vadd.f32 0.0, %v466
      %v468 = vpop.f32.mrf.mxu0
      %v469 = vpop.f32.mrf.mxu0
      %v470 = vadd.f32 0.0, %v469
      %v471 = vpop.f32.mrf.mxu0
      %472 = vmatprep.mubr.bf16.mxu0 0
      %473 = vmatmul.mubr.bf16.gmra.mxu0 %v331
      %v474 = vpop.f32.mrf.mxu0
      %v475 = vadd.f32 0.0, %v474
      %v476 = vpop.f32.mrf.mxu0
      %v477 = vpop.f32.mrf.mxu0
      %v478 = vadd.f32 0.0, %v477
      %v479 = vpop.f32.mrf.mxu0
      %480 = vmatprep.mubr.bf16.mxu0 0
      %481 = vmatmul.mubr.bf16.gmra.mxu0 %v334
      %v482 = vpop.f32.mrf.mxu0
      %v483 = vadd.f32 0.0, %v482
      %v484 = vpop.f32.mrf.mxu0
      %v485 = vpop.f32.mrf.mxu0
      %v486 = vadd.f32 0.0, %v485
      %v487 = vpop.f32.mrf.mxu0
      %488 = vmatprep.mubr.bf16.mxu0 0
      %489 = vmatmul.mubr.bf16.gmra.mxu0 %v337
      %v490 = vpop.f32.mrf.mxu0
      %v491 = vadd.f32 0.0, %v490
      %v492 = vpop.f32.mrf.mxu0
      %v493 = vpop.f32.mrf.mxu0
      %v494 = vadd.f32 0.0, %v493
      %v495 = vpop.f32.mrf.mxu0
      %496 = vmatprep.mubr.bf16.mxu0 0
      %497 = vmatmul.mubr.bf16.gmra.mxu0 %v340
      %v498 = vpop.f32.mrf.mxu0
      %v499 = vadd.f32 0.0, %v498
      %v500 = vpop.f32.mrf.mxu0
      %v501 = vpop.f32.mrf.mxu0
      %v502 = vadd.f32 0.0, %v501
      %v503 = vpop.f32.mrf.mxu0
      %504 = vmatprep.mubr.bf16.mxu0 0
      %505 = vmatmul.mubr.bf16.gmra.mxu0 %v343
      %v506 = vpop.f32.mrf.mxu0
      %v507 = vadd.f32 0.0, %v506
      %v508 = vpop.f32.mrf.mxu0
      %v509 = vpop.f32.mrf.mxu0
      %v510 = vadd.f32 0.0, %v509
      %v511 = vpop.f32.mrf.mxu0
      %512 = vdwg.mxu0
      %v515 = vunpack.c.l.b16 %v172
      %v516 = vunpack.c.l.b16 %v173
      %v517 = vpack.c.b16 %v516, %v515
      %v520 = vunpack.c.l.b16 %v204
      %v521 = vunpack.c.l.b16 %v205
      %v522 = vpack.c.b16 %v521, %v520
      %v524 = vsel %vm296, %v517, 0
      %v527 = vand.u32 %v522, %v348
      %529 = vmatprep.subr.bf16.mxu0 0
      %530 = vmatpush1.bf16.msra.mxu0 0
      %531 = vmatprep.subr.bf16.mxu0 0
      %532 = vmatpush1.bf16.msra.mxu0 0
      %533 = vmatprep.subr.bf16.mxu0 0
      %534 = vmatpush1.bf16.msra.mxu0 0
      %535 = vmatprep.subr.bf16.mxu0 0
      %536 = vmatpush1.bf16.msra.mxu0 0
      %537 = vmatprep.subr.bf16.mxu0 0
      %538 = vmatpush1.bf16.msra.mxu0 0
      %539 = vmatprep.subr.bf16.mxu0 0
      %540 = vmatpush1.bf16.msra.mxu0 0
      %541 = vmatprep.subr.bf16.mxu0 0
      %542 = vmatpush1.bf16.msra.mxu0 0
      %543 = vmatprep.subr.bf16.mxu0 0
      %544 = vmatpush1.bf16.msra.mxu0 %v527
      %545 = vmatprep.subr.bf16.mxu0 0
      %546 = vmatpush2.bf16.msra.mxu0 0
      %547 = vmatprep.subr.bf16.mxu0 0
      %548 = vmatpush2.bf16.msra.mxu0 0
      %549 = vmatprep.subr.bf16.mxu0 0
      %550 = vmatpush2.bf16.msra.mxu0 0
      %551 = vmatprep.subr.bf16.mxu0 0
      %552 = vmatpush2.bf16.msra.mxu0 0
      %553 = vmatprep.subr.bf16.mxu0 0
      %554 = vmatpush2.bf16.msra.mxu0 0
      %555 = vmatprep.subr.bf16.mxu0 0
      %556 = vmatpush2.bf16.msra.mxu0 0
      %557 = vmatprep.subr.bf16.mxu0 0
      %558 = vmatpush2.bf16.msra.mxu0 0
      %559 = vmatprep.subr.bf16.mxu0 0
      %560 = vmatpush2.bf16.msra.mxu0 0
      %561 = vmatprep.mubr.bf16.mxu0 0
      %562 = vmatmul.mubr.bf16.gmra.mxu0 %v524
      %v563 = vpop.f32.mrf.mxu0
      %v564 = vadd.f32 %v387, %v563
      %v565 = vpop.f32.mrf.mxu0
      %v566 = vpop.f32.mrf.mxu0
      %v567 = vadd.f32 %v390, %v566
      %v568 = vpop.f32.mrf.mxu0
      %569 = vmatprep.mubr.bf16.mxu0 0
      %570 = vmatmul.mubr.bf16.gmra.mxu0 %v298
      %v571 = vpop.f32.mrf.mxu0
      %v572 = vadd.f32 %v395, %v571
      %v573 = vpop.f32.mrf.mxu0
      %v574 = vpop.f32.mrf.mxu0
      %v575 = vadd.f32 %v398, %v574
      %v576 = vpop.f32.mrf.mxu0
      %577 = vmatprep.mubr.bf16.mxu0 0
      %578 = vmatmul.mubr.bf16.gmra.mxu0 %v301
      %v579 = vpop.f32.mrf.mxu0
      %v580 = vadd.f32 %v403, %v579
      %v581 = vpop.f32.mrf.mxu0
      %v582 = vpop.f32.mrf.mxu0
      %v583 = vadd.f32 %v406, %v582
      %v584 = vpop.f32.mrf.mxu0
      %585 = vmatprep.mubr.bf16.mxu0 0
      %586 = vmatmul.mubr.bf16.gmra.mxu0 %v304
      %v587 = vpop.f32.mrf.mxu0
      %v588 = vadd.f32 %v411, %v587
      %v589 = vpop.f32.mrf.mxu0
      %v590 = vpop.f32.mrf.mxu0
      %v591 = vadd.f32 %v414, %v590
      %v592 = vpop.f32.mrf.mxu0
      %593 = vmatprep.mubr.bf16.mxu0 0
      %594 = vmatmul.mubr.bf16.gmra.mxu0 %v307
      %v595 = vpop.f32.mrf.mxu0
      %v596 = vadd.f32 %v419, %v595
      %v597 = vpop.f32.mrf.mxu0
      %v598 = vpop.f32.mrf.mxu0
      %v599 = vadd.f32 %v422, %v598
      %v600 = vpop.f32.mrf.mxu0
      %601 = vmatprep.mubr.bf16.mxu0 0
      %602 = vmatmul.mubr.bf16.gmra.mxu0 %v310
      %v603 = vpop.f32.mrf.mxu0
      %v604 = vadd.f32 %v427, %v603
      %v605 = vpop.f32.mrf.mxu0
      %v606 = vpop.f32.mrf.mxu0
      %v607 = vadd.f32 %v430, %v606
      %v608 = vpop.f32.mrf.mxu0
      %609 = vmatprep.mubr.bf16.mxu0 0
      %610 = vmatmul.mubr.bf16.gmra.mxu0 %v313
      %v611 = vpop.f32.mrf.mxu0
      %v612 = vadd.f32 %v435, %v611
      %v613 = vpop.f32.mrf.mxu0
      %v614 = vpop.f32.mrf.mxu0
      %v615 = vadd.f32 %v438, %v614
      %v616 = vpop.f32.mrf.mxu0
      %617 = vmatprep.mubr.bf16.mxu0 0
      %618 = vmatmul.mubr.bf16.gmra.mxu0 %v316
      %v619 = vpop.f32.mrf.mxu0
      %v620 = vadd.f32 %v443, %v619
      %v621 = vpop.f32.mrf.mxu0
      %v622 = vpop.f32.mrf.mxu0
      %v623 = vadd.f32 %v446, %v622
      %v624 = vpop.f32.mrf.mxu0
      %625 = vmatprep.mubr.bf16.mxu0 0
      %626 = vmatmul.mubr.bf16.gmra.mxu0 %v319
      %v627 = vpop.f32.mrf.mxu0
      %v628 = vadd.f32 %v451, %v627
      %v629 = vpop.f32.mrf.mxu0
      %v630 = vpop.f32.mrf.mxu0
      %v631 = vadd.f32 %v454, %v630
      %v632 = vpop.f32.mrf.mxu0
      %633 = vmatprep.mubr.bf16.mxu0 0
      %634 = vmatmul.mubr.bf16.gmra.mxu0 %v322
      %v635 = vpop.f32.mrf.mxu0
      %v636 = vadd.f32 %v459, %v635
      %v637 = vpop.f32.mrf.mxu0
      %v638 = vpop.f32.mrf.mxu0
      %v639 = vadd.f32 %v462, %v638
      %v640 = vpop.f32.mrf.mxu0
      %641 = vmatprep.mubr.bf16.mxu0 0
      %642 = vmatmul.mubr.bf16.gmra.mxu0 %v325
      %v643 = vpop.f32.mrf.mxu0
      %v644 = vadd.f32 %v467, %v643
      %v645 = vpop.f32.mrf.mxu0
      %v646 = vpop.f32.mrf.mxu0
      %v647 = vadd.f32 %v470, %v646
      %v648 = vpop.f32.mrf.mxu0
      %649 = vmatprep.mubr.bf16.mxu0 0
      %650 = vmatmul.mubr.bf16.gmra.mxu0 %v328
      %v651 = vpop.f32.mrf.mxu0
      %v652 = vadd.f32 %v475, %v651
      %v653 = vpop.f32.mrf.mxu0
      %v654 = vpop.f32.mrf.mxu0
      %v655 = vadd.f32 %v478, %v654
      %v656 = vpop.f32.mrf.mxu0
      %657 = vmatprep.mubr.bf16.mxu0 0
      %658 = vmatmul.mubr.bf16.gmra.mxu0 %v331
      %v659 = vpop.f32.mrf.mxu0
      %v660 = vadd.f32 %v483, %v659
      %v661 = vpop.f32.mrf.mxu0
      %v662 = vpop.f32.mrf.mxu0
      %v663 = vadd.f32 %v486, %v662
      %v664 = vpop.f32.mrf.mxu0
      %665 = vmatprep.mubr.bf16.mxu0 0
      %666 = vmatmul.mubr.bf16.gmra.mxu0 %v334
      %v667 = vpop.f32.mrf.mxu0
      %v668 = vadd.f32 %v491, %v667
      %v669 = vpop.f32.mrf.mxu0
      %v670 = vpop.f32.mrf.mxu0
      %v671 = vadd.f32 %v494, %v670
      %v672 = vpop.f32.mrf.mxu0
      %673 = vmatprep.mubr.bf16.mxu0 0
      %674 = vmatmul.mubr.bf16.gmra.mxu0 %v337
      %v675 = vpop.f32.mrf.mxu0
      %v676 = vadd.f32 %v499, %v675
      %v677 = vpop.f32.mrf.mxu0
      %v678 = vpop.f32.mrf.mxu0
      %v679 = vadd.f32 %v502, %v678
      %v680 = vpop.f32.mrf.mxu0
      %681 = vmatprep.mubr.bf16.mxu0 0
      %682 = vmatmul.mubr.bf16.gmra.mxu0 %v340
      %v683 = vpop.f32.mrf.mxu0
      %v684 = vadd.f32 %v507, %v683
      %v685 = vpop.f32.mrf.mxu0
      %v686 = vpop.f32.mrf.mxu0
      %v687 = vadd.f32 %v510, %v686
      %v688 = vpop.f32.mrf.mxu0
      %689 = vdwg.mxu0
      %v690 = vld [vmem:[%s165 + $0x10] sm:$0xf]
      %v691 = vld [vmem:[%s165 + $0x14] sm:$0xf]
      %v692 = vld [vmem:[%s165 + $0x18] sm:$0xf]
      %v693 = vld [vmem:[%s165 + $0x1c] sm:$0xf]
      %v694 = vld [vmem:[%s165 + $0x20] sm:$0xf]
      %v695 = vld [vmem:[%s165 + $0x24] sm:$0xf]
      %v696 = vld [vmem:[%s165 + $0x28] sm:$0xf]
      %v697 = vld [vmem:[%s165 + $0x2c] sm:$0xf]
      %v698 = vld [vmem:[%s165 + $0x30] sm:$0xf]
      %v699 = vld [vmem:[%s165 + $0x34] sm:$0xf]
      %v700 = vld [vmem:[%s165 + $0x38] sm:$0xf]
      %v701 = vld [vmem:[%s165 + $0x3c] sm:$0xf]
      %v702 = vld [vmem:[%s165 + $0x40] sm:$0xf]
      %v703 = vld [vmem:[%s165 + $0x44] sm:$0xf]
      %v704 = vld [vmem:[%s165 + $0x48] sm:$0xf]
      %v705 = vld [vmem:[%s165 + $0x4c] sm:$0xf]
      %v706 = vld [vmem:[%s165 + $0x50] sm:$0xf]
      %v707 = vld [vmem:[%s165 + $0x54] sm:$0xf]
      %v708 = vld [vmem:[%s165 + $0x58] sm:$0xf]
      %v709 = vld [vmem:[%s165 + $0x5c] sm:$0xf]
      %v710 = vld [vmem:[%s165 + $0x60] sm:$0xf]
      %v711 = vld [vmem:[%s165 + $0x64] sm:$0xf]
      %v712 = vld [vmem:[%s165 + $0x68] sm:$0xf]
      %v713 = vld [vmem:[%s165 + $0x6c] sm:$0xf]
      %v714 = vld [vmem:[%s165 + $0x70] sm:$0xf]
      %v715 = vld [vmem:[%s165 + $0x74] sm:$0xf]
      %v716 = vld [vmem:[%s165 + $0x78] sm:$0xf]
      %v717 = vld [vmem:[%s165 + $0x7c] sm:$0xf]
      %v718 = vld [vmem:[%s165 + $0x80] sm:$0xf]
      %v719 = vld [vmem:[%s165 + $0x84] sm:$0xf]
      %v720 = vld [vmem:[%s165 + $0x88] sm:$0xf]
      %v721 = vld [vmem:[%s165 + $0x8c] sm:$0xf]
      %s722 = scalar_lea.vmem %s1, 16
      %v723 = vld [vmem:[%s722] sm:$0xf]
      %v724 = vld [vmem:[%s722 + $0x4] sm:$0x1]
      %v757 = vunpack.c.l.b16 %v690
      %v758 = vunpack.c.l.b16 %v691
      %v759 = vunpack.c.l.b16 %v692
      %v760 = vunpack.c.l.b16 %v693
      %v761 = vunpack.c.l.b16 %v694
      %v762 = vunpack.c.l.b16 %v695
      %v763 = vunpack.c.l.b16 %v696
      %v764 = vunpack.c.l.b16 %v697
      %v765 = vunpack.c.l.b16 %v698
      %v766 = vunpack.c.l.b16 %v699
      %v767 = vunpack.c.l.b16 %v700
      %v768 = vunpack.c.l.b16 %v701
      %v769 = vunpack.c.l.b16 %v702
      %v770 = vunpack.c.l.b16 %v703
      %v771 = vunpack.c.l.b16 %v704
      %v772 = vunpack.c.l.b16 %v705
      %v773 = vunpack.c.l.b16 %v706
      %v774 = vunpack.c.l.b16 %v707
      %v775 = vunpack.c.l.b16 %v708
      %v776 = vunpack.c.l.b16 %v709
      %v777 = vunpack.c.l.b16 %v710
      %v778 = vunpack.c.l.b16 %v711
      %v779 = vunpack.c.l.b16 %v712
      %v780 = vunpack.c.l.b16 %v713
      %v781 = vunpack.c.l.b16 %v714
      %v782 = vunpack.c.l.b16 %v715
      %v783 = vunpack.c.l.b16 %v716
      %v784 = vunpack.c.l.b16 %v717
      %v785 = vunpack.c.l.b16 %v718
      %v786 = vunpack.c.l.b16 %v719
      %v787 = vunpack.c.l.b16 %v720
      %v788 = vunpack.c.l.b16 %v721
      %v789 = vpack.c.b16 %v758, %v757
      %v790 = vpack.c.b16 %v760, %v759
      %v791 = vpack.c.b16 %v762, %v761
      %v792 = vpack.c.b16 %v764, %v763
      %v793 = vpack.c.b16 %v766, %v765
      %v794 = vpack.c.b16 %v768, %v767
      %v795 = vpack.c.b16 %v770, %v769
      %v796 = vpack.c.b16 %v772, %v771
      %v797 = vpack.c.b16 %v774, %v773
      %v798 = vpack.c.b16 %v776, %v775
      %v799 = vpack.c.b16 %v778, %v777
      %v800 = vpack.c.b16 %v780, %v779
      %v801 = vpack.c.b16 %v782, %v781
      %v802 = vpack.c.b16 %v784, %v783
      %v803 = vpack.c.b16 %v786, %v785
      %v804 = vpack.c.b16 %v788, %v787
      %v807 = vunpack.c.l.b16 %v723
      %v808 = vunpack.c.l.b16 %v724
      %v809 = vpack.c.b16 %v808, %v807
      %v811 = vsel %vm296, %v789, 0
      %v814 = vsel %vm296, %v790, 0
      %v817 = vsel %vm296, %v791, 0
      %v820 = vsel %vm296, %v792, 0
      %v823 = vsel %vm296, %v793, 0
      %v826 = vsel %vm296, %v794, 0
      %v829 = vsel %vm296, %v795, 0
      %v832 = vsel %vm296, %v796, 0
      %v835 = vsel %vm296, %v797, 0
      %v838 = vsel %vm296, %v798, 0
      %v841 = vsel %vm296, %v799, 0
      %v844 = vsel %vm296, %v800, 0
      %v847 = vsel %vm296, %v801, 0
      %v850 = vsel %vm296, %v802, 0
      %v853 = vsel %vm296, %v803, 0
      %v856 = vsel %vm296, %v804, 0
      %v859 = vand.u32 %v809, %v348
      %861 = vmatprep.subr.bf16.mxu0 0
      %862 = vmatpush1.bf16.msra.mxu0 0
      %863 = vmatprep.subr.bf16.mxu0 0
      %864 = vmatpush1.bf16.msra.mxu0 0
      %865 = vmatprep.subr.bf16.mxu0 0
      %866 = vmatpush1.bf16.msra.mxu0 0
      %867 = vmatprep.subr.bf16.mxu0 0
      %868 = vmatpush1.bf16.msra.mxu0 0
      %869 = vmatprep.subr.bf16.mxu0 0
      %870 = vmatpush1.bf16.msra.mxu0 0
      %871 = vmatprep.subr.bf16.mxu0 0
      %872 = vmatpush1.bf16.msra.mxu0 0
      %873 = vmatprep.subr.bf16.mxu0 0
      %874 = vmatpush1.bf16.msra.mxu0 0
      %875 = vmatprep.subr.bf16.mxu0 0
      %876 = vmatpush1.bf16.msra.mxu0 %v859
      %877 = vmatprep.subr.bf16.mxu0 0
      %878 = vmatpush2.bf16.msra.mxu0 0
      %879 = vmatprep.subr.bf16.mxu0 0
      %880 = vmatpush2.bf16.msra.mxu0 0
      %881 = vmatprep.subr.bf16.mxu0 0
      %882 = vmatpush2.bf16.msra.mxu0 0
      %883 = vmatprep.subr.bf16.mxu0 0
      %884 = vmatpush2.bf16.msra.mxu0 0
      %885 = vmatprep.subr.bf16.mxu0 0
      %886 = vmatpush2.bf16.msra.mxu0 0
      %887 = vmatprep.subr.bf16.mxu0 0
      %888 = vmatpush2.bf16.msra.mxu0 0
      %889 = vmatprep.subr.bf16.mxu0 0
      %890 = vmatpush2.bf16.msra.mxu0 0
      %891 = vmatprep.subr.bf16.mxu0 0
      %892 = vmatpush2.bf16.msra.mxu0 0
      %893 = vmatprep.mubr.bf16.mxu0 0
      %894 = vmatmul.mubr.bf16.gmra.mxu0 %v811
      %v895 = vpop.f32.mrf.mxu0
      %v896 = vadd.f32 0.0, %v895
      %v897 = vpop.f32.mrf.mxu0
      %v898 = vpop.f32.mrf.mxu0
      %v899 = vadd.f32 0.0, %v898
      %v900 = vpop.f32.mrf.mxu0
      %901 = vmatprep.mubr.bf16.mxu0 0
      %902 = vmatmul.mubr.bf16.gmra.mxu0 %v814
      %v903 = vpop.f32.mrf.mxu0
      %v904 = vadd.f32 0.0, %v903
      %v905 = vpop.f32.mrf.mxu0
      %v906 = vpop.f32.mrf.mxu0
      %v907 = vadd.f32 0.0, %v906
      %v908 = vpop.f32.mrf.mxu0
      %909 = vmatprep.mubr.bf16.mxu0 0
      %910 = vmatmul.mubr.bf16.gmra.mxu0 %v817
      %v911 = vpop.f32.mrf.mxu0
      %v912 = vadd.f32 0.0, %v911
      %v913 = vpop.f32.mrf.mxu0
      %v914 = vpop.f32.mrf.mxu0
      %v915 = vadd.f32 0.0, %v914
      %v916 = vpop.f32.mrf.mxu0
      %917 = vmatprep.mubr.bf16.mxu0 0
      %918 = vmatmul.mubr.bf16.gmra.mxu0 %v820
      %v919 = vpop.f32.mrf.mxu0
      %v920 = vadd.f32 0.0, %v919
      %v921 = vpop.f32.mrf.mxu0
      %v922 = vpop.f32.mrf.mxu0
      %v923 = vadd.f32 0.0, %v922
      %v924 = vpop.f32.mrf.mxu0
      %925 = vmatprep.mubr.bf16.mxu0 0
      %926 = vmatmul.mubr.bf16.gmra.mxu0 %v823
      %v927 = vpop.f32.mrf.mxu0
      %v928 = vadd.f32 0.0, %v927
      %v929 = vpop.f32.mrf.mxu0
      %v930 = vpop.f32.mrf.mxu0
      %v931 = vadd.f32 0.0, %v930
      %v932 = vpop.f32.mrf.mxu0
      %933 = vmatprep.mubr.bf16.mxu0 0
      %934 = vmatmul.mubr.bf16.gmra.mxu0 %v826
      %v935 = vpop.f32.mrf.mxu0
      %v936 = vadd.f32 0.0, %v935
      %v937 = vpop.f32.mrf.mxu0
      %v938 = vpop.f32.mrf.mxu0
      %v939 = vadd.f32 0.0, %v938
      %v940 = vpop.f32.mrf.mxu0
      %941 = vmatprep.mubr.bf16.mxu0 0
      %942 = vmatmul.mubr.bf16.gmra.mxu0 %v829
      %v943 = vpop.f32.mrf.mxu0
      %v944 = vadd.f32 0.0, %v943
      %v945 = vpop.f32.mrf.mxu0
      %v946 = vpop.f32.mrf.mxu0
      %v947 = vadd.f32 0.0, %v946
      %v948 = vpop.f32.mrf.mxu0
      %949 = vmatprep.mubr.bf16.mxu0 0
      %950 = vmatmul.mubr.bf16.gmra.mxu0 %v832
      %v951 = vpop.f32.mrf.mxu0
      %v952 = vadd.f32 0.0, %v951
      %v953 = vpop.f32.mrf.mxu0
      %v954 = vpop.f32.mrf.mxu0
      %v955 = vadd.f32 0.0, %v954
      %v956 = vpop.f32.mrf.mxu0
      %957 = vmatprep.mubr.bf16.mxu0 0
      %958 = vmatmul.mubr.bf16.gmra.mxu0 %v835
      %v959 = vpop.f32.mrf.mxu0
      %v960 = vadd.f32 0.0, %v959
      %v961 = vpop.f32.mrf.mxu0
      %v962 = vpop.f32.mrf.mxu0
      %v963 = vadd.f32 0.0, %v962
      %v964 = vpop.f32.mrf.mxu0
      %965 = vmatprep.mubr.bf16.mxu0 0
      %966 = vmatmul.mubr.bf16.gmra.mxu0 %v838
      %v967 = vpop.f32.mrf.mxu0
      %v968 = vadd.f32 0.0, %v967
      %v969 = vpop.f32.mrf.mxu0
      %v970 = vpop.f32.mrf.mxu0
      %v971 = vadd.f32 0.0, %v970
      %v972 = vpop.f32.mrf.mxu0
      %973 = vmatprep.mubr.bf16.mxu0 0
      %974 = vmatmul.mubr.bf16.gmra.mxu0 %v841
      %v975 = vpop.f32.mrf.mxu0
      %v976 = vadd.f32 0.0, %v975
      %v977 = vpop.f32.mrf.mxu0
      %v978 = vpop.f32.mrf.mxu0
      %v979 = vadd.f32 0.0, %v978
      %v980 = vpop.f32.mrf.mxu0
      %981 = vmatprep.mubr.bf16.mxu0 0
      %982 = vmatmul.mubr.bf16.gmra.mxu0 %v844
      %v983 = vpop.f32.mrf.mxu0
      %v984 = vadd.f32 0.0, %v983
      %v985 = vpop.f32.mrf.mxu0
      %v986 = vpop.f32.mrf.mxu0
      %v987 = vadd.f32 0.0, %v986
      %v988 = vpop.f32.mrf.mxu0
      %989 = vmatprep.mubr.bf16.mxu0 0
      %990 = vmatmul.mubr.bf16.gmra.mxu0 %v847
      %v991 = vpop.f32.mrf.mxu0
      %v992 = vadd.f32 0.0, %v991
      %v993 = vpop.f32.mrf.mxu0
      %v994 = vpop.f32.mrf.mxu0
      %v995 = vadd.f32 0.0, %v994
      %v996 = vpop.f32.mrf.mxu0
      %997 = vmatprep.mubr.bf16.mxu0 0
      %998 = vmatmul.mubr.bf16.gmra.mxu0 %v850
      %v999 = vpop.f32.mrf.mxu0
      %v1000 = vadd.f32 0.0, %v999
      %v1001 = vpop.f32.mrf.mxu0
      %v1002 = vpop.f32.mrf.mxu0
      %v1003 = vadd.f32 0.0, %v1002
      %v1004 = vpop.f32.mrf.mxu0
      %1005 = vmatprep.mubr.bf16.mxu0 0
      %1006 = vmatmul.mubr.bf16.gmra.mxu0 %v853
      %v1007 = vpop.f32.mrf.mxu0
      %v1008 = vadd.f32 0.0, %v1007
      %v1009 = vpop.f32.mrf.mxu0
      %v1010 = vpop.f32.mrf.mxu0
      %v1011 = vadd.f32 0.0, %v1010
      %v1012 = vpop.f32.mrf.mxu0
      %1013 = vmatprep.mubr.bf16.mxu0 0
      %1014 = vmatmul.mubr.bf16.gmra.mxu0 %v856
      %v1015 = vpop.f32.mrf.mxu0
      %v1016 = vadd.f32 0.0, %v1015
      %v1017 = vpop.f32.mrf.mxu0
      %v1018 = vpop.f32.mrf.mxu0
      %v1019 = vadd.f32 0.0, %v1018
      %v1020 = vpop.f32.mrf.mxu0
      %1021 = vdwg.mxu0
      %v1022 = vadd.f32 %v564, %v896
      %v1023 = vadd.f32 %v567, %v899
      %v1024 = vadd.f32 %v572, %v904
      %v1025 = vadd.f32 %v575, %v907
      %v1026 = vadd.f32 %v580, %v912
      %v1027 = vadd.f32 %v583, %v915
      %v1028 = vadd.f32 %v588, %v920
      %v1029 = vadd.f32 %v591, %v923
      %v1030 = vadd.f32 %v596, %v928
      %v1031 = vadd.f32 %v599, %v931
      %v1032 = vadd.f32 %v604, %v936
      %v1033 = vadd.f32 %v607, %v939
      %v1034 = vadd.f32 %v612, %v944
      %v1035 = vadd.f32 %v615, %v947
      %v1036 = vadd.f32 %v620, %v952
      %v1037 = vadd.f32 %v623, %v955
      %v1038 = vadd.f32 %v628, %v960
      %v1039 = vadd.f32 %v631, %v963
      %v1040 = vadd.f32 %v636, %v968
      %v1041 = vadd.f32 %v639, %v971
      %v1042 = vadd.f32 %v644, %v976
      %v1043 = vadd.f32 %v647, %v979
      %v1044 = vadd.f32 %v652, %v984
      %v1045 = vadd.f32 %v655, %v987
      %v1046 = vadd.f32 %v660, %v992
      %v1047 = vadd.f32 %v663, %v995
      %v1048 = vadd.f32 %v668, %v1000
      %v1049 = vadd.f32 %v671, %v1003
      %v1050 = vadd.f32 %v676, %v1008
      %v1051 = vadd.f32 %v679, %v1011
      %v1052 = vadd.f32 %v684, %v1016
      %v1053 = vadd.f32 %v687, %v1019
      %v1054 = vld [vmem:[%s2] sm:$0x1]
      %v1056 = vlaneseq
      %v1057 = vshrl.u32 %v1056, 7
      %v1058 = vsub.s32 0, %v1057
      %v1059 = vrot.slane %v1054, %v1058
      %v1061 = vadd.f32 %v1022, %v1059
      %v1062 = vadd.f32 %v1023, %v1059
      %v1063 = vadd.f32 %v1024, %v1059
      %v1064 = vadd.f32 %v1025, %v1059
      %v1065 = vadd.f32 %v1026, %v1059
      %v1066 = vadd.f32 %v1027, %v1059
      %v1067 = vadd.f32 %v1028, %v1059
      %v1068 = vadd.f32 %v1029, %v1059
      %v1069 = vadd.f32 %v1030, %v1059
      %v1070 = vadd.f32 %v1031, %v1059
      %v1071 = vadd.f32 %v1032, %v1059
      %v1072 = vadd.f32 %v1033, %v1059
      %v1073 = vadd.f32 %v1034, %v1059
      %v1074 = vadd.f32 %v1035, %v1059
      %v1075 = vadd.f32 %v1036, %v1059
      %v1076 = vadd.f32 %v1037, %v1059
      %v1077 = vadd.f32 %v1038, %v1059
      %v1078 = vadd.f32 %v1039, %v1059
      %v1079 = vadd.f32 %v1040, %v1059
      %v1080 = vadd.f32 %v1041, %v1059
      %v1081 = vadd.f32 %v1042, %v1059
      %v1082 = vadd.f32 %v1043, %v1059
      %v1083 = vadd.f32 %v1044, %v1059
      %v1084 = vadd.f32 %v1045, %v1059
      %v1085 = vadd.f32 %v1046, %v1059
      %v1086 = vadd.f32 %v1047, %v1059
      %v1087 = vadd.f32 %v1048, %v1059
      %v1088 = vadd.f32 %v1049, %v1059
      %v1089 = vadd.f32 %v1050, %v1059
      %v1090 = vadd.f32 %v1051, %v1059
      %v1091 = vadd.f32 %v1052, %v1059
      %v1092 = vadd.f32 %v1053, %v1059
      %v1093 = vmax.f32 %v1061, 0.0
      %v1094 = vmax.f32 %v1062, 0.0
      %v1095 = vmax.f32 %v1063, 0.0
      %v1096 = vmax.f32 %v1064, 0.0
      %v1097 = vmax.f32 %v1065, 0.0
      %v1098 = vmax.f32 %v1066, 0.0
      %v1099 = vmax.f32 %v1067, 0.0
      %v1100 = vmax.f32 %v1068, 0.0
      %v1101 = vmax.f32 %v1069, 0.0
      %v1102 = vmax.f32 %v1070, 0.0
      %v1103 = vmax.f32 %v1071, 0.0
      %v1104 = vmax.f32 %v1072, 0.0
      %v1105 = vmax.f32 %v1073, 0.0
      %v1106 = vmax.f32 %v1074, 0.0
      %v1107 = vmax.f32 %v1075, 0.0
      %v1108 = vmax.f32 %v1076, 0.0
      %v1109 = vmax.f32 %v1077, 0.0
      %v1110 = vmax.f32 %v1078, 0.0
      %v1111 = vmax.f32 %v1079, 0.0
      %v1112 = vmax.f32 %v1080, 0.0
      %v1113 = vmax.f32 %v1081, 0.0
      %v1114 = vmax.f32 %v1082, 0.0
      %v1115 = vmax.f32 %v1083, 0.0
      %v1116 = vmax.f32 %v1084, 0.0
      %v1117 = vmax.f32 %v1085, 0.0
      %v1118 = vmax.f32 %v1086, 0.0
      %v1119 = vmax.f32 %v1087, 0.0
      %v1120 = vmax.f32 %v1088, 0.0
      %v1121 = vmax.f32 %v1089, 0.0
      %v1122 = vmax.f32 %v1090, 0.0
      %v1123 = vmax.f32 %v1091, 0.0
      %v1124 = vmax.f32 %v1092, 0.0
      %vm1125 = vcmask 64512
      %1126 = vst.msk [vmem:[%s170] sm:$0xff] %vm1125, %v1093
      %1127 = vst.msk [vmem:[%s170 + $0x8] sm:$0xff] %vm1125, %v1094
      %1128 = vst.msk [vmem:[%s170 + $0x10] sm:$0xff] %vm1125, %v1095
      %1129 = vst.msk [vmem:[%s170 + $0x18] sm:$0xff] %vm1125, %v1096
      %1130 = vst.msk [vmem:[%s170 + $0x20] sm:$0xff] %vm1125, %v1097
      %1131 = vst.msk [vmem:[%s170 + $0x28] sm:$0xff] %vm1125, %v1098
      %1132 = vst.msk [vmem:[%s170 + $0x30] sm:$0xff] %vm1125, %v1099
      %1133 = vst.msk [vmem:[%s170 + $0x38] sm:$0xff] %vm1125, %v1100
      %1134 = vst.msk [vmem:[%s170 + $0x40] sm:$0xff] %vm1125, %v1101
      %1135 = vst.msk [vmem:[%s170 + $0x48] sm:$0xff] %vm1125, %v1102
      %1136 = vst.msk [vmem:[%s170 + $0x50] sm:$0xff] %vm1125, %v1103
      %1137 = vst.msk [vmem:[%s170 + $0x58] sm:$0xff] %vm1125, %v1104
      %1138 = vst.msk [vmem:[%s170 + $0x60] sm:$0xff] %vm1125, %v1105
      %1139 = vst.msk [vmem:[%s170 + $0x68] sm:$0xff] %vm1125, %v1106
      %1140 = vst.msk [vmem:[%s170 + $0x70] sm:$0xff] %vm1125, %v1107
      %1141 = vst.msk [vmem:[%s170 + $0x78] sm:$0xff] %vm1125, %v1108
      %1142 = vst.msk [vmem:[%s170 + $0x80] sm:$0xff] %vm1125, %v1109
      %1143 = vst.msk [vmem:[%s170 + $0x88] sm:$0xff] %vm1125, %v1110
      %1144 = vst.msk [vmem:[%s170 + $0x90] sm:$0xff] %vm1125, %v1111
      %1145 = vst.msk [vmem:[%s170 + $0x98] sm:$0xff] %vm1125, %v1112
      %1146 = vst.msk [vmem:[%s170 + $0xa0] sm:$0xff] %vm1125, %v1113
      %1147 = vst.msk [vmem:[%s170 + $0xa8] sm:$0xff] %vm1125, %v1114
      %1148 = vst.msk [vmem:[%s170 + $0xb0] sm:$0xff] %vm1125, %v1115
      %1149 = vst.msk [vmem:[%s170 + $0xb8] sm:$0xff] %vm1125, %v1116
      %1150 = vst.msk [vmem:[%s170 + $0xc0] sm:$0xff] %vm1125, %v1117
      %1151 = vst.msk [vmem:[%s170 + $0xc8] sm:$0xff] %vm1125, %v1118
      %1152 = vst.msk [vmem:[%s170 + $0xd0] sm:$0xff] %vm1125, %v1119
      %1153 = vst.msk [vmem:[%s170 + $0xd8] sm:$0xff] %vm1125, %v1120
      %1154 = vst.msk [vmem:[%s170 + $0xe0] sm:$0xff] %vm1125, %v1121
      %1155 = vst.msk [vmem:[%s170 + $0xe8] sm:$0xff] %vm1125, %v1122
      %1156 = vst.msk [vmem:[%s170 + $0xf0] sm:$0xff] %vm1125, %v1123
      %1157 = vst.msk [vmem:[%s170 + $0xf8] sm:$0xff] %vm1125, %v1124
      %p1158 = scmp.lt.s32.totalorder %s14, 1
      %s1159 = scalar_select %p1158, %s14, 1
      %s1160 = smul.addr %s1159, 32
      %s1161 = smul.addr %s1160, 8
      %s1162 = scalar_lea.vmem %s3, %s1161
      // Predicated region
      $region33: #{vgg_forward.13} parent=31 // pred_check
        %p1163 = pneg %p100
      $region34: #{vgg_forward.13} parent=31 // pred_check_branch
        %1165 = sbr.rel (%p1163) target = $region36
      $region35: #{vgg_forward.13} parent=31 // pred_region
        _
      $region36: #{vgg_forward.13} parent=31 // pred_fallthru
        _
    $region32: #{vgg_forward.13} parent=5 // pred_fallthru
      _
    %p1166 = scmp.le.s32.totalorder 2, %s9
    // Predicated region
    $region37: #{vgg_forward.13} parent=5 // pred_check
      %p1167 = pneg %p1166
    $region38: #{vgg_forward.13} parent=5 // pred_check_branch
      %1169 = sbr.rel (%p1167) target = $region40
    $region39: #{vgg_forward.13} parent=5 // pred_region
      %s1170 = ssub.s32 %s9, 2
      // Predicated region
      $region41: #{vgg_forward.13} parent=39 // pred_check
        %p1171 = pneg %p106
      $region42: #{vgg_forward.13} parent=39 // pred_check_branch
        %1173 = sbr.rel (%p1171) target = $region44
      $region43: #{vgg_forward.13} parent=39 // pred_region
        %p1174 = scmp.lt.s32.totalorder %s15, 1
        %s1175 = scalar_select %p1174, %s15, 1
        %s1176 = smul.addr %s1175, 32
        %s1177 = smul.addr %s1176, 8
        %s1178 = scalar_lea.vmem %s3, %s1177
      $region44: #{vgg_forward.13} parent=39 // pred_fallthru
        _
    $region40: #{vgg_forward.13} parent=5 // pred_fallthru
      _
  $region6: #{vgg_forward.13} parent=0 // loop_footer
    %s13 = sadd.s32 1, %s9
  $region7: #{vgg_forward.13} parent=0 // loop_footer_branch
    %8 = sbr.rel target = $region3
  $region8: #{vgg_forward.13} parent=0 // loop_exit
    _

// kernel: vgg_forward.14
$region0: #{vgg_forward.14}
  #allocation0 [shape = 'u32[]', space=smem, size = 0x4, offset = 0x4, fixed_abs, tag = 'smem constant byte address 0x4 - core index']
  #allocation1 [shape = 'u32[144,128]{1,0:T(1,128)}', space=vmem, size = 0x12000, scoped, tag = 'internal scratch']
  %s0 = inlined_call_operand.vmem [shape: bf16[2,288,24], index: 0, kind: input, shape index: {}]
  %s1 = inlined_call_operand.vmem [shape: bf16[3,24,8], index: 1, kind: input, shape index: {}]
  %s2 = inlined_call_operand.vmem [shape: f32[1,8], index: 2, kind: input, shape index: {}]
  %s3 = inlined_call_operand.vmem [shape: f32[2,256,8], index: 3, kind: output, shape index: {}]
  %s4 = sld [smem:[#allocation0]]
  $region45: #{vgg_forward.14} parent=0
    _
  %s6 = ssub.s32 1, %s4
  %s7 = scalar_select 0, %s6, %s4
  loop: start=0, step=1, limit=4
  $region2: #{vgg_forward.14} parent=0 // loop_pre_header
    _
  $region3: #{vgg_forward.14} parent=0 // loop_header
    %s9 = sphi 0, %s13
    %p10 = scmp.ge.s32.totalorder %s9, 4
    %s19 = sphi 0, %s21
    %s22 = sphi 0, %s19
    %s23 = sphi 0, %s22
    %s39 = sphi 0, %s23
    %s43 = sphi 0, %s43
    %s45 = sphi 0, %s43
    %s46 = sphi 0, %s45
    %s60 = sphi 0, %s46
    %s64 = sphi 0, %s64
    %s66 = sphi 0, %s64
    %s67 = sphi 0, %s66
    %s81 = sphi 0, %s67
    %s87 = sphi 0, %s89
    %s90 = sphi 0, %s87
    %s91 = sphi 0, %s90
    %s107 = sphi 0, %s91
  $region4: #{vgg_forward.14} parent=0 // loop_header_branch
    %12 = sbr.rel (%p10) target = $region8
  $region5: #{vgg_forward.14} parent=0 // loop_body
    %s14 = ssub.s32 %s9, 1
    %s15 = ssub.s32 %s9, 2
    %s16 = sadd.s32 %s9, 1
    %s17 = ssub.s32 %s9, %s16
    %p18 = scmp.eq.s32.totalorder %s17, 0
    %s20 = sadd.s32 %s19, 1
    %s21 = scalar_select %p18, %s19, %s20
    %p24 = pneg %p18
    %p25 = scmp.eq.s32.totalorder %s9, 1
    %p26 = por %p24, %p25
    %p27 = scmp.ne.s32.totalorder %s19, %s22
    %p28 = scmp.eq.s32.totalorder %s9, 0
    %p29 = por %p27, %p28
    %p30 = scmp.ne.s32.totalorder %s19, %s22
    %p31 = scmp.eq.s32.totalorder %s14, 1
    %p32 = por %p30, %p31
    %p33 = scmp.ne.s32.totalorder %s22, %s23
    %p34 = scmp.eq.s32.totalorder %s14, 0
    %p35 = por %p33, %p34
    %p36 = scmp.ne.s32.totalorder %s22, %s23
    %p37 = scmp.eq.s32.totalorder %s15, 1
    %p38 = por %p36, %p37
    %p40 = scmp.ne.s32.totalorder %s23, %s39
    %p41 = scmp.eq.s32.totalorder %s15, 0
    %p42 = por %p40, %p41
    %s44 = sadd.s32 %s43, 1
    %p47 = scmp.eq.s32.totalorder %s9, 1
    %p48 = scmp.ne.s32.totalorder %s43, %s45
    %p49 = scmp.eq.s32.totalorder %s9, 0
    %p50 = por %p48, %p49
    %p51 = scmp.ne.s32.totalorder %s43, %s45
    %p52 = scmp.eq.s32.totalorder %s14, 1
    %p53 = por %p51, %p52
    %p54 = scmp.ne.s32.totalorder %s45, %s46
    %p55 = scmp.eq.s32.totalorder %s14, 0
    %p56 = por %p54, %p55
    %p57 = scmp.ne.s32.totalorder %s45, %s46
    %p58 = scmp.eq.s32.totalorder %s15, 1
    %p59 = por %p57, %p58
    %p61 = scmp.ne.s32.totalorder %s46, %s60
    %p62 = scmp.eq.s32.totalorder %s15, 0
    %p63 = por %p61, %p62
    %s65 = sadd.s32 %s64, 1
    %p68 = scmp.eq.s32.totalorder %s9, 1
    %p69 = scmp.ne.s32.totalorder %s64, %s66
    %p70 = scmp.eq.s32.totalorder %s9, 0
    %p71 = por %p69, %p70
    %p72 = scmp.ne.s32.totalorder %s64, %s66
    %p73 = scmp.eq.s32.totalorder %s14, 1
    %p74 = por %p72, %p73
    %p75 = scmp.ne.s32.totalorder %s66, %s67
    %p76 = scmp.eq.s32.totalorder %s14, 0
    %p77 = por %p75, %p76
    %p78 = scmp.ne.s32.totalorder %s66, %s67
    %p79 = scmp.eq.s32.totalorder %s15, 1
    %p80 = por %p78, %p79
    %p82 = scmp.ne.s32.totalorder %s67, %s81
    %p83 = scmp.eq.s32.totalorder %s15, 0
    %p84 = por %p82, %p83
    %s85 = ssub.s32 %s9, %s16
    %p86 = scmp.eq.s32.totalorder %s85, 0
    %s88 = sadd.s32 %s87, 1
    %s89 = scalar_select %p86, %s87, %s88
    %p92 = pneg %p86
    %p93 = scmp.eq.s32.totalorder %s9, 1
    %p94 = por %p92, %p93
    %p95 = scmp.ne.s32.totalorder %s87, %s90
    %p96 = scmp.eq.s32.totalorder %s9, 0
    %p97 = por %p95, %p96
    %p98 = scmp.ne.s32.totalorder %s87, %s90
    %p99 = scmp.eq.s32.totalorder %s14, 1
    %p100 = por %p98, %p99
    %p101 = scmp.ne.s32.totalorder %s90, %s91
    %p102 = scmp.eq.s32.totalorder %s14, 0
    %p103 = por %p101, %p102
    %p104 = scmp.ne.s32.totalorder %s90, %s91
    %p105 = scmp.eq.s32.totalorder %s15, 1
    %p106 = por %p104, %p105
    %p108 = scmp.ne.s32.totalorder %s91, %s107
    %p109 = scmp.eq.s32.totalorder %s15, 0
    %p110 = por %p108, %p109
    %p111 = scmp.le.s32.totalorder 1, %s9
    %p112 = scmp.lt.s32.totalorder %s9, 3
    %p113 = pnand %p111, %p112
    %p114 = pneg %p113
    // Predicated region
    $region9: #{vgg_forward.14} parent=5 // pred_check
      _
    $region10: #{vgg_forward.14} parent=5 // pred_check_branch
      %116 = sbr.rel (%p113) target = $region12
    $region11: #{vgg_forward.14} parent=5 // pred_region
      %s117 = ssub.s32 %s9, 1
      // Predicated region
      $region13: #{vgg_forward.14} parent=11 // pred_check
        %p118 = pneg %p56
      $region14: #{vgg_forward.14} parent=11 // pred_check_branch
        %120 = sbr.rel (%p118) target = $region16
      $region15: #{vgg_forward.14} parent=11 // pred_region
        _
      $region16: #{vgg_forward.14} parent=11 // pred_fallthru
        _
      // Predicated region
      $region17: #{vgg_forward.14} parent=11 // pred_check
        %p121 = pneg %p77
      $region18: #{vgg_forward.14} parent=11 // pred_check_branch
        %123 = sbr.rel (%p121) target = $region20
      $region19: #{vgg_forward.14} parent=11 // pred_region
        _
      $region20: #{vgg_forward.14} parent=11 // pred_fallthru
        _
    $region12: #{vgg_forward.14} parent=5 // pred_fallthru
      _
    %p124 = scmp.lt.s32.totalorder %s9, 2
    // Predicated region
    $region21: #{vgg_forward.14} parent=5 // pred_check
      %p125 = pneg %p124
    $region22: #{vgg_forward.14} parent=5 // pred_check_branch
      %127 = sbr.rel (%p125) target = $region24
    $region23: #{vgg_forward.14} parent=5 // pred_region
      // Predicated region
      $region25: #{vgg_forward.14} parent=23 // pred_check
        %p128 = pneg %p29
      $region26: #{vgg_forward.14} parent=23 // pred_check_branch
        %130 = sbr.rel (%p128) target = $region28
      $region27: #{vgg_forward.14} parent=23 // pred_region
        %p131 = scmp.lt.s32.totalorder %s9, 1
        %s132 = scalar_select %p131, %s9, 1
        %s133 = smul.addr %s132, 36
        %s134 = smul.addr %s133, 4
        %s135 = scalar_lea.vmem %s0, %s134
      $region28: #{vgg_forward.14} parent=23 // pred_fallthru
        _
    $region24: #{vgg_forward.14} parent=5 // pred_fallthru
      _
    %p136 = scmp.le.s32.totalorder 1, %s9
    %p137 = scmp.lt.s32.totalorder %s9, 3
    %p138 = pnand %p136, %p137
    %p139 = pneg %p138
    // Predicated region
    $region29: #{vgg_forward.14} parent=5 // pred_check
      _
    $region30: #{vgg_forward.14} parent=5 // pred_check_branch
      %141 = sbr.rel (%p138) target = $region32
    $region31: #{vgg_forward.14} parent=5 // pred_region
      %s142 = ssub.s32 %s9, 1
      %p143 = scmp.lt.s32.totalorder %s14, 1
      %s144 = scalar_select %p143, %s14, 1
      %s145 = smul.addr %s144, 36
      %s146 = smul.addr %s145, 4
      %s147 = scalar_lea.vmem %s0, %s146
      %p148 = pneg %p35
      %p149 = pneg %p32
      %p150 = pneg %p56
      %p151 = pneg %p53
      %p152 = pneg %p77
      %p153 = pneg %p74
      %p154 = pneg %p103
      %p155 = pneg %p100
      %p156 = scmp.lt.s32.totalorder %s14, 1
      %s157 = scalar_select %p156, %s14, 1
      %s158 = smul.addr %s157, 32
      %s159 = smul.addr %s158, 8
      %s160 = scalar_lea.vmem %s3, %s159
      %p161 = scmp.lt.s32.totalorder %s14, 1
      %s162 = scalar_select %p161, %s14, 1
      %s163 = smul.addr %s162, 36
      %s164 = smul.addr %s163, 4
      %s165 = scalar_lea.vmem %s0, %s164
      %p166 = scmp.lt.s32.totalorder %s14, 1
      %s167 = scalar_select %p166, %s14, 1
      %s168 = smul.addr %s167, 32
      %s169 = smul.addr %s168, 8
      %s170 = scalar_lea.vmem %s3, %s169
      %v172 = vld [vmem:[%s165] sm:$0xf]
      %v173 = vld [vmem:[%s165 + $0x4] sm:$0xf]
      %v174 = vld [vmem:[%s165 + $0x8] sm:$0xf]
      %v175 = vld [vmem:[%s165 + $0xc] sm:$0xf]
      %v176 = vld [vmem:[%s165 + $0x10] sm:$0xf]
      %v177 = vld [vmem:[%s165 + $0x14] sm:$0xf]
      %v178 = vld [vmem:[%s165 + $0x18] sm:$0xf]
      %v179 = vld [vmem:[%s165 + $0x1c] sm:$0xf]
      %v180 = vld [vmem:[%s165 + $0x20] sm:$0xf]
      %v181 = vld [vmem:[%s165 + $0x24] sm:$0xf]
      %v182 = vld [vmem:[%s165 + $0x28] sm:$0xf]
      %v183 = vld [vmem:[%s165 + $0x2c] sm:$0xf]
      %v184 = vld [vmem:[%s165 + $0x30] sm:$0xf]
      %v185 = vld [vmem:[%s165 + $0x34] sm:$0xf]
      %v186 = vld [vmem:[%s165 + $0x38] sm:$0xf]
      %v187 = vld [vmem:[%s165 + $0x3c] sm:$0xf]
      %v188 = vld [vmem:[%s165 + $0x40] sm:$0xf]
      %v189 = vld [vmem:[%s165 + $0x44] sm:$0xf]
      %v190 = vld [vmem:[%s165 + $0x48] sm:$0xf]
      %v191 = vld [vmem:[%s165 + $0x4c] sm:$0xf]
      %v192 = vld [vmem:[%s165 + $0x50] sm:$0xf]
      %v193 = vld [vmem:[%s165 + $0x54] sm:$0xf]
      %v194 = vld [vmem:[%s165 + $0x58] sm:$0xf]
      %v195 = vld [vmem:[%s165 + $0x5c] sm:$0xf]
      %v196 = vld [vmem:[%s165 + $0x60] sm:$0xf]
      %v197 = vld [vmem:[%s165 + $0x64] sm:$0xf]
      %v198 = vld [vmem:[%s165 + $0x68] sm:$0xf]
      %v199 = vld [vmem:[%s165 + $0x6c] sm:$0xf]
      %v200 = vld [vmem:[%s165 + $0x70] sm:$0xf]
      %v201 = vld [vmem:[%s165 + $0x74] sm:$0xf]
      %v202 = vld [vmem:[%s165 + $0x78] sm:$0xf]
      %v203 = vld [vmem:[%s165 + $0x7c] sm:$0xf]
      %v204 = vld [vmem:[%s1] sm:$0xf]
      %v205 = vld [vmem:[%s1 + $0x4] sm:$0xf]
      %v206 = vld [vmem:[%s1 + $0x8] sm:$0xf]
      %v207 = vld [vmem:[%s165 + $0x80] sm:$0xf]
      %v208 = vld [vmem:[%s165 + $0x84] sm:$0xf]
      %s209 = scalar_lea.vmem %s1, 12
      %v210 = vld [vmem:[%s209] sm:$0xf]
      %v211 = vld [vmem:[%s209 + $0x4] sm:$0xf]
      %v212 = vld [vmem:[%s209 + $0x8] sm:$0xf]
      %v245 = vunpack.c.l.b16 %v174
      %v246 = vunpack.c.l.b16 %v175
      %v247 = vunpack.c.l.b16 %v176
      %v248 = vunpack.c.l.b16 %v177
      %v249 = vunpack.c.l.b16 %v178
      %v250 = vunpack.c.l.b16 %v179
      %v251 = vunpack.c.l.b16 %v180
      %v252 = vunpack.c.l.b16 %v181
      %v253 = vunpack.c.l.b16 %v182
      %v254 = vunpack.c.l.b16 %v183
      %v255 = vunpack.c.l.b16 %v184
      %v256 = vunpack.c.l.b16 %v185
      %v257 = vunpack.c.l.b16 %v186
      %v258 = vunpack.c.l.b16 %v187
      %v259 = vunpack.c.l.b16 %v188
      %v260 = vunpack.c.l.b16 %v189
      %v261 = vunpack.c.l.b16 %v190
      %v262 = vunpack.c.l.b16 %v191
      %v263 = vunpack.c.l.b16 %v192
      %v264 = vunpack.c.l.b16 %v193
      %v265 = vunpack.c.l.b16 %v194
      %v266 = vunpack.c.l.b16 %v195
      %v267 = vunpack.c.l.b16 %v196
      %v268 = vunpack.c.l.b16 %v197
      %v269 = vunpack.c.l.b16 %v198
      %v270 = vunpack.c.l.b16 %v199
      %v271 = vunpack.c.l.b16 %v200
      %v272 = vunpack.c.l.b16 %v201
      %v273 = vunpack.c.l.b16 %v202
      %v274 = vunpack.c.l.b16 %v203
      %v275 = vunpack.c.l.b16 %v207
      %v276 = vunpack.c.l.b16 %v208
      %v277 = vpack.c.b16 %v246, %v245
      %v278 = vpack.c.b16 %v248, %v247
      %v279 = vpack.c.b16 %v250, %v249
      %v280 = vpack.c.b16 %v252, %v251
      %v281 = vpack.c.b16 %v254, %v253
      %v282 = vpack.c.b16 %v256, %v255
      %v283 = vpack.c.b16 %v258, %v257
      %v284 = vpack.c.b16 %v260, %v259
      %v285 = vpack.c.b16 %v262, %v261
      %v286 = vpack.c.b16 %v264, %v263
      %v287 = vpack.c.b16 %v266, %v265
      %v288 = vpack.c.b16 %v268, %v267
      %v289 = vpack.c.b16 %v270, %v269
      %v290 = vpack.c.b16 %v272, %v271
      %v291 = vpack.c.b16 %v274, %v273
      %v292 = vpack.c.b16 %v276, %v275
      %v296 = vunpack.c.l.b16 %v210
      %v297 = vunpack.c.l.b16 %v211
      %v298 = vunpack.c.l.b16 %v212
      %v299 = vpack.c.b16 %v297, %v296
      %v300 = vpack.c.b16 %v298, %v298
      %vm302 = vcmask 195584
      %v304 = vsel %vm302, %v277, 0
      %v307 = vsel %vm302, %v278, 0
      %v310 = vsel %vm302, %v279, 0
      %v313 = vsel %vm302, %v280, 0
      %v316 = vsel %vm302, %v281, 0
      %v319 = vsel %vm302, %v282, 0
      %v322 = vsel %vm302, %v283, 0
      %v325 = vsel %vm302, %v284, 0
      %v328 = vsel %vm302, %v285, 0
      %v331 = vsel %vm302, %v286, 0
      %v334 = vsel %vm302, %v287, 0
      %v337 = vsel %vm302, %v288, 0
      %v340 = vsel %vm302, %v289, 0
      %v343 = vsel %vm302, %v290, 0
      %v346 = vsel %vm302, %v291, 0
      %v349 = vsel %vm302, %v292, 0
      %vm351 = vcmask 1043456
      %v353 = vsel %vm351, %v300, 0
      %355 = vmatprep.subr.bf16.mxu0 0
      %356 = vmatpush1.bf16.msra.mxu0 0
      %357 = vmatprep.subr.bf16.mxu0 0
      %358 = vmatpush1.bf16.msra.mxu0 0
      %359 = vmatprep.subr.bf16.mxu0 0
      %360 = vmatpush1.bf16.msra.mxu0 0
      %361 = vmatprep.subr.bf16.mxu0 0
      %362 = vmatpush1.bf16.msra.mxu0 0
      %363 = vmatprep.subr.bf16.mxu0 0
      %364 = vmatpush1.bf16.msra.mxu0 0
      %365 = vmatprep.subr.bf16.mxu0 0
      %366 = vmatpush1.bf16.msra.mxu0 0
      %367 = vmatprep.subr.bf16.mxu0 0
      %368 = vmatpush1.bf16.msra.mxu0 %v353
      %369 = vmatprep.subr.bf16.mxu0 0
      %370 = vmatpush1.bf16.msra.mxu0 %v299
      %371 = vmatprep.subr.bf16.mxu0 0
      %372 = vmatpush2.bf16.msra.mxu0 0
      %373 = vmatprep.subr.bf16.mxu0 0
      %374 = vmatpush2.bf16.msra.mxu0 0
      %375 = vmatprep.subr.bf16.mxu0 0
      %376 = vmatpush2.bf16.msra.mxu0 0
      %377 = vmatprep.subr.bf16.mxu0 0
      %378 = vmatpush2.bf16.msra.mxu0 0
      %379 = vmatprep.subr.bf16.mxu0 0
      %380 = vmatpush2.bf16.msra.mxu0 0
      %381 = vmatprep.subr.bf16.mxu0 0
      %382 = vmatpush2.bf16.msra.mxu0 0
      %383 = vmatprep.subr.bf16.mxu0 0
      %384 = vmatpush2.bf16.msra.mxu0 0
      %385 = vmatprep.subr.bf16.mxu0 0
      %386 = vmatpush2.bf16.msra.mxu0 0
      %387 = vmatprep.mubr.bf16.mxu0 0
      %388 = vmatmul.mubr.bf16.gmra.mxu0 %v304
      %v389 = vpop.f32.mrf.mxu0
      %v390 = vadd.f32 0.0, %v389
      %v391 = vpop.f32.mrf.mxu0
      %v392 = vpop.f32.mrf.mxu0
      %v393 = vadd.f32 0.0, %v392
      %v394 = vpop.f32.mrf.mxu0
      %395 = vmatprep.mubr.bf16.mxu0 0
      %396 = vmatmul.mubr.bf16.gmra.mxu0 %v307
      %v397 = vpop.f32.mrf.mxu0
      %v398 = vadd.f32 0.0, %v397
      %v399 = vpop.f32.mrf.mxu0
      %v400 = vpop.f32.mrf.mxu0
      %v401 = vadd.f32 0.0, %v400
      %v402 = vpop.f32.mrf.mxu0
      %403 = vmatprep.mubr.bf16.mxu0 0
      %404 = vmatmul.mubr.bf16.gmra.mxu0 %v310
      %v405 = vpop.f32.mrf.mxu0
      %v406 = vadd.f32 0.0, %v405
      %v407 = vpop.f32.mrf.mxu0
      %v408 = vpop.f32.mrf.mxu0
      %v409 = vadd.f32 0.0, %v408
      %v410 = vpop.f32.mrf.mxu0
      %411 = vmatprep.mubr.bf16.mxu0 0
      %412 = vmatmul.mubr.bf16.gmra.mxu0 %v313
      %v413 = vpop.f32.mrf.mxu0
      %v414 = vadd.f32 0.0, %v413
      %v415 = vpop.f32.mrf.mxu0
      %v416 = vpop.f32.mrf.mxu0
      %v417 = vadd.f32 0.0, %v416
      %v418 = vpop.f32.mrf.mxu0
      %419 = vmatprep.mubr.bf16.mxu0 0
      %420 = vmatmul.mubr.bf16.gmra.mxu0 %v316
      %v421 = vpop.f32.mrf.mxu0
      %v422 = vadd.f32 0.0, %v421
      %v423 = vpop.f32.mrf.mxu0
      %v424 = vpop.f32.mrf.mxu0
      %v425 = vadd.f32 0.0, %v424
      %v426 = vpop.f32.mrf.mxu0
      %427 = vmatprep.mubr.bf16.mxu0 0
      %428 = vmatmul.mubr.bf16.gmra.mxu0 %v319
      %v429 = vpop.f32.mrf.mxu0
      %v430 = vadd.f32 0.0, %v429
      %v431 = vpop.f32.mrf.mxu0
      %v432 = vpop.f32.mrf.mxu0
      %v433 = vadd.f32 0.0, %v432
      %v434 = vpop.f32.mrf.mxu0
      %435 = vmatprep.mubr.bf16.mxu0 0
      %436 = vmatmul.mubr.bf16.gmra.mxu0 %v322
      %v437 = vpop.f32.mrf.mxu0
      %v438 = vadd.f32 0.0, %v437
      %v439 = vpop.f32.mrf.mxu0
      %v440 = vpop.f32.mrf.mxu0
      %v441 = vadd.f32 0.0, %v440
      %v442 = vpop.f32.mrf.mxu0
      %443 = vmatprep.mubr.bf16.mxu0 0
      %444 = vmatmul.mubr.bf16.gmra.mxu0 %v325
      %v445 = vpop.f32.mrf.mxu0
      %v446 = vadd.f32 0.0, %v445
      %v447 = vpop.f32.mrf.mxu0
      %v448 = vpop.f32.mrf.mxu0
      %v449 = vadd.f32 0.0, %v448
      %v450 = vpop.f32.mrf.mxu0
      %451 = vmatprep.mubr.bf16.mxu0 0
      %452 = vmatmul.mubr.bf16.gmra.mxu0 %v328
      %v453 = vpop.f32.mrf.mxu0
      %v454 = vadd.f32 0.0, %v453
      %v455 = vpop.f32.mrf.mxu0
      %v456 = vpop.f32.mrf.mxu0
      %v457 = vadd.f32 0.0, %v456
      %v458 = vpop.f32.mrf.mxu0
      %459 = vmatprep.mubr.bf16.mxu0 0
      %460 = vmatmul.mubr.bf16.gmra.mxu0 %v331
      %v461 = vpop.f32.mrf.mxu0
      %v462 = vadd.f32 0.0, %v461
      %v463 = vpop.f32.mrf.mxu0
      %v464 = vpop.f32.mrf.mxu0
      %v465 = vadd.f32 0.0, %v464
      %v466 = vpop.f32.mrf.mxu0
      %467 = vmatprep.mubr.bf16.mxu0 0
      %468 = vmatmul.mubr.bf16.gmra.mxu0 %v334
      %v469 = vpop.f32.mrf.mxu0
      %v470 = vadd.f32 0.0, %v469
      %v471 = vpop.f32.mrf.mxu0
      %v472 = vpop.f32.mrf.mxu0
      %v473 = vadd.f32 0.0, %v472
      %v474 = vpop.f32.mrf.mxu0
      %475 = vmatprep.mubr.bf16.mxu0 0
      %476 = vmatmul.mubr.bf16.gmra.mxu0 %v337
      %v477 = vpop.f32.mrf.mxu0
      %v478 = vadd.f32 0.0, %v477
      %v479 = vpop.f32.mrf.mxu0
      %v480 = vpop.f32.mrf.mxu0
      %v481 = vadd.f32 0.0, %v480
      %v482 = vpop.f32.mrf.mxu0
      %483 = vmatprep.mubr.bf16.mxu0 0
      %484 = vmatmul.mubr.bf16.gmra.mxu0 %v340
      %v485 = vpop.f32.mrf.mxu0
      %v486 = vadd.f32 0.0, %v485
      %v487 = vpop.f32.mrf.mxu0
      %v488 = vpop.f32.mrf.mxu0
      %v489 = vadd.f32 0.0, %v488
      %v490 = vpop.f32.mrf.mxu0
      %491 = vmatprep.mubr.bf16.mxu0 0
      %492 = vmatmul.mubr.bf16.gmra.mxu0 %v343
      %v493 = vpop.f32.mrf.mxu0
      %v494 = vadd.f32 0.0, %v493
      %v495 = vpop.f32.mrf.mxu0
      %v496 = vpop.f32.mrf.mxu0
      %v497 = vadd.f32 0.0, %v496
      %v498 = vpop.f32.mrf.mxu0
      %499 = vmatprep.mubr.bf16.mxu0 0
      %500 = vmatmul.mubr.bf16.gmra.mxu0 %v346
      %v501 = vpop.f32.mrf.mxu0
      %v502 = vadd.f32 0.0, %v501
      %v503 = vpop.f32.mrf.mxu0
      %v504 = vpop.f32.mrf.mxu0
      %v505 = vadd.f32 0.0, %v504
      %v506 = vpop.f32.mrf.mxu0
      %507 = vmatprep.mubr.bf16.mxu0 0
      %508 = vmatmul.mubr.bf16.gmra.mxu0 %v349
      %v509 = vpop.f32.mrf.mxu0
      %v510 = vadd.f32 0.0, %v509
      %v511 = vpop.f32.mrf.mxu0
      %v512 = vpop.f32.mrf.mxu0
      %v513 = vadd.f32 0.0, %v512
      %v514 = vpop.f32.mrf.mxu0
      %515 = vdwg.mxu0
      %v518 = vunpack.c.l.b16 %v172
      %v519 = vunpack.c.l.b16 %v173
      %v520 = vpack.c.b16 %v519, %v518
      %v524 = vunpack.c.l.b16 %v204
      %v525 = vunpack.c.l.b16 %v205
      %v526 = vunpack.c.l.b16 %v206
      %v527 = vpack.c.b16 %v525, %v524
      %v528 = vpack.c.b16 %v526, %v526
      %v531 = vsel %vm302, %v520, 0
      %v534 = vsel %vm351, %v528, 0
      %536 = vmatprep.subr.bf16.mxu0 0
      %537 = vmatpush1.bf16.msra.mxu0 0
      %538 = vmatprep.subr.bf16.mxu0 0
      %539 = vmatpush1.bf16.msra.mxu0 0
      %540 = vmatprep.subr.bf16.mxu0 0
      %541 = vmatpush1.bf16.msra.mxu0 0
      %542 = vmatprep.subr.bf16.mxu0 0
      %543 = vmatpush1.bf16.msra.mxu0 0
      %544 = vmatprep.subr.bf16.mxu0 0
      %545 = vmatpush1.bf16.msra.mxu0 0
      %546 = vmatprep.subr.bf16.mxu0 0
      %547 = vmatpush1.bf16.msra.mxu0 0
      %548 = vmatprep.subr.bf16.mxu0 0
      %549 = vmatpush1.bf16.msra.mxu0 %v534
      %550 = vmatprep.subr.bf16.mxu0 0
      %551 = vmatpush1.bf16.msra.mxu0 %v527
      %552 = vmatprep.subr.bf16.mxu0 0
      %553 = vmatpush2.bf16.msra.mxu0 0
      %554 = vmatprep.subr.bf16.mxu0 0
      %555 = vmatpush2.bf16.msra.mxu0 0
      %556 = vmatprep.subr.bf16.mxu0 0
      %557 = vmatpush2.bf16.msra.mxu0 0
      %558 = vmatprep.subr.bf16.mxu0 0
      %559 = vmatpush2.bf16.msra.mxu0 0
      %560 = vmatprep.subr.bf16.mxu0 0
      %561 = vmatpush2.bf16.msra.mxu0 0
      %562 = vmatprep.subr.bf16.mxu0 0
      %563 = vmatpush2.bf16.msra.mxu0 0
      %564 = vmatprep.subr.bf16.mxu0 0
      %565 = vmatpush2.bf16.msra.mxu0 0
      %566 = vmatprep.subr.bf16.mxu0 0
      %567 = vmatpush2.bf16.msra.mxu0 0
      %568 = vmatprep.mubr.bf16.mxu0 0
      %569 = vmatmul.mubr.bf16.gmra.mxu0 %v531
      %v570 = vpop.f32.mrf.mxu0
      %v571 = vadd.f32 %v390, %v570
      %v572 = vpop.f32.mrf.mxu0
      %v573 = vpop.f32.mrf.mxu0
      %v574 = vadd.f32 %v393, %v573
      %v575 = vpop.f32.mrf.mxu0
      %576 = vmatprep.mubr.bf16.mxu0 0
      %577 = vmatmul.mubr.bf16.gmra.mxu0 %v304
      %v578 = vpop.f32.mrf.mxu0
      %v579 = vadd.f32 %v398, %v578
      %v580 = vpop.f32.mrf.mxu0
      %v581 = vpop.f32.mrf.mxu0
      %v582 = vadd.f32 %v401, %v581
      %v583 = vpop.f32.mrf.mxu0
      %584 = vmatprep.mubr.bf16.mxu0 0
      %585 = vmatmul.mubr.bf16.gmra.mxu0 %v307
      %v586 = vpop.f32.mrf.mxu0
      %v587 = vadd.f32 %v406, %v586
      %v588 = vpop.f32.mrf.mxu0
      %v589 = vpop.f32.mrf.mxu0
      %v590 = vadd.f32 %v409, %v589
      %v591 = vpop.f32.mrf.mxu0
      %592 = vmatprep.mubr.bf16.mxu0 0
      %593 = vmatmul.mubr.bf16.gmra.mxu0 %v310
      %v594 = vpop.f32.mrf.mxu0
      %v595 = vadd.f32 %v414, %v594
      %v596 = vpop.f32.mrf.mxu0
      %v597 = vpop.f32.mrf.mxu0
      %v598 = vadd.f32 %v417, %v597
      %v599 = vpop.f32.mrf.mxu0
      %600 = vmatprep.mubr.bf16.mxu0 0
      %601 = vmatmul.mubr.bf16.gmra.mxu0 %v313
      %v602 = vpop.f32.mrf.mxu0
      %v603 = vadd.f32 %v422, %v602
      %v604 = vpop.f32.mrf.mxu0
      %v605 = vpop.f32.mrf.mxu0
      %v606 = vadd.f32 %v425, %v605
      %v607 = vpop.f32.mrf.mxu0
      %608 = vmatprep.mubr.bf16.mxu0 0
      %609 = vmatmul.mubr.bf16.gmra.mxu0 %v316
      %v610 = vpop.f32.mrf.mxu0
      %v611 = vadd.f32 %v430, %v610
      %v612 = vpop.f32.mrf.mxu0
      %v613 = vpop.f32.mrf.mxu0
      %v614 = vadd.f32 %v433, %v613
      %v615 = vpop.f32.mrf.mxu0
      %616 = vmatprep.mubr.bf16.mxu0 0
      %617 = vmatmul.mubr.bf16.gmra.mxu0 %v319
      %v618 = vpop.f32.mrf.mxu0
      %v619 = vadd.f32 %v438, %v618
      %v620 = vpop.f32.mrf.mxu0
      %v621 = vpop.f32.mrf.mxu0
      %v622 = vadd.f32 %v441, %v621
      %v623 = vpop.f32.mrf.mxu0
      %624 = vmatprep.mubr.bf16.mxu0 0
      %625 = vmatmul.mubr.bf16.gmra.mxu0 %v322
      %v626 = vpop.f32.mrf.mxu0
      %v627 = vadd.f32 %v446, %v626
      %v628 = vpop.f32.mrf.mxu0
      %v629 = vpop.f32.mrf.mxu0
      %v630 = vadd.f32 %v449, %v629
      %v631 = vpop.f32.mrf.mxu0
      %632 = vmatprep.mubr.bf16.mxu0 0
      %633 = vmatmul.mubr.bf16.gmra.mxu0 %v325
      %v634 = vpop.f32.mrf.mxu0
      %v635 = vadd.f32 %v454, %v634
      %v636 = vpop.f32.mrf.mxu0
      %v637 = vpop.f32.mrf.mxu0
      %v638 = vadd.f32 %v457, %v637
      %v639 = vpop.f32.mrf.mxu0
      %640 = vmatprep.mubr.bf16.mxu0 0
      %641 = vmatmul.mubr.bf16.gmra.mxu0 %v328
      %v642 = vpop.f32.mrf.mxu0
      %v643 = vadd.f32 %v462, %v642
      %v644 = vpop.f32.mrf.mxu0
      %v645 = vpop.f32.mrf.mxu0
      %v646 = vadd.f32 %v465, %v645
      %v647 = vpop.f32.mrf.mxu0
      %648 = vmatprep.mubr.bf16.mxu0 0
      %649 = vmatmul.mubr.bf16.gmra.mxu0 %v331
      %v650 = vpop.f32.mrf.mxu0
      %v651 = vadd.f32 %v470, %v650
      %v652 = vpop.f32.mrf.mxu0
      %v653 = vpop.f32.mrf.mxu0
      %v654 = vadd.f32 %v473, %v653
      %v655 = vpop.f32.mrf.mxu0
      %656 = vmatprep.mubr.bf16.mxu0 0
      %657 = vmatmul.mubr.bf16.gmra.mxu0 %v334
      %v658 = vpop.f32.mrf.mxu0
      %v659 = vadd.f32 %v478, %v658
      %v660 = vpop.f32.mrf.mxu0
      %v661 = vpop.f32.mrf.mxu0
      %v662 = vadd.f32 %v481, %v661
      %v663 = vpop.f32.mrf.mxu0
      %664 = vmatprep.mubr.bf16.mxu0 0
      %665 = vmatmul.mubr.bf16.gmra.mxu0 %v337
      %v666 = vpop.f32.mrf.mxu0
      %v667 = vadd.f32 %v486, %v666
      %v668 = vpop.f32.mrf.mxu0
      %v669 = vpop.f32.mrf.mxu0
      %v670 = vadd.f32 %v489, %v669
      %v671 = vpop.f32.mrf.mxu0
      %672 = vmatprep.mubr.bf16.mxu0 0
      %673 = vmatmul.mubr.bf16.gmra.mxu0 %v340
      %v674 = vpop.f32.mrf.mxu0
      %v675 = vadd.f32 %v494, %v674
      %v676 = vpop.f32.mrf.mxu0
      %v677 = vpop.f32.mrf.mxu0
      %v678 = vadd.f32 %v497, %v677
      %v679 = vpop.f32.mrf.mxu0
      %680 = vmatprep.mubr.bf16.mxu0 0
      %681 = vmatmul.mubr.bf16.gmra.mxu0 %v343
      %v682 = vpop.f32.mrf.mxu0
      %v683 = vadd.f32 %v502, %v682
      %v684 = vpop.f32.mrf.mxu0
      %v685 = vpop.f32.mrf.mxu0
      %v686 = vadd.f32 %v505, %v685
      %v687 = vpop.f32.mrf.mxu0
      %688 = vmatprep.mubr.bf16.mxu0 0
      %689 = vmatmul.mubr.bf16.gmra.mxu0 %v346
      %v690 = vpop.f32.mrf.mxu0
      %v691 = vadd.f32 %v510, %v690
      %v692 = vpop.f32.mrf.mxu0
      %v693 = vpop.f32.mrf.mxu0
      %v694 = vadd.f32 %v513, %v693
      %v695 = vpop.f32.mrf.mxu0
      %696 = vdwg.mxu0
      %v697 = vld [vmem:[%s165 + $0x10] sm:$0xf]
      %v698 = vld [vmem:[%s165 + $0x14] sm:$0xf]
      %v699 = vld [vmem:[%s165 + $0x18] sm:$0xf]
      %v700 = vld [vmem:[%s165 + $0x1c] sm:$0xf]
      %v701 = vld [vmem:[%s165 + $0x20] sm:$0xf]
      %v702 = vld [vmem:[%s165 + $0x24] sm:$0xf]
      %v703 = vld [vmem:[%s165 + $0x28] sm:$0xf]
      %v704 = vld [vmem:[%s165 + $0x2c] sm:$0xf]
      %v705 = vld [vmem:[%s165 + $0x30] sm:$0xf]
      %v706 = vld [vmem:[%s165 + $0x34] sm:$0xf]
      %v707 = vld [vmem:[%s165 + $0x38] sm:$0xf]
      %v708 = vld [vmem:[%s165 + $0x3c] sm:$0xf]
      %v709 = vld [vmem:[%s165 + $0x40] sm:$0xf]
      %v710 = vld [vmem:[%s165 + $0x44] sm:$0xf]
      %v711 = vld [vmem:[%s165 + $0x48] sm:$0xf]
      %v712 = vld [vmem:[%s165 + $0x4c] sm:$0xf]
      %v713 = vld [vmem:[%s165 + $0x50] sm:$0xf]
      %v714 = vld [vmem:[%s165 + $0x54] sm:$0xf]
      %v715 = vld [vmem:[%s165 + $0x58] sm:$0xf]
      %v716 = vld [vmem:[%s165 + $0x5c] sm:$0xf]
      %v717 = vld [vmem:[%s165 + $0x60] sm:$0xf]
      %v718 = vld [vmem:[%s165 + $0x64] sm:$0xf]
      %v719 = vld [vmem:[%s165 + $0x68] sm:$0xf]
      %v720 = vld [vmem:[%s165 + $0x6c] sm:$0xf]
      %v721 = vld [vmem:[%s165 + $0x70] sm:$0xf]
      %v722 = vld [vmem:[%s165 + $0x74] sm:$0xf]
      %v723 = vld [vmem:[%s165 + $0x78] sm:$0xf]
      %v724 = vld [vmem:[%s165 + $0x7c] sm:$0xf]
      %v725 = vld [vmem:[%s165 + $0x80] sm:$0xf]
      %v726 = vld [vmem:[%s165 + $0x84] sm:$0xf]
      %v727 = vld [vmem:[%s165 + $0x88] sm:$0xf]
      %v728 = vld [vmem:[%s165 + $0x8c] sm:$0xf]
      %s729 = scalar_lea.vmem %s1, 24
      %v730 = vld [vmem:[%s729] sm:$0xf]
      %v731 = vld [vmem:[%s729 + $0x4] sm:$0xf]
      %v732 = vld [vmem:[%s729 + $0x8] sm:$0xf]
      %v765 = vunpack.c.l.b16 %v697
      %v766 = vunpack.c.l.b16 %v698
      %v767 = vunpack.c.l.b16 %v699
      %v768 = vunpack.c.l.b16 %v700
      %v769 = vunpack.c.l.b16 %v701
      %v770 = vunpack.c.l.b16 %v702
      %v771 = vunpack.c.l.b16 %v703
      %v772 = vunpack.c.l.b16 %v704
      %v773 = vunpack.c.l.b16 %v705
      %v774 = vunpack.c.l.b16 %v706
      %v775 = vunpack.c.l.b16 %v707
      %v776 = vunpack.c.l.b16 %v708
      %v777 = vunpack.c.l.b16 %v709
      %v778 = vunpack.c.l.b16 %v710
      %v779 = vunpack.c.l.b16 %v711
      %v780 = vunpack.c.l.b16 %v712
      %v781 = vunpack.c.l.b16 %v713
      %v782 = vunpack.c.l.b16 %v714
      %v783 = vunpack.c.l.b16 %v715
      %v784 = vunpack.c.l.b16 %v716
      %v785 = vunpack.c.l.b16 %v717
      %v786 = vunpack.c.l.b16 %v718
      %v787 = vunpack.c.l.b16 %v719
      %v788 = vunpack.c.l.b16 %v720
      %v789 = vunpack.c.l.b16 %v721
      %v790 = vunpack.c.l.b16 %v722
      %v791 = vunpack.c.l.b16 %v723
      %v792 = vunpack.c.l.b16 %v724
      %v793 = vunpack.c.l.b16 %v725
      %v794 = vunpack.c.l.b16 %v726
      %v795 = vunpack.c.l.b16 %v727
      %v796 = vunpack.c.l.b16 %v728
      %v797 = vpack.c.b16 %v766, %v765
      %v798 = vpack.c.b16 %v768, %v767
      %v799 = vpack.c.b16 %v770, %v769
      %v800 = vpack.c.b16 %v772, %v771
      %v801 = vpack.c.b16 %v774, %v773
      %v802 = vpack.c.b16 %v776, %v775
      %v803 = vpack.c.b16 %v778, %v777
      %v804 = vpack.c.b16 %v780, %v779
      %v805 = vpack.c.b16 %v782, %v781
      %v806 = vpack.c.b16 %v784, %v783
      %v807 = vpack.c.b16 %v786, %v785
      %v808 = vpack.c.b16 %v788, %v787
      %v809 = vpack.c.b16 %v790, %v789
      %v810 = vpack.c.b16 %v792, %v791
      %v811 = vpack.c.b16 %v794, %v793
      %v812 = vpack.c.b16 %v796, %v795
      %v816 = vunpack.c.l.b16 %v730
      %v817 = vunpack.c.l.b16 %v731
      %v818 = vunpack.c.l.b16 %v732
      %v819 = vpack.c.b16 %v817, %v816
      %v820 = vpack.c.b16 %v818, %v818
      %v823 = vsel %vm302, %v797, 0
      %v826 = vsel %vm302, %v798, 0
      %v829 = vsel %vm302, %v799, 0
      %v832 = vsel %vm302, %v800, 0
      %v835 = vsel %vm302, %v801, 0
      %v838 = vsel %vm302, %v802, 0
      %v841 = vsel %vm302, %v803, 0
      %v844 = vsel %vm302, %v804, 0
      %v847 = vsel %vm302, %v805, 0
      %v850 = vsel %vm302, %v806, 0
      %v853 = vsel %vm302, %v807, 0
      %v856 = vsel %vm302, %v808, 0
      %v859 = vsel %vm302, %v809, 0
      %v862 = vsel %vm302, %v810, 0
      %v865 = vsel %vm302, %v811, 0
      %v868 = vsel %vm302, %v812, 0
      %v871 = vsel %vm351, %v820, 0
      %873 = vmatprep.subr.bf16.mxu0 0
      %874 = vmatpush1.bf16.msra.mxu0 0
      %875 = vmatprep.subr.bf16.mxu0 0
      %876 = vmatpush1.bf16.msra.mxu0 0
      %877 = vmatprep.subr.bf16.mxu0 0
      %878 = vmatpush1.bf16.msra.mxu0 0
      %879 = vmatprep.subr.bf16.mxu0 0
      %880 = vmatpush1.bf16.msra.mxu0 0
      %881 = vmatprep.subr.bf16.mxu0 0
      %882 = vmatpush1.bf16.msra.mxu0 0
      %883 = vmatprep.subr.bf16.mxu0 0
      %884 = vmatpush1.bf16.msra.mxu0 0
      %885 = vmatprep.subr.bf16.mxu0 0
      %886 = vmatpush1.bf16.msra.mxu0 %v871
      %887 = vmatprep.subr.bf16.mxu0 0
      %888 = vmatpush1.bf16.msra.mxu0 %v819
      %889 = vmatprep.subr.bf16.mxu0 0
      %890 = vmatpush2.bf16.msra.mxu0 0
      %891 = vmatprep.subr.bf16.mxu0 0
      %892 = vmatpush2.bf16.msra.mxu0 0
      %893 = vmatprep.subr.bf16.mxu0 0
      %894 = vmatpush2.bf16.msra.mxu0 0
      %895 = vmatprep.subr.bf16.mxu0 0
      %896 = vmatpush2.bf16.msra.mxu0 0
      %897 = vmatprep.subr.bf16.mxu0 0
      %898 = vmatpush2.bf16.msra.mxu0 0
      %899 = vmatprep.subr.bf16.mxu0 0
      %900 = vmatpush2.bf16.msra.mxu0 0
      %901 = vmatprep.subr.bf16.mxu0 0
      %902 = vmatpush2.bf16.msra.mxu0 0
      %903 = vmatprep.subr.bf16.mxu0 0
      %904 = vmatpush2.bf16.msra.mxu0 0
      %905 = vmatprep.mubr.bf16.mxu0 0
      %906 = vmatmul.mubr.bf16.gmra.mxu0 %v823
      %v907 = vpop.f32.mrf.mxu0
      %v908 = vadd.f32 0.0, %v907
      %v909 = vpop.f32.mrf.mxu0
      %v910 = vpop.f32.mrf.mxu0
      %v911 = vadd.f32 0.0, %v910
      %v912 = vpop.f32.mrf.mxu0
      %913 = vmatprep.mubr.bf16.mxu0 0
      %914 = vmatmul.mubr.bf16.gmra.mxu0 %v826
      %v915 = vpop.f32.mrf.mxu0
      %v916 = vadd.f32 0.0, %v915
      %v917 = vpop.f32.mrf.mxu0
      %v918 = vpop.f32.mrf.mxu0
      %v919 = vadd.f32 0.0, %v918
      %v920 = vpop.f32.mrf.mxu0
      %921 = vmatprep.mubr.bf16.mxu0 0
      %922 = vmatmul.mubr.bf16.gmra.mxu0 %v829
      %v923 = vpop.f32.mrf.mxu0
      %v924 = vadd.f32 0.0, %v923
      %v925 = vpop.f32.mrf.mxu0
      %v926 = vpop.f32.mrf.mxu0
      %v927 = vadd.f32 0.0, %v926
      %v928 = vpop.f32.mrf.mxu0
      %929 = vmatprep.mubr.bf16.mxu0 0
      %930 = vmatmul.mubr.bf16.gmra.mxu0 %v832
      %v931 = vpop.f32.mrf.mxu0
      %v932 = vadd.f32 0.0, %v931
      %v933 = vpop.f32.mrf.mxu0
      %v934 = vpop.f32.mrf.mxu0
      %v935 = vadd.f32 0.0, %v934
      %v936 = vpop.f32.mrf.mxu0
      %937 = vmatprep.mubr.bf16.mxu0 0
      %938 = vmatmul.mubr.bf16.gmra.mxu0 %v835
      %v939 = vpop.f32.mrf.mxu0
      %v940 = vadd.f32 0.0, %v939
      %v941 = vpop.f32.mrf.mxu0
      %v942 = vpop.f32.mrf.mxu0
      %v943 = vadd.f32 0.0, %v942
      %v944 = vpop.f32.mrf.mxu0
      %945 = vmatprep.mubr.bf16.mxu0 0
      %946 = vmatmul.mubr.bf16.gmra.mxu0 %v838
      %v947 = vpop.f32.mrf.mxu0
      %v948 = vadd.f32 0.0, %v947
      %v949 = vpop.f32.mrf.mxu0
      %v950 = vpop.f32.mrf.mxu0
      %v951 = vadd.f32 0.0, %v950
      %v952 = vpop.f32.mrf.mxu0
      %953 = vmatprep.mubr.bf16.mxu0 0
      %954 = vmatmul.mubr.bf16.gmra.mxu0 %v841
      %v955 = vpop.f32.mrf.mxu0
      %v956 = vadd.f32 0.0, %v955
      %v957 = vpop.f32.mrf.mxu0
      %v958 = vpop.f32.mrf.mxu0
      %v959 = vadd.f32 0.0, %v958
      %v960 = vpop.f32.mrf.mxu0
      %961 = vmatprep.mubr.bf16.mxu0 0
      %962 = vmatmul.mubr.bf16.gmra.mxu0 %v844
      %v963 = vpop.f32.mrf.mxu0
      %v964 = vadd.f32 0.0, %v963
      %v965 = vpop.f32.mrf.mxu0
      %v966 = vpop.f32.mrf.mxu0
      %v967 = vadd.f32 0.0, %v966
      %v968 = vpop.f32.mrf.mxu0
      %969 = vmatprep.mubr.bf16.mxu0 0
      %970 = vmatmul.mubr.bf16.gmra.mxu0 %v847
      %v971 = vpop.f32.mrf.mxu0
      %v972 = vadd.f32 0.0, %v971
      %v973 = vpop.f32.mrf.mxu0
      %v974 = vpop.f32.mrf.mxu0
      %v975 = vadd.f32 0.0, %v974
      %v976 = vpop.f32.mrf.mxu0
      %977 = vmatprep.mubr.bf16.mxu0 0
      %978 = vmatmul.mubr.bf16.gmra.mxu0 %v850
      %v979 = vpop.f32.mrf.mxu0
      %v980 = vadd.f32 0.0, %v979
      %v981 = vpop.f32.mrf.mxu0
      %v982 = vpop.f32.mrf.mxu0
      %v983 = vadd.f32 0.0, %v982
      %v984 = vpop.f32.mrf.mxu0
      %985 = vmatprep.mubr.bf16.mxu0 0
      %986 = vmatmul.mubr.bf16.gmra.mxu0 %v853
      %v987 = vpop.f32.mrf.mxu0
      %v988 = vadd.f32 0.0, %v987
      %v989 = vpop.f32.mrf.mxu0
      %v990 = vpop.f32.mrf.mxu0
      %v991 = vadd.f32 0.0, %v990
      %v992 = vpop.f32.mrf.mxu0
      %993 = vmatprep.mubr.bf16.mxu0 0
      %994 = vmatmul.mubr.bf16.gmra.mxu0 %v856
      %v995 = vpop.f32.mrf.mxu0
      %v996 = vadd.f32 0.0, %v995
      %v997 = vpop.f32.mrf.mxu0
      %v998 = vpop.f32.mrf.mxu0
      %v999 = vadd.f32 0.0, %v998
      %v1000 = vpop.f32.mrf.mxu0
      %1001 = vmatprep.mubr.bf16.mxu0 0
      %1002 = vmatmul.mubr.bf16.gmra.mxu0 %v859
      %v1003 = vpop.f32.mrf.mxu0
      %v1004 = vadd.f32 0.0, %v1003
      %v1005 = vpop.f32.mrf.mxu0
      %v1006 = vpop.f32.mrf.mxu0
      %v1007 = vadd.f32 0.0, %v1006
      %v1008 = vpop.f32.mrf.mxu0
      %1009 = vmatprep.mubr.bf16.mxu0 0
      %1010 = vmatmul.mubr.bf16.gmra.mxu0 %v862
      %v1011 = vpop.f32.mrf.mxu0
      %v1012 = vadd.f32 0.0, %v1011
      %v1013 = vpop.f32.mrf.mxu0
      %v1014 = vpop.f32.mrf.mxu0
      %v1015 = vadd.f32 0.0, %v1014
      %v1016 = vpop.f32.mrf.mxu0
      %1017 = vmatprep.mubr.bf16.mxu0 0
      %1018 = vmatmul.mubr.bf16.gmra.mxu0 %v865
      %v1019 = vpop.f32.mrf.mxu0
      %v1020 = vadd.f32 0.0, %v1019
      %v1021 = vpop.f32.mrf.mxu0
      %v1022 = vpop.f32.mrf.mxu0
      %v1023 = vadd.f32 0.0, %v1022
      %v1024 = vpop.f32.mrf.mxu0
      %1025 = vmatprep.mubr.bf16.mxu0 0
      %1026 = vmatmul.mubr.bf16.gmra.mxu0 %v868
      %v1027 = vpop.f32.mrf.mxu0
      %v1028 = vadd.f32 0.0, %v1027
      %v1029 = vpop.f32.mrf.mxu0
      %v1030 = vpop.f32.mrf.mxu0
      %v1031 = vadd.f32 0.0, %v1030
      %v1032 = vpop.f32.mrf.mxu0
      %1033 = vdwg.mxu0
      %v1034 = vadd.f32 %v571, %v908
      %v1035 = vadd.f32 %v574, %v911
      %v1036 = vadd.f32 %v579, %v916
      %v1037 = vadd.f32 %v582, %v919
      %v1038 = vadd.f32 %v587, %v924
      %v1039 = vadd.f32 %v590, %v927
      %v1040 = vadd.f32 %v595, %v932
      %v1041 = vadd.f32 %v598, %v935
      %v1042 = vadd.f32 %v603, %v940
      %v1043 = vadd.f32 %v606, %v943
      %v1044 = vadd.f32 %v611, %v948
      %v1045 = vadd.f32 %v614, %v951
      %v1046 = vadd.f32 %v619, %v956
      %v1047 = vadd.f32 %v622, %v959
      %v1048 = vadd.f32 %v627, %v964
      %v1049 = vadd.f32 %v630, %v967
      %v1050 = vadd.f32 %v635, %v972
      %v1051 = vadd.f32 %v638, %v975
      %v1052 = vadd.f32 %v643, %v980
      %v1053 = vadd.f32 %v646, %v983
      %v1054 = vadd.f32 %v651, %v988
      %v1055 = vadd.f32 %v654, %v991
      %v1056 = vadd.f32 %v659, %v996
      %v1057 = vadd.f32 %v662, %v999
      %v1058 = vadd.f32 %v667, %v1004
      %v1059 = vadd.f32 %v670, %v1007
      %v1060 = vadd.f32 %v675, %v1012
      %v1061 = vadd.f32 %v678, %v1015
      %v1062 = vadd.f32 %v683, %v1020
      %v1063 = vadd.f32 %v686, %v1023
      %v1064 = vadd.f32 %v691, %v1028
      %v1065 = vadd.f32 %v694, %v1031
      %v1066 = vld [vmem:[%s2] sm:$0x1]
      %v1068 = vlaneseq
      %v1069 = vshrl.u32 %v1068, 7
      %v1070 = vsub.s32 0, %v1069
      %v1071 = vrot.slane %v1066, %v1070
      %v1073 = vadd.f32 %v1034, %v1071
      %v1074 = vadd.f32 %v1035, %v1071
      %v1075 = vadd.f32 %v1036, %v1071
      %v1076 = vadd.f32 %v1037, %v1071
      %v1077 = vadd.f32 %v1038, %v1071
      %v1078 = vadd.f32 %v1039, %v1071
      %v1079 = vadd.f32 %v1040, %v1071
      %v1080 = vadd.f32 %v1041, %v1071
      %v1081 = vadd.f32 %v1042, %v1071
      %v1082 = vadd.f32 %v1043, %v1071
      %v1083 = vadd.f32 %v1044, %v1071
      %v1084 = vadd.f32 %v1045, %v1071
      %v1085 = vadd.f32 %v1046, %v1071
      %v1086 = vadd.f32 %v1047, %v1071
      %v1087 = vadd.f32 %v1048, %v1071
      %v1088 = vadd.f32 %v1049, %v1071
      %v1089 = vadd.f32 %v1050, %v1071
      %v1090 = vadd.f32 %v1051, %v1071
      %v1091 = vadd.f32 %v1052, %v1071
      %v1092 = vadd.f32 %v1053, %v1071
      %v1093 = vadd.f32 %v1054, %v1071
      %v1094 = vadd.f32 %v1055, %v1071
      %v1095 = vadd.f32 %v1056, %v1071
      %v1096 = vadd.f32 %v1057, %v1071
      %v1097 = vadd.f32 %v1058, %v1071
      %v1098 = vadd.f32 %v1059, %v1071
      %v1099 = vadd.f32 %v1060, %v1071
      %v1100 = vadd.f32 %v1061, %v1071
      %v1101 = vadd.f32 %v1062, %v1071
      %v1102 = vadd.f32 %v1063, %v1071
      %v1103 = vadd.f32 %v1064, %v1071
      %v1104 = vadd.f32 %v1065, %v1071
      %v1105 = vmax.f32 %v1073, 0.0
      %v1106 = vmax.f32 %v1074, 0.0
      %v1107 = vmax.f32 %v1075, 0.0
      %v1108 = vmax.f32 %v1076, 0.0
      %v1109 = vmax.f32 %v1077, 0.0
      %v1110 = vmax.f32 %v1078, 0.0
      %v1111 = vmax.f32 %v1079, 0.0
      %v1112 = vmax.f32 %v1080, 0.0
      %v1113 = vmax.f32 %v1081, 0.0
      %v1114 = vmax.f32 %v1082, 0.0
      %v1115 = vmax.f32 %v1083, 0.0
      %v1116 = vmax.f32 %v1084, 0.0
      %v1117 = vmax.f32 %v1085, 0.0
      %v1118 = vmax.f32 %v1086, 0.0
      %v1119 = vmax.f32 %v1087, 0.0
      %v1120 = vmax.f32 %v1088, 0.0
      %v1121 = vmax.f32 %v1089, 0.0
      %v1122 = vmax.f32 %v1090, 0.0
      %v1123 = vmax.f32 %v1091, 0.0
      %v1124 = vmax.f32 %v1092, 0.0
      %v1125 = vmax.f32 %v1093, 0.0
      %v1126 = vmax.f32 %v1094, 0.0
      %v1127 = vmax.f32 %v1095, 0.0
      %v1128 = vmax.f32 %v1096, 0.0
      %v1129 = vmax.f32 %v1097, 0.0
      %v1130 = vmax.f32 %v1098, 0.0
      %v1131 = vmax.f32 %v1099, 0.0
      %v1132 = vmax.f32 %v1100, 0.0
      %v1133 = vmax.f32 %v1101, 0.0
      %v1134 = vmax.f32 %v1102, 0.0
      %v1135 = vmax.f32 %v1103, 0.0
      %v1136 = vmax.f32 %v1104, 0.0
      %vm1137 = vcmask 64512
      %1138 = vst.msk [vmem:[%s170] sm:$0xff] %vm1137, %v1105
      %1139 = vst.msk [vmem:[%s170 + $0x8] sm:$0xff] %vm1137, %v1106
      %1140 = vst.msk [vmem:[%s170 + $0x10] sm:$0xff] %vm1137, %v1107
      %1141 = vst.msk [vmem:[%s170 + $0x18] sm:$0xff] %vm1137, %v1108
      %1142 = vst.msk [vmem:[%s170 + $0x20] sm:$0xff] %vm1137, %v1109
      %1143 = vst.msk [vmem:[%s170 + $0x28] sm:$0xff] %vm1137, %v1110
      %1144 = vst.msk [vmem:[%s170 + $0x30] sm:$0xff] %vm1137, %v1111
      %1145 = vst.msk [vmem:[%s170 + $0x38] sm:$0xff] %vm1137, %v1112
      %1146 = vst.msk [vmem:[%s170 + $0x40] sm:$0xff] %vm1137, %v1113
      %1147 = vst.msk [vmem:[%s170 + $0x48] sm:$0xff] %vm1137, %v1114
      %1148 = vst.msk [vmem:[%s170 + $0x50] sm:$0xff] %vm1137, %v1115
      %1149 = vst.msk [vmem:[%s170 + $0x58] sm:$0xff] %vm1137, %v1116
      %1150 = vst.msk [vmem:[%s170 + $0x60] sm:$0xff] %vm1137, %v1117
      %1151 = vst.msk [vmem:[%s170 + $0x68] sm:$0xff] %vm1137, %v1118
      %1152 = vst.msk [vmem:[%s170 + $0x70] sm:$0xff] %vm1137, %v1119
      %1153 = vst.msk [vmem:[%s170 + $0x78] sm:$0xff] %vm1137, %v1120
      %1154 = vst.msk [vmem:[%s170 + $0x80] sm:$0xff] %vm1137, %v1121
      %1155 = vst.msk [vmem:[%s170 + $0x88] sm:$0xff] %vm1137, %v1122
      %1156 = vst.msk [vmem:[%s170 + $0x90] sm:$0xff] %vm1137, %v1123
      %1157 = vst.msk [vmem:[%s170 + $0x98] sm:$0xff] %vm1137, %v1124
      %1158 = vst.msk [vmem:[%s170 + $0xa0] sm:$0xff] %vm1137, %v1125
      %1159 = vst.msk [vmem:[%s170 + $0xa8] sm:$0xff] %vm1137, %v1126
      %1160 = vst.msk [vmem:[%s170 + $0xb0] sm:$0xff] %vm1137, %v1127
      %1161 = vst.msk [vmem:[%s170 + $0xb8] sm:$0xff] %vm1137, %v1128
      %1162 = vst.msk [vmem:[%s170 + $0xc0] sm:$0xff] %vm1137, %v1129
      %1163 = vst.msk [vmem:[%s170 + $0xc8] sm:$0xff] %vm1137, %v1130
      %1164 = vst.msk [vmem:[%s170 + $0xd0] sm:$0xff] %vm1137, %v1131
      %1165 = vst.msk [vmem:[%s170 + $0xd8] sm:$0xff] %vm1137, %v1132
      %1166 = vst.msk [vmem:[%s170 + $0xe0] sm:$0xff] %vm1137, %v1133
      %1167 = vst.msk [vmem:[%s170 + $0xe8] sm:$0xff] %vm1137, %v1134
      %1168 = vst.msk [vmem:[%s170 + $0xf0] sm:$0xff] %vm1137, %v1135
      %1169 = vst.msk [vmem:[%s170 + $0xf8] sm:$0xff] %vm1137, %v1136
      %p1170 = scmp.lt.s32.totalorder %s14, 1
      %s1171 = scalar_select %p1170, %s14, 1
      %s1172 = smul.addr %s1171, 32
      %s1173 = smul.addr %s1172, 8
      %s1174 = scalar_lea.vmem %s3, %s1173
      // Predicated region
      $region33: #{vgg_forward.14} parent=31 // pred_check
        %p1175 = pneg %p100
      $region34: #{vgg_forward.14} parent=31 // pred_check_branch
        %1177 = sbr.rel (%p1175) target = $region36
      $region35: #{vgg_forward.14} parent=31 // pred_region
        _
      $region36: #{vgg_forward.14} parent=31 // pred_fallthru
        _
    $region32: #{vgg_forward.14} parent=5 // pred_fallthru
      _
    %p1178 = scmp.le.s32.totalorder 2, %s9
    // Predicated region
    $region37: #{vgg_forward.14} parent=5 // pred_check
      %p1179 = pneg %p1178
    $region38: #{vgg_forward.14} parent=5 // pred_check_branch
      %1181 = sbr.rel (%p1179) target = $region40
    $region39: #{vgg_forward.14} parent=5 // pred_region
      %s1182 = ssub.s32 %s9, 2
      // Predicated region
      $region41: #{vgg_forward.14} parent=39 // pred_check
        %p1183 = pneg %p106
      $region42: #{vgg_forward.14} parent=39 // pred_check_branch
        %1185 = sbr.rel (%p1183) target = $region44
      $region43: #{vgg_forward.14} parent=39 // pred_region
        %p1186 = scmp.lt.s32.totalorder %s15, 1
        %s1187 = scalar_select %p1186, %s15, 1
        %s1188 = smul.addr %s1187, 32
        %s1189 = smul.addr %s1188, 8
        %s1190 = scalar_lea.vmem %s3, %s1189
      $region44: #{vgg_forward.14} parent=39 // pred_fallthru
        _
    $region40: #{vgg_forward.14} parent=5 // pred_fallthru
      _
  $region6: #{vgg_forward.14} parent=0 // loop_footer
    %s13 = sadd.s32 1, %s9
  $region7: #{vgg_forward.14} parent=0 // loop_footer_branch
    %8 = sbr.rel target = $region3
  $region8: #{vgg_forward.14} parent=0 // loop_exit
    _

// kernel: vgg_forward.18
$region0: #{vgg_forward.18}
  #allocation0 [shape = 'u32[]', space=smem, size = 0x4, offset = 0x4, fixed_abs, tag = 'smem constant byte address 0x4 - core index']
  #allocation1 [shape = 'u32[144,128]{1,0:T(1,128)}', space=vmem, size = 0x12000, scoped, tag = 'internal scratch']
  %s0 = inlined_call_operand.vmem [shape: f32[2,4,2,4,32], index: 0, kind: input, shape index: {}]
  %s1 = inlined_call_operand.vmem [shape: f32[2,4,4,16], index: 1, kind: output, shape index: {}]
  %s2 = sld [smem:[#allocation0]]
  $region37: #{vgg_forward.18} parent=0
    _
  %s4 = ssub.s32 1, %s2
  %s5 = scalar_select 0, %s4, %s2
  loop: start=0, step=1, limit=4
  $region2: #{vgg_forward.18} parent=0 // loop_pre_header
    _
  $region3: #{vgg_forward.18} parent=0 // loop_header
    %s7 = sphi 0, %s11
    %p8 = scmp.ge.s32.totalorder %s7, 4
    %s17 = sphi 0, %s19
    %s20 = sphi 0, %s17
    %s21 = sphi 0, %s20
    %s37 = sphi 0, %s21
    %s43 = sphi 0, %s45
    %s46 = sphi 0, %s43
    %s47 = sphi 0, %s46
    %s63 = sphi 0, %s47
  $region4: #{vgg_forward.18} parent=0 // loop_header_branch
    %10 = sbr.rel (%p8) target = $region8
  $region5: #{vgg_forward.18} parent=0 // loop_body
    %s12 = ssub.s32 %s7, 1
    %s13 = ssub.s32 %s7, 2
    %s14 = sadd.s32 %s7, 1
    %s15 = ssub.s32 %s7, %s14
    %p16 = scmp.eq.s32.totalorder %s15, 0
    %s18 = sadd.s32 %s17, 1
    %s19 = scalar_select %p16, %s17, %s18
    %p22 = pneg %p16
    %p23 = scmp.eq.s32.totalorder %s7, 1
    %p24 = por %p22, %p23
    %p25 = scmp.ne.s32.totalorder %s17, %s20
    %p26 = scmp.eq.s32.totalorder %s7, 0
    %p27 = por %p25, %p26
    %p28 = scmp.ne.s32.totalorder %s17, %s20
    %p29 = scmp.eq.s32.totalorder %s12, 1
    %p30 = por %p28, %p29
    %p31 = scmp.ne.s32.totalorder %s20, %s21
    %p32 = scmp.eq.s32.totalorder %s12, 0
    %p33 = por %p31, %p32
    %p34 = scmp.ne.s32.totalorder %s20, %s21
    %p35 = scmp.eq.s32.totalorder %s13, 1
    %p36 = por %p34, %p35
    %p38 = scmp.ne.s32.totalorder %s21, %s37
    %p39 = scmp.eq.s32.totalorder %s13, 0
    %p40 = por %p38, %p39
    %s41 = ssub.s32 %s7, %s14
    %p42 = scmp.eq.s32.totalorder %s41, 0
    %s44 = sadd.s32 %s43, 1
    %s45 = scalar_select %p42, %s43, %s44
    %p48 = pneg %p42
    %p49 = scmp.eq.s32.totalorder %s7, 1
    %p50 = por %p48, %p49
    %p51 = scmp.ne.s32.totalorder %s43, %s46
    %p52 = scmp.eq.s32.totalorder %s7, 0
    %p53 = por %p51, %p52
    %p54 = scmp.ne.s32.totalorder %s43, %s46
    %p55 = scmp.eq.s32.totalorder %s12, 1
    %p56 = por %p54, %p55
    %p57 = scmp.ne.s32.totalorder %s46, %s47
    %p58 = scmp.eq.s32.totalorder %s12, 0
    %p59 = por %p57, %p58
    %p60 = scmp.ne.s32.totalorder %s46, %s47
    %p61 = scmp.eq.s32.totalorder %s13, 1
    %p62 = por %p60, %p61
    %p64 = scmp.ne.s32.totalorder %s47, %s63
    %p65 = scmp.eq.s32.totalorder %s13, 0
    %p66 = por %p64, %p65
    %p67 = scmp.le.s32.totalorder 1, %s7
    %p68 = scmp.lt.s32.totalorder %s7, 3
    %p69 = pnand %p67, %p68
    %p70 = pneg %p69
    // Predicated region
    $region9: #{vgg_forward.18} parent=5 // pred_check
      _
    $region10: #{vgg_forward.18} parent=5 // pred_check_branch
      %72 = sbr.rel (%p69) target = $region12
    $region11: #{vgg_forward.18} parent=5 // pred_region
      %s73 = ssub.s32 %s7, 1
    $region12: #{vgg_forward.18} parent=5 // pred_fallthru
      _
    %p74 = scmp.lt.s32.totalorder %s7, 2
    // Predicated region
    $region13: #{vgg_forward.18} parent=5 // pred_check
      %p75 = pneg %p74
    $region14: #{vgg_forward.18} parent=5 // pred_check_branch
      %77 = sbr.rel (%p75) target = $region16
    $region15: #{vgg_forward.18} parent=5 // pred_region
      // Predicated region
      $region17: #{vgg_forward.18} parent=15 // pred_check
        %p78 = pneg %p27
      $region18: #{vgg_forward.18} parent=15 // pred_check_branch
        %80 = sbr.rel (%p78) target = $region20
      $region19: #{vgg_forward.18} parent=15 // pred_region
        %p81 = scmp.lt.s32.totalorder %s7, 1
        %s82 = scalar_select %p81, %s7, 1
        %s83 = smul.addr %s82, 8
        %s84 = smul.addr %s83, 4
        %s85 = scalar_lea.vmem %s0, %s84
      $region20: #{vgg_forward.18} parent=15 // pred_fallthru
        _
    $region16: #{vgg_forward.18} parent=5 // pred_fallthru
      _
    %p86 = scmp.le.s32.totalorder 1, %s7
    %p87 = scmp.lt.s32.totalorder %s7, 3
    %p88 = pnand %p86, %p87
    %p89 = pneg %p88
    // Predicated region
    $region21: #{vgg_forward.18} parent=5 // pred_check
      _
    $region22: #{vgg_forward.18} parent=5 // pred_check_branch
      %91 = sbr.rel (%p88) target = $region24
    $region23: #{vgg_forward.18} parent=5 // pred_region
      %s92 = ssub.s32 %s7, 1
      %p93 = scmp.lt.s32.totalorder %s12, 1
      %s94 = scalar_select %p93, %s12, 1
      %s95 = smul.addr %s94, 8
      %s96 = smul.addr %s95, 4
      %s97 = scalar_lea.vmem %s0, %s96
      %p98 = pneg %p33
      %p99 = pneg %p30
      %p100 = pneg %p59
      %p101 = pneg %p56
      %p102 = scmp.lt.s32.totalorder %s12, 1
      %s103 = scalar_select %p102, %s12, 1
      %s104 = smul.addr %s103, 4
      %s105 = smul.addr %s104, 4
      %s106 = scalar_lea.vmem %s1, %s105
      %p107 = scmp.lt.s32.totalorder %s12, 1
      %s108 = scalar_select %p107, %s12, 1
      %s109 = smul.addr %s108, 8
      %s110 = smul.addr %s109, 4
      %s111 = scalar_lea.vmem %s0, %s110
      %p112 = scmp.lt.s32.totalorder %s12, 1
      %s113 = scalar_select %p112, %s12, 1
      %s114 = smul.addr %s113, 4
      %s115 = smul.addr %s114, 4
      %s116 = scalar_lea.vmem %s1, %s115
      %v117 = vld [vmem:[%s111] sm:$0xf]
      %v118 = vld [vmem:[%s111 + $0x8] sm:$0xf]
      %v119 = vld [vmem:[%s111 + $0x10] sm:$0xf]
      %v120 = vld [vmem:[%s111 + $0x18] sm:$0xf]
      %s121 = scalar_lea.vmem %s111, 4
      %v122 = vld [vmem:[%s121] sm:$0xf]
      %v123 = vld [vmem:[%s121 + $0x8] sm:$0xf]
      %v124 = vld [vmem:[%s121 + $0x10] sm:$0xf]
      %v125 = vld [vmem:[%s121 + $0x18] sm:$0xf]
      %v126 = vmax.f32 %v117, %v122
      %v127 = vmax.f32 %v118, %v123
      %v128 = vmax.f32 %v119, %v124
      %v129 = vmax.f32 %v120, %v125
      %134 = vrot.lane.b32.xlu0 %v126, 112
      %v135 = vpop.permute.xlu0 %134
      %136 = vrot.lane.b32.xlu0 %v127, 112
      %v137 = vpop.permute.xlu0 %136
      %138 = vrot.lane.b32.xlu0 %v128, 112
      %v139 = vpop.permute.xlu0 %138
      %140 = vrot.lane.b32.xlu0 %v129, 112
      %v141 = vpop.permute.xlu0 %140
      %v146 = vmax.f32 %v126, %v135
      %v147 = vmax.f32 %v127, %v137
      %v148 = vmax.f32 %v128, %v139
      %v149 = vmax.f32 %v129, %v141
      %vm150 = vcmask 125952
      %151 = vst.msk [vmem:[%s116] sm:$0xf] %vm150, %v146
      %152 = vst.msk [vmem:[%s116 + $0x4] sm:$0xf] %vm150, %v147
      %153 = vst.msk [vmem:[%s116 + $0x8] sm:$0xf] %vm150, %v148
      %154 = vst.msk [vmem:[%s116 + $0xc] sm:$0xf] %vm150, %v149
      %p155 = scmp.lt.s32.totalorder %s12, 1
      %s156 = scalar_select %p155, %s12, 1
      %s157 = smul.addr %s156, 4
      %s158 = smul.addr %s157, 4
      %s159 = scalar_lea.vmem %s1, %s158
      // Predicated region
      $region25: #{vgg_forward.18} parent=23 // pred_check
        %p160 = pneg %p56
      $region26: #{vgg_forward.18} parent=23 // pred_check_branch
        %162 = sbr.rel (%p160) target = $region28
      $region27: #{vgg_forward.18} parent=23 // pred_region
        _
      $region28: #{vgg_forward.18} parent=23 // pred_fallthru
        _
    $region24: #{vgg_forward.18} parent=5 // pred_fallthru
      _
    %p163 = scmp.le.s32.totalorder 2, %s7
    // Predicated region
    $region29: #{vgg_forward.18} parent=5 // pred_check
      %p164 = pneg %p163
    $region30: #{vgg_forward.18} parent=5 // pred_check_branch
      %166 = sbr.rel (%p164) target = $region32
    $region31: #{vgg_forward.18} parent=5 // pred_region
      %s167 = ssub.s32 %s7, 2
      // Predicated region
      $region33: #{vgg_forward.18} parent=31 // pred_check
        %p168 = pneg %p62
      $region34: #{vgg_forward.18} parent=31 // pred_check_branch
        %170 = sbr.rel (%p168) target = $region36
      $region35: #{vgg_forward.18} parent=31 // pred_region
        %p171 = scmp.lt.s32.totalorder %s13, 1
        %s172 = scalar_select %p171, %s13, 1
        %s173 = smul.addr %s172, 4
        %s174 = smul.addr %s173, 4
        %s175 = scalar_lea.vmem %s1, %s174
      $region36: #{vgg_forward.18} parent=31 // pred_fallthru
        _
    $region32: #{vgg_forward.18} parent=5 // pred_fallthru
      _
  $region6: #{vgg_forward.18} parent=0 // loop_footer
    %s11 = sadd.s32 1, %s7
  $region7: #{vgg_forward.18} parent=0 // loop_footer_branch
    %6 = sbr.rel target = $region3
  $region8: #{vgg_forward.18} parent=0 // loop_exit
    _

// kernel: vgg_forward.16
$region0: #{vgg_forward.16}
  #allocation0 [shape = 'u32[]', space=smem, size = 0x4, offset = 0x4, fixed_abs, tag = 'smem constant byte address 0x4 - core index']
  #allocation1 [shape = 'u32[144,128]{1,0:T(1,128)}', space=vmem, size = 0x12000, scoped, tag = 'internal scratch']
  %s0 = inlined_call_operand.vmem [shape: bf16[2,80,24], index: 0, kind: input, shape index: {}]
  %s1 = inlined_call_operand.vmem [shape: bf16[3,24,16], index: 1, kind: input, shape index: {}]
  %s2 = inlined_call_operand.vmem [shape: f32[1,16], index: 2, kind: input, shape index: {}]
  %s3 = inlined_call_operand.vmem [shape: f32[2,64,16], index: 3, kind: output, shape index: {}]
  %s4 = sld [smem:[#allocation0]]
  $region45: #{vgg_forward.16} parent=0
    _
  %s6 = ssub.s32 1, %s4
  %s7 = scalar_select 0, %s6, %s4
  loop: start=0, step=1, limit=4
  $region2: #{vgg_forward.16} parent=0 // loop_pre_header
    _
  $region3: #{vgg_forward.16} parent=0 // loop_header
    %s9 = sphi 0, %s13
    %p10 = scmp.ge.s32.totalorder %s9, 4
    %s19 = sphi 0, %s21
    %s22 = sphi 0, %s19
    %s23 = sphi 0, %s22
    %s39 = sphi 0, %s23
    %s43 = sphi 0, %s43
    %s45 = sphi 0, %s43
    %s46 = sphi 0, %s45
    %s60 = sphi 0, %s46
    %s64 = sphi 0, %s64
    %s66 = sphi 0, %s64
    %s67 = sphi 0, %s66
    %s81 = sphi 0, %s67
    %s87 = sphi 0, %s89
    %s90 = sphi 0, %s87
    %s91 = sphi 0, %s90
    %s107 = sphi 0, %s91
  $region4: #{vgg_forward.16} parent=0 // loop_header_branch
    %12 = sbr.rel (%p10) target = $region8
  $region5: #{vgg_forward.16} parent=0 // loop_body
    %s14 = ssub.s32 %s9, 1
    %s15 = ssub.s32 %s9, 2
    %s16 = sadd.s32 %s9, 1
    %s17 = ssub.s32 %s9, %s16
    %p18 = scmp.eq.s32.totalorder %s17, 0
    %s20 = sadd.s32 %s19, 1
    %s21 = scalar_select %p18, %s19, %s20
    %p24 = pneg %p18
    %p25 = scmp.eq.s32.totalorder %s9, 1
    %p26 = por %p24, %p25
    %p27 = scmp.ne.s32.totalorder %s19, %s22
    %p28 = scmp.eq.s32.totalorder %s9, 0
    %p29 = por %p27, %p28
    %p30 = scmp.ne.s32.totalorder %s19, %s22
    %p31 = scmp.eq.s32.totalorder %s14, 1
    %p32 = por %p30, %p31
    %p33 = scmp.ne.s32.totalorder %s22, %s23
    %p34 = scmp.eq.s32.totalorder %s14, 0
    %p35 = por %p33, %p34
    %p36 = scmp.ne.s32.totalorder %s22, %s23
    %p37 = scmp.eq.s32.totalorder %s15, 1
    %p38 = por %p36, %p37
    %p40 = scmp.ne.s32.totalorder %s23, %s39
    %p41 = scmp.eq.s32.totalorder %s15, 0
    %p42 = por %p40, %p41
    %s44 = sadd.s32 %s43, 1
    %p47 = scmp.eq.s32.totalorder %s9, 1
    %p48 = scmp.ne.s32.totalorder %s43, %s45
    %p49 = scmp.eq.s32.totalorder %s9, 0
    %p50 = por %p48, %p49
    %p51 = scmp.ne.s32.totalorder %s43, %s45
    %p52 = scmp.eq.s32.totalorder %s14, 1
    %p53 = por %p51, %p52
    %p54 = scmp.ne.s32.totalorder %s45, %s46
    %p55 = scmp.eq.s32.totalorder %s14, 0
    %p56 = por %p54, %p55
    %p57 = scmp.ne.s32.totalorder %s45, %s46
    %p58 = scmp.eq.s32.totalorder %s15, 1
    %p59 = por %p57, %p58
    %p61 = scmp.ne.s32.totalorder %s46, %s60
    %p62 = scmp.eq.s32.totalorder %s15, 0
    %p63 = por %p61, %p62
    %s65 = sadd.s32 %s64, 1
    %p68 = scmp.eq.s32.totalorder %s9, 1
    %p69 = scmp.ne.s32.totalorder %s64, %s66
    %p70 = scmp.eq.s32.totalorder %s9, 0
    %p71 = por %p69, %p70
    %p72 = scmp.ne.s32.totalorder %s64, %s66
    %p73 = scmp.eq.s32.totalorder %s14, 1
    %p74 = por %p72, %p73
    %p75 = scmp.ne.s32.totalorder %s66, %s67
    %p76 = scmp.eq.s32.totalorder %s14, 0
    %p77 = por %p75, %p76
    %p78 = scmp.ne.s32.totalorder %s66, %s67
    %p79 = scmp.eq.s32.totalorder %s15, 1
    %p80 = por %p78, %p79
    %p82 = scmp.ne.s32.totalorder %s67, %s81
    %p83 = scmp.eq.s32.totalorder %s15, 0
    %p84 = por %p82, %p83
    %s85 = ssub.s32 %s9, %s16
    %p86 = scmp.eq.s32.totalorder %s85, 0
    %s88 = sadd.s32 %s87, 1
    %s89 = scalar_select %p86, %s87, %s88
    %p92 = pneg %p86
    %p93 = scmp.eq.s32.totalorder %s9, 1
    %p94 = por %p92, %p93
    %p95 = scmp.ne.s32.totalorder %s87, %s90
    %p96 = scmp.eq.s32.totalorder %s9, 0
    %p97 = por %p95, %p96
    %p98 = scmp.ne.s32.totalorder %s87, %s90
    %p99 = scmp.eq.s32.totalorder %s14, 1
    %p100 = por %p98, %p99
    %p101 = scmp.ne.s32.totalorder %s90, %s91
    %p102 = scmp.eq.s32.totalorder %s14, 0
    %p103 = por %p101, %p102
    %p104 = scmp.ne.s32.totalorder %s90, %s91
    %p105 = scmp.eq.s32.totalorder %s15, 1
    %p106 = por %p104, %p105
    %p108 = scmp.ne.s32.totalorder %s91, %s107
    %p109 = scmp.eq.s32.totalorder %s15, 0
    %p110 = por %p108, %p109
    %p111 = scmp.le.s32.totalorder 1, %s9
    %p112 = scmp.lt.s32.totalorder %s9, 3
    %p113 = pnand %p111, %p112
    %p114 = pneg %p113
    // Predicated region
    $region9: #{vgg_forward.16} parent=5 // pred_check
      _
    $region10: #{vgg_forward.16} parent=5 // pred_check_branch
      %116 = sbr.rel (%p113) target = $region12
    $region11: #{vgg_forward.16} parent=5 // pred_region
      %s117 = ssub.s32 %s9, 1
      // Predicated region
      $region13: #{vgg_forward.16} parent=11 // pred_check
        %p118 = pneg %p56
      $region14: #{vgg_forward.16} parent=11 // pred_check_branch
        %120 = sbr.rel (%p118) target = $region16
      $region15: #{vgg_forward.16} parent=11 // pred_region
        _
      $region16: #{vgg_forward.16} parent=11 // pred_fallthru
        _
      // Predicated region
      $region17: #{vgg_forward.16} parent=11 // pred_check
        %p121 = pneg %p77
      $region18: #{vgg_forward.16} parent=11 // pred_check_branch
        %123 = sbr.rel (%p121) target = $region20
      $region19: #{vgg_forward.16} parent=11 // pred_region
        _
      $region20: #{vgg_forward.16} parent=11 // pred_fallthru
        _
    $region12: #{vgg_forward.16} parent=5 // pred_fallthru
      _
    %p124 = scmp.lt.s32.totalorder %s9, 2
    // Predicated region
    $region21: #{vgg_forward.16} parent=5 // pred_check
      %p125 = pneg %p124
    $region22: #{vgg_forward.16} parent=5 // pred_check_branch
      %127 = sbr.rel (%p125) target = $region24
    $region23: #{vgg_forward.16} parent=5 // pred_region
      // Predicated region
      $region25: #{vgg_forward.16} parent=23 // pred_check
        %p128 = pneg %p29
      $region26: #{vgg_forward.16} parent=23 // pred_check_branch
        %130 = sbr.rel (%p128) target = $region28
      $region27: #{vgg_forward.16} parent=23 // pred_region
        %p131 = scmp.lt.s32.totalorder %s9, 1
        %s132 = scalar_select %p131, %s9, 1
        %s133 = smul.addr %s132, 10
        %s134 = smul.addr %s133, 4
        %s135 = scalar_lea.vmem %s0, %s134
      $region28: #{vgg_forward.16} parent=23 // pred_fallthru
        _
    $region24: #{vgg_forward.16} parent=5 // pred_fallthru
      _
    %p136 = scmp.le.s32.totalorder 1, %s9
    %p137 = scmp.lt.s32.totalorder %s9, 3
    %p138 = pnand %p136, %p137
    %p139 = pneg %p138
    // Predicated region
    $region29: #{vgg_forward.16} parent=5 // pred_check
      _
    $region30: #{vgg_forward.16} parent=5 // pred_check_branch
      %141 = sbr.rel (%p138) target = $region32
    $region31: #{vgg_forward.16} parent=5 // pred_region
      %s142 = ssub.s32 %s9, 1
      %p143 = scmp.lt.s32.totalorder %s14, 1
      %s144 = scalar_select %p143, %s14, 1
      %s145 = smul.addr %s144, 10
      %s146 = smul.addr %s145, 4
      %s147 = scalar_lea.vmem %s0, %s146
      %p148 = pneg %p35
      %p149 = pneg %p32
      %p150 = pneg %p56
      %p151 = pneg %p53
      %p152 = pneg %p77
      %p153 = pneg %p74
      %p154 = pneg %p103
      %p155 = pneg %p100
      %p156 = scmp.lt.s32.totalorder %s14, 1
      %s157 = scalar_select %p156, %s14, 1
      %s158 = smul.addr %s157, 8
      %s159 = smul.addr %s158, 8
      %s160 = scalar_lea.vmem %s3, %s159
      %p161 = scmp.lt.s32.totalorder %s14, 1
      %s162 = scalar_select %p161, %s14, 1
      %s163 = smul.addr %s162, 10
      %s164 = smul.addr %s163, 4
      %s165 = scalar_lea.vmem %s0, %s164
      %p166 = scmp.lt.s32.totalorder %s14, 1
      %s167 = scalar_select %p166, %s14, 1
      %s168 = smul.addr %s167, 8
      %s169 = smul.addr %s168, 8
      %s170 = scalar_lea.vmem %s3, %s169
      %v172 = vld [vmem:[%s165] sm:$0xf]
      %v173 = vld [vmem:[%s165 + $0x4] sm:$0xf]
      %v174 = vld [vmem:[%s165 + $0x8] sm:$0xf]
      %v175 = vld [vmem:[%s165 + $0xc] sm:$0xf]
      %v176 = vld [vmem:[%s165 + $0x10] sm:$0xf]
      %v177 = vld [vmem:[%s165 + $0x14] sm:$0xf]
      %v178 = vld [vmem:[%s165 + $0x18] sm:$0xf]
      %v179 = vld [vmem:[%s165 + $0x1c] sm:$0xf]
      %v180 = vld [vmem:[%s1] sm:$0xf]
      %v181 = vld [vmem:[%s1 + $0x4] sm:$0xf]
      %v182 = vld [vmem:[%s1 + $0x8] sm:$0xf]
      %v183 = vld [vmem:[%s165 + $0x20] sm:$0xf]
      %s184 = scalar_lea.vmem %s1, 12
      %v185 = vld [vmem:[%s184] sm:$0xf]
      %v186 = vld [vmem:[%s184 + $0x4] sm:$0xf]
      %v187 = vld [vmem:[%s184 + $0x8] sm:$0xf]
      %v196 = vunpack.c.l.b16 %v173
      %v197 = vunpack.c.l.b16 %v174
      %v198 = vunpack.c.l.b16 %v175
      %v199 = vunpack.c.l.b16 %v176
      %v200 = vunpack.c.l.b16 %v177
      %v201 = vunpack.c.l.b16 %v178
      %v202 = vunpack.c.l.b16 %v179
      %v203 = vunpack.c.l.b16 %v183
      %v204 = vpack.c.b16 %v197, %v196
      %v205 = vpack.c.b16 %v199, %v198
      %v206 = vpack.c.b16 %v201, %v200
      %v207 = vpack.c.b16 %v203, %v202
      %v211 = vunpack.c.l.b16 %v185
      %v212 = vunpack.c.l.b16 %v186
      %v213 = vunpack.c.l.b16 %v187
      %v214 = vpack.c.b16 %v212, %v211
      %v215 = vpack.c.b16 %v213, %v213
      %vm217 = vcmask 195584
      %v219 = vsel %vm217, %v204, 0
      %v222 = vsel %vm217, %v205, 0
      %v225 = vsel %vm217, %v206, 0
      %v228 = vsel %vm217, %v207, 0
      %vm230 = vcmask 1043456
      %v232 = vsel %vm230, %v215, 0
      %234 = vmatprep.subr.bf16.mxu0 0
      %235 = vmatpush1.bf16.msra.mxu0 0
      %236 = vmatprep.subr.bf16.mxu0 0
      %237 = vmatpush1.bf16.msra.mxu0 0
      %238 = vmatprep.subr.bf16.mxu0 0
      %239 = vmatpush1.bf16.msra.mxu0 0
      %240 = vmatprep.subr.bf16.mxu0 0
      %241 = vmatpush1.bf16.msra.mxu0 0
      %242 = vmatprep.subr.bf16.mxu0 0
      %243 = vmatpush1.bf16.msra.mxu0 0
      %244 = vmatprep.subr.bf16.mxu0 0
      %245 = vmatpush1.bf16.msra.mxu0 0
      %246 = vmatprep.subr.bf16.mxu0 0
      %247 = vmatpush1.bf16.msra.mxu0 %v232
      %248 = vmatprep.subr.bf16.mxu0 0
      %249 = vmatpush1.bf16.msra.mxu0 %v214
      %250 = vmatprep.subr.bf16.mxu0 0
      %251 = vmatpush2.bf16.msra.mxu0 0
      %252 = vmatprep.subr.bf16.mxu0 0
      %253 = vmatpush2.bf16.msra.mxu0 0
      %254 = vmatprep.subr.bf16.mxu0 0
      %255 = vmatpush2.bf16.msra.mxu0 0
      %256 = vmatprep.subr.bf16.mxu0 0
      %257 = vmatpush2.bf16.msra.mxu0 0
      %258 = vmatprep.subr.bf16.mxu0 0
      %259 = vmatpush2.bf16.msra.mxu0 0
      %260 = vmatprep.subr.bf16.mxu0 0
      %261 = vmatpush2.bf16.msra.mxu0 0
      %262 = vmatprep.subr.bf16.mxu0 0
      %263 = vmatpush2.bf16.msra.mxu0 0
      %264 = vmatprep.subr.bf16.mxu0 0
      %265 = vmatpush2.bf16.msra.mxu0 0
      %266 = vmatprep.mubr.bf16.mxu0 0
      %267 = vmatmul.mubr.bf16.gmra.mxu0 %v219
      %v268 = vpop.f32.mrf.mxu0
      %v269 = vadd.f32 0.0, %v268
      %v270 = vpop.f32.mrf.mxu0
      %v271 = vpop.f32.mrf.mxu0
      %v272 = vadd.f32 0.0, %v271
      %v273 = vpop.f32.mrf.mxu0
      %274 = vmatprep.mubr.bf16.mxu0 0
      %275 = vmatmul.mubr.bf16.gmra.mxu0 %v222
      %v276 = vpop.f32.mrf.mxu0
      %v277 = vadd.f32 0.0, %v276
      %v278 = vpop.f32.mrf.mxu0
      %v279 = vpop.f32.mrf.mxu0
      %v280 = vadd.f32 0.0, %v279
      %v281 = vpop.f32.mrf.mxu0
      %282 = vmatprep.mubr.bf16.mxu0 0
      %283 = vmatmul.mubr.bf16.gmra.mxu0 %v225
      %v284 = vpop.f32.mrf.mxu0
      %v285 = vadd.f32 0.0, %v284
      %v286 = vpop.f32.mrf.mxu0
      %v287 = vpop.f32.mrf.mxu0
      %v288 = vadd.f32 0.0, %v287
      %v289 = vpop.f32.mrf.mxu0
      %290 = vmatprep.mubr.bf16.mxu0 0
      %291 = vmatmul.mubr.bf16.gmra.mxu0 %v228
      %v292 = vpop.f32.mrf.mxu0
      %v293 = vadd.f32 0.0, %v292
      %v294 = vpop.f32.mrf.mxu0
      %v295 = vpop.f32.mrf.mxu0
      %v296 = vadd.f32 0.0, %v295
      %v297 = vpop.f32.mrf.mxu0
      %298 = vdwg.mxu0
      %v300 = vunpack.c.l.b16 %v172
      %v301 = vpack.c.b16 %v196, %v300
      %v302 = vpack.c.b16 %v198, %v197
      %v303 = vpack.c.b16 %v200, %v199
      %v304 = vpack.c.b16 %v202, %v201
      %v308 = vunpack.c.l.b16 %v180
      %v309 = vunpack.c.l.b16 %v181
      %v310 = vunpack.c.l.b16 %v182
      %v311 = vpack.c.b16 %v309, %v308
      %v312 = vpack.c.b16 %v310, %v310
      %v315 = vsel %vm217, %v301, 0
      %v318 = vsel %vm217, %v302, 0
      %v321 = vsel %vm217, %v303, 0
      %v324 = vsel %vm217, %v304, 0
      %v327 = vsel %vm230, %v312, 0
      %329 = vmatprep.subr.bf16.mxu0 0
      %330 = vmatpush1.bf16.msra.mxu0 0
      %331 = vmatprep.subr.bf16.mxu0 0
      %332 = vmatpush1.bf16.msra.mxu0 0
      %333 = vmatprep.subr.bf16.mxu0 0
      %334 = vmatpush1.bf16.msra.mxu0 0
      %335 = vmatprep.subr.bf16.mxu0 0
      %336 = vmatpush1.bf16.msra.mxu0 0
      %337 = vmatprep.subr.bf16.mxu0 0
      %338 = vmatpush1.bf16.msra.mxu0 0
      %339 = vmatprep.subr.bf16.mxu0 0
      %340 = vmatpush1.bf16.msra.mxu0 0
      %341 = vmatprep.subr.bf16.mxu0 0
      %342 = vmatpush1.bf16.msra.mxu0 %v327
      %343 = vmatprep.subr.bf16.mxu0 0
      %344 = vmatpush1.bf16.msra.mxu0 %v311
      %345 = vmatprep.subr.bf16.mxu0 0
      %346 = vmatpush2.bf16.msra.mxu0 0
      %347 = vmatprep.subr.bf16.mxu0 0
      %348 = vmatpush2.bf16.msra.mxu0 0
      %349 = vmatprep.subr.bf16.mxu0 0
      %350 = vmatpush2.bf16.msra.mxu0 0
      %351 = vmatprep.subr.bf16.mxu0 0
      %352 = vmatpush2.bf16.msra.mxu0 0
      %353 = vmatprep.subr.bf16.mxu0 0
      %354 = vmatpush2.bf16.msra.mxu0 0
      %355 = vmatprep.subr.bf16.mxu0 0
      %356 = vmatpush2.bf16.msra.mxu0 0
      %357 = vmatprep.subr.bf16.mxu0 0
      %358 = vmatpush2.bf16.msra.mxu0 0
      %359 = vmatprep.subr.bf16.mxu0 0
      %360 = vmatpush2.bf16.msra.mxu0 0
      %361 = vmatprep.mubr.bf16.mxu0 0
      %362 = vmatmul.mubr.bf16.gmra.mxu0 %v315
      %v363 = vpop.f32.mrf.mxu0
      %v364 = vadd.f32 %v269, %v363
      %v365 = vpop.f32.mrf.mxu0
      %v366 = vpop.f32.mrf.mxu0
      %v367 = vadd.f32 %v272, %v366
      %v368 = vpop.f32.mrf.mxu0
      %369 = vmatprep.mubr.bf16.mxu0 0
      %370 = vmatmul.mubr.bf16.gmra.mxu0 %v318
      %v371 = vpop.f32.mrf.mxu0
      %v372 = vadd.f32 %v277, %v371
      %v373 = vpop.f32.mrf.mxu0
      %v374 = vpop.f32.mrf.mxu0
      %v375 = vadd.f32 %v280, %v374
      %v376 = vpop.f32.mrf.mxu0
      %377 = vmatprep.mubr.bf16.mxu0 0
      %378 = vmatmul.mubr.bf16.gmra.mxu0 %v321
      %v379 = vpop.f32.mrf.mxu0
      %v380 = vadd.f32 %v285, %v379
      %v381 = vpop.f32.mrf.mxu0
      %v382 = vpop.f32.mrf.mxu0
      %v383 = vadd.f32 %v288, %v382
      %v384 = vpop.f32.mrf.mxu0
      %385 = vmatprep.mubr.bf16.mxu0 0
      %386 = vmatmul.mubr.bf16.gmra.mxu0 %v324
      %v387 = vpop.f32.mrf.mxu0
      %v388 = vadd.f32 %v293, %v387
      %v389 = vpop.f32.mrf.mxu0
      %v390 = vpop.f32.mrf.mxu0
      %v391 = vadd.f32 %v296, %v390
      %v392 = vpop.f32.mrf.mxu0
      %393 = vdwg.mxu0
      %v394 = vld [vmem:[%s165 + $0x8] sm:$0xf]
      %v395 = vld [vmem:[%s165 + $0xc] sm:$0xf]
      %v396 = vld [vmem:[%s165 + $0x10] sm:$0xf]
      %v397 = vld [vmem:[%s165 + $0x14] sm:$0xf]
      %v398 = vld [vmem:[%s165 + $0x18] sm:$0xf]
      %v399 = vld [vmem:[%s165 + $0x1c] sm:$0xf]
      %v400 = vld [vmem:[%s165 + $0x20] sm:$0xf]
      %v401 = vld [vmem:[%s165 + $0x24] sm:$0xf]
      %s402 = scalar_lea.vmem %s1, 24
      %v403 = vld [vmem:[%s402] sm:$0xf]
      %v404 = vld [vmem:[%s402 + $0x4] sm:$0xf]
      %v405 = vld [vmem:[%s402 + $0x8] sm:$0xf]
      %v414 = vunpack.c.l.b16 %v394
      %v415 = vunpack.c.l.b16 %v395
      %v416 = vunpack.c.l.b16 %v396
      %v417 = vunpack.c.l.b16 %v397
      %v418 = vunpack.c.l.b16 %v398
      %v419 = vunpack.c.l.b16 %v399
      %v420 = vunpack.c.l.b16 %v400
      %v421 = vunpack.c.l.b16 %v401
      %v422 = vpack.c.b16 %v415, %v414
      %v423 = vpack.c.b16 %v417, %v416
      %v424 = vpack.c.b16 %v419, %v418
      %v425 = vpack.c.b16 %v421, %v420
      %v429 = vunpack.c.l.b16 %v403
      %v430 = vunpack.c.l.b16 %v404
      %v431 = vunpack.c.l.b16 %v405
      %v432 = vpack.c.b16 %v430, %v429
      %v433 = vpack.c.b16 %v431, %v431
      %v436 = vsel %vm217, %v422, 0
      %v439 = vsel %vm217, %v423, 0
      %v442 = vsel %vm217, %v424, 0
      %v445 = vsel %vm217, %v425, 0
      %v448 = vsel %vm230, %v433, 0
      %450 = vmatprep.subr.bf16.mxu0 0
      %451 = vmatpush1.bf16.msra.mxu0 0
      %452 = vmatprep.subr.bf16.mxu0 0
      %453 = vmatpush1.bf16.msra.mxu0 0
      %454 = vmatprep.subr.bf16.mxu0 0
      %455 = vmatpush1.bf16.msra.mxu0 0
      %456 = vmatprep.subr.bf16.mxu0 0
      %457 = vmatpush1.bf16.msra.mxu0 0
      %458 = vmatprep.subr.bf16.mxu0 0
      %459 = vmatpush1.bf16.msra.mxu0 0
      %460 = vmatprep.subr.bf16.mxu0 0
      %461 = vmatpush1.bf16.msra.mxu0 0
      %462 = vmatprep.subr.bf16.mxu0 0
      %463 = vmatpush1.bf16.msra.mxu0 %v448
      %464 = vmatprep.subr.bf16.mxu0 0
      %465 = vmatpush1.bf16.msra.mxu0 %v432
      %466 = vmatprep.subr.bf16.mxu0 0
      %467 = vmatpush2.bf16.msra.mxu0 0
      %468 = vmatprep.subr.bf16.mxu0 0
      %469 = vmatpush2.bf16.msra.mxu0 0
      %470 = vmatprep.subr.bf16.mxu0 0
      %471 = vmatpush2.bf16.msra.mxu0 0
      %472 = vmatprep.subr.bf16.mxu0 0
      %473 = vmatpush2.bf16.msra.mxu0 0
      %474 = vmatprep.subr.bf16.mxu0 0
      %475 = vmatpush2.bf16.msra.mxu0 0
      %476 = vmatprep.subr.bf16.mxu0 0
      %477 = vmatpush2.bf16.msra.mxu0 0
      %478 = vmatprep.subr.bf16.mxu0 0
      %479 = vmatpush2.bf16.msra.mxu0 0
      %480 = vmatprep.subr.bf16.mxu0 0
      %481 = vmatpush2.bf16.msra.mxu0 0
      %482 = vmatprep.mubr.bf16.mxu0 0
      %483 = vmatmul.mubr.bf16.gmra.mxu0 %v436
      %v484 = vpop.f32.mrf.mxu0
      %v485 = vadd.f32 0.0, %v484
      %v486 = vpop.f32.mrf.mxu0
      %v487 = vpop.f32.mrf.mxu0
      %v488 = vadd.f32 0.0, %v487
      %v489 = vpop.f32.mrf.mxu0
      %490 = vmatprep.mubr.bf16.mxu0 0
      %491 = vmatmul.mubr.bf16.gmra.mxu0 %v439
      %v492 = vpop.f32.mrf.mxu0
      %v493 = vadd.f32 0.0, %v492
      %v494 = vpop.f32.mrf.mxu0
      %v495 = vpop.f32.mrf.mxu0
      %v496 = vadd.f32 0.0, %v495
      %v497 = vpop.f32.mrf.mxu0
      %498 = vmatprep.mubr.bf16.mxu0 0
      %499 = vmatmul.mubr.bf16.gmra.mxu0 %v442
      %v500 = vpop.f32.mrf.mxu0
      %v501 = vadd.f32 0.0, %v500
      %v502 = vpop.f32.mrf.mxu0
      %v503 = vpop.f32.mrf.mxu0
      %v504 = vadd.f32 0.0, %v503
      %v505 = vpop.f32.mrf.mxu0
      %506 = vmatprep.mubr.bf16.mxu0 0
      %507 = vmatmul.mubr.bf16.gmra.mxu0 %v445
      %v508 = vpop.f32.mrf.mxu0
      %v509 = vadd.f32 0.0, %v508
      %v510 = vpop.f32.mrf.mxu0
      %v511 = vpop.f32.mrf.mxu0
      %v512 = vadd.f32 0.0, %v511
      %v513 = vpop.f32.mrf.mxu0
      %514 = vdwg.mxu0
      %v515 = vadd.f32 %v364, %v485
      %v516 = vadd.f32 %v367, %v488
      %v517 = vadd.f32 %v372, %v493
      %v518 = vadd.f32 %v375, %v496
      %v519 = vadd.f32 %v380, %v501
      %v520 = vadd.f32 %v383, %v504
      %v521 = vadd.f32 %v388, %v509
      %v522 = vadd.f32 %v391, %v512
      %v523 = vld [vmem:[%s2] sm:$0x1]
      %v525 = vlaneseq
      %v526 = vshrl.u32 %v525, 7
      %v527 = vsub.s32 0, %v526
      %v528 = vrot.slane %v523, %v527
      %v530 = vadd.f32 %v515, %v528
      %v531 = vadd.f32 %v516, %v528
      %v532 = vadd.f32 %v517, %v528
      %v533 = vadd.f32 %v518, %v528
      %v534 = vadd.f32 %v519, %v528
      %v535 = vadd.f32 %v520, %v528
      %v536 = vadd.f32 %v521, %v528
      %v537 = vadd.f32 %v522, %v528
      %v538 = vmax.f32 %v530, 0.0
      %v539 = vmax.f32 %v531, 0.0
      %v540 = vmax.f32 %v532, 0.0
      %v541 = vmax.f32 %v533, 0.0
      %v542 = vmax.f32 %v534, 0.0
      %v543 = vmax.f32 %v535, 0.0
      %v544 = vmax.f32 %v536, 0.0
      %v545 = vmax.f32 %v537, 0.0
      %vm546 = vcmask 130048
      %547 = vst.msk [vmem:[%s170] sm:$0xff] %vm546, %v538
      %548 = vst.msk [vmem:[%s170 + $0x8] sm:$0xff] %vm546, %v539
      %549 = vst.msk [vmem:[%s170 + $0x10] sm:$0xff] %vm546, %v540
      %550 = vst.msk [vmem:[%s170 + $0x18] sm:$0xff] %vm546, %v541
      %551 = vst.msk [vmem:[%s170 + $0x20] sm:$0xff] %vm546, %v542
      %552 = vst.msk [vmem:[%s170 + $0x28] sm:$0xff] %vm546, %v543
      %553 = vst.msk [vmem:[%s170 + $0x30] sm:$0xff] %vm546, %v544
      %554 = vst.msk [vmem:[%s170 + $0x38] sm:$0xff] %vm546, %v545
      %p555 = scmp.lt.s32.totalorder %s14, 1
      %s556 = scalar_select %p555, %s14, 1
      %s557 = smul.addr %s556, 8
      %s558 = smul.addr %s557, 8
      %s559 = scalar_lea.vmem %s3, %s558
      // Predicated region
      $region33: #{vgg_forward.16} parent=31 // pred_check
        %p560 = pneg %p100
      $region34: #{vgg_forward.16} parent=31 // pred_check_branch
        %562 = sbr.rel (%p560) target = $region36
      $region35: #{vgg_forward.16} parent=31 // pred_region
        _
      $region36: #{vgg_forward.16} parent=31 // pred_fallthru
        _
    $region32: #{vgg_forward.16} parent=5 // pred_fallthru
      _
    %p563 = scmp.le.s32.totalorder 2, %s9
    // Predicated region
    $region37: #{vgg_forward.16} parent=5 // pred_check
      %p564 = pneg %p563
    $region38: #{vgg_forward.16} parent=5 // pred_check_branch
      %566 = sbr.rel (%p564) target = $region40
    $region39: #{vgg_forward.16} parent=5 // pred_region
      %s567 = ssub.s32 %s9, 2
      // Predicated region
      $region41: #{vgg_forward.16} parent=39 // pred_check
        %p568 = pneg %p106
      $region42: #{vgg_forward.16} parent=39 // pred_check_branch
        %570 = sbr.rel (%p568) target = $region44
      $region43: #{vgg_forward.16} parent=39 // pred_region
        %p571 = scmp.lt.s32.totalorder %s15, 1
        %s572 = scalar_select %p571, %s15, 1
        %s573 = smul.addr %s572, 8
        %s574 = smul.addr %s573, 8
        %s575 = scalar_lea.vmem %s3, %s574
      $region44: #{vgg_forward.16} parent=39 // pred_fallthru
        _
    $region40: #{vgg_forward.16} parent=5 // pred_fallthru
      _
  $region6: #{vgg_forward.16} parent=0 // loop_footer
    %s13 = sadd.s32 1, %s9
  $region7: #{vgg_forward.16} parent=0 // loop_footer_branch
    %8 = sbr.rel target = $region3
  $region8: #{vgg_forward.16} parent=0 // loop_exit
    _

// kernel: vgg_forward.17
$region0: #{vgg_forward.17}
  #allocation0 [shape = 'u32[]', space=smem, size = 0x4, offset = 0x4, fixed_abs, tag = 'smem constant byte address 0x4 - core index']
  #allocation1 [shape = 'u32[144,128]{1,0:T(1,128)}', space=vmem, size = 0x12000, scoped, tag = 'internal scratch']
  %s0 = inlined_call_operand.vmem [shape: bf16[2,80,48], index: 0, kind: input, shape index: {}]
  %s1 = inlined_call_operand.vmem [shape: bf16[3,48,16], index: 1, kind: input, shape index: {}]
  %s2 = inlined_call_operand.vmem [shape: f32[1,16], index: 2, kind: input, shape index: {}]
  %s3 = inlined_call_operand.vmem [shape: f32[2,64,16], index: 3, kind: output, shape index: {}]
  %s4 = sld [smem:[#allocation0]]
  $region45: #{vgg_forward.17} parent=0
    _
  %s6 = ssub.s32 1, %s4
  %s7 = scalar_select 0, %s6, %s4
  loop: start=0, step=1, limit=4
  $region2: #{vgg_forward.17} parent=0 // loop_pre_header
    _
  $region3: #{vgg_forward.17} parent=0 // loop_header
    %s9 = sphi 0, %s13
    %p10 = scmp.ge.s32.totalorder %s9, 4
    %s19 = sphi 0, %s21
    %s22 = sphi 0, %s19
    %s23 = sphi 0, %s22
    %s39 = sphi 0, %s23
    %s43 = sphi 0, %s43
    %s45 = sphi 0, %s43
    %s46 = sphi 0, %s45
    %s60 = sphi 0, %s46
    %s64 = sphi 0, %s64
    %s66 = sphi 0, %s64
    %s67 = sphi 0, %s66
    %s81 = sphi 0, %s67
    %s87 = sphi 0, %s89
    %s90 = sphi 0, %s87
    %s91 = sphi 0, %s90
    %s107 = sphi 0, %s91
  $region4: #{vgg_forward.17} parent=0 // loop_header_branch
    %12 = sbr.rel (%p10) target = $region8
  $region5: #{vgg_forward.17} parent=0 // loop_body
    %s14 = ssub.s32 %s9, 1
    %s15 = ssub.s32 %s9, 2
    %s16 = sadd.s32 %s9, 1
    %s17 = ssub.s32 %s9, %s16
    %p18 = scmp.eq.s32.totalorder %s17, 0
    %s20 = sadd.s32 %s19, 1
    %s21 = scalar_select %p18, %s19, %s20
    %p24 = pneg %p18
    %p25 = scmp.eq.s32.totalorder %s9, 1
    %p26 = por %p24, %p25
    %p27 = scmp.ne.s32.totalorder %s19, %s22
    %p28 = scmp.eq.s32.totalorder %s9, 0
    %p29 = por %p27, %p28
    %p30 = scmp.ne.s32.totalorder %s19, %s22
    %p31 = scmp.eq.s32.totalorder %s14, 1
    %p32 = por %p30, %p31
    %p33 = scmp.ne.s32.totalorder %s22, %s23
    %p34 = scmp.eq.s32.totalorder %s14, 0
    %p35 = por %p33, %p34
    %p36 = scmp.ne.s32.totalorder %s22, %s23
    %p37 = scmp.eq.s32.totalorder %s15, 1
    %p38 = por %p36, %p37
    %p40 = scmp.ne.s32.totalorder %s23, %s39
    %p41 = scmp.eq.s32.totalorder %s15, 0
    %p42 = por %p40, %p41
    %s44 = sadd.s32 %s43, 1
    %p47 = scmp.eq.s32.totalorder %s9, 1
    %p48 = scmp.ne.s32.totalorder %s43, %s45
    %p49 = scmp.eq.s32.totalorder %s9, 0
    %p50 = por %p48, %p49
    %p51 = scmp.ne.s32.totalorder %s43, %s45
    %p52 = scmp.eq.s32.totalorder %s14, 1
    %p53 = por %p51, %p52
    %p54 = scmp.ne.s32.totalorder %s45, %s46
    %p55 = scmp.eq.s32.totalorder %s14, 0
    %p56 = por %p54, %p55
    %p57 = scmp.ne.s32.totalorder %s45, %s46
    %p58 = scmp.eq.s32.totalorder %s15, 1
    %p59 = por %p57, %p58
    %p61 = scmp.ne.s32.totalorder %s46, %s60
    %p62 = scmp.eq.s32.totalorder %s15, 0
    %p63 = por %p61, %p62
    %s65 = sadd.s32 %s64, 1
    %p68 = scmp.eq.s32.totalorder %s9, 1
    %p69 = scmp.ne.s32.totalorder %s64, %s66
    %p70 = scmp.eq.s32.totalorder %s9, 0
    %p71 = por %p69, %p70
    %p72 = scmp.ne.s32.totalorder %s64, %s66
    %p73 = scmp.eq.s32.totalorder %s14, 1
    %p74 = por %p72, %p73
    %p75 = scmp.ne.s32.totalorder %s66, %s67
    %p76 = scmp.eq.s32.totalorder %s14, 0
    %p77 = por %p75, %p76
    %p78 = scmp.ne.s32.totalorder %s66, %s67
    %p79 = scmp.eq.s32.totalorder %s15, 1
    %p80 = por %p78, %p79
    %p82 = scmp.ne.s32.totalorder %s67, %s81
    %p83 = scmp.eq.s32.totalorder %s15, 0
    %p84 = por %p82, %p83
    %s85 = ssub.s32 %s9, %s16
    %p86 = scmp.eq.s32.totalorder %s85, 0
    %s88 = sadd.s32 %s87, 1
    %s89 = scalar_select %p86, %s87, %s88
    %p92 = pneg %p86
    %p93 = scmp.eq.s32.totalorder %s9, 1
    %p94 = por %p92, %p93
    %p95 = scmp.ne.s32.totalorder %s87, %s90
    %p96 = scmp.eq.s32.totalorder %s9, 0
    %p97 = por %p95, %p96
    %p98 = scmp.ne.s32.totalorder %s87, %s90
    %p99 = scmp.eq.s32.totalorder %s14, 1
    %p100 = por %p98, %p99
    %p101 = scmp.ne.s32.totalorder %s90, %s91
    %p102 = scmp.eq.s32.totalorder %s14, 0
    %p103 = por %p101, %p102
    %p104 = scmp.ne.s32.totalorder %s90, %s91
    %p105 = scmp.eq.s32.totalorder %s15, 1
    %p106 = por %p104, %p105
    %p108 = scmp.ne.s32.totalorder %s91, %s107
    %p109 = scmp.eq.s32.totalorder %s15, 0
    %p110 = por %p108, %p109
    %p111 = scmp.le.s32.totalorder 1, %s9
    %p112 = scmp.lt.s32.totalorder %s9, 3
    %p113 = pnand %p111, %p112
    %p114 = pneg %p113
    // Predicated region
    $region9: #{vgg_forward.17} parent=5 // pred_check
      _
    $region10: #{vgg_forward.17} parent=5 // pred_check_branch
      %116 = sbr.rel (%p113) target = $region12
    $region11: #{vgg_forward.17} parent=5 // pred_region
      %s117 = ssub.s32 %s9, 1
      // Predicated region
      $region13: #{vgg_forward.17} parent=11 // pred_check
        %p118 = pneg %p56
      $region14: #{vgg_forward.17} parent=11 // pred_check_branch
        %120 = sbr.rel (%p118) target = $region16
      $region15: #{vgg_forward.17} parent=11 // pred_region
        _
      $region16: #{vgg_forward.17} parent=11 // pred_fallthru
        _
      // Predicated region
      $region17: #{vgg_forward.17} parent=11 // pred_check
        %p121 = pneg %p77
      $region18: #{vgg_forward.17} parent=11 // pred_check_branch
        %123 = sbr.rel (%p121) target = $region20
      $region19: #{vgg_forward.17} parent=11 // pred_region
        _
      $region20: #{vgg_forward.17} parent=11 // pred_fallthru
        _
    $region12: #{vgg_forward.17} parent=5 // pred_fallthru
      _
    %p124 = scmp.lt.s32.totalorder %s9, 2
    // Predicated region
    $region21: #{vgg_forward.17} parent=5 // pred_check
      %p125 = pneg %p124
    $region22: #{vgg_forward.17} parent=5 // pred_check_branch
      %127 = sbr.rel (%p125) target = $region24
    $region23: #{vgg_forward.17} parent=5 // pred_region
      // Predicated region
      $region25: #{vgg_forward.17} parent=23 // pred_check
        %p128 = pneg %p29
      $region26: #{vgg_forward.17} parent=23 // pred_check_branch
        %130 = sbr.rel (%p128) target = $region28
      $region27: #{vgg_forward.17} parent=23 // pred_region
        %p131 = scmp.lt.s32.totalorder %s9, 1
        %s132 = scalar_select %p131, %s9, 1
        %s133 = smul.addr %s132, 10
        %s134 = smul.addr %s133, 4
        %s135 = scalar_lea.vmem %s0, %s134
      $region28: #{vgg_forward.17} parent=23 // pred_fallthru
        _
    $region24: #{vgg_forward.17} parent=5 // pred_fallthru
      _
    %p136 = scmp.le.s32.totalorder 1, %s9
    %p137 = scmp.lt.s32.totalorder %s9, 3
    %p138 = pnand %p136, %p137
    %p139 = pneg %p138
    // Predicated region
    $region29: #{vgg_forward.17} parent=5 // pred_check
      _
    $region30: #{vgg_forward.17} parent=5 // pred_check_branch
      %141 = sbr.rel (%p138) target = $region32
    $region31: #{vgg_forward.17} parent=5 // pred_region
      %s142 = ssub.s32 %s9, 1
      %p143 = scmp.lt.s32.totalorder %s14, 1
      %s144 = scalar_select %p143, %s14, 1
      %s145 = smul.addr %s144, 10
      %s146 = smul.addr %s145, 4
      %s147 = scalar_lea.vmem %s0, %s146
      %p148 = pneg %p35
      %p149 = pneg %p32
      %p150 = pneg %p56
      %p151 = pneg %p53
      %p152 = pneg %p77
      %p153 = pneg %p74
      %p154 = pneg %p103
      %p155 = pneg %p100
      %p156 = scmp.lt.s32.totalorder %s14, 1
      %s157 = scalar_select %p156, %s14, 1
      %s158 = smul.addr %s157, 8
      %s159 = smul.addr %s158, 8
      %s160 = scalar_lea.vmem %s3, %s159
      %p161 = scmp.lt.s32.totalorder %s14, 1
      %s162 = scalar_select %p161, %s14, 1
      %s163 = smul.addr %s162, 10
      %s164 = smul.addr %s163, 4
      %s165 = scalar_lea.vmem %s0, %s164
      %p166 = scmp.lt.s32.totalorder %s14, 1
      %s167 = scalar_select %p166, %s14, 1
      %s168 = smul.addr %s167, 8
      %s169 = smul.addr %s168, 8
      %s170 = scalar_lea.vmem %s3, %s169
      %v172 = vld [vmem:[%s165] sm:$0xf]
      %v173 = vld [vmem:[%s165 + $0x4] sm:$0xf]
      %v174 = vld [vmem:[%s165 + $0x8] sm:$0xf]
      %v175 = vld [vmem:[%s165 + $0xc] sm:$0xf]
      %v176 = vld [vmem:[%s165 + $0x10] sm:$0xf]
      %v177 = vld [vmem:[%s165 + $0x14] sm:$0xf]
      %v178 = vld [vmem:[%s165 + $0x18] sm:$0xf]
      %v179 = vld [vmem:[%s165 + $0x1c] sm:$0xf]
      %v180 = vld [vmem:[%s1] sm:$0xf]
      %v181 = vld [vmem:[%s1 + $0x4] sm:$0xf]
      %v182 = vld [vmem:[%s1 + $0x8] sm:$0xf]
      %v183 = vld [vmem:[%s1 + $0xc] sm:$0xf]
      %v184 = vld [vmem:[%s1 + $0x10] sm:$0xf]
      %v185 = vld [vmem:[%s1 + $0x14] sm:$0xf]
      %v186 = vld [vmem:[%s165 + $0x20] sm:$0xf]
      %s187 = scalar_lea.vmem %s1, 24
      %v188 = vld [vmem:[%s187] sm:$0xf]
      %v189 = vld [vmem:[%s187 + $0x4] sm:$0xf]
      %v190 = vld [vmem:[%s187 + $0x8] sm:$0xf]
      %v191 = vld [vmem:[%s187 + $0xc] sm:$0xf]
      %v192 = vld [vmem:[%s187 + $0x10] sm:$0xf]
      %v193 = vld [vmem:[%s187 + $0x14] sm:$0xf]
      %v202 = vunpack.c.l.b16 %v173
      %v203 = vunpack.c.l.b16 %v174
      %v204 = vunpack.c.l.b16 %v175
      %v205 = vunpack.c.l.b16 %v176
      %v206 = vunpack.c.l.b16 %v177
      %v207 = vunpack.c.l.b16 %v178
      %v208 = vunpack.c.l.b16 %v179
      %v209 = vunpack.c.l.b16 %v186
      %v210 = vpack.c.b16 %v203, %v202
      %v211 = vpack.c.b16 %v205, %v204
      %v212 = vpack.c.b16 %v207, %v206
      %v213 = vpack.c.b16 %v209, %v208
      %v220 = vunpack.c.l.b16 %v188
      %v221 = vunpack.c.l.b16 %v189
      %v222 = vunpack.c.l.b16 %v190
      %v223 = vunpack.c.l.b16 %v191
      %v224 = vunpack.c.l.b16 %v192
      %v225 = vunpack.c.l.b16 %v193
      %v226 = vpack.c.b16 %v221, %v220
      %v227 = vpack.c.b16 %v223, %v222
      %v228 = vpack.c.b16 %v225, %v224
      %vm232 = vcmask 392192
      %v234 = vsel %vm232, %v210, 0
      %v237 = vsel %vm232, %v211, 0
      %v240 = vsel %vm232, %v212, 0
      %v243 = vsel %vm232, %v213, 0
      %245 = vmatprep.subr.bf16.mxu0 0
      %246 = vmatpush1.bf16.msra.mxu0 0
      %247 = vmatprep.subr.bf16.mxu0 0
      %248 = vmatpush1.bf16.msra.mxu0 0
      %249 = vmatprep.subr.bf16.mxu0 0
      %250 = vmatpush1.bf16.msra.mxu0 0
      %251 = vmatprep.subr.bf16.mxu0 0
      %252 = vmatpush1.bf16.msra.mxu0 0
      %253 = vmatprep.subr.bf16.mxu0 0
      %254 = vmatpush1.bf16.msra.mxu0 0
      %255 = vmatprep.subr.bf16.mxu0 0
      %256 = vmatpush1.bf16.msra.mxu0 %v228
      %257 = vmatprep.subr.bf16.mxu0 0
      %258 = vmatpush1.bf16.msra.mxu0 %v227
      %259 = vmatprep.subr.bf16.mxu0 0
      %260 = vmatpush1.bf16.msra.mxu0 %v226
      %261 = vmatprep.subr.bf16.mxu0 0
      %262 = vmatpush2.bf16.msra.mxu0 0
      %263 = vmatprep.subr.bf16.mxu0 0
      %264 = vmatpush2.bf16.msra.mxu0 0
      %265 = vmatprep.subr.bf16.mxu0 0
      %266 = vmatpush2.bf16.msra.mxu0 0
      %267 = vmatprep.subr.bf16.mxu0 0
      %268 = vmatpush2.bf16.msra.mxu0 0
      %269 = vmatprep.subr.bf16.mxu0 0
      %270 = vmatpush2.bf16.msra.mxu0 0
      %271 = vmatprep.subr.bf16.mxu0 0
      %272 = vmatpush2.bf16.msra.mxu0 0
      %273 = vmatprep.subr.bf16.mxu0 0
      %274 = vmatpush2.bf16.msra.mxu0 0
      %275 = vmatprep.subr.bf16.mxu0 0
      %276 = vmatpush2.bf16.msra.mxu0 0
      %277 = vmatprep.mubr.bf16.mxu0 0
      %278 = vmatmul.mubr.bf16.gmra.mxu0 %v234
      %v279 = vpop.f32.mrf.mxu0
      %v280 = vadd.f32 0.0, %v279
      %v281 = vpop.f32.mrf.mxu0
      %v282 = vpop.f32.mrf.mxu0
      %v283 = vadd.f32 0.0, %v282
      %v284 = vpop.f32.mrf.mxu0
      %285 = vmatprep.mubr.bf16.mxu0 0
      %286 = vmatmul.mubr.bf16.gmra.mxu0 %v237
      %v287 = vpop.f32.mrf.mxu0
      %v288 = vadd.f32 0.0, %v287
      %v289 = vpop.f32.mrf.mxu0
      %v290 = vpop.f32.mrf.mxu0
      %v291 = vadd.f32 0.0, %v290
      %v292 = vpop.f32.mrf.mxu0
      %293 = vmatprep.mubr.bf16.mxu0 0
      %294 = vmatmul.mubr.bf16.gmra.mxu0 %v240
      %v295 = vpop.f32.mrf.mxu0
      %v296 = vadd.f32 0.0, %v295
      %v297 = vpop.f32.mrf.mxu0
      %v298 = vpop.f32.mrf.mxu0
      %v299 = vadd.f32 0.0, %v298
      %v300 = vpop.f32.mrf.mxu0
      %301 = vmatprep.mubr.bf16.mxu0 0
      %302 = vmatmul.mubr.bf16.gmra.mxu0 %v243
      %v303 = vpop.f32.mrf.mxu0
      %v304 = vadd.f32 0.0, %v303
      %v305 = vpop.f32.mrf.mxu0
      %v306 = vpop.f32.mrf.mxu0
      %v307 = vadd.f32 0.0, %v306
      %v308 = vpop.f32.mrf.mxu0
      %309 = vdwg.mxu0
      %v311 = vunpack.c.l.b16 %v172
      %v312 = vpack.c.b16 %v202, %v311
      %v313 = vpack.c.b16 %v204, %v203
      %v314 = vpack.c.b16 %v206, %v205
      %v315 = vpack.c.b16 %v208, %v207
      %v322 = vunpack.c.l.b16 %v180
      %v323 = vunpack.c.l.b16 %v181
      %v324 = vunpack.c.l.b16 %v182
      %v325 = vunpack.c.l.b16 %v183
      %v326 = vunpack.c.l.b16 %v184
      %v327 = vunpack.c.l.b16 %v185
      %v328 = vpack.c.b16 %v323, %v322
      %v329 = vpack.c.b16 %v325, %v324
      %v330 = vpack.c.b16 %v327, %v326
      %v335 = vsel %vm232, %v312, 0
      %v338 = vsel %vm232, %v313, 0
      %v341 = vsel %vm232, %v314, 0
      %v344 = vsel %vm232, %v315, 0
      %346 = vmatprep.subr.bf16.mxu0 0
      %347 = vmatpush1.bf16.msra.mxu0 0
      %348 = vmatprep.subr.bf16.mxu0 0
      %349 = vmatpush1.bf16.msra.mxu0 0
      %350 = vmatprep.subr.bf16.mxu0 0
      %351 = vmatpush1.bf16.msra.mxu0 0
      %352 = vmatprep.subr.bf16.mxu0 0
      %353 = vmatpush1.bf16.msra.mxu0 0
      %354 = vmatprep.subr.bf16.mxu0 0
      %355 = vmatpush1.bf16.msra.mxu0 0
      %356 = vmatprep.subr.bf16.mxu0 0
      %357 = vmatpush1.bf16.msra.mxu0 %v330
      %358 = vmatprep.subr.bf16.mxu0 0
      %359 = vmatpush1.bf16.msra.mxu0 %v329
      %360 = vmatprep.subr.bf16.mxu0 0
      %361 = vmatpush1.bf16.msra.mxu0 %v328
      %362 = vmatprep.subr.bf16.mxu0 0
      %363 = vmatpush2.bf16.msra.mxu0 0
      %364 = vmatprep.subr.bf16.mxu0 0
      %365 = vmatpush2.bf16.msra.mxu0 0
      %366 = vmatprep.subr.bf16.mxu0 0
      %367 = vmatpush2.bf16.msra.mxu0 0
      %368 = vmatprep.subr.bf16.mxu0 0
      %369 = vmatpush2.bf16.msra.mxu0 0
      %370 = vmatprep.subr.bf16.mxu0 0
      %371 = vmatpush2.bf16.msra.mxu0 0
      %372 = vmatprep.subr.bf16.mxu0 0
      %373 = vmatpush2.bf16.msra.mxu0 0
      %374 = vmatprep.subr.bf16.mxu0 0
      %375 = vmatpush2.bf16.msra.mxu0 0
      %376 = vmatprep.subr.bf16.mxu0 0
      %377 = vmatpush2.bf16.msra.mxu0 0
      %378 = vmatprep.mubr.bf16.mxu0 0
      %379 = vmatmul.mubr.bf16.gmra.mxu0 %v335
      %v380 = vpop.f32.mrf.mxu0
      %v381 = vadd.f32 %v280, %v380
      %v382 = vpop.f32.mrf.mxu0
      %v383 = vpop.f32.mrf.mxu0
      %v384 = vadd.f32 %v283, %v383
      %v385 = vpop.f32.mrf.mxu0
      %386 = vmatprep.mubr.bf16.mxu0 0
      %387 = vmatmul.mubr.bf16.gmra.mxu0 %v338
      %v388 = vpop.f32.mrf.mxu0
      %v389 = vadd.f32 %v288, %v388
      %v390 = vpop.f32.mrf.mxu0
      %v391 = vpop.f32.mrf.mxu0
      %v392 = vadd.f32 %v291, %v391
      %v393 = vpop.f32.mrf.mxu0
      %394 = vmatprep.mubr.bf16.mxu0 0
      %395 = vmatmul.mubr.bf16.gmra.mxu0 %v341
      %v396 = vpop.f32.mrf.mxu0
      %v397 = vadd.f32 %v296, %v396
      %v398 = vpop.f32.mrf.mxu0
      %v399 = vpop.f32.mrf.mxu0
      %v400 = vadd.f32 %v299, %v399
      %v401 = vpop.f32.mrf.mxu0
      %402 = vmatprep.mubr.bf16.mxu0 0
      %403 = vmatmul.mubr.bf16.gmra.mxu0 %v344
      %v404 = vpop.f32.mrf.mxu0
      %v405 = vadd.f32 %v304, %v404
      %v406 = vpop.f32.mrf.mxu0
      %v407 = vpop.f32.mrf.mxu0
      %v408 = vadd.f32 %v307, %v407
      %v409 = vpop.f32.mrf.mxu0
      %410 = vdwg.mxu0
      %v411 = vld [vmem:[%s165 + $0x8] sm:$0xf]
      %v412 = vld [vmem:[%s165 + $0xc] sm:$0xf]
      %v413 = vld [vmem:[%s165 + $0x10] sm:$0xf]
      %v414 = vld [vmem:[%s165 + $0x14] sm:$0xf]
      %v415 = vld [vmem:[%s165 + $0x18] sm:$0xf]
      %v416 = vld [vmem:[%s165 + $0x1c] sm:$0xf]
      %v417 = vld [vmem:[%s165 + $0x20] sm:$0xf]
      %v418 = vld [vmem:[%s165 + $0x24] sm:$0xf]
      %s419 = scalar_lea.vmem %s1, 48
      %v420 = vld [vmem:[%s419] sm:$0xf]
      %v421 = vld [vmem:[%s419 + $0x4] sm:$0xf]
      %v422 = vld [vmem:[%s419 + $0x8] sm:$0xf]
      %v423 = vld [vmem:[%s419 + $0xc] sm:$0xf]
      %v424 = vld [vmem:[%s419 + $0x10] sm:$0xf]
      %v425 = vld [vmem:[%s419 + $0x14] sm:$0xf]
      %v434 = vunpack.c.l.b16 %v411
      %v435 = vunpack.c.l.b16 %v412
      %v436 = vunpack.c.l.b16 %v413
      %v437 = vunpack.c.l.b16 %v414
      %v438 = vunpack.c.l.b16 %v415
      %v439 = vunpack.c.l.b16 %v416
      %v440 = vunpack.c.l.b16 %v417
      %v441 = vunpack.c.l.b16 %v418
      %v442 = vpack.c.b16 %v435, %v434
      %v443 = vpack.c.b16 %v437, %v436
      %v444 = vpack.c.b16 %v439, %v438
      %v445 = vpack.c.b16 %v441, %v440
      %v452 = vunpack.c.l.b16 %v420
      %v453 = vunpack.c.l.b16 %v421
      %v454 = vunpack.c.l.b16 %v422
      %v455 = vunpack.c.l.b16 %v423
      %v456 = vunpack.c.l.b16 %v424
      %v457 = vunpack.c.l.b16 %v425
      %v458 = vpack.c.b16 %v453, %v452
      %v459 = vpack.c.b16 %v455, %v454
      %v460 = vpack.c.b16 %v457, %v456
      %v465 = vsel %vm232, %v442, 0
      %v468 = vsel %vm232, %v443, 0
      %v471 = vsel %vm232, %v444, 0
      %v474 = vsel %vm232, %v445, 0
      %476 = vmatprep.subr.bf16.mxu0 0
      %477 = vmatpush1.bf16.msra.mxu0 0
      %478 = vmatprep.subr.bf16.mxu0 0
      %479 = vmatpush1.bf16.msra.mxu0 0
      %480 = vmatprep.subr.bf16.mxu0 0
      %481 = vmatpush1.bf16.msra.mxu0 0
      %482 = vmatprep.subr.bf16.mxu0 0
      %483 = vmatpush1.bf16.msra.mxu0 0
      %484 = vmatprep.subr.bf16.mxu0 0
      %485 = vmatpush1.bf16.msra.mxu0 0
      %486 = vmatprep.subr.bf16.mxu0 0
      %487 = vmatpush1.bf16.msra.mxu0 %v460
      %488 = vmatprep.subr.bf16.mxu0 0
      %489 = vmatpush1.bf16.msra.mxu0 %v459
      %490 = vmatprep.subr.bf16.mxu0 0
      %491 = vmatpush1.bf16.msra.mxu0 %v458
      %492 = vmatprep.subr.bf16.mxu0 0
      %493 = vmatpush2.bf16.msra.mxu0 0
      %494 = vmatprep.subr.bf16.mxu0 0
      %495 = vmatpush2.bf16.msra.mxu0 0
      %496 = vmatprep.subr.bf16.mxu0 0
      %497 = vmatpush2.bf16.msra.mxu0 0
      %498 = vmatprep.subr.bf16.mxu0 0
      %499 = vmatpush2.bf16.msra.mxu0 0
      %500 = vmatprep.subr.bf16.mxu0 0
      %501 = vmatpush2.bf16.msra.mxu0 0
      %502 = vmatprep.subr.bf16.mxu0 0
      %503 = vmatpush2.bf16.msra.mxu0 0
      %504 = vmatprep.subr.bf16.mxu0 0
      %505 = vmatpush2.bf16.msra.mxu0 0
      %506 = vmatprep.subr.bf16.mxu0 0
      %507 = vmatpush2.bf16.msra.mxu0 0
      %508 = vmatprep.mubr.bf16.mxu0 0
      %509 = vmatmul.mubr.bf16.gmra.mxu0 %v465
      %v510 = vpop.f32.mrf.mxu0
      %v511 = vadd.f32 0.0, %v510
      %v512 = vpop.f32.mrf.mxu0
      %v513 = vpop.f32.mrf.mxu0
      %v514 = vadd.f32 0.0, %v513
      %v515 = vpop.f32.mrf.mxu0
      %516 = vmatprep.mubr.bf16.mxu0 0
      %517 = vmatmul.mubr.bf16.gmra.mxu0 %v468
      %v518 = vpop.f32.mrf.mxu0
      %v519 = vadd.f32 0.0, %v518
      %v520 = vpop.f32.mrf.mxu0
      %v521 = vpop.f32.mrf.mxu0
      %v522 = vadd.f32 0.0, %v521
      %v523 = vpop.f32.mrf.mxu0
      %524 = vmatprep.mubr.bf16.mxu0 0
      %525 = vmatmul.mubr.bf16.gmra.mxu0 %v471
      %v526 = vpop.f32.mrf.mxu0
      %v527 = vadd.f32 0.0, %v526
      %v528 = vpop.f32.mrf.mxu0
      %v529 = vpop.f32.mrf.mxu0
      %v530 = vadd.f32 0.0, %v529
      %v531 = vpop.f32.mrf.mxu0
      %532 = vmatprep.mubr.bf16.mxu0 0
      %533 = vmatmul.mubr.bf16.gmra.mxu0 %v474
      %v534 = vpop.f32.mrf.mxu0
      %v535 = vadd.f32 0.0, %v534
      %v536 = vpop.f32.mrf.mxu0
      %v537 = vpop.f32.mrf.mxu0
      %v538 = vadd.f32 0.0, %v537
      %v539 = vpop.f32.mrf.mxu0
      %540 = vdwg.mxu0
      %v541 = vadd.f32 %v381, %v511
      %v542 = vadd.f32 %v384, %v514
      %v543 = vadd.f32 %v389, %v519
      %v544 = vadd.f32 %v392, %v522
      %v545 = vadd.f32 %v397, %v527
      %v546 = vadd.f32 %v400, %v530
      %v547 = vadd.f32 %v405, %v535
      %v548 = vadd.f32 %v408, %v538
      %v549 = vld [vmem:[%s2] sm:$0x1]
      %v551 = vlaneseq
      %v552 = vshrl.u32 %v551, 7
      %v553 = vsub.s32 0, %v552
      %v554 = vrot.slane %v549, %v553
      %v556 = vadd.f32 %v541, %v554
      %v557 = vadd.f32 %v542, %v554
      %v558 = vadd.f32 %v543, %v554
      %v559 = vadd.f32 %v544, %v554
      %v560 = vadd.f32 %v545, %v554
      %v561 = vadd.f32 %v546, %v554
      %v562 = vadd.f32 %v547, %v554
      %v563 = vadd.f32 %v548, %v554
      %v564 = vmax.f32 %v556, 0.0
      %v565 = vmax.f32 %v557, 0.0
      %v566 = vmax.f32 %v558, 0.0
      %v567 = vmax.f32 %v559, 0.0
      %v568 = vmax.f32 %v560, 0.0
      %v569 = vmax.f32 %v561, 0.0
      %v570 = vmax.f32 %v562, 0.0
      %v571 = vmax.f32 %v563, 0.0
      %vm572 = vcmask 130048
      %573 = vst.msk [vmem:[%s170] sm:$0xff] %vm572, %v564
      %574 = vst.msk [vmem:[%s170 + $0x8] sm:$0xff] %vm572, %v565
      %575 = vst.msk [vmem:[%s170 + $0x10] sm:$0xff] %vm572, %v566
      %576 = vst.msk [vmem:[%s170 + $0x18] sm:$0xff] %vm572, %v567
      %577 = vst.msk [vmem:[%s170 + $0x20] sm:$0xff] %vm572, %v568
      %578 = vst.msk [vmem:[%s170 + $0x28] sm:$0xff] %vm572, %v569
      %579 = vst.msk [vmem:[%s170 + $0x30] sm:$0xff] %vm572, %v570
      %580 = vst.msk [vmem:[%s170 + $0x38] sm:$0xff] %vm572, %v571
      %p581 = scmp.lt.s32.totalorder %s14, 1
      %s582 = scalar_select %p581, %s14, 1
      %s583 = smul.addr %s582, 8
      %s584 = smul.addr %s583, 8
      %s585 = scalar_lea.vmem %s3, %s584
      // Predicated region
      $region33: #{vgg_forward.17} parent=31 // pred_check
        %p586 = pneg %p100
      $region34: #{vgg_forward.17} parent=31 // pred_check_branch
        %588 = sbr.rel (%p586) target = $region36
      $region35: #{vgg_forward.17} parent=31 // pred_region
        _
      $region36: #{vgg_forward.17} parent=31 // pred_fallthru
        _
    $region32: #{vgg_forward.17} parent=5 // pred_fallthru
      _
    %p589 = scmp.le.s32.totalorder 2, %s9
    // Predicated region
    $region37: #{vgg_forward.17} parent=5 // pred_check
      %p590 = pneg %p589
    $region38: #{vgg_forward.17} parent=5 // pred_check_branch
      %592 = sbr.rel (%p590) target = $region40
    $region39: #{vgg_forward.17} parent=5 // pred_region
      %s593 = ssub.s32 %s9, 2
      // Predicated region
      $region41: #{vgg_forward.17} parent=39 // pred_check
        %p594 = pneg %p106
      $region42: #{vgg_forward.17} parent=39 // pred_check_branch
        %596 = sbr.rel (%p594) target = $region44
      $region43: #{vgg_forward.17} parent=39 // pred_region
        %p597 = scmp.lt.s32.totalorder %s15, 1
        %s598 = scalar_select %p597, %s15, 1
        %s599 = smul.addr %s598, 8
        %s600 = smul.addr %s599, 8
        %s601 = scalar_lea.vmem %s3, %s600
      $region44: #{vgg_forward.17} parent=39 // pred_fallthru
        _
    $region40: #{vgg_forward.17} parent=5 // pred_fallthru
      _
  $region6: #{vgg_forward.17} parent=0 // loop_footer
    %s13 = sadd.s32 1, %s9
  $region7: #{vgg_forward.17} parent=0 // loop_footer_branch
    %8 = sbr.rel target = $region3
  $region8: #{vgg_forward.17} parent=0 // loop_exit
    _

// kernel: vgg_forward.19
$region0: #{vgg_forward.19}
  #allocation0 [shape = 'u32[]', space=smem, size = 0x4, offset = 0x4, fixed_abs, tag = 'smem constant byte address 0x4 - core index']
  #allocation1 [shape = 'u32[144,128]{1,0:T(1,128)}', space=vmem, size = 0x12000, scoped, tag = 'internal scratch']
  %s0 = inlined_call_operand.vmem [shape: bf16[2,24,48], index: 0, kind: input, shape index: {}]
  %s1 = inlined_call_operand.vmem [shape: bf16[3,48,32], index: 1, kind: input, shape index: {}]
  %s2 = inlined_call_operand.vmem [shape: f32[1,32], index: 2, kind: input, shape index: {}]
  %s3 = inlined_call_operand.vmem [shape: f32[2,16,32], index: 3, kind: output, shape index: {}]
  %s4 = sld [smem:[#allocation0]]
  $region45: #{vgg_forward.19} parent=0
    _
  %s6 = ssub.s32 1, %s4
  %s7 = scalar_select 0, %s6, %s4
  loop: start=0, step=1, limit=4
  $region2: #{vgg_forward.19} parent=0 // loop_pre_header
    _
  $region3: #{vgg_forward.19} parent=0 // loop_header
    %s9 = sphi 0, %s13
    %p10 = scmp.ge.s32.totalorder %s9, 4
    %s19 = sphi 0, %s21
    %s22 = sphi 0, %s19
    %s23 = sphi 0, %s22
    %s39 = sphi 0, %s23
    %s43 = sphi 0, %s43
    %s45 = sphi 0, %s43
    %s46 = sphi 0, %s45
    %s60 = sphi 0, %s46
    %s64 = sphi 0, %s64
    %s66 = sphi 0, %s64
    %s67 = sphi 0, %s66
    %s81 = sphi 0, %s67
    %s87 = sphi 0, %s89
    %s90 = sphi 0, %s87
    %s91 = sphi 0, %s90
    %s107 = sphi 0, %s91
  $region4: #{vgg_forward.19} parent=0 // loop_header_branch
    %12 = sbr.rel (%p10) target = $region8
  $region5: #{vgg_forward.19} parent=0 // loop_body
    %s14 = ssub.s32 %s9, 1
    %s15 = ssub.s32 %s9, 2
    %s16 = sadd.s32 %s9, 1
    %s17 = ssub.s32 %s9, %s16
    %p18 = scmp.eq.s32.totalorder %s17, 0
    %s20 = sadd.s32 %s19, 1
    %s21 = scalar_select %p18, %s19, %s20
    %p24 = pneg %p18
    %p25 = scmp.eq.s32.totalorder %s9, 1
    %p26 = por %p24, %p25
    %p27 = scmp.ne.s32.totalorder %s19, %s22
    %p28 = scmp.eq.s32.totalorder %s9, 0
    %p29 = por %p27, %p28
    %p30 = scmp.ne.s32.totalorder %s19, %s22
    %p31 = scmp.eq.s32.totalorder %s14, 1
    %p32 = por %p30, %p31
    %p33 = scmp.ne.s32.totalorder %s22, %s23
    %p34 = scmp.eq.s32.totalorder %s14, 0
    %p35 = por %p33, %p34
    %p36 = scmp.ne.s32.totalorder %s22, %s23
    %p37 = scmp.eq.s32.totalorder %s15, 1
    %p38 = por %p36, %p37
    %p40 = scmp.ne.s32.totalorder %s23, %s39
    %p41 = scmp.eq.s32.totalorder %s15, 0
    %p42 = por %p40, %p41
    %s44 = sadd.s32 %s43, 1
    %p47 = scmp.eq.s32.totalorder %s9, 1
    %p48 = scmp.ne.s32.totalorder %s43, %s45
    %p49 = scmp.eq.s32.totalorder %s9, 0
    %p50 = por %p48, %p49
    %p51 = scmp.ne.s32.totalorder %s43, %s45
    %p52 = scmp.eq.s32.totalorder %s14, 1
    %p53 = por %p51, %p52
    %p54 = scmp.ne.s32.totalorder %s45, %s46
    %p55 = scmp.eq.s32.totalorder %s14, 0
    %p56 = por %p54, %p55
    %p57 = scmp.ne.s32.totalorder %s45, %s46
    %p58 = scmp.eq.s32.totalorder %s15, 1
    %p59 = por %p57, %p58
    %p61 = scmp.ne.s32.totalorder %s46, %s60
    %p62 = scmp.eq.s32.totalorder %s15, 0
    %p63 = por %p61, %p62
    %s65 = sadd.s32 %s64, 1
    %p68 = scmp.eq.s32.totalorder %s9, 1
    %p69 = scmp.ne.s32.totalorder %s64, %s66
    %p70 = scmp.eq.s32.totalorder %s9, 0
    %p71 = por %p69, %p70
    %p72 = scmp.ne.s32.totalorder %s64, %s66
    %p73 = scmp.eq.s32.totalorder %s14, 1
    %p74 = por %p72, %p73
    %p75 = scmp.ne.s32.totalorder %s66, %s67
    %p76 = scmp.eq.s32.totalorder %s14, 0
    %p77 = por %p75, %p76
    %p78 = scmp.ne.s32.totalorder %s66, %s67
    %p79 = scmp.eq.s32.totalorder %s15, 1
    %p80 = por %p78, %p79
    %p82 = scmp.ne.s32.totalorder %s67, %s81
    %p83 = scmp.eq.s32.totalorder %s15, 0
    %p84 = por %p82, %p83
    %s85 = ssub.s32 %s9, %s16
    %p86 = scmp.eq.s32.totalorder %s85, 0
    %s88 = sadd.s32 %s87, 1
    %s89 = scalar_select %p86, %s87, %s88
    %p92 = pneg %p86
    %p93 = scmp.eq.s32.totalorder %s9, 1
    %p94 = por %p92, %p93
    %p95 = scmp.ne.s32.totalorder %s87, %s90
    %p96 = scmp.eq.s32.totalorder %s9, 0
    %p97 = por %p95, %p96
    %p98 = scmp.ne.s32.totalorder %s87, %s90
    %p99 = scmp.eq.s32.totalorder %s14, 1
    %p100 = por %p98, %p99
    %p101 = scmp.ne.s32.totalorder %s90, %s91
    %p102 = scmp.eq.s32.totalorder %s14, 0
    %p103 = por %p101, %p102
    %p104 = scmp.ne.s32.totalorder %s90, %s91
    %p105 = scmp.eq.s32.totalorder %s15, 1
    %p106 = por %p104, %p105
    %p108 = scmp.ne.s32.totalorder %s91, %s107
    %p109 = scmp.eq.s32.totalorder %s15, 0
    %p110 = por %p108, %p109
    %p111 = scmp.le.s32.totalorder 1, %s9
    %p112 = scmp.lt.s32.totalorder %s9, 3
    %p113 = pnand %p111, %p112
    %p114 = pneg %p113
    // Predicated region
    $region9: #{vgg_forward.19} parent=5 // pred_check
      _
    $region10: #{vgg_forward.19} parent=5 // pred_check_branch
      %116 = sbr.rel (%p113) target = $region12
    $region11: #{vgg_forward.19} parent=5 // pred_region
      %s117 = ssub.s32 %s9, 1
      // Predicated region
      $region13: #{vgg_forward.19} parent=11 // pred_check
        %p118 = pneg %p56
      $region14: #{vgg_forward.19} parent=11 // pred_check_branch
        %120 = sbr.rel (%p118) target = $region16
      $region15: #{vgg_forward.19} parent=11 // pred_region
        _
      $region16: #{vgg_forward.19} parent=11 // pred_fallthru
        _
      // Predicated region
      $region17: #{vgg_forward.19} parent=11 // pred_check
        %p121 = pneg %p77
      $region18: #{vgg_forward.19} parent=11 // pred_check_branch
        %123 = sbr.rel (%p121) target = $region20
      $region19: #{vgg_forward.19} parent=11 // pred_region
        _
      $region20: #{vgg_forward.19} parent=11 // pred_fallthru
        _
    $region12: #{vgg_forward.19} parent=5 // pred_fallthru
      _
    %p124 = scmp.lt.s32.totalorder %s9, 2
    // Predicated region
    $region21: #{vgg_forward.19} parent=5 // pred_check
      %p125 = pneg %p124
    $region22: #{vgg_forward.19} parent=5 // pred_check_branch
      %127 = sbr.rel (%p125) target = $region24
    $region23: #{vgg_forward.19} parent=5 // pred_region
      // Predicated region
      $region25: #{vgg_forward.19} parent=23 // pred_check
        %p128 = pneg %p29
      $region26: #{vgg_forward.19} parent=23 // pred_check_branch
        %130 = sbr.rel (%p128) target = $region28
      $region27: #{vgg_forward.19} parent=23 // pred_region
        %p131 = scmp.lt.s32.totalorder %s9, 1
        %s132 = scalar_select %p131, %s9, 1
        %s133 = smul.addr %s132, 3
        %s134 = smul.addr %s133, 4
        %s135 = scalar_lea.vmem %s0, %s134
      $region28: #{vgg_forward.19} parent=23 // pred_fallthru
        _
    $region24: #{vgg_forward.19} parent=5 // pred_fallthru
      _
    %p136 = scmp.le.s32.totalorder 1, %s9
    %p137 = scmp.lt.s32.totalorder %s9, 3
    %p138 = pnand %p136, %p137
    %p139 = pneg %p138
    // Predicated region
    $region29: #{vgg_forward.19} parent=5 // pred_check
      _
    $region30: #{vgg_forward.19} parent=5 // pred_check_branch
      %141 = sbr.rel (%p138) target = $region32
    $region31: #{vgg_forward.19} parent=5 // pred_region
      %s142 = ssub.s32 %s9, 1
      %p143 = scmp.lt.s32.totalorder %s14, 1
      %s144 = scalar_select %p143, %s14, 1
      %s145 = smul.addr %s144, 3
      %s146 = smul.addr %s145, 4
      %s147 = scalar_lea.vmem %s0, %s146
      %p148 = pneg %p35
      %p149 = pneg %p32
      %p150 = pneg %p56
      %p151 = pneg %p53
      %p152 = pneg %p77
      %p153 = pneg %p74
      %p154 = pneg %p103
      %p155 = pneg %p100
      %p156 = scmp.lt.s32.totalorder %s14, 1
      %s157 = scalar_select %p156, %s14, 1
      %s158 = smul.addr %s157, 2
      %s159 = smul.addr %s158, 8
      %s160 = scalar_lea.vmem %s3, %s159
      %p161 = scmp.lt.s32.totalorder %s14, 1
      %s162 = scalar_select %p161, %s14, 1
      %s163 = smul.addr %s162, 3
      %s164 = smul.addr %s163, 4
      %s165 = scalar_lea.vmem %s0, %s164
      %p166 = scmp.lt.s32.totalorder %s14, 1
      %s167 = scalar_select %p166, %s14, 1
      %s168 = smul.addr %s167, 2
      %s169 = smul.addr %s168, 8
      %s170 = scalar_lea.vmem %s3, %s169
      %v172 = vld [vmem:[%s165] sm:$0xf]
      %v173 = vld [vmem:[%s165 + $0x4] sm:$0xf]
      %v174 = vld [vmem:[%s1] sm:$0xf]
      %v175 = vld [vmem:[%s1 + $0x4] sm:$0xf]
      %v176 = vld [vmem:[%s1 + $0x8] sm:$0xf]
      %v177 = vld [vmem:[%s1 + $0xc] sm:$0xf]
      %v178 = vld [vmem:[%s1 + $0x10] sm:$0xf]
      %v179 = vld [vmem:[%s1 + $0x14] sm:$0xf]
      %v180 = vld [vmem:[%s165] sm:$0xc]
      %v181 = vld [vmem:[%s165 + $0x8] sm:$0x3]
      %s182 = scalar_lea.vmem %s1, 24
      %v183 = vld [vmem:[%s182] sm:$0xf]
      %v184 = vld [vmem:[%s182 + $0x4] sm:$0xf]
      %v185 = vld [vmem:[%s182 + $0x8] sm:$0xf]
      %v186 = vld [vmem:[%s182 + $0xc] sm:$0xf]
      %v187 = vld [vmem:[%s182 + $0x10] sm:$0xf]
      %v188 = vld [vmem:[%s182 + $0x14] sm:$0xf]
      %v192 = vunpack.c.l.b16 %v180
      %v193 = vunpack.c.l.b16 %v173
      %v194 = vunpack.c.l.b16 %v181
      %v195 = vpack.c.b16 %v193, %v192
      %v196 = vpack.c.b16 %v194, %v194
      %vm197 = vcmask 1045504
      %v198 = vrot.slane %v195, 2
      %v199 = vrot.slane %v196, 2
      %v200 = vsel %vm197, %v198, %v199
      %v207 = vunpack.c.l.b16 %v183
      %v208 = vunpack.c.l.b16 %v184
      %v209 = vunpack.c.l.b16 %v185
      %v210 = vunpack.c.l.b16 %v186
      %v211 = vunpack.c.l.b16 %v187
      %v212 = vunpack.c.l.b16 %v188
      %v213 = vpack.c.b16 %v208, %v207
      %v214 = vpack.c.b16 %v210, %v209
      %v215 = vpack.c.b16 %v212, %v211
      %vm219 = vcmask 392192
      %v221 = vsel %vm219, %v200, 0
      %223 = vmatprep.subr.bf16.mxu0 0
      %224 = vmatpush1.bf16.msra.mxu0 0
      %225 = vmatprep.subr.bf16.mxu0 0
      %226 = vmatpush1.bf16.msra.mxu0 0
      %227 = vmatprep.subr.bf16.mxu0 0
      %228 = vmatpush1.bf16.msra.mxu0 0
      %229 = vmatprep.subr.bf16.mxu0 0
      %230 = vmatpush1.bf16.msra.mxu0 0
      %231 = vmatprep.subr.bf16.mxu0 0
      %232 = vmatpush1.bf16.msra.mxu0 0
      %233 = vmatprep.subr.bf16.mxu0 0
      %234 = vmatpush1.bf16.msra.mxu0 %v215
      %235 = vmatprep.subr.bf16.mxu0 0
      %236 = vmatpush1.bf16.msra.mxu0 %v214
      %237 = vmatprep.subr.bf16.mxu0 0
      %238 = vmatpush1.bf16.msra.mxu0 %v213
      %239 = vmatprep.subr.bf16.mxu0 0
      %240 = vmatpush2.bf16.msra.mxu0 0
      %241 = vmatprep.subr.bf16.mxu0 0
      %242 = vmatpush2.bf16.msra.mxu0 0
      %243 = vmatprep.subr.bf16.mxu0 0
      %244 = vmatpush2.bf16.msra.mxu0 0
      %245 = vmatprep.subr.bf16.mxu0 0
      %246 = vmatpush2.bf16.msra.mxu0 0
      %247 = vmatprep.subr.bf16.mxu0 0
      %248 = vmatpush2.bf16.msra.mxu0 0
      %249 = vmatprep.subr.bf16.mxu0 0
      %250 = vmatpush2.bf16.msra.mxu0 0
      %251 = vmatprep.subr.bf16.mxu0 0
      %252 = vmatpush2.bf16.msra.mxu0 0
      %253 = vmatprep.subr.bf16.mxu0 0
      %254 = vmatpush2.bf16.msra.mxu0 0
      %255 = vmatprep.mubr.bf16.mxu0 0
      %256 = vmatmul.mubr.bf16.gmra.mxu0 %v221
      %v257 = vpop.f32.mrf.mxu0
      %v258 = vadd.f32 0.0, %v257
      %v259 = vpop.f32.mrf.mxu0
      %v260 = vpop.f32.mrf.mxu0
      %v261 = vadd.f32 0.0, %v260
      %v262 = vpop.f32.mrf.mxu0
      %263 = vdwg.mxu0
      %v265 = vunpack.c.l.b16 %v172
      %v266 = vpack.c.b16 %v193, %v265
      %v273 = vunpack.c.l.b16 %v174
      %v274 = vunpack.c.l.b16 %v175
      %v275 = vunpack.c.l.b16 %v176
      %v276 = vunpack.c.l.b16 %v177
      %v277 = vunpack.c.l.b16 %v178
      %v278 = vunpack.c.l.b16 %v179
      %v279 = vpack.c.b16 %v274, %v273
      %v280 = vpack.c.b16 %v276, %v275
      %v281 = vpack.c.b16 %v278, %v277
      %v286 = vsel %vm219, %v266, 0
      %288 = vmatprep.subr.bf16.mxu0 0
      %289 = vmatpush1.bf16.msra.mxu0 0
      %290 = vmatprep.subr.bf16.mxu0 0
      %291 = vmatpush1.bf16.msra.mxu0 0
      %292 = vmatprep.subr.bf16.mxu0 0
      %293 = vmatpush1.bf16.msra.mxu0 0
      %294 = vmatprep.subr.bf16.mxu0 0
      %295 = vmatpush1.bf16.msra.mxu0 0
      %296 = vmatprep.subr.bf16.mxu0 0
      %297 = vmatpush1.bf16.msra.mxu0 0
      %298 = vmatprep.subr.bf16.mxu0 0
      %299 = vmatpush1.bf16.msra.mxu0 %v281
      %300 = vmatprep.subr.bf16.mxu0 0
      %301 = vmatpush1.bf16.msra.mxu0 %v280
      %302 = vmatprep.subr.bf16.mxu0 0
      %303 = vmatpush1.bf16.msra.mxu0 %v279
      %304 = vmatprep.subr.bf16.mxu0 0
      %305 = vmatpush2.bf16.msra.mxu0 0
      %306 = vmatprep.subr.bf16.mxu0 0
      %307 = vmatpush2.bf16.msra.mxu0 0
      %308 = vmatprep.subr.bf16.mxu0 0
      %309 = vmatpush2.bf16.msra.mxu0 0
      %310 = vmatprep.subr.bf16.mxu0 0
      %311 = vmatpush2.bf16.msra.mxu0 0
      %312 = vmatprep.subr.bf16.mxu0 0
      %313 = vmatpush2.bf16.msra.mxu0 0
      %314 = vmatprep.subr.bf16.mxu0 0
      %315 = vmatpush2.bf16.msra.mxu0 0
      %316 = vmatprep.subr.bf16.mxu0 0
      %317 = vmatpush2.bf16.msra.mxu0 0
      %318 = vmatprep.subr.bf16.mxu0 0
      %319 = vmatpush2.bf16.msra.mxu0 0
      %320 = vmatprep.mubr.bf16.mxu0 0
      %321 = vmatmul.mubr.bf16.gmra.mxu0 %v286
      %v322 = vpop.f32.mrf.mxu0
      %v323 = vadd.f32 %v258, %v322
      %v324 = vpop.f32.mrf.mxu0
      %v325 = vpop.f32.mrf.mxu0
      %v326 = vadd.f32 %v261, %v325
      %v327 = vpop.f32.mrf.mxu0
      %328 = vdwg.mxu0
      %v329 = vld [vmem:[%s165 + $0x8] sm:$0xf]
      %s330 = scalar_lea.vmem %s1, 48
      %v331 = vld [vmem:[%s330] sm:$0xf]
      %v332 = vld [vmem:[%s330 + $0x4] sm:$0xf]
      %v333 = vld [vmem:[%s330 + $0x8] sm:$0xf]
      %v334 = vld [vmem:[%s330 + $0xc] sm:$0xf]
      %v335 = vld [vmem:[%s330 + $0x10] sm:$0xf]
      %v336 = vld [vmem:[%s330 + $0x14] sm:$0xf]
      %v338 = vunpack.c.l.b16 %v329
      %v339 = vpack.c.b16 %v338, %v193
      %v346 = vunpack.c.l.b16 %v331
      %v347 = vunpack.c.l.b16 %v332
      %v348 = vunpack.c.l.b16 %v333
      %v349 = vunpack.c.l.b16 %v334
      %v350 = vunpack.c.l.b16 %v335
      %v351 = vunpack.c.l.b16 %v336
      %v352 = vpack.c.b16 %v347, %v346
      %v353 = vpack.c.b16 %v349, %v348
      %v354 = vpack.c.b16 %v351, %v350
      %v359 = vsel %vm219, %v339, 0
      %361 = vmatprep.subr.bf16.mxu0 0
      %362 = vmatpush1.bf16.msra.mxu0 0
      %363 = vmatprep.subr.bf16.mxu0 0
      %364 = vmatpush1.bf16.msra.mxu0 0
      %365 = vmatprep.subr.bf16.mxu0 0
      %366 = vmatpush1.bf16.msra.mxu0 0
      %367 = vmatprep.subr.bf16.mxu0 0
      %368 = vmatpush1.bf16.msra.mxu0 0
      %369 = vmatprep.subr.bf16.mxu0 0
      %370 = vmatpush1.bf16.msra.mxu0 0
      %371 = vmatprep.subr.bf16.mxu0 0
      %372 = vmatpush1.bf16.msra.mxu0 %v354
      %373 = vmatprep.subr.bf16.mxu0 0
      %374 = vmatpush1.bf16.msra.mxu0 %v353
      %375 = vmatprep.subr.bf16.mxu0 0
      %376 = vmatpush1.bf16.msra.mxu0 %v352
      %377 = vmatprep.subr.bf16.mxu0 0
      %378 = vmatpush2.bf16.msra.mxu0 0
      %379 = vmatprep.subr.bf16.mxu0 0
      %380 = vmatpush2.bf16.msra.mxu0 0
      %381 = vmatprep.subr.bf16.mxu0 0
      %382 = vmatpush2.bf16.msra.mxu0 0
      %383 = vmatprep.subr.bf16.mxu0 0
      %384 = vmatpush2.bf16.msra.mxu0 0
      %385 = vmatprep.subr.bf16.mxu0 0
      %386 = vmatpush2.bf16.msra.mxu0 0
      %387 = vmatprep.subr.bf16.mxu0 0
      %388 = vmatpush2.bf16.msra.mxu0 0
      %389 = vmatprep.subr.bf16.mxu0 0
      %390 = vmatpush2.bf16.msra.mxu0 0
      %391 = vmatprep.subr.bf16.mxu0 0
      %392 = vmatpush2.bf16.msra.mxu0 0
      %393 = vmatprep.mubr.bf16.mxu0 0
      %394 = vmatmul.mubr.bf16.gmra.mxu0 %v359
      %v395 = vpop.f32.mrf.mxu0
      %v396 = vadd.f32 0.0, %v395
      %v397 = vpop.f32.mrf.mxu0
      %v398 = vpop.f32.mrf.mxu0
      %v399 = vadd.f32 0.0, %v398
      %v400 = vpop.f32.mrf.mxu0
      %401 = vdwg.mxu0
      %v402 = vadd.f32 %v323, %v396
      %v403 = vadd.f32 %v326, %v399
      %v404 = vld [vmem:[%s2] sm:$0x1]
      %v406 = vlaneseq
      %v407 = vshrl.u32 %v406, 7
      %v408 = vsub.s32 0, %v407
      %v409 = vrot.slane %v404, %v408
      %v411 = vadd.f32 %v402, %v409
      %v412 = vadd.f32 %v403, %v409
      %v413 = vmax.f32 %v411, 0.0
      %v414 = vmax.f32 %v412, 0.0
      %vm415 = vcmask 261120
      %416 = vst.msk [vmem:[%s170] sm:$0xff] %vm415, %v413
      %417 = vst.msk [vmem:[%s170 + $0x8] sm:$0xff] %vm415, %v414
      %p418 = scmp.lt.s32.totalorder %s14, 1
      %s419 = scalar_select %p418, %s14, 1
      %s420 = smul.addr %s419, 2
      %s421 = smul.addr %s420, 8
      %s422 = scalar_lea.vmem %s3, %s421
      // Predicated region
      $region33: #{vgg_forward.19} parent=31 // pred_check
        %p423 = pneg %p100
      $region34: #{vgg_forward.19} parent=31 // pred_check_branch
        %425 = sbr.rel (%p423) target = $region36
      $region35: #{vgg_forward.19} parent=31 // pred_region
        _
      $region36: #{vgg_forward.19} parent=31 // pred_fallthru
        _
    $region32: #{vgg_forward.19} parent=5 // pred_fallthru
      _
    %p426 = scmp.le.s32.totalorder 2, %s9
    // Predicated region
    $region37: #{vgg_forward.19} parent=5 // pred_check
      %p427 = pneg %p426
    $region38: #{vgg_forward.19} parent=5 // pred_check_branch
      %429 = sbr.rel (%p427) target = $region40
    $region39: #{vgg_forward.19} parent=5 // pred_region
      %s430 = ssub.s32 %s9, 2
      // Predicated region
      $region41: #{vgg_forward.19} parent=39 // pred_check
        %p431 = pneg %p106
      $region42: #{vgg_forward.19} parent=39 // pred_check_branch
        %433 = sbr.rel (%p431) target = $region44
      $region43: #{vgg_forward.19} parent=39 // pred_region
        %p434 = scmp.lt.s32.totalorder %s15, 1
        %s435 = scalar_select %p434, %s15, 1
        %s436 = smul.addr %s435, 2
        %s437 = smul.addr %s436, 8
        %s438 = scalar_lea.vmem %s3, %s437
      $region44: #{vgg_forward.19} parent=39 // pred_fallthru
        _
    $region40: #{vgg_forward.19} parent=5 // pred_fallthru
      _
  $region6: #{vgg_forward.19} parent=0 // loop_footer
    %s13 = sadd.s32 1, %s9
  $region7: #{vgg_forward.19} parent=0 // loop_footer_branch
    %8 = sbr.rel target = $region3
  $region8: #{vgg_forward.19} parent=0 // loop_exit
    _

// kernel: vgg_forward.22
$region0: #{vgg_forward.22}
  #allocation0 [shape = 'u32[]', space=smem, size = 0x4, offset = 0x4, fixed_abs, tag = 'smem constant byte address 0x4 - core index']
  #allocation1 [shape = 'u32[144,128]{1,0:T(1,128)}', space=vmem, size = 0x12000, scoped, tag = 'internal scratch']
  %s0 = inlined_call_operand.vmem [shape: f32[2,2,2,2,64], index: 0, kind: input, shape index: {}]
  %s1 = inlined_call_operand.vmem [shape: f32[2,2,2,32], index: 1, kind: output, shape index: {}]
  %s2 = sld [smem:[#allocation0]]
  $region37: #{vgg_forward.22} parent=0
    _
  %s4 = ssub.s32 1, %s2
  %s5 = scalar_select 0, %s4, %s2
  loop: start=0, step=1, limit=4
  $region2: #{vgg_forward.22} parent=0 // loop_pre_header
    _
  $region3: #{vgg_forward.22} parent=0 // loop_header
    %s7 = sphi 0, %s11
    %p8 = scmp.ge.s32.totalorder %s7, 4
    %s17 = sphi 0, %s19
    %s20 = sphi 0, %s17
    %s21 = sphi 0, %s20
    %s37 = sphi 0, %s21
    %s43 = sphi 0, %s45
    %s46 = sphi 0, %s43
    %s47 = sphi 0, %s46
    %s63 = sphi 0, %s47
  $region4: #{vgg_forward.22} parent=0 // loop_header_branch
    %10 = sbr.rel (%p8) target = $region8
  $region5: #{vgg_forward.22} parent=0 // loop_body
    %s12 = ssub.s32 %s7, 1
    %s13 = ssub.s32 %s7, 2
    %s14 = sadd.s32 %s7, 1
    %s15 = ssub.s32 %s7, %s14
    %p16 = scmp.eq.s32.totalorder %s15, 0
    %s18 = sadd.s32 %s17, 1
    %s19 = scalar_select %p16, %s17, %s18
    %p22 = pneg %p16
    %p23 = scmp.eq.s32.totalorder %s7, 1
    %p24 = por %p22, %p23
    %p25 = scmp.ne.s32.totalorder %s17, %s20
    %p26 = scmp.eq.s32.totalorder %s7, 0
    %p27 = por %p25, %p26
    %p28 = scmp.ne.s32.totalorder %s17, %s20
    %p29 = scmp.eq.s32.totalorder %s12, 1
    %p30 = por %p28, %p29
    %p31 = scmp.ne.s32.totalorder %s20, %s21
    %p32 = scmp.eq.s32.totalorder %s12, 0
    %p33 = por %p31, %p32
    %p34 = scmp.ne.s32.totalorder %s20, %s21
    %p35 = scmp.eq.s32.totalorder %s13, 1
    %p36 = por %p34, %p35
    %p38 = scmp.ne.s32.totalorder %s21, %s37
    %p39 = scmp.eq.s32.totalorder %s13, 0
    %p40 = por %p38, %p39
    %s41 = ssub.s32 %s7, %s14
    %p42 = scmp.eq.s32.totalorder %s41, 0
    %s44 = sadd.s32 %s43, 1
    %s45 = scalar_select %p42, %s43, %s44
    %p48 = pneg %p42
    %p49 = scmp.eq.s32.totalorder %s7, 1
    %p50 = por %p48, %p49
    %p51 = scmp.ne.s32.totalorder %s43, %s46
    %p52 = scmp.eq.s32.totalorder %s7, 0
    %p53 = por %p51, %p52
    %p54 = scmp.ne.s32.totalorder %s43, %s46
    %p55 = scmp.eq.s32.totalorder %s12, 1
    %p56 = por %p54, %p55
    %p57 = scmp.ne.s32.totalorder %s46, %s47
    %p58 = scmp.eq.s32.totalorder %s12, 0
    %p59 = por %p57, %p58
    %p60 = scmp.ne.s32.totalorder %s46, %s47
    %p61 = scmp.eq.s32.totalorder %s13, 1
    %p62 = por %p60, %p61
    %p64 = scmp.ne.s32.totalorder %s47, %s63
    %p65 = scmp.eq.s32.totalorder %s13, 0
    %p66 = por %p64, %p65
    %p67 = scmp.le.s32.totalorder 1, %s7
    %p68 = scmp.lt.s32.totalorder %s7, 3
    %p69 = pnand %p67, %p68
    %p70 = pneg %p69
    // Predicated region
    $region9: #{vgg_forward.22} parent=5 // pred_check
      _
    $region10: #{vgg_forward.22} parent=5 // pred_check_branch
      %72 = sbr.rel (%p69) target = $region12
    $region11: #{vgg_forward.22} parent=5 // pred_region
      %s73 = ssub.s32 %s7, 1
    $region12: #{vgg_forward.22} parent=5 // pred_fallthru
      _
    %p74 = scmp.lt.s32.totalorder %s7, 2
    // Predicated region
    $region13: #{vgg_forward.22} parent=5 // pred_check
      %p75 = pneg %p74
    $region14: #{vgg_forward.22} parent=5 // pred_check_branch
      %77 = sbr.rel (%p75) target = $region16
    $region15: #{vgg_forward.22} parent=5 // pred_region
      // Predicated region
      $region17: #{vgg_forward.22} parent=15 // pred_check
        %p78 = pneg %p27
      $region18: #{vgg_forward.22} parent=15 // pred_check_branch
        %80 = sbr.rel (%p78) target = $region20
      $region19: #{vgg_forward.22} parent=15 // pred_region
        %p81 = scmp.lt.s32.totalorder %s7, 1
        %s82 = scalar_select %p81, %s7, 1
        %s83 = smul.addr %s82, 4
        %s84 = smul.addr %s83, 2
        %s85 = scalar_lea.vmem %s0, %s84
      $region20: #{vgg_forward.22} parent=15 // pred_fallthru
        _
    $region16: #{vgg_forward.22} parent=5 // pred_fallthru
      _
    %p86 = scmp.le.s32.totalorder 1, %s7
    %p87 = scmp.lt.s32.totalorder %s7, 3
    %p88 = pnand %p86, %p87
    %p89 = pneg %p88
    // Predicated region
    $region21: #{vgg_forward.22} parent=5 // pred_check
      _
    $region22: #{vgg_forward.22} parent=5 // pred_check_branch
      %91 = sbr.rel (%p88) target = $region24
    $region23: #{vgg_forward.22} parent=5 // pred_region
      %s92 = ssub.s32 %s7, 1
      %p93 = scmp.lt.s32.totalorder %s12, 1
      %s94 = scalar_select %p93, %s12, 1
      %s95 = smul.addr %s94, 4
      %s96 = smul.addr %s95, 2
      %s97 = scalar_lea.vmem %s0, %s96
      %p98 = pneg %p33
      %p99 = pneg %p30
      %p100 = pneg %p59
      %p101 = pneg %p56
      %p102 = scmp.lt.s32.totalorder %s12, 1
      %s103 = scalar_select %p102, %s12, 1
      %s104 = smul.addr %s103, 2
      %s105 = smul.addr %s104, 2
      %s106 = scalar_lea.vmem %s1, %s105
      %p107 = scmp.lt.s32.totalorder %s12, 1
      %s108 = scalar_select %p107, %s12, 1
      %s109 = smul.addr %s108, 4
      %s110 = smul.addr %s109, 2
      %s111 = scalar_lea.vmem %s0, %s110
      %p112 = scmp.lt.s32.totalorder %s12, 1
      %s113 = scalar_select %p112, %s12, 1
      %s114 = smul.addr %s113, 2
      %s115 = smul.addr %s114, 2
      %s116 = scalar_lea.vmem %s1, %s115
      %v117 = vld [vmem:[%s111] sm:$0x3]
      %v118 = vld [vmem:[%s111 + $0x4] sm:$0x3]
      %s119 = scalar_lea.vmem %s111, 2
      %v120 = vld [vmem:[%s119] sm:$0x3]
      %v121 = vld [vmem:[%s119 + $0x4] sm:$0x3]
      %v122 = vmax.f32 %v117, %v120
      %v123 = vmax.f32 %v118, %v121
      %126 = vrot.lane.b32.xlu0 %v122, 96
      %v127 = vpop.permute.xlu0 %126
      %128 = vrot.lane.b32.xlu0 %v123, 96
      %v129 = vpop.permute.xlu0 %128
      %v132 = vmax.f32 %v122, %v127
      %v133 = vmax.f32 %v123, %v129
      %vm134 = vcmask 254976
      %135 = vst.msk [vmem:[%s116] sm:$0x3] %vm134, %v132
      %136 = vst.msk [vmem:[%s116 + $0x2] sm:$0x3] %vm134, %v133
      %p137 = scmp.lt.s32.totalorder %s12, 1
      %s138 = scalar_select %p137, %s12, 1
      %s139 = smul.addr %s138, 2
      %s140 = smul.addr %s139, 2
      %s141 = scalar_lea.vmem %s1, %s140
      // Predicated region
      $region25: #{vgg_forward.22} parent=23 // pred_check
        %p142 = pneg %p56
      $region26: #{vgg_forward.22} parent=23 // pred_check_branch
        %144 = sbr.rel (%p142) target = $region28
      $region27: #{vgg_forward.22} parent=23 // pred_region
        _
      $region28: #{vgg_forward.22} parent=23 // pred_fallthru
        _
    $region24: #{vgg_forward.22} parent=5 // pred_fallthru
      _
    %p145 = scmp.le.s32.totalorder 2, %s7
    // Predicated region
    $region29: #{vgg_forward.22} parent=5 // pred_check
      %p146 = pneg %p145
    $region30: #{vgg_forward.22} parent=5 // pred_check_branch
      %148 = sbr.rel (%p146) target = $region32
    $region31: #{vgg_forward.22} parent=5 // pred_region
      %s149 = ssub.s32 %s7, 2
      // Predicated region
      $region33: #{vgg_forward.22} parent=31 // pred_check
        %p150 = pneg %p62
      $region34: #{vgg_forward.22} parent=31 // pred_check_branch
        %152 = sbr.rel (%p150) target = $region36
      $region35: #{vgg_forward.22} parent=31 // pred_region
        %p153 = scmp.lt.s32.totalorder %s13, 1
        %s154 = scalar_select %p153, %s13, 1
        %s155 = smul.addr %s154, 2
        %s156 = smul.addr %s155, 2
        %s157 = scalar_lea.vmem %s1, %s156
      $region36: #{vgg_forward.22} parent=31 // pred_fallthru
        _
    $region32: #{vgg_forward.22} parent=5 // pred_fallthru
      _
  $region6: #{vgg_forward.22} parent=0 // loop_footer
    %s11 = sadd.s32 1, %s7
  $region7: #{vgg_forward.22} parent=0 // loop_footer_branch
    %6 = sbr.rel target = $region3
  $region8: #{vgg_forward.22} parent=0 // loop_exit
    _

// kernel: vgg_forward.20
$region0: #{vgg_forward.20}
  #allocation0 [shape = 'u32[]', space=smem, size = 0x4, offset = 0x4, fixed_abs, tag = 'smem constant byte address 0x4 - core index']
  #allocation1 [shape = 'u32[144,128]{1,0:T(1,128)}', space=vmem, size = 0x12000, scoped, tag = 'internal scratch']
  %s0 = inlined_call_operand.vmem [shape: bf16[2,24,96], index: 0, kind: input, shape index: {}]
  %s1 = inlined_call_operand.vmem [shape: bf16[3,96,32], index: 1, kind: input, shape index: {}]
  %s2 = inlined_call_operand.vmem [shape: f32[1,32], index: 2, kind: input, shape index: {}]
  %s3 = inlined_call_operand.vmem [shape: f32[2,16,32], index: 3, kind: output, shape index: {}]
  %s4 = sld [smem:[#allocation0]]
  $region45: #{vgg_forward.20} parent=0
    _
  %s6 = ssub.s32 1, %s4
  %s7 = scalar_select 0, %s6, %s4
  loop: start=0, step=1, limit=4
  $region2: #{vgg_forward.20} parent=0 // loop_pre_header
    _
  $region3: #{vgg_forward.20} parent=0 // loop_header
    %s9 = sphi 0, %s13
    %p10 = scmp.ge.s32.totalorder %s9, 4
    %s19 = sphi 0, %s21
    %s22 = sphi 0, %s19
    %s23 = sphi 0, %s22
    %s39 = sphi 0, %s23
    %s43 = sphi 0, %s43
    %s45 = sphi 0, %s43
    %s46 = sphi 0, %s45
    %s60 = sphi 0, %s46
    %s64 = sphi 0, %s64
    %s66 = sphi 0, %s64
    %s67 = sphi 0, %s66
    %s81 = sphi 0, %s67
    %s87 = sphi 0, %s89
    %s90 = sphi 0, %s87
    %s91 = sphi 0, %s90
    %s107 = sphi 0, %s91
  $region4: #{vgg_forward.20} parent=0 // loop_header_branch
    %12 = sbr.rel (%p10) target = $region8
  $region5: #{vgg_forward.20} parent=0 // loop_body
    %s14 = ssub.s32 %s9, 1
    %s15 = ssub.s32 %s9, 2
    %s16 = sadd.s32 %s9, 1
    %s17 = ssub.s32 %s9, %s16
    %p18 = scmp.eq.s32.totalorder %s17, 0
    %s20 = sadd.s32 %s19, 1
    %s21 = scalar_select %p18, %s19, %s20
    %p24 = pneg %p18
    %p25 = scmp.eq.s32.totalorder %s9, 1
    %p26 = por %p24, %p25
    %p27 = scmp.ne.s32.totalorder %s19, %s22
    %p28 = scmp.eq.s32.totalorder %s9, 0
    %p29 = por %p27, %p28
    %p30 = scmp.ne.s32.totalorder %s19, %s22
    %p31 = scmp.eq.s32.totalorder %s14, 1
    %p32 = por %p30, %p31
    %p33 = scmp.ne.s32.totalorder %s22, %s23
    %p34 = scmp.eq.s32.totalorder %s14, 0
    %p35 = por %p33, %p34
    %p36 = scmp.ne.s32.totalorder %s22, %s23
    %p37 = scmp.eq.s32.totalorder %s15, 1
    %p38 = por %p36, %p37
    %p40 = scmp.ne.s32.totalorder %s23, %s39
    %p41 = scmp.eq.s32.totalorder %s15, 0
    %p42 = por %p40, %p41
    %s44 = sadd.s32 %s43, 1
    %p47 = scmp.eq.s32.totalorder %s9, 1
    %p48 = scmp.ne.s32.totalorder %s43, %s45
    %p49 = scmp.eq.s32.totalorder %s9, 0
    %p50 = por %p48, %p49
    %p51 = scmp.ne.s32.totalorder %s43, %s45
    %p52 = scmp.eq.s32.totalorder %s14, 1
    %p53 = por %p51, %p52
    %p54 = scmp.ne.s32.totalorder %s45, %s46
    %p55 = scmp.eq.s32.totalorder %s14, 0
    %p56 = por %p54, %p55
    %p57 = scmp.ne.s32.totalorder %s45, %s46
    %p58 = scmp.eq.s32.totalorder %s15, 1
    %p59 = por %p57, %p58
    %p61 = scmp.ne.s32.totalorder %s46, %s60
    %p62 = scmp.eq.s32.totalorder %s15, 0
    %p63 = por %p61, %p62
    %s65 = sadd.s32 %s64, 1
    %p68 = scmp.eq.s32.totalorder %s9, 1
    %p69 = scmp.ne.s32.totalorder %s64, %s66
    %p70 = scmp.eq.s32.totalorder %s9, 0
    %p71 = por %p69, %p70
    %p72 = scmp.ne.s32.totalorder %s64, %s66
    %p73 = scmp.eq.s32.totalorder %s14, 1
    %p74 = por %p72, %p73
    %p75 = scmp.ne.s32.totalorder %s66, %s67
    %p76 = scmp.eq.s32.totalorder %s14, 0
    %p77 = por %p75, %p76
    %p78 = scmp.ne.s32.totalorder %s66, %s67
    %p79 = scmp.eq.s32.totalorder %s15, 1
    %p80 = por %p78, %p79
    %p82 = scmp.ne.s32.totalorder %s67, %s81
    %p83 = scmp.eq.s32.totalorder %s15, 0
    %p84 = por %p82, %p83
    %s85 = ssub.s32 %s9, %s16
    %p86 = scmp.eq.s32.totalorder %s85, 0
    %s88 = sadd.s32 %s87, 1
    %s89 = scalar_select %p86, %s87, %s88
    %p92 = pneg %p86
    %p93 = scmp.eq.s32.totalorder %s9, 1
    %p94 = por %p92, %p93
    %p95 = scmp.ne.s32.totalorder %s87, %s90
    %p96 = scmp.eq.s32.totalorder %s9, 0
    %p97 = por %p95, %p96
    %p98 = scmp.ne.s32.totalorder %s87, %s90
    %p99 = scmp.eq.s32.totalorder %s14, 1
    %p100 = por %p98, %p99
    %p101 = scmp.ne.s32.totalorder %s90, %s91
    %p102 = scmp.eq.s32.totalorder %s14, 0
    %p103 = por %p101, %p102
    %p104 = scmp.ne.s32.totalorder %s90, %s91
    %p105 = scmp.eq.s32.totalorder %s15, 1
    %p106 = por %p104, %p105
    %p108 = scmp.ne.s32.totalorder %s91, %s107
    %p109 = scmp.eq.s32.totalorder %s15, 0
    %p110 = por %p108, %p109
    %p111 = scmp.le.s32.totalorder 1, %s9
    %p112 = scmp.lt.s32.totalorder %s9, 3
    %p113 = pnand %p111, %p112
    %p114 = pneg %p113
    // Predicated region
    $region9: #{vgg_forward.20} parent=5 // pred_check
      _
    $region10: #{vgg_forward.20} parent=5 // pred_check_branch
      %116 = sbr.rel (%p113) target = $region12
    $region11: #{vgg_forward.20} parent=5 // pred_region
      %s117 = ssub.s32 %s9, 1
      // Predicated region
      $region13: #{vgg_forward.20} parent=11 // pred_check
        %p118 = pneg %p56
      $region14: #{vgg_forward.20} parent=11 // pred_check_branch
        %120 = sbr.rel (%p118) target = $region16
      $region15: #{vgg_forward.20} parent=11 // pred_region
        _
      $region16: #{vgg_forward.20} parent=11 // pred_fallthru
        _
      // Predicated region
      $region17: #{vgg_forward.20} parent=11 // pred_check
        %p121 = pneg %p77
      $region18: #{vgg_forward.20} parent=11 // pred_check_branch
        %123 = sbr.rel (%p121) target = $region20
      $region19: #{vgg_forward.20} parent=11 // pred_region
        _
      $region20: #{vgg_forward.20} parent=11 // pred_fallthru
        _
    $region12: #{vgg_forward.20} parent=5 // pred_fallthru
      _
    %p124 = scmp.lt.s32.totalorder %s9, 2
    // Predicated region
    $region21: #{vgg_forward.20} parent=5 // pred_check
      %p125 = pneg %p124
    $region22: #{vgg_forward.20} parent=5 // pred_check_branch
      %127 = sbr.rel (%p125) target = $region24
    $region23: #{vgg_forward.20} parent=5 // pred_region
      // Predicated region
      $region25: #{vgg_forward.20} parent=23 // pred_check
        %p128 = pneg %p29
      $region26: #{vgg_forward.20} parent=23 // pred_check_branch
        %130 = sbr.rel (%p128) target = $region28
      $region27: #{vgg_forward.20} parent=23 // pred_region
        %p131 = scmp.lt.s32.totalorder %s9, 1
        %s132 = scalar_select %p131, %s9, 1
        %s133 = smul.addr %s132, 3
        %s134 = smul.addr %s133, 4
        %s135 = scalar_lea.vmem %s0, %s134
      $region28: #{vgg_forward.20} parent=23 // pred_fallthru
        _
    $region24: #{vgg_forward.20} parent=5 // pred_fallthru
      _
    %p136 = scmp.le.s32.totalorder 1, %s9
    %p137 = scmp.lt.s32.totalorder %s9, 3
    %p138 = pnand %p136, %p137
    %p139 = pneg %p138
    // Predicated region
    $region29: #{vgg_forward.20} parent=5 // pred_check
      _
    $region30: #{vgg_forward.20} parent=5 // pred_check_branch
      %141 = sbr.rel (%p138) target = $region32
    $region31: #{vgg_forward.20} parent=5 // pred_region
      %s142 = ssub.s32 %s9, 1
      %p143 = scmp.lt.s32.totalorder %s14, 1
      %s144 = scalar_select %p143, %s14, 1
      %s145 = smul.addr %s144, 3
      %s146 = smul.addr %s145, 4
      %s147 = scalar_lea.vmem %s0, %s146
      %p148 = pneg %p35
      %p149 = pneg %p32
      %p150 = pneg %p56
      %p151 = pneg %p53
      %p152 = pneg %p77
      %p153 = pneg %p74
      %p154 = pneg %p103
      %p155 = pneg %p100
      %p156 = scmp.lt.s32.totalorder %s14, 1
      %s157 = scalar_select %p156, %s14, 1
      %s158 = smul.addr %s157, 2
      %s159 = smul.addr %s158, 8
      %s160 = scalar_lea.vmem %s3, %s159
      %p161 = scmp.lt.s32.totalorder %s14, 1
      %s162 = scalar_select %p161, %s14, 1
      %s163 = smul.addr %s162, 3
      %s164 = smul.addr %s163, 4
      %s165 = scalar_lea.vmem %s0, %s164
      %p166 = scmp.lt.s32.totalorder %s14, 1
      %s167 = scalar_select %p166, %s14, 1
      %s168 = smul.addr %s167, 2
      %s169 = smul.addr %s168, 8
      %s170 = scalar_lea.vmem %s3, %s169
      %v172 = vld [vmem:[%s165] sm:$0xf]
      %v173 = vld [vmem:[%s165 + $0x4] sm:$0xf]
      %v174 = vld [vmem:[%s1] sm:$0xf]
      %v175 = vld [vmem:[%s1 + $0x4] sm:$0xf]
      %v176 = vld [vmem:[%s1 + $0x8] sm:$0xf]
      %v177 = vld [vmem:[%s1 + $0xc] sm:$0xf]
      %v178 = vld [vmem:[%s1 + $0x10] sm:$0xf]
      %v179 = vld [vmem:[%s1 + $0x14] sm:$0xf]
      %v180 = vld [vmem:[%s1 + $0x18] sm:$0xf]
      %v181 = vld [vmem:[%s1 + $0x1c] sm:$0xf]
      %v182 = vld [vmem:[%s1 + $0x20] sm:$0xf]
      %v183 = vld [vmem:[%s1 + $0x24] sm:$0xf]
      %v184 = vld [vmem:[%s1 + $0x28] sm:$0xf]
      %v185 = vld [vmem:[%s1 + $0x2c] sm:$0xf]
      %v186 = vld [vmem:[%s165] sm:$0xc]
      %v187 = vld [vmem:[%s165 + $0x8] sm:$0x3]
      %s188 = scalar_lea.vmem %s1, 48
      %v189 = vld [vmem:[%s188] sm:$0xf]
      %v190 = vld [vmem:[%s188 + $0x4] sm:$0xf]
      %v191 = vld [vmem:[%s188 + $0x8] sm:$0xf]
      %v192 = vld [vmem:[%s188 + $0xc] sm:$0xf]
      %v193 = vld [vmem:[%s188 + $0x10] sm:$0xf]
      %v194 = vld [vmem:[%s188 + $0x14] sm:$0xf]
      %v195 = vld [vmem:[%s188 + $0x18] sm:$0xf]
      %v196 = vld [vmem:[%s188 + $0x1c] sm:$0xf]
      %v197 = vld [vmem:[%s188 + $0x20] sm:$0xf]
      %v198 = vld [vmem:[%s188 + $0x24] sm:$0xf]
      %v199 = vld [vmem:[%s188 + $0x28] sm:$0xf]
      %v200 = vld [vmem:[%s188 + $0x2c] sm:$0xf]
      %v204 = vunpack.c.l.b16 %v186
      %v205 = vunpack.c.l.b16 %v173
      %v206 = vunpack.c.l.b16 %v187
      %v207 = vpack.c.b16 %v205, %v204
      %v208 = vpack.c.b16 %v206, %v206
      %vm209 = vcmask 1045504
      %v210 = vrot.slane %v207, 2
      %v211 = vrot.slane %v208, 2
      %v212 = vsel %vm209, %v210, %v211
      %v225 = vunpack.c.l.b16 %v189
      %v226 = vunpack.c.l.b16 %v190
      %v227 = vunpack.c.l.b16 %v191
      %v228 = vunpack.c.l.b16 %v192
      %v229 = vunpack.c.l.b16 %v193
      %v230 = vunpack.c.l.b16 %v194
      %v231 = vunpack.c.l.b16 %v195
      %v232 = vunpack.c.l.b16 %v196
      %v233 = vunpack.c.l.b16 %v197
      %v234 = vunpack.c.l.b16 %v198
      %v235 = vunpack.c.l.b16 %v199
      %v236 = vunpack.c.l.b16 %v200
      %v237 = vpack.c.b16 %v226, %v225
      %v238 = vpack.c.b16 %v228, %v227
      %v239 = vpack.c.b16 %v230, %v229
      %v240 = vpack.c.b16 %v232, %v231
      %v241 = vpack.c.b16 %v234, %v233
      %v242 = vpack.c.b16 %v236, %v235
      %vm249 = vcmask 785408
      %v251 = vsel %vm249, %v212, 0
      %253 = vmatprep.subr.bf16.mxu0 0
      %254 = vmatpush1.bf16.msra.mxu0 0
      %255 = vmatprep.subr.bf16.mxu0 0
      %256 = vmatpush1.bf16.msra.mxu0 0
      %257 = vmatprep.subr.bf16.mxu0 0
      %258 = vmatpush1.bf16.msra.mxu0 %v242
      %259 = vmatprep.subr.bf16.mxu0 0
      %260 = vmatpush1.bf16.msra.mxu0 %v241
      %261 = vmatprep.subr.bf16.mxu0 0
      %262 = vmatpush1.bf16.msra.mxu0 %v240
      %263 = vmatprep.subr.bf16.mxu0 0
      %264 = vmatpush1.bf16.msra.mxu0 %v239
      %265 = vmatprep.subr.bf16.mxu0 0
      %266 = vmatpush1.bf16.msra.mxu0 %v238
      %267 = vmatprep.subr.bf16.mxu0 0
      %268 = vmatpush1.bf16.msra.mxu0 %v237
      %269 = vmatprep.subr.bf16.mxu0 0
      %270 = vmatpush2.bf16.msra.mxu0 0
      %271 = vmatprep.subr.bf16.mxu0 0
      %272 = vmatpush2.bf16.msra.mxu0 0
      %273 = vmatprep.subr.bf16.mxu0 0
      %274 = vmatpush2.bf16.msra.mxu0 0
      %275 = vmatprep.subr.bf16.mxu0 0
      %276 = vmatpush2.bf16.msra.mxu0 0
      %277 = vmatprep.subr.bf16.mxu0 0
      %278 = vmatpush2.bf16.msra.mxu0 0
      %279 = vmatprep.subr.bf16.mxu0 0
      %280 = vmatpush2.bf16.msra.mxu0 0
      %281 = vmatprep.subr.bf16.mxu0 0
      %282 = vmatpush2.bf16.msra.mxu0 0
      %283 = vmatprep.subr.bf16.mxu0 0
      %284 = vmatpush2.bf16.msra.mxu0 0
      %285 = vmatprep.mubr.bf16.mxu0 0
      %286 = vmatmul.mubr.bf16.gmra.mxu0 %v251
      %v287 = vpop.f32.mrf.mxu0
      %v288 = vadd.f32 0.0, %v287
      %v289 = vpop.f32.mrf.mxu0
      %v290 = vpop.f32.mrf.mxu0
      %v291 = vadd.f32 0.0, %v290
      %v292 = vpop.f32.mrf.mxu0
      %293 = vdwg.mxu0
      %v295 = vunpack.c.l.b16 %v172
      %v296 = vpack.c.b16 %v205, %v295
      %v309 = vunpack.c.l.b16 %v174
      %v310 = vunpack.c.l.b16 %v175
      %v311 = vunpack.c.l.b16 %v176
      %v312 = vunpack.c.l.b16 %v177
      %v313 = vunpack.c.l.b16 %v178
      %v314 = vunpack.c.l.b16 %v179
      %v315 = vunpack.c.l.b16 %v180
      %v316 = vunpack.c.l.b16 %v181
      %v317 = vunpack.c.l.b16 %v182
      %v318 = vunpack.c.l.b16 %v183
      %v319 = vunpack.c.l.b16 %v184
      %v320 = vunpack.c.l.b16 %v185
      %v321 = vpack.c.b16 %v310, %v309
      %v322 = vpack.c.b16 %v312, %v311
      %v323 = vpack.c.b16 %v314, %v313
      %v324 = vpack.c.b16 %v316, %v315
      %v325 = vpack.c.b16 %v318, %v317
      %v326 = vpack.c.b16 %v320, %v319
      %v334 = vsel %vm249, %v296, 0
      %336 = vmatprep.subr.bf16.mxu0 0
      %337 = vmatpush1.bf16.msra.mxu0 0
      %338 = vmatprep.subr.bf16.mxu0 0
      %339 = vmatpush1.bf16.msra.mxu0 0
      %340 = vmatprep.subr.bf16.mxu0 0
      %341 = vmatpush1.bf16.msra.mxu0 %v326
      %342 = vmatprep.subr.bf16.mxu0 0
      %343 = vmatpush1.bf16.msra.mxu0 %v325
      %344 = vmatprep.subr.bf16.mxu0 0
      %345 = vmatpush1.bf16.msra.mxu0 %v324
      %346 = vmatprep.subr.bf16.mxu0 0
      %347 = vmatpush1.bf16.msra.mxu0 %v323
      %348 = vmatprep.subr.bf16.mxu0 0
      %349 = vmatpush1.bf16.msra.mxu0 %v322
      %350 = vmatprep.subr.bf16.mxu0 0
      %351 = vmatpush1.bf16.msra.mxu0 %v321
      %352 = vmatprep.subr.bf16.mxu0 0
      %353 = vmatpush2.bf16.msra.mxu0 0
      %354 = vmatprep.subr.bf16.mxu0 0
      %355 = vmatpush2.bf16.msra.mxu0 0
      %356 = vmatprep.subr.bf16.mxu0 0
      %357 = vmatpush2.bf16.msra.mxu0 0
      %358 = vmatprep.subr.bf16.mxu0 0
      %359 = vmatpush2.bf16.msra.mxu0 0
      %360 = vmatprep.subr.bf16.mxu0 0
      %361 = vmatpush2.bf16.msra.mxu0 0
      %362 = vmatprep.subr.bf16.mxu0 0
      %363 = vmatpush2.bf16.msra.mxu0 0
      %364 = vmatprep.subr.bf16.mxu0 0
      %365 = vmatpush2.bf16.msra.mxu0 0
      %366 = vmatprep.subr.bf16.mxu0 0
      %367 = vmatpush2.bf16.msra.mxu0 0
      %368 = vmatprep.mubr.bf16.mxu0 0
      %369 = vmatmul.mubr.bf16.gmra.mxu0 %v334
      %v370 = vpop.f32.mrf.mxu0
      %v371 = vadd.f32 %v288, %v370
      %v372 = vpop.f32.mrf.mxu0
      %v373 = vpop.f32.mrf.mxu0
      %v374 = vadd.f32 %v291, %v373
      %v375 = vpop.f32.mrf.mxu0
      %376 = vdwg.mxu0
      %v377 = vld [vmem:[%s165 + $0x8] sm:$0xf]
      %s378 = scalar_lea.vmem %s1, 96
      %v379 = vld [vmem:[%s378] sm:$0xf]
      %v380 = vld [vmem:[%s378 + $0x4] sm:$0xf]
      %v381 = vld [vmem:[%s378 + $0x8] sm:$0xf]
      %v382 = vld [vmem:[%s378 + $0xc] sm:$0xf]
      %v383 = vld [vmem:[%s378 + $0x10] sm:$0xf]
      %v384 = vld [vmem:[%s378 + $0x14] sm:$0xf]
      %v385 = vld [vmem:[%s378 + $0x18] sm:$0xf]
      %v386 = vld [vmem:[%s378 + $0x1c] sm:$0xf]
      %v387 = vld [vmem:[%s378 + $0x20] sm:$0xf]
      %v388 = vld [vmem:[%s378 + $0x24] sm:$0xf]
      %v389 = vld [vmem:[%s378 + $0x28] sm:$0xf]
      %v390 = vld [vmem:[%s378 + $0x2c] sm:$0xf]
      %v392 = vunpack.c.l.b16 %v377
      %v393 = vpack.c.b16 %v392, %v205
      %v406 = vunpack.c.l.b16 %v379
      %v407 = vunpack.c.l.b16 %v380
      %v408 = vunpack.c.l.b16 %v381
      %v409 = vunpack.c.l.b16 %v382
      %v410 = vunpack.c.l.b16 %v383
      %v411 = vunpack.c.l.b16 %v384
      %v412 = vunpack.c.l.b16 %v385
      %v413 = vunpack.c.l.b16 %v386
      %v414 = vunpack.c.l.b16 %v387
      %v415 = vunpack.c.l.b16 %v388
      %v416 = vunpack.c.l.b16 %v389
      %v417 = vunpack.c.l.b16 %v390
      %v418 = vpack.c.b16 %v407, %v406
      %v419 = vpack.c.b16 %v409, %v408
      %v420 = vpack.c.b16 %v411, %v410
      %v421 = vpack.c.b16 %v413, %v412
      %v422 = vpack.c.b16 %v415, %v414
      %v423 = vpack.c.b16 %v417, %v416
      %v431 = vsel %vm249, %v393, 0
      %433 = vmatprep.subr.bf16.mxu0 0
      %434 = vmatpush1.bf16.msra.mxu0 0
      %435 = vmatprep.subr.bf16.mxu0 0
      %436 = vmatpush1.bf16.msra.mxu0 0
      %437 = vmatprep.subr.bf16.mxu0 0
      %438 = vmatpush1.bf16.msra.mxu0 %v423
      %439 = vmatprep.subr.bf16.mxu0 0
      %440 = vmatpush1.bf16.msra.mxu0 %v422
      %441 = vmatprep.subr.bf16.mxu0 0
      %442 = vmatpush1.bf16.msra.mxu0 %v421
      %443 = vmatprep.subr.bf16.mxu0 0
      %444 = vmatpush1.bf16.msra.mxu0 %v420
      %445 = vmatprep.subr.bf16.mxu0 0
      %446 = vmatpush1.bf16.msra.mxu0 %v419
      %447 = vmatprep.subr.bf16.mxu0 0
      %448 = vmatpush1.bf16.msra.mxu0 %v418
      %449 = vmatprep.subr.bf16.mxu0 0
      %450 = vmatpush2.bf16.msra.mxu0 0
      %451 = vmatprep.subr.bf16.mxu0 0
      %452 = vmatpush2.bf16.msra.mxu0 0
      %453 = vmatprep.subr.bf16.mxu0 0
      %454 = vmatpush2.bf16.msra.mxu0 0
      %455 = vmatprep.subr.bf16.mxu0 0
      %456 = vmatpush2.bf16.msra.mxu0 0
      %457 = vmatprep.subr.bf16.mxu0 0
      %458 = vmatpush2.bf16.msra.mxu0 0
      %459 = vmatprep.subr.bf16.mxu0 0
      %460 = vmatpush2.bf16.msra.mxu0 0
      %461 = vmatprep.subr.bf16.mxu0 0
      %462 = vmatpush2.bf16.msra.mxu0 0
      %463 = vmatprep.subr.bf16.mxu0 0
      %464 = vmatpush2.bf16.msra.mxu0 0
      %465 = vmatprep.mubr.bf16.mxu0 0
      %466 = vmatmul.mubr.bf16.gmra.mxu0 %v431
      %v467 = vpop.f32.mrf.mxu0
      %v468 = vadd.f32 0.0, %v467
      %v469 = vpop.f32.mrf.mxu0
      %v470 = vpop.f32.mrf.mxu0
      %v471 = vadd.f32 0.0, %v470
      %v472 = vpop.f32.mrf.mxu0
      %473 = vdwg.mxu0
      %v474 = vadd.f32 %v371, %v468
      %v475 = vadd.f32 %v374, %v471
      %v476 = vld [vmem:[%s2] sm:$0x1]
      %v478 = vlaneseq
      %v479 = vshrl.u32 %v478, 7
      %v480 = vsub.s32 0, %v479
      %v481 = vrot.slane %v476, %v480
      %v483 = vadd.f32 %v474, %v481
      %v484 = vadd.f32 %v475, %v481
      %v485 = vmax.f32 %v483, 0.0
      %v486 = vmax.f32 %v484, 0.0
      %vm487 = vcmask 261120
      %488 = vst.msk [vmem:[%s170] sm:$0xff] %vm487, %v485
      %489 = vst.msk [vmem:[%s170 + $0x8] sm:$0xff] %vm487, %v486
      %p490 = scmp.lt.s32.totalorder %s14, 1
      %s491 = scalar_select %p490, %s14, 1
      %s492 = smul.addr %s491, 2
      %s493 = smul.addr %s492, 8
      %s494 = scalar_lea.vmem %s3, %s493
      // Predicated region
      $region33: #{vgg_forward.20} parent=31 // pred_check
        %p495 = pneg %p100
      $region34: #{vgg_forward.20} parent=31 // pred_check_branch
        %497 = sbr.rel (%p495) target = $region36
      $region35: #{vgg_forward.20} parent=31 // pred_region
        _
      $region36: #{vgg_forward.20} parent=31 // pred_fallthru
        _
    $region32: #{vgg_forward.20} parent=5 // pred_fallthru
      _
    %p498 = scmp.le.s32.totalorder 2, %s9
    // Predicated region
    $region37: #{vgg_forward.20} parent=5 // pred_check
      %p499 = pneg %p498
    $region38: #{vgg_forward.20} parent=5 // pred_check_branch
      %501 = sbr.rel (%p499) target = $region40
    $region39: #{vgg_forward.20} parent=5 // pred_region
      %s502 = ssub.s32 %s9, 2
      // Predicated region
      $region41: #{vgg_forward.20} parent=39 // pred_check
        %p503 = pneg %p106
      $region42: #{vgg_forward.20} parent=39 // pred_check_branch
        %505 = sbr.rel (%p503) target = $region44
      $region43: #{vgg_forward.20} parent=39 // pred_region
        %p506 = scmp.lt.s32.totalorder %s15, 1
        %s507 = scalar_select %p506, %s15, 1
        %s508 = smul.addr %s507, 2
        %s509 = smul.addr %s508, 8
        %s510 = scalar_lea.vmem %s3, %s509
      $region44: #{vgg_forward.20} parent=39 // pred_fallthru
        _
    $region40: #{vgg_forward.20} parent=5 // pred_fallthru
      _
  $region6: #{vgg_forward.20} parent=0 // loop_footer
    %s13 = sadd.s32 1, %s9
  $region7: #{vgg_forward.20} parent=0 // loop_footer_branch
    %8 = sbr.rel target = $region3
  $region8: #{vgg_forward.20} parent=0 // loop_exit
    _

// kernel: vgg_forward.23
$region0: #{vgg_forward.23}
  #allocation0 [shape = 'u32[]', space=smem, size = 0x4, offset = 0x4, fixed_abs, tag = 'smem constant byte address 0x4 - core index']
  #allocation1 [shape = 'u32[144,128]{1,0:T(1,128)}', space=vmem, size = 0x12000, scoped, tag = 'internal scratch']
  %s0 = inlined_call_operand.vmem [shape: bf16[2,8,96], index: 0, kind: input, shape index: {}]
  %s1 = inlined_call_operand.vmem [shape: bf16[3,96,64], index: 1, kind: input, shape index: {}]
  %s2 = inlined_call_operand.vmem [shape: f32[1,64], index: 2, kind: input, shape index: {}]
  %s3 = inlined_call_operand.vmem [shape: f32[2,4,64], index: 3, kind: output, shape index: {}]
  %s4 = sld [smem:[#allocation0]]
  $region45: #{vgg_forward.23} parent=0
    _
  %s6 = ssub.s32 1, %s4
  %s7 = scalar_select 0, %s6, %s4
  loop: start=0, step=1, limit=4
  $region2: #{vgg_forward.23} parent=0 // loop_pre_header
    _
  $region3: #{vgg_forward.23} parent=0 // loop_header
    %s9 = sphi 0, %s13
    %p10 = scmp.ge.s32.totalorder %s9, 4
    %s19 = sphi 0, %s21
    %s22 = sphi 0, %s19
    %s23 = sphi 0, %s22
    %s39 = sphi 0, %s23
    %s43 = sphi 0, %s43
    %s45 = sphi 0, %s43
    %s46 = sphi 0, %s45
    %s60 = sphi 0, %s46
    %s64 = sphi 0, %s64
    %s66 = sphi 0, %s64
    %s67 = sphi 0, %s66
    %s81 = sphi 0, %s67
    %s87 = sphi 0, %s89
    %s90 = sphi 0, %s87
    %s91 = sphi 0, %s90
    %s107 = sphi 0, %s91
  $region4: #{vgg_forward.23} parent=0 // loop_header_branch
    %12 = sbr.rel (%p10) target = $region8
  $region5: #{vgg_forward.23} parent=0 // loop_body
    %s14 = ssub.s32 %s9, 1
    %s15 = ssub.s32 %s9, 2
    %s16 = sadd.s32 %s9, 1
    %s17 = ssub.s32 %s9, %s16
    %p18 = scmp.eq.s32.totalorder %s17, 0
    %s20 = sadd.s32 %s19, 1
    %s21 = scalar_select %p18, %s19, %s20
    %p24 = pneg %p18
    %p25 = scmp.eq.s32.totalorder %s9, 1
    %p26 = por %p24, %p25
    %p27 = scmp.ne.s32.totalorder %s19, %s22
    %p28 = scmp.eq.s32.totalorder %s9, 0
    %p29 = por %p27, %p28
    %p30 = scmp.ne.s32.totalorder %s19, %s22
    %p31 = scmp.eq.s32.totalorder %s14, 1
    %p32 = por %p30, %p31
    %p33 = scmp.ne.s32.totalorder %s22, %s23
    %p34 = scmp.eq.s32.totalorder %s14, 0
    %p35 = por %p33, %p34
    %p36 = scmp.ne.s32.totalorder %s22, %s23
    %p37 = scmp.eq.s32.totalorder %s15, 1
    %p38 = por %p36, %p37
    %p40 = scmp.ne.s32.totalorder %s23, %s39
    %p41 = scmp.eq.s32.totalorder %s15, 0
    %p42 = por %p40, %p41
    %s44 = sadd.s32 %s43, 1
    %p47 = scmp.eq.s32.totalorder %s9, 1
    %p48 = scmp.ne.s32.totalorder %s43, %s45
    %p49 = scmp.eq.s32.totalorder %s9, 0
    %p50 = por %p48, %p49
    %p51 = scmp.ne.s32.totalorder %s43, %s45
    %p52 = scmp.eq.s32.totalorder %s14, 1
    %p53 = por %p51, %p52
    %p54 = scmp.ne.s32.totalorder %s45, %s46
    %p55 = scmp.eq.s32.totalorder %s14, 0
    %p56 = por %p54, %p55
    %p57 = scmp.ne.s32.totalorder %s45, %s46
    %p58 = scmp.eq.s32.totalorder %s15, 1
    %p59 = por %p57, %p58
    %p61 = scmp.ne.s32.totalorder %s46, %s60
    %p62 = scmp.eq.s32.totalorder %s15, 0
    %p63 = por %p61, %p62
    %s65 = sadd.s32 %s64, 1
    %p68 = scmp.eq.s32.totalorder %s9, 1
    %p69 = scmp.ne.s32.totalorder %s64, %s66
    %p70 = scmp.eq.s32.totalorder %s9, 0
    %p71 = por %p69, %p70
    %p72 = scmp.ne.s32.totalorder %s64, %s66
    %p73 = scmp.eq.s32.totalorder %s14, 1
    %p74 = por %p72, %p73
    %p75 = scmp.ne.s32.totalorder %s66, %s67
    %p76 = scmp.eq.s32.totalorder %s14, 0
    %p77 = por %p75, %p76
    %p78 = scmp.ne.s32.totalorder %s66, %s67
    %p79 = scmp.eq.s32.totalorder %s15, 1
    %p80 = por %p78, %p79
    %p82 = scmp.ne.s32.totalorder %s67, %s81
    %p83 = scmp.eq.s32.totalorder %s15, 0
    %p84 = por %p82, %p83
    %s85 = ssub.s32 %s9, %s16
    %p86 = scmp.eq.s32.totalorder %s85, 0
    %s88 = sadd.s32 %s87, 1
    %s89 = scalar_select %p86, %s87, %s88
    %p92 = pneg %p86
    %p93 = scmp.eq.s32.totalorder %s9, 1
    %p94 = por %p92, %p93
    %p95 = scmp.ne.s32.totalorder %s87, %s90
    %p96 = scmp.eq.s32.totalorder %s9, 0
    %p97 = por %p95, %p96
    %p98 = scmp.ne.s32.totalorder %s87, %s90
    %p99 = scmp.eq.s32.totalorder %s14, 1
    %p100 = por %p98, %p99
    %p101 = scmp.ne.s32.totalorder %s90, %s91
    %p102 = scmp.eq.s32.totalorder %s14, 0
    %p103 = por %p101, %p102
    %p104 = scmp.ne.s32.totalorder %s90, %s91
    %p105 = scmp.eq.s32.totalorder %s15, 1
    %p106 = por %p104, %p105
    %p108 = scmp.ne.s32.totalorder %s91, %s107
    %p109 = scmp.eq.s32.totalorder %s15, 0
    %p110 = por %p108, %p109
    %p111 = scmp.le.s32.totalorder 1, %s9
    %p112 = scmp.lt.s32.totalorder %s9, 3
    %p113 = pnand %p111, %p112
    %p114 = pneg %p113
    // Predicated region
    $region9: #{vgg_forward.23} parent=5 // pred_check
      _
    $region10: #{vgg_forward.23} parent=5 // pred_check_branch
      %116 = sbr.rel (%p113) target = $region12
    $region11: #{vgg_forward.23} parent=5 // pred_region
      %s117 = ssub.s32 %s9, 1
      // Predicated region
      $region13: #{vgg_forward.23} parent=11 // pred_check
        %p118 = pneg %p56
      $region14: #{vgg_forward.23} parent=11 // pred_check_branch
        %120 = sbr.rel (%p118) target = $region16
      $region15: #{vgg_forward.23} parent=11 // pred_region
        _
      $region16: #{vgg_forward.23} parent=11 // pred_fallthru
        _
      // Predicated region
      $region17: #{vgg_forward.23} parent=11 // pred_check
        %p121 = pneg %p77
      $region18: #{vgg_forward.23} parent=11 // pred_check_branch
        %123 = sbr.rel (%p121) target = $region20
      $region19: #{vgg_forward.23} parent=11 // pred_region
        _
      $region20: #{vgg_forward.23} parent=11 // pred_fallthru
        _
    $region12: #{vgg_forward.23} parent=5 // pred_fallthru
      _
    %p124 = scmp.lt.s32.totalorder %s9, 2
    // Predicated region
    $region21: #{vgg_forward.23} parent=5 // pred_check
      %p125 = pneg %p124
    $region22: #{vgg_forward.23} parent=5 // pred_check_branch
      %127 = sbr.rel (%p125) target = $region24
    $region23: #{vgg_forward.23} parent=5 // pred_region
      // Predicated region
      $region25: #{vgg_forward.23} parent=23 // pred_check
        %p128 = pneg %p29
      $region26: #{vgg_forward.23} parent=23 // pred_check_branch
        %130 = sbr.rel (%p128) target = $region28
      $region27: #{vgg_forward.23} parent=23 // pred_region
        %p131 = scmp.lt.s32.totalorder %s9, 1
        %s132 = scalar_select %p131, %s9, 1
        %s133 = smul.addr %s132, 4
        %s134 = scalar_lea.vmem %s0, %s133
      $region28: #{vgg_forward.23} parent=23 // pred_fallthru
        _
    $region24: #{vgg_forward.23} parent=5 // pred_fallthru
      _
    %p135 = scmp.le.s32.totalorder 1, %s9
    %p136 = scmp.lt.s32.totalorder %s9, 3
    %p137 = pnand %p135, %p136
    %p138 = pneg %p137
    // Predicated region
    $region29: #{vgg_forward.23} parent=5 // pred_check
      _
    $region30: #{vgg_forward.23} parent=5 // pred_check_branch
      %140 = sbr.rel (%p137) target = $region32
    $region31: #{vgg_forward.23} parent=5 // pred_region
      %s141 = ssub.s32 %s9, 1
      %p142 = scmp.lt.s32.totalorder %s14, 1
      %s143 = scalar_select %p142, %s14, 1
      %s144 = smul.addr %s143, 4
      %s145 = scalar_lea.vmem %s0, %s144
      %p146 = pneg %p35
      %p147 = pneg %p32
      %p148 = pneg %p56
      %p149 = pneg %p53
      %p150 = pneg %p77
      %p151 = pneg %p74
      %p152 = pneg %p103
      %p153 = pneg %p100
      %p154 = scmp.lt.s32.totalorder %s14, 1
      %s155 = scalar_select %p154, %s14, 1
      %s156 = smul.addr %s155, 4
      %s157 = scalar_lea.vmem %s3, %s156
      %p158 = scmp.lt.s32.totalorder %s14, 1
      %s159 = scalar_select %p158, %s14, 1
      %s160 = smul.addr %s159, 4
      %s161 = scalar_lea.vmem %s0, %s160
      %p162 = scmp.lt.s32.totalorder %s14, 1
      %s163 = scalar_select %p162, %s14, 1
      %s164 = smul.addr %s163, 4
      %s165 = scalar_lea.vmem %s3, %s164
      %v167 = vld [vmem:[%s161] sm:$0x3]
      %v168 = vld [vmem:[%s1] sm:$0xf]
      %v169 = vld [vmem:[%s1 + $0x4] sm:$0xf]
      %v170 = vld [vmem:[%s1 + $0x8] sm:$0xf]
      %v171 = vld [vmem:[%s1 + $0xc] sm:$0xf]
      %v172 = vld [vmem:[%s1 + $0x10] sm:$0xf]
      %v173 = vld [vmem:[%s1 + $0x14] sm:$0xf]
      %v174 = vld [vmem:[%s1 + $0x18] sm:$0xf]
      %v175 = vld [vmem:[%s1 + $0x1c] sm:$0xf]
      %v176 = vld [vmem:[%s1 + $0x20] sm:$0xf]
      %v177 = vld [vmem:[%s1 + $0x24] sm:$0xf]
      %v178 = vld [vmem:[%s1 + $0x28] sm:$0xf]
      %v179 = vld [vmem:[%s1 + $0x2c] sm:$0xf]
      %v180 = vld [vmem:[%s161] sm:$0x6]
      %s181 = scalar_lea.vmem %s1, 48
      %v182 = vld [vmem:[%s181] sm:$0xf]
      %v183 = vld [vmem:[%s181 + $0x4] sm:$0xf]
      %v184 = vld [vmem:[%s181 + $0x8] sm:$0xf]
      %v185 = vld [vmem:[%s181 + $0xc] sm:$0xf]
      %v186 = vld [vmem:[%s181 + $0x10] sm:$0xf]
      %v187 = vld [vmem:[%s181 + $0x14] sm:$0xf]
      %v188 = vld [vmem:[%s181 + $0x18] sm:$0xf]
      %v189 = vld [vmem:[%s181 + $0x1c] sm:$0xf]
      %v190 = vld [vmem:[%s181 + $0x20] sm:$0xf]
      %v191 = vld [vmem:[%s181 + $0x24] sm:$0xf]
      %v192 = vld [vmem:[%s181 + $0x28] sm:$0xf]
      %v193 = vld [vmem:[%s181 + $0x2c] sm:$0xf]
      %v195 = vunpack.c.l.b16 %v180
      %v196 = vpack.c.b16 %v195, %v195
      %v197 = vrot.slane %v196, 1
      %v210 = vunpack.c.l.b16 %v182
      %v211 = vunpack.c.l.b16 %v183
      %v212 = vunpack.c.l.b16 %v184
      %v213 = vunpack.c.l.b16 %v185
      %v214 = vunpack.c.l.b16 %v186
      %v215 = vunpack.c.l.b16 %v187
      %v216 = vunpack.c.l.b16 %v188
      %v217 = vunpack.c.l.b16 %v189
      %v218 = vunpack.c.l.b16 %v190
      %v219 = vunpack.c.l.b16 %v191
      %v220 = vunpack.c.l.b16 %v192
      %v221 = vunpack.c.l.b16 %v193
      %v222 = vpack.c.b16 %v211, %v210
      %v223 = vpack.c.b16 %v213, %v212
      %v224 = vpack.c.b16 %v215, %v214
      %v225 = vpack.c.b16 %v217, %v216
      %v226 = vpack.c.b16 %v219, %v218
      %v227 = vpack.c.b16 %v221, %v220
      %vm234 = vcmask 785408
      %v236 = vsel %vm234, %v197, 0
      %238 = vmatprep.subr.bf16.mxu0 0
      %239 = vmatpush1.bf16.msra.mxu0 0
      %240 = vmatprep.subr.bf16.mxu0 0
      %241 = vmatpush1.bf16.msra.mxu0 0
      %242 = vmatprep.subr.bf16.mxu0 0
      %243 = vmatpush1.bf16.msra.mxu0 %v227
      %244 = vmatprep.subr.bf16.mxu0 0
      %245 = vmatpush1.bf16.msra.mxu0 %v226
      %246 = vmatprep.subr.bf16.mxu0 0
      %247 = vmatpush1.bf16.msra.mxu0 %v225
      %248 = vmatprep.subr.bf16.mxu0 0
      %249 = vmatpush1.bf16.msra.mxu0 %v224
      %250 = vmatprep.subr.bf16.mxu0 0
      %251 = vmatpush1.bf16.msra.mxu0 %v223
      %252 = vmatprep.subr.bf16.mxu0 0
      %253 = vmatpush1.bf16.msra.mxu0 %v222
      %254 = vmatprep.subr.bf16.mxu0 0
      %255 = vmatpush2.bf16.msra.mxu0 0
      %256 = vmatprep.subr.bf16.mxu0 0
      %257 = vmatpush2.bf16.msra.mxu0 0
      %258 = vmatprep.subr.bf16.mxu0 0
      %259 = vmatpush2.bf16.msra.mxu0 0
      %260 = vmatprep.subr.bf16.mxu0 0
      %261 = vmatpush2.bf16.msra.mxu0 0
      %262 = vmatprep.subr.bf16.mxu0 0
      %263 = vmatpush2.bf16.msra.mxu0 0
      %264 = vmatprep.subr.bf16.mxu0 0
      %265 = vmatpush2.bf16.msra.mxu0 0
      %266 = vmatprep.subr.bf16.mxu0 0
      %267 = vmatpush2.bf16.msra.mxu0 0
      %268 = vmatprep.subr.bf16.mxu0 0
      %269 = vmatpush2.bf16.msra.mxu0 0
      %270 = vmatprep.mubr.bf16.mxu0 0
      %271 = vmatmul.mubr.bf16.gmra.mxu0 %v236
      %v272 = vpop.f32.mrf.mxu0
      %v273 = vadd.f32 0.0, %v272
      %v274 = vpop.f32.mrf.mxu0
      %v275 = vpop.f32.mrf.mxu0
      %v276 = vpop.f32.mrf.mxu0
      %277 = vdwg.mxu0
      %v290 = vunpack.c.l.b16 %v168
      %v291 = vunpack.c.l.b16 %v169
      %v292 = vunpack.c.l.b16 %v170
      %v293 = vunpack.c.l.b16 %v171
      %v294 = vunpack.c.l.b16 %v172
      %v295 = vunpack.c.l.b16 %v173
      %v296 = vunpack.c.l.b16 %v174
      %v297 = vunpack.c.l.b16 %v175
      %v298 = vunpack.c.l.b16 %v176
      %v299 = vunpack.c.l.b16 %v177
      %v300 = vunpack.c.l.b16 %v178
      %v301 = vunpack.c.l.b16 %v179
      %v302 = vpack.c.b16 %v291, %v290
      %v303 = vpack.c.b16 %v293, %v292
      %v304 = vpack.c.b16 %v295, %v294
      %v305 = vpack.c.b16 %v297, %v296
      %v306 = vpack.c.b16 %v299, %v298
      %v307 = vpack.c.b16 %v301, %v300
      %v315 = vsel %vm234, %v167, 0
      %317 = vmatprep.subr.bf16.mxu0 0
      %318 = vmatpush1.bf16.msra.mxu0 0
      %319 = vmatprep.subr.bf16.mxu0 0
      %320 = vmatpush1.bf16.msra.mxu0 0
      %321 = vmatprep.subr.bf16.mxu0 0
      %322 = vmatpush1.bf16.msra.mxu0 %v307
      %323 = vmatprep.subr.bf16.mxu0 0
      %324 = vmatpush1.bf16.msra.mxu0 %v306
      %325 = vmatprep.subr.bf16.mxu0 0
      %326 = vmatpush1.bf16.msra.mxu0 %v305
      %327 = vmatprep.subr.bf16.mxu0 0
      %328 = vmatpush1.bf16.msra.mxu0 %v304
      %329 = vmatprep.subr.bf16.mxu0 0
      %330 = vmatpush1.bf16.msra.mxu0 %v303
      %331 = vmatprep.subr.bf16.mxu0 0
      %332 = vmatpush1.bf16.msra.mxu0 %v302
      %333 = vmatprep.subr.bf16.mxu0 0
      %334 = vmatpush2.bf16.msra.mxu0 0
      %335 = vmatprep.subr.bf16.mxu0 0
      %336 = vmatpush2.bf16.msra.mxu0 0
      %337 = vmatprep.subr.bf16.mxu0 0
      %338 = vmatpush2.bf16.msra.mxu0 0
      %339 = vmatprep.subr.bf16.mxu0 0
      %340 = vmatpush2.bf16.msra.mxu0 0
      %341 = vmatprep.subr.bf16.mxu0 0
      %342 = vmatpush2.bf16.msra.mxu0 0
      %343 = vmatprep.subr.bf16.mxu0 0
      %344 = vmatpush2.bf16.msra.mxu0 0
      %345 = vmatprep.subr.bf16.mxu0 0
      %346 = vmatpush2.bf16.msra.mxu0 0
      %347 = vmatprep.subr.bf16.mxu0 0
      %348 = vmatpush2.bf16.msra.mxu0 0
      %349 = vmatprep.mubr.bf16.mxu0 0
      %350 = vmatmul.mubr.bf16.gmra.mxu0 %v315
      %v351 = vpop.f32.mrf.mxu0
      %v352 = vadd.f32 %v273, %v351
      %v353 = vpop.f32.mrf.mxu0
      %v354 = vpop.f32.mrf.mxu0
      %v355 = vpop.f32.mrf.mxu0
      %356 = vdwg.mxu0
      %v357 = vld [vmem:[%s161] sm:$0xc]
      %s358 = scalar_lea.vmem %s1, 96
      %v359 = vld [vmem:[%s358] sm:$0xf]
      %v360 = vld [vmem:[%s358 + $0x4] sm:$0xf]
      %v361 = vld [vmem:[%s358 + $0x8] sm:$0xf]
      %v362 = vld [vmem:[%s358 + $0xc] sm:$0xf]
      %v363 = vld [vmem:[%s358 + $0x10] sm:$0xf]
      %v364 = vld [vmem:[%s358 + $0x14] sm:$0xf]
      %v365 = vld [vmem:[%s358 + $0x18] sm:$0xf]
      %v366 = vld [vmem:[%s358 + $0x1c] sm:$0xf]
      %v367 = vld [vmem:[%s358 + $0x20] sm:$0xf]
      %v368 = vld [vmem:[%s358 + $0x24] sm:$0xf]
      %v369 = vld [vmem:[%s358 + $0x28] sm:$0xf]
      %v370 = vld [vmem:[%s358 + $0x2c] sm:$0xf]
      %v372 = vunpack.c.l.b16 %v357
      %v373 = vpack.c.b16 %v372, %v372
      %v374 = vrot.slane %v373, 2
      %v387 = vunpack.c.l.b16 %v359
      %v388 = vunpack.c.l.b16 %v360
      %v389 = vunpack.c.l.b16 %v361
      %v390 = vunpack.c.l.b16 %v362
      %v391 = vunpack.c.l.b16 %v363
      %v392 = vunpack.c.l.b16 %v364
      %v393 = vunpack.c.l.b16 %v365
      %v394 = vunpack.c.l.b16 %v366
      %v395 = vunpack.c.l.b16 %v367
      %v396 = vunpack.c.l.b16 %v368
      %v397 = vunpack.c.l.b16 %v369
      %v398 = vunpack.c.l.b16 %v370
      %v399 = vpack.c.b16 %v388, %v387
      %v400 = vpack.c.b16 %v390, %v389
      %v401 = vpack.c.b16 %v392, %v391
      %v402 = vpack.c.b16 %v394, %v393
      %v403 = vpack.c.b16 %v396, %v395
      %v404 = vpack.c.b16 %v398, %v397
      %v412 = vsel %vm234, %v374, 0
      %414 = vmatprep.subr.bf16.mxu0 0
      %415 = vmatpush1.bf16.msra.mxu0 0
      %416 = vmatprep.subr.bf16.mxu0 0
      %417 = vmatpush1.bf16.msra.mxu0 0
      %418 = vmatprep.subr.bf16.mxu0 0
      %419 = vmatpush1.bf16.msra.mxu0 %v404
      %420 = vmatprep.subr.bf16.mxu0 0
      %421 = vmatpush1.bf16.msra.mxu0 %v403
      %422 = vmatprep.subr.bf16.mxu0 0
      %423 = vmatpush1.bf16.msra.mxu0 %v402
      %424 = vmatprep.subr.bf16.mxu0 0
      %425 = vmatpush1.bf16.msra.mxu0 %v401
      %426 = vmatprep.subr.bf16.mxu0 0
      %427 = vmatpush1.bf16.msra.mxu0 %v400
      %428 = vmatprep.subr.bf16.mxu0 0
      %429 = vmatpush1.bf16.msra.mxu0 %v399
      %430 = vmatprep.subr.bf16.mxu0 0
      %431 = vmatpush2.bf16.msra.mxu0 0
      %432 = vmatprep.subr.bf16.mxu0 0
      %433 = vmatpush2.bf16.msra.mxu0 0
      %434 = vmatprep.subr.bf16.mxu0 0
      %435 = vmatpush2.bf16.msra.mxu0 0
      %436 = vmatprep.subr.bf16.mxu0 0
      %437 = vmatpush2.bf16.msra.mxu0 0
      %438 = vmatprep.subr.bf16.mxu0 0
      %439 = vmatpush2.bf16.msra.mxu0 0
      %440 = vmatprep.subr.bf16.mxu0 0
      %441 = vmatpush2.bf16.msra.mxu0 0
      %442 = vmatprep.subr.bf16.mxu0 0
      %443 = vmatpush2.bf16.msra.mxu0 0
      %444 = vmatprep.subr.bf16.mxu0 0
      %445 = vmatpush2.bf16.msra.mxu0 0
      %446 = vmatprep.mubr.bf16.mxu0 0
      %447 = vmatmul.mubr.bf16.gmra.mxu0 %v412
      %v448 = vpop.f32.mrf.mxu0
      %v449 = vadd.f32 0.0, %v448
      %v450 = vpop.f32.mrf.mxu0
      %v451 = vpop.f32.mrf.mxu0
      %v452 = vpop.f32.mrf.mxu0
      %453 = vdwg.mxu0
      %v454 = vadd.f32 %v352, %v449
      %v455 = vld [vmem:[%s2] sm:$0x1]
      %v457 = vlaneseq
      %v458 = vshrl.u32 %v457, 7
      %v459 = vsub.s32 0, %v458
      %v460 = vrot.slane %v455, %v459
      %v462 = vadd.f32 %v454, %v460
      %v463 = vmax.f32 %v462, 0.0
      %vm464 = vcmask 519168
      %465 = vst.msk [vmem:[%s165] sm:$0xf] %vm464, %v463
      %p466 = scmp.lt.s32.totalorder %s14, 1
      %s467 = scalar_select %p466, %s14, 1
      %s468 = smul.addr %s467, 4
      %s469 = scalar_lea.vmem %s3, %s468
      // Predicated region
      $region33: #{vgg_forward.23} parent=31 // pred_check
        %p470 = pneg %p100
      $region34: #{vgg_forward.23} parent=31 // pred_check_branch
        %472 = sbr.rel (%p470) target = $region36
      $region35: #{vgg_forward.23} parent=31 // pred_region
        _
      $region36: #{vgg_forward.23} parent=31 // pred_fallthru
        _
    $region32: #{vgg_forward.23} parent=5 // pred_fallthru
      _
    %p473 = scmp.le.s32.totalorder 2, %s9
    // Predicated region
    $region37: #{vgg_forward.23} parent=5 // pred_check
      %p474 = pneg %p473
    $region38: #{vgg_forward.23} parent=5 // pred_check_branch
      %476 = sbr.rel (%p474) target = $region40
    $region39: #{vgg_forward.23} parent=5 // pred_region
      %s477 = ssub.s32 %s9, 2
      // Predicated region
      $region41: #{vgg_forward.23} parent=39 // pred_check
        %p478 = pneg %p106
      $region42: #{vgg_forward.23} parent=39 // pred_check_branch
        %480 = sbr.rel (%p478) target = $region44
      $region43: #{vgg_forward.23} parent=39 // pred_region
        %p481 = scmp.lt.s32.totalorder %s15, 1
        %s482 = scalar_select %p481, %s15, 1
        %s483 = smul.addr %s482, 4
        %s484 = scalar_lea.vmem %s3, %s483
      $region44: #{vgg_forward.23} parent=39 // pred_fallthru
        _
    $region40: #{vgg_forward.23} parent=5 // pred_fallthru
      _
  $region6: #{vgg_forward.23} parent=0 // loop_footer
    %s13 = sadd.s32 1, %s9
  $region7: #{vgg_forward.23} parent=0 // loop_footer_branch
    %8 = sbr.rel target = $region3
  $region8: #{vgg_forward.23} parent=0 // loop_exit
    _

// kernel: vgg_forward.24
$region0: #{vgg_forward.24}
  #allocation0 [shape = 'u32[]', space=smem, size = 0x4, offset = 0x4, fixed_abs, tag = 'smem constant byte address 0x4 - core index']
  #allocation1 [shape = 'u32[144,128]{1,0:T(1,128)}', space=vmem, size = 0x12000, scoped, tag = 'internal scratch']
  %s0 = inlined_call_operand.vmem [shape: bf16[2,8,192], index: 0, kind: input, shape index: {}]
  %s1 = inlined_call_operand.vmem [shape: bf16[3,192,64], index: 1, kind: input, shape index: {}]
  %s2 = inlined_call_operand.vmem [shape: f32[1,64], index: 2, kind: input, shape index: {}]
  %s3 = inlined_call_operand.vmem [shape: f32[2,4,64], index: 3, kind: output, shape index: {}]
  %s4 = sld [smem:[#allocation0]]
  $region45: #{vgg_forward.24} parent=0
    _
  %s6 = ssub.s32 1, %s4
  %s7 = scalar_select 0, %s6, %s4
  loop: start=0, step=1, limit=4
  $region2: #{vgg_forward.24} parent=0 // loop_pre_header
    _
  $region3: #{vgg_forward.24} parent=0 // loop_header
    %s9 = sphi 0, %s13
    %p10 = scmp.ge.s32.totalorder %s9, 4
    %s19 = sphi 0, %s21
    %s22 = sphi 0, %s19
    %s23 = sphi 0, %s22
    %s39 = sphi 0, %s23
    %s43 = sphi 0, %s43
    %s45 = sphi 0, %s43
    %s46 = sphi 0, %s45
    %s60 = sphi 0, %s46
    %s64 = sphi 0, %s64
    %s66 = sphi 0, %s64
    %s67 = sphi 0, %s66
    %s81 = sphi 0, %s67
    %s87 = sphi 0, %s89
    %s90 = sphi 0, %s87
    %s91 = sphi 0, %s90
    %s107 = sphi 0, %s91
  $region4: #{vgg_forward.24} parent=0 // loop_header_branch
    %12 = sbr.rel (%p10) target = $region8
  $region5: #{vgg_forward.24} parent=0 // loop_body
    %s14 = ssub.s32 %s9, 1
    %s15 = ssub.s32 %s9, 2
    %s16 = sadd.s32 %s9, 1
    %s17 = ssub.s32 %s9, %s16
    %p18 = scmp.eq.s32.totalorder %s17, 0
    %s20 = sadd.s32 %s19, 1
    %s21 = scalar_select %p18, %s19, %s20
    %p24 = pneg %p18
    %p25 = scmp.eq.s32.totalorder %s9, 1
    %p26 = por %p24, %p25
    %p27 = scmp.ne.s32.totalorder %s19, %s22
    %p28 = scmp.eq.s32.totalorder %s9, 0
    %p29 = por %p27, %p28
    %p30 = scmp.ne.s32.totalorder %s19, %s22
    %p31 = scmp.eq.s32.totalorder %s14, 1
    %p32 = por %p30, %p31
    %p33 = scmp.ne.s32.totalorder %s22, %s23
    %p34 = scmp.eq.s32.totalorder %s14, 0
    %p35 = por %p33, %p34
    %p36 = scmp.ne.s32.totalorder %s22, %s23
    %p37 = scmp.eq.s32.totalorder %s15, 1
    %p38 = por %p36, %p37
    %p40 = scmp.ne.s32.totalorder %s23, %s39
    %p41 = scmp.eq.s32.totalorder %s15, 0
    %p42 = por %p40, %p41
    %s44 = sadd.s32 %s43, 1
    %p47 = scmp.eq.s32.totalorder %s9, 1
    %p48 = scmp.ne.s32.totalorder %s43, %s45
    %p49 = scmp.eq.s32.totalorder %s9, 0
    %p50 = por %p48, %p49
    %p51 = scmp.ne.s32.totalorder %s43, %s45
    %p52 = scmp.eq.s32.totalorder %s14, 1
    %p53 = por %p51, %p52
    %p54 = scmp.ne.s32.totalorder %s45, %s46
    %p55 = scmp.eq.s32.totalorder %s14, 0
    %p56 = por %p54, %p55
    %p57 = scmp.ne.s32.totalorder %s45, %s46
    %p58 = scmp.eq.s32.totalorder %s15, 1
    %p59 = por %p57, %p58
    %p61 = scmp.ne.s32.totalorder %s46, %s60
    %p62 = scmp.eq.s32.totalorder %s15, 0
    %p63 = por %p61, %p62
    %s65 = sadd.s32 %s64, 1
    %p68 = scmp.eq.s32.totalorder %s9, 1
    %p69 = scmp.ne.s32.totalorder %s64, %s66
    %p70 = scmp.eq.s32.totalorder %s9, 0
    %p71 = por %p69, %p70
    %p72 = scmp.ne.s32.totalorder %s64, %s66
    %p73 = scmp.eq.s32.totalorder %s14, 1
    %p74 = por %p72, %p73
    %p75 = scmp.ne.s32.totalorder %s66, %s67
    %p76 = scmp.eq.s32.totalorder %s14, 0
    %p77 = por %p75, %p76
    %p78 = scmp.ne.s32.totalorder %s66, %s67
    %p79 = scmp.eq.s32.totalorder %s15, 1
    %p80 = por %p78, %p79
    %p82 = scmp.ne.s32.totalorder %s67, %s81
    %p83 = scmp.eq.s32.totalorder %s15, 0
    %p84 = por %p82, %p83
    %s85 = ssub.s32 %s9, %s16
    %p86 = scmp.eq.s32.totalorder %s85, 0
    %s88 = sadd.s32 %s87, 1
    %s89 = scalar_select %p86, %s87, %s88
    %p92 = pneg %p86
    %p93 = scmp.eq.s32.totalorder %s9, 1
    %p94 = por %p92, %p93
    %p95 = scmp.ne.s32.totalorder %s87, %s90
    %p96 = scmp.eq.s32.totalorder %s9, 0
    %p97 = por %p95, %p96
    %p98 = scmp.ne.s32.totalorder %s87, %s90
    %p99 = scmp.eq.s32.totalorder %s14, 1
    %p100 = por %p98, %p99
    %p101 = scmp.ne.s32.totalorder %s90, %s91
    %p102 = scmp.eq.s32.totalorder %s14, 0
    %p103 = por %p101, %p102
    %p104 = scmp.ne.s32.totalorder %s90, %s91
    %p105 = scmp.eq.s32.totalorder %s15, 1
    %p106 = por %p104, %p105
    %p108 = scmp.ne.s32.totalorder %s91, %s107
    %p109 = scmp.eq.s32.totalorder %s15, 0
    %p110 = por %p108, %p109
    %p111 = scmp.le.s32.totalorder 1, %s9
    %p112 = scmp.lt.s32.totalorder %s9, 3
    %p113 = pnand %p111, %p112
    %p114 = pneg %p113
    // Predicated region
    $region9: #{vgg_forward.24} parent=5 // pred_check
      _
    $region10: #{vgg_forward.24} parent=5 // pred_check_branch
      %116 = sbr.rel (%p113) target = $region12
    $region11: #{vgg_forward.24} parent=5 // pred_region
      %s117 = ssub.s32 %s9, 1
      // Predicated region
      $region13: #{vgg_forward.24} parent=11 // pred_check
        %p118 = pneg %p56
      $region14: #{vgg_forward.24} parent=11 // pred_check_branch
        %120 = sbr.rel (%p118) target = $region16
      $region15: #{vgg_forward.24} parent=11 // pred_region
        _
      $region16: #{vgg_forward.24} parent=11 // pred_fallthru
        _
      // Predicated region
      $region17: #{vgg_forward.24} parent=11 // pred_check
        %p121 = pneg %p77
      $region18: #{vgg_forward.24} parent=11 // pred_check_branch
        %123 = sbr.rel (%p121) target = $region20
      $region19: #{vgg_forward.24} parent=11 // pred_region
        _
      $region20: #{vgg_forward.24} parent=11 // pred_fallthru
        _
    $region12: #{vgg_forward.24} parent=5 // pred_fallthru
      _
    %p124 = scmp.lt.s32.totalorder %s9, 2
    // Predicated region
    $region21: #{vgg_forward.24} parent=5 // pred_check
      %p125 = pneg %p124
    $region22: #{vgg_forward.24} parent=5 // pred_check_branch
      %127 = sbr.rel (%p125) target = $region24
    $region23: #{vgg_forward.24} parent=5 // pred_region
      // Predicated region
      $region25: #{vgg_forward.24} parent=23 // pred_check
        %p128 = pneg %p29
      $region26: #{vgg_forward.24} parent=23 // pred_check_branch
        %130 = sbr.rel (%p128) target = $region28
      $region27: #{vgg_forward.24} parent=23 // pred_region
        %p131 = scmp.lt.s32.totalorder %s9, 1
        %s132 = scalar_select %p131, %s9, 1
        %s133 = smul.addr %s132, 2
        %s134 = smul.addr %s133, 4
        %s135 = scalar_lea.vmem %s0, %s134
      $region28: #{vgg_forward.24} parent=23 // pred_fallthru
        _
    $region24: #{vgg_forward.24} parent=5 // pred_fallthru
      _
    %p136 = scmp.le.s32.totalorder 1, %s9
    %p137 = scmp.lt.s32.totalorder %s9, 3
    %p138 = pnand %p136, %p137
    %p139 = pneg %p138
    // Predicated region
    $region29: #{vgg_forward.24} parent=5 // pred_check
      _
    $region30: #{vgg_forward.24} parent=5 // pred_check_branch
      %141 = sbr.rel (%p138) target = $region32
    $region31: #{vgg_forward.24} parent=5 // pred_region
      %s142 = ssub.s32 %s9, 1
      %p143 = scmp.lt.s32.totalorder %s14, 1
      %s144 = scalar_select %p143, %s14, 1
      %s145 = smul.addr %s144, 2
      %s146 = smul.addr %s145, 4
      %s147 = scalar_lea.vmem %s0, %s146
      %p148 = pneg %p35
      %p149 = pneg %p32
      %p150 = pneg %p56
      %p151 = pneg %p53
      %p152 = pneg %p77
      %p153 = pneg %p74
      %p154 = pneg %p103
      %p155 = pneg %p100
      %p156 = scmp.lt.s32.totalorder %s14, 1
      %s157 = scalar_select %p156, %s14, 1
      %s158 = smul.addr %s157, 4
      %s159 = scalar_lea.vmem %s3, %s158
      %p160 = scmp.lt.s32.totalorder %s14, 1
      %s161 = scalar_select %p160, %s14, 1
      %s162 = smul.addr %s161, 2
      %s163 = smul.addr %s162, 4
      %s164 = scalar_lea.vmem %s0, %s163
      %p165 = scmp.lt.s32.totalorder %s14, 1
      %s166 = scalar_select %p165, %s14, 1
      %s167 = smul.addr %s166, 4
      %s168 = scalar_lea.vmem %s3, %s167
      %v170 = vld [vmem:[%s164] sm:$0x33]
      %v171 = vld [vmem:[%s1] sm:$0xf]
      %v172 = vld [vmem:[%s1 + $0x4] sm:$0xf]
      %v173 = vld [vmem:[%s1 + $0x8] sm:$0xf]
      %v174 = vld [vmem:[%s1 + $0xc] sm:$0xf]
      %v175 = vld [vmem:[%s1 + $0x10] sm:$0xf]
      %v176 = vld [vmem:[%s1 + $0x14] sm:$0xf]
      %v177 = vld [vmem:[%s1 + $0x18] sm:$0xf]
      %v178 = vld [vmem:[%s1 + $0x1c] sm:$0xf]
      %v179 = vld [vmem:[%s1 + $0x20] sm:$0xf]
      %v180 = vld [vmem:[%s1 + $0x24] sm:$0xf]
      %v181 = vld [vmem:[%s1 + $0x28] sm:$0xf]
      %v182 = vld [vmem:[%s1 + $0x2c] sm:$0xf]
      %v183 = vld [vmem:[%s1 + $0x30] sm:$0xf]
      %v184 = vld [vmem:[%s1 + $0x34] sm:$0xf]
      %v185 = vld [vmem:[%s1 + $0x38] sm:$0xf]
      %v186 = vld [vmem:[%s1 + $0x3c] sm:$0xf]
      %v187 = vld [vmem:[%s1 + $0x40] sm:$0xf]
      %v188 = vld [vmem:[%s1 + $0x44] sm:$0xf]
      %v189 = vld [vmem:[%s1 + $0x48] sm:$0xf]
      %v190 = vld [vmem:[%s1 + $0x4c] sm:$0xf]
      %v191 = vld [vmem:[%s1 + $0x50] sm:$0xf]
      %v192 = vld [vmem:[%s1 + $0x54] sm:$0xf]
      %v193 = vld [vmem:[%s1 + $0x58] sm:$0xf]
      %v194 = vld [vmem:[%s1 + $0x5c] sm:$0xf]
      %v195 = vld [vmem:[%s164] sm:$0x66]
      %s196 = scalar_lea.vmem %s1, 96
      %v197 = vld [vmem:[%s196] sm:$0xf]
      %v198 = vld [vmem:[%s196 + $0x4] sm:$0xf]
      %v199 = vld [vmem:[%s196 + $0x8] sm:$0xf]
      %v200 = vld [vmem:[%s196 + $0xc] sm:$0xf]
      %v201 = vld [vmem:[%s196 + $0x10] sm:$0xf]
      %v202 = vld [vmem:[%s196 + $0x14] sm:$0xf]
      %v203 = vld [vmem:[%s196 + $0x18] sm:$0xf]
      %v204 = vld [vmem:[%s196 + $0x1c] sm:$0xf]
      %v205 = vld [vmem:[%s196 + $0x20] sm:$0xf]
      %v206 = vld [vmem:[%s196 + $0x24] sm:$0xf]
      %v207 = vld [vmem:[%s196 + $0x28] sm:$0xf]
      %v208 = vld [vmem:[%s196 + $0x2c] sm:$0xf]
      %v209 = vld [vmem:[%s196 + $0x30] sm:$0xf]
      %v210 = vld [vmem:[%s196 + $0x34] sm:$0xf]
      %v211 = vld [vmem:[%s196 + $0x38] sm:$0xf]
      %v212 = vld [vmem:[%s196 + $0x3c] sm:$0xf]
      %v213 = vld [vmem:[%s196 + $0x40] sm:$0xf]
      %v214 = vld [vmem:[%s196 + $0x44] sm:$0xf]
      %v215 = vld [vmem:[%s196 + $0x48] sm:$0xf]
      %v216 = vld [vmem:[%s196 + $0x4c] sm:$0xf]
      %v217 = vld [vmem:[%s196 + $0x50] sm:$0xf]
      %v218 = vld [vmem:[%s196 + $0x54] sm:$0xf]
      %v219 = vld [vmem:[%s196 + $0x58] sm:$0xf]
      %v220 = vld [vmem:[%s196 + $0x5c] sm:$0xf]
      %v222 = vunpack.c.l.b16 %v195
      %v223 = vunpack.c.h.b16 %v195
      %v224 = vpack.c.b16 %v222, %v222
      %v225 = vpack.c.b16 %v223, %v223
      %v226 = vrot.slane %v224, 1
      %v227 = vrot.slane %v225, 1
      %v253 = vunpack.c.l.b16 %v197
      %v254 = vunpack.c.l.b16 %v198
      %v255 = vunpack.c.l.b16 %v199
      %v256 = vunpack.c.l.b16 %v200
      %v257 = vunpack.c.l.b16 %v201
      %v258 = vunpack.c.l.b16 %v202
      %v259 = vunpack.c.l.b16 %v203
      %v260 = vunpack.c.l.b16 %v204
      %v261 = vunpack.c.l.b16 %v205
      %v262 = vunpack.c.l.b16 %v206
      %v263 = vunpack.c.l.b16 %v207
      %v264 = vunpack.c.l.b16 %v208
      %v265 = vunpack.c.l.b16 %v209
      %v266 = vunpack.c.l.b16 %v210
      %v267 = vunpack.c.l.b16 %v211
      %v268 = vunpack.c.l.b16 %v212
      %v269 = vunpack.c.l.b16 %v213
      %v270 = vunpack.c.l.b16 %v214
      %v271 = vunpack.c.l.b16 %v215
      %v272 = vunpack.c.l.b16 %v216
      %v273 = vunpack.c.l.b16 %v217
      %v274 = vunpack.c.l.b16 %v218
      %v275 = vunpack.c.l.b16 %v219
      %v276 = vunpack.c.l.b16 %v220
      %v277 = vpack.c.b16 %v254, %v253
      %v278 = vpack.c.b16 %v256, %v255
      %v279 = vpack.c.b16 %v258, %v257
      %v280 = vpack.c.b16 %v260, %v259
      %v281 = vpack.c.b16 %v262, %v261
      %v282 = vpack.c.b16 %v264, %v263
      %v283 = vpack.c.b16 %v266, %v265
      %v284 = vpack.c.b16 %v268, %v267
      %v285 = vpack.c.b16 %v270, %v269
      %v286 = vpack.c.b16 %v272, %v271
      %v287 = vpack.c.b16 %v274, %v273
      %v288 = vpack.c.b16 %v276, %v275
      %vm301 = vcmask 523264
      %v303 = vsel %vm301, %v227, 0
      %305 = vmatprep.subr.bf16.mxu0 0
      %306 = vmatpush1.bf16.msra.mxu0 %v284
      %307 = vmatprep.subr.bf16.mxu0 0
      %308 = vmatpush1.bf16.msra.mxu0 %v283
      %309 = vmatprep.subr.bf16.mxu0 0
      %310 = vmatpush1.bf16.msra.mxu0 %v282
      %311 = vmatprep.subr.bf16.mxu0 0
      %312 = vmatpush1.bf16.msra.mxu0 %v281
      %313 = vmatprep.subr.bf16.mxu0 0
      %314 = vmatpush1.bf16.msra.mxu0 %v280
      %315 = vmatprep.subr.bf16.mxu0 0
      %316 = vmatpush1.bf16.msra.mxu0 %v279
      %317 = vmatprep.subr.bf16.mxu0 0
      %318 = vmatpush1.bf16.msra.mxu0 %v278
      %319 = vmatprep.subr.bf16.mxu0 0
      %320 = vmatpush1.bf16.msra.mxu0 %v277
      %321 = vmatprep.subr.bf16.mxu0 0
      %322 = vmatpush2.bf16.msra.mxu0 0
      %323 = vmatprep.subr.bf16.mxu0 0
      %324 = vmatpush2.bf16.msra.mxu0 0
      %325 = vmatprep.subr.bf16.mxu0 0
      %326 = vmatpush2.bf16.msra.mxu0 0
      %327 = vmatprep.subr.bf16.mxu0 0
      %328 = vmatpush2.bf16.msra.mxu0 0
      %329 = vmatprep.subr.bf16.mxu0 0
      %330 = vmatpush2.bf16.msra.mxu0 %v288
      %331 = vmatprep.subr.bf16.mxu0 0
      %332 = vmatpush2.bf16.msra.mxu0 %v287
      %333 = vmatprep.subr.bf16.mxu0 0
      %334 = vmatpush2.bf16.msra.mxu0 %v286
      %335 = vmatprep.subr.bf16.mxu0 0
      %336 = vmatpush2.bf16.msra.mxu0 %v285
      %337 = vmatprep.mubr.bf16.mxu0 %v303
      %338 = vmatmul.mubr.bf16.gmra.mxu0 %v226
      %v339 = vpop.f32.mrf.mxu0
      %v340 = vadd.f32 0.0, %v339
      %v341 = vpop.f32.mrf.mxu0
      %v342 = vpop.f32.mrf.mxu0
      %v343 = vpop.f32.mrf.mxu0
      %344 = vdwg.mxu0
      %v346 = vunpack.c.l.b16 %v170
      %v347 = vunpack.c.h.b16 %v170
      %v348 = vpack.c.b16 %v346, %v346
      %v349 = vpack.c.b16 %v347, %v347
      %v375 = vunpack.c.l.b16 %v171
      %v376 = vunpack.c.l.b16 %v172
      %v377 = vunpack.c.l.b16 %v173
      %v378 = vunpack.c.l.b16 %v174
      %v379 = vunpack.c.l.b16 %v175
      %v380 = vunpack.c.l.b16 %v176
      %v381 = vunpack.c.l.b16 %v177
      %v382 = vunpack.c.l.b16 %v178
      %v383 = vunpack.c.l.b16 %v179
      %v384 = vunpack.c.l.b16 %v180
      %v385 = vunpack.c.l.b16 %v181
      %v386 = vunpack.c.l.b16 %v182
      %v387 = vunpack.c.l.b16 %v183
      %v388 = vunpack.c.l.b16 %v184
      %v389 = vunpack.c.l.b16 %v185
      %v390 = vunpack.c.l.b16 %v186
      %v391 = vunpack.c.l.b16 %v187
      %v392 = vunpack.c.l.b16 %v188
      %v393 = vunpack.c.l.b16 %v189
      %v394 = vunpack.c.l.b16 %v190
      %v395 = vunpack.c.l.b16 %v191
      %v396 = vunpack.c.l.b16 %v192
      %v397 = vunpack.c.l.b16 %v193
      %v398 = vunpack.c.l.b16 %v194
      %v399 = vpack.c.b16 %v376, %v375
      %v400 = vpack.c.b16 %v378, %v377
      %v401 = vpack.c.b16 %v380, %v379
      %v402 = vpack.c.b16 %v382, %v381
      %v403 = vpack.c.b16 %v384, %v383
      %v404 = vpack.c.b16 %v386, %v385
      %v405 = vpack.c.b16 %v388, %v387
      %v406 = vpack.c.b16 %v390, %v389
      %v407 = vpack.c.b16 %v392, %v391
      %v408 = vpack.c.b16 %v394, %v393
      %v409 = vpack.c.b16 %v396, %v395
      %v410 = vpack.c.b16 %v398, %v397
      %v424 = vsel %vm301, %v349, 0
      %426 = vmatprep.subr.bf16.mxu0 0
      %427 = vmatpush1.bf16.msra.mxu0 %v406
      %428 = vmatprep.subr.bf16.mxu0 0
      %429 = vmatpush1.bf16.msra.mxu0 %v405
      %430 = vmatprep.subr.bf16.mxu0 0
      %431 = vmatpush1.bf16.msra.mxu0 %v404
      %432 = vmatprep.subr.bf16.mxu0 0
      %433 = vmatpush1.bf16.msra.mxu0 %v403
      %434 = vmatprep.subr.bf16.mxu0 0
      %435 = vmatpush1.bf16.msra.mxu0 %v402
      %436 = vmatprep.subr.bf16.mxu0 0
      %437 = vmatpush1.bf16.msra.mxu0 %v401
      %438 = vmatprep.subr.bf16.mxu0 0
      %439 = vmatpush1.bf16.msra.mxu0 %v400
      %440 = vmatprep.subr.bf16.mxu0 0
      %441 = vmatpush1.bf16.msra.mxu0 %v399
      %442 = vmatprep.subr.bf16.mxu0 0
      %443 = vmatpush2.bf16.msra.mxu0 0
      %444 = vmatprep.subr.bf16.mxu0 0
      %445 = vmatpush2.bf16.msra.mxu0 0
      %446 = vmatprep.subr.bf16.mxu0 0
      %447 = vmatpush2.bf16.msra.mxu0 0
      %448 = vmatprep.subr.bf16.mxu0 0
      %449 = vmatpush2.bf16.msra.mxu0 0
      %450 = vmatprep.subr.bf16.mxu0 0
      %451 = vmatpush2.bf16.msra.mxu0 %v410
      %452 = vmatprep.subr.bf16.mxu0 0
      %453 = vmatpush2.bf16.msra.mxu0 %v409
      %454 = vmatprep.subr.bf16.mxu0 0
      %455 = vmatpush2.bf16.msra.mxu0 %v408
      %456 = vmatprep.subr.bf16.mxu0 0
      %457 = vmatpush2.bf16.msra.mxu0 %v407
      %458 = vmatprep.mubr.bf16.mxu0 %v424
      %459 = vmatmul.mubr.bf16.gmra.mxu0 %v348
      %v460 = vpop.f32.mrf.mxu0
      %v461 = vadd.f32 %v340, %v460
      %v462 = vpop.f32.mrf.mxu0
      %v463 = vpop.f32.mrf.mxu0
      %v464 = vpop.f32.mrf.mxu0
      %465 = vdwg.mxu0
      %v466 = vld [vmem:[%s164] sm:$0xcc]
      %s467 = scalar_lea.vmem %s1, 192
      %v468 = vld [vmem:[%s467] sm:$0xf]
      %v469 = vld [vmem:[%s467 + $0x4] sm:$0xf]
      %v470 = vld [vmem:[%s467 + $0x8] sm:$0xf]
      %v471 = vld [vmem:[%s467 + $0xc] sm:$0xf]
      %v472 = vld [vmem:[%s467 + $0x10] sm:$0xf]
      %v473 = vld [vmem:[%s467 + $0x14] sm:$0xf]
      %v474 = vld [vmem:[%s467 + $0x18] sm:$0xf]
      %v475 = vld [vmem:[%s467 + $0x1c] sm:$0xf]
      %v476 = vld [vmem:[%s467 + $0x20] sm:$0xf]
      %v477 = vld [vmem:[%s467 + $0x24] sm:$0xf]
      %v478 = vld [vmem:[%s467 + $0x28] sm:$0xf]
      %v479 = vld [vmem:[%s467 + $0x2c] sm:$0xf]
      %v480 = vld [vmem:[%s467 + $0x30] sm:$0xf]
      %v481 = vld [vmem:[%s467 + $0x34] sm:$0xf]
      %v482 = vld [vmem:[%s467 + $0x38] sm:$0xf]
      %v483 = vld [vmem:[%s467 + $0x3c] sm:$0xf]
      %v484 = vld [vmem:[%s467 + $0x40] sm:$0xf]
      %v485 = vld [vmem:[%s467 + $0x44] sm:$0xf]
      %v486 = vld [vmem:[%s467 + $0x48] sm:$0xf]
      %v487 = vld [vmem:[%s467 + $0x4c] sm:$0xf]
      %v488 = vld [vmem:[%s467 + $0x50] sm:$0xf]
      %v489 = vld [vmem:[%s467 + $0x54] sm:$0xf]
      %v490 = vld [vmem:[%s467 + $0x58] sm:$0xf]
      %v491 = vld [vmem:[%s467 + $0x5c] sm:$0xf]
      %v493 = vunpack.c.l.b16 %v466
      %v494 = vunpack.c.h.b16 %v466
      %v495 = vpack.c.b16 %v493, %v493
      %v496 = vpack.c.b16 %v494, %v494
      %v497 = vrot.slane %v495, 2
      %v498 = vrot.slane %v496, 2
      %v524 = vunpack.c.l.b16 %v468
      %v525 = vunpack.c.l.b16 %v469
      %v526 = vunpack.c.l.b16 %v470
      %v527 = vunpack.c.l.b16 %v471
      %v528 = vunpack.c.l.b16 %v472
      %v529 = vunpack.c.l.b16 %v473
      %v530 = vunpack.c.l.b16 %v474
      %v531 = vunpack.c.l.b16 %v475
      %v532 = vunpack.c.l.b16 %v476
      %v533 = vunpack.c.l.b16 %v477
      %v534 = vunpack.c.l.b16 %v478
      %v535 = vunpack.c.l.b16 %v479
      %v536 = vunpack.c.l.b16 %v480
      %v537 = vunpack.c.l.b16 %v481
      %v538 = vunpack.c.l.b16 %v482
      %v539 = vunpack.c.l.b16 %v483
      %v540 = vunpack.c.l.b16 %v484
      %v541 = vunpack.c.l.b16 %v485
      %v542 = vunpack.c.l.b16 %v486
      %v543 = vunpack.c.l.b16 %v487
      %v544 = vunpack.c.l.b16 %v488
      %v545 = vunpack.c.l.b16 %v489
      %v546 = vunpack.c.l.b16 %v490
      %v547 = vunpack.c.l.b16 %v491
      %v548 = vpack.c.b16 %v525, %v524
      %v549 = vpack.c.b16 %v527, %v526
      %v550 = vpack.c.b16 %v529, %v528
      %v551 = vpack.c.b16 %v531, %v530
      %v552 = vpack.c.b16 %v533, %v532
      %v553 = vpack.c.b16 %v535, %v534
      %v554 = vpack.c.b16 %v537, %v536
      %v555 = vpack.c.b16 %v539, %v538
      %v556 = vpack.c.b16 %v541, %v540
      %v557 = vpack.c.b16 %v543, %v542
      %v558 = vpack.c.b16 %v545, %v544
      %v559 = vpack.c.b16 %v547, %v546
      %v573 = vsel %vm301, %v498, 0
      %575 = vmatprep.subr.bf16.mxu0 0
      %576 = vmatpush1.bf16.msra.mxu0 %v555
      %577 = vmatprep.subr.bf16.mxu0 0
      %578 = vmatpush1.bf16.msra.mxu0 %v554
      %579 = vmatprep.subr.bf16.mxu0 0
      %580 = vmatpush1.bf16.msra.mxu0 %v553
      %581 = vmatprep.subr.bf16.mxu0 0
      %582 = vmatpush1.bf16.msra.mxu0 %v552
      %583 = vmatprep.subr.bf16.mxu0 0
      %584 = vmatpush1.bf16.msra.mxu0 %v551
      %585 = vmatprep.subr.bf16.mxu0 0
      %586 = vmatpush1.bf16.msra.mxu0 %v550
      %587 = vmatprep.subr.bf16.mxu0 0
      %588 = vmatpush1.bf16.msra.mxu0 %v549
      %589 = vmatprep.subr.bf16.mxu0 0
      %590 = vmatpush1.bf16.msra.mxu0 %v548
      %591 = vmatprep.subr.bf16.mxu0 0
      %592 = vmatpush2.bf16.msra.mxu0 0
      %593 = vmatprep.subr.bf16.mxu0 0
      %594 = vmatpush2.bf16.msra.mxu0 0
      %595 = vmatprep.subr.bf16.mxu0 0
      %596 = vmatpush2.bf16.msra.mxu0 0
      %597 = vmatprep.subr.bf16.mxu0 0
      %598 = vmatpush2.bf16.msra.mxu0 0
      %599 = vmatprep.subr.bf16.mxu0 0
      %600 = vmatpush2.bf16.msra.mxu0 %v559
      %601 = vmatprep.subr.bf16.mxu0 0
      %602 = vmatpush2.bf16.msra.mxu0 %v558
      %603 = vmatprep.subr.bf16.mxu0 0
      %604 = vmatpush2.bf16.msra.mxu0 %v557
      %605 = vmatprep.subr.bf16.mxu0 0
      %606 = vmatpush2.bf16.msra.mxu0 %v556
      %607 = vmatprep.mubr.bf16.mxu0 %v573
      %608 = vmatmul.mubr.bf16.gmra.mxu0 %v497
      %v609 = vpop.f32.mrf.mxu0
      %v610 = vadd.f32 0.0, %v609
      %v611 = vpop.f32.mrf.mxu0
      %v612 = vpop.f32.mrf.mxu0
      %v613 = vpop.f32.mrf.mxu0
      %614 = vdwg.mxu0
      %v615 = vadd.f32 %v461, %v610
      %v616 = vld [vmem:[%s2] sm:$0x1]
      %v618 = vlaneseq
      %v619 = vshrl.u32 %v618, 7
      %v620 = vsub.s32 0, %v619
      %v621 = vrot.slane %v616, %v620
      %v623 = vadd.f32 %v615, %v621
      %v624 = vmax.f32 %v623, 0.0
      %vm625 = vcmask 519168
      %626 = vst.msk [vmem:[%s168] sm:$0xf] %vm625, %v624
      %p627 = scmp.lt.s32.totalorder %s14, 1
      %s628 = scalar_select %p627, %s14, 1
      %s629 = smul.addr %s628, 4
      %s630 = scalar_lea.vmem %s3, %s629
      // Predicated region
      $region33: #{vgg_forward.24} parent=31 // pred_check
        %p631 = pneg %p100
      $region34: #{vgg_forward.24} parent=31 // pred_check_branch
        %633 = sbr.rel (%p631) target = $region36
      $region35: #{vgg_forward.24} parent=31 // pred_region
        _
      $region36: #{vgg_forward.24} parent=31 // pred_fallthru
        _
    $region32: #{vgg_forward.24} parent=5 // pred_fallthru
      _
    %p634 = scmp.le.s32.totalorder 2, %s9
    // Predicated region
    $region37: #{vgg_forward.24} parent=5 // pred_check
      %p635 = pneg %p634
    $region38: #{vgg_forward.24} parent=5 // pred_check_branch
      %637 = sbr.rel (%p635) target = $region40
    $region39: #{vgg_forward.24} parent=5 // pred_region
      %s638 = ssub.s32 %s9, 2
      // Predicated region
      $region41: #{vgg_forward.24} parent=39 // pred_check
        %p639 = pneg %p106
      $region42: #{vgg_forward.24} parent=39 // pred_check_branch
        %641 = sbr.rel (%p639) target = $region44
      $region43: #{vgg_forward.24} parent=39 // pred_region
        %p642 = scmp.lt.s32.totalorder %s15, 1
        %s643 = scalar_select %p642, %s15, 1
        %s644 = smul.addr %s643, 4
        %s645 = scalar_lea.vmem %s3, %s644
      $region44: #{vgg_forward.24} parent=39 // pred_fallthru
        _
    $region40: #{vgg_forward.24} parent=5 // pred_fallthru
      _
  $region6: #{vgg_forward.24} parent=0 // loop_footer
    %s13 = sadd.s32 1, %s9
  $region7: #{vgg_forward.24} parent=0 // loop_footer_branch
    %8 = sbr.rel target = $region3
  $region8: #{vgg_forward.24} parent=0 // loop_exit
    _

// kernel: vgg_forward.25
$region0: #{vgg_forward.25}
  #allocation0 [shape = 'u32[]', space=smem, size = 0x4, offset = 0x4, fixed_abs, tag = 'smem constant byte address 0x4 - core index']
  #allocation1 [shape = 'u32[144,128]{1,0:T(1,128)}', space=vmem, size = 0x12000, scoped, tag = 'internal scratch']
  %s0 = inlined_call_operand.vmem [shape: bf16[2,8,192], index: 0, kind: input, shape index: {}]
  %s1 = inlined_call_operand.vmem [shape: bf16[3,192,64], index: 1, kind: input, shape index: {}]
  %s2 = inlined_call_operand.vmem [shape: f32[1,64], index: 2, kind: input, shape index: {}]
  %s3 = inlined_call_operand.hbm [shape: f32[2,4,64], index: 3, kind: output, shape index: {}]
  %s4 = sld [smem:[#allocation0]]
  $region45: #{vgg_forward.25} parent=0
    _
  %s6 = ssub.s32 1, %s4
  %s7 = scalar_select 0, %s6, %s4
  $region1: #{vgg_forward.25} parent=0
    #allocation2 [shape = 'u8[4096]{0}', space=vmem, size = 0x1000, scoped, tag = 'output window, operand 0']
    #allocation3 [shape = 's32[2]{0}', space=sflag, size = 0x8, scoped, tag = 'scoped memory for vgg_forward.25']
    %8 = vsyncpa [#allocation3], 0
    %s9 = scalar_lea.sflag [#allocation3], 1
    %10 = vsyncpa %s9, 0
    loop: start=0, step=1, limit=4
    $region2: #{vgg_forward.25} parent=1 // loop_pre_header
      _
    $region3: #{vgg_forward.25} parent=1 // loop_header
      %s12 = sphi 0, %s16
      %p13 = scmp.ge.s32.totalorder %s12, 4
      %s22 = sphi 0, %s24
      %s25 = sphi 0, %s22
      %s26 = sphi 0, %s25
      %s42 = sphi 0, %s26
      %s46 = sphi 0, %s46
      %s48 = sphi 0, %s46
      %s49 = sphi 0, %s48
      %s63 = sphi 0, %s49
      %s67 = sphi 0, %s67
      %s69 = sphi 0, %s67
      %s70 = sphi 0, %s69
      %s84 = sphi 0, %s70
      %s90 = sphi 0, %s92
      %s93 = sphi 0, %s90
      %s94 = sphi 0, %s93
      %s110 = sphi 0, %s94
    $region4: #{vgg_forward.25} parent=1 // loop_header_branch
      %15 = sbr.rel (%p13) target = $region8
    $region5: #{vgg_forward.25} parent=1 // loop_body
      %s17 = ssub.s32 %s12, 1
      %s18 = ssub.s32 %s12, 2
      %s19 = sadd.s32 %s12, 1
      %s20 = ssub.s32 %s12, %s19
      %p21 = scmp.eq.s32.totalorder %s20, 0
      %s23 = sadd.s32 %s22, 1
      %s24 = scalar_select %p21, %s22, %s23
      %p27 = pneg %p21
      %p28 = scmp.eq.s32.totalorder %s12, 1
      %p29 = por %p27, %p28
      %p30 = scmp.ne.s32.totalorder %s22, %s25
      %p31 = scmp.eq.s32.totalorder %s12, 0
      %p32 = por %p30, %p31
      %p33 = scmp.ne.s32.totalorder %s22, %s25
      %p34 = scmp.eq.s32.totalorder %s17, 1
      %p35 = por %p33, %p34
      %p36 = scmp.ne.s32.totalorder %s25, %s26
      %p37 = scmp.eq.s32.totalorder %s17, 0
      %p38 = por %p36, %p37
      %p39 = scmp.ne.s32.totalorder %s25, %s26
      %p40 = scmp.eq.s32.totalorder %s18, 1
      %p41 = por %p39, %p40
      %p43 = scmp.ne.s32.totalorder %s26, %s42
      %p44 = scmp.eq.s32.totalorder %s18, 0
      %p45 = por %p43, %p44
      %s47 = sadd.s32 %s46, 1
      %p50 = scmp.eq.s32.totalorder %s12, 1
      %p51 = scmp.ne.s32.totalorder %s46, %s48
      %p52 = scmp.eq.s32.totalorder %s12, 0
      %p53 = por %p51, %p52
      %p54 = scmp.ne.s32.totalorder %s46, %s48
      %p55 = scmp.eq.s32.totalorder %s17, 1
      %p56 = por %p54, %p55
      %p57 = scmp.ne.s32.totalorder %s48, %s49
      %p58 = scmp.eq.s32.totalorder %s17, 0
      %p59 = por %p57, %p58
      %p60 = scmp.ne.s32.totalorder %s48, %s49
      %p61 = scmp.eq.s32.totalorder %s18, 1
      %p62 = por %p60, %p61
      %p64 = scmp.ne.s32.totalorder %s49, %s63
      %p65 = scmp.eq.s32.totalorder %s18, 0
      %p66 = por %p64, %p65
      %s68 = sadd.s32 %s67, 1
      %p71 = scmp.eq.s32.totalorder %s12, 1
      %p72 = scmp.ne.s32.totalorder %s67, %s69
      %p73 = scmp.eq.s32.totalorder %s12, 0
      %p74 = por %p72, %p73
      %p75 = scmp.ne.s32.totalorder %s67, %s69
      %p76 = scmp.eq.s32.totalorder %s17, 1
      %p77 = por %p75, %p76
      %p78 = scmp.ne.s32.totalorder %s69, %s70
      %p79 = scmp.eq.s32.totalorder %s17, 0
      %p80 = por %p78, %p79
      %p81 = scmp.ne.s32.totalorder %s69, %s70
      %p82 = scmp.eq.s32.totalorder %s18, 1
      %p83 = por %p81, %p82
      %p85 = scmp.ne.s32.totalorder %s70, %s84
      %p86 = scmp.eq.s32.totalorder %s18, 0
      %p87 = por %p85, %p86
      %s88 = ssub.s32 %s12, %s19
      %p89 = scmp.eq.s32.totalorder %s88, 0
      %s91 = sadd.s32 %s90, 1
      %s92 = scalar_select %p89, %s90, %s91
      %p95 = pneg %p89
      %p96 = scmp.eq.s32.totalorder %s12, 1
      %p97 = por %p95, %p96
      %p98 = scmp.ne.s32.totalorder %s90, %s93
      %p99 = scmp.eq.s32.totalorder %s12, 0
      %p100 = por %p98, %p99
      %p101 = scmp.ne.s32.totalorder %s90, %s93
      %p102 = scmp.eq.s32.totalorder %s17, 1
      %p103 = por %p101, %p102
      %p104 = scmp.ne.s32.totalorder %s93, %s94
      %p105 = scmp.eq.s32.totalorder %s17, 0
      %p106 = por %p104, %p105
      %p107 = scmp.ne.s32.totalorder %s93, %s94
      %p108 = scmp.eq.s32.totalorder %s18, 1
      %p109 = por %p107, %p108
      %p111 = scmp.ne.s32.totalorder %s94, %s110
      %p112 = scmp.eq.s32.totalorder %s18, 0
      %p113 = por %p111, %p112
      %p114 = scmp.le.s32.totalorder 1, %s12
      %p115 = scmp.lt.s32.totalorder %s12, 3
      %p116 = pnand %p114, %p115
      %p117 = pneg %p116
      // Predicated region
      $region9: #{vgg_forward.25} parent=5 // pred_check
        _
      $region10: #{vgg_forward.25} parent=5 // pred_check_branch
        %119 = sbr.rel (%p116) target = $region12
      $region11: #{vgg_forward.25} parent=5 // pred_region
        %s120 = ssub.s32 %s12, 1
        // Predicated region
        $region13: #{vgg_forward.25} parent=11 // pred_check
          %p121 = pneg %p59
        $region14: #{vgg_forward.25} parent=11 // pred_check_branch
          %123 = sbr.rel (%p121) target = $region16
        $region15: #{vgg_forward.25} parent=11 // pred_region
          _
        $region16: #{vgg_forward.25} parent=11 // pred_fallthru
          _
        // Predicated region
        $region17: #{vgg_forward.25} parent=11 // pred_check
          %p124 = pneg %p80
        $region18: #{vgg_forward.25} parent=11 // pred_check_branch
          %126 = sbr.rel (%p124) target = $region20
        $region19: #{vgg_forward.25} parent=11 // pred_region
          _
        $region20: #{vgg_forward.25} parent=11 // pred_fallthru
          _
      $region12: #{vgg_forward.25} parent=5 // pred_fallthru
        _
      %p127 = scmp.lt.s32.totalorder %s12, 2
      // Predicated region
      $region21: #{vgg_forward.25} parent=5 // pred_check
        %p128 = pneg %p127
      $region22: #{vgg_forward.25} parent=5 // pred_check_branch
        %130 = sbr.rel (%p128) target = $region24
      $region23: #{vgg_forward.25} parent=5 // pred_region
        // Predicated region
        $region25: #{vgg_forward.25} parent=23 // pred_check
          %p131 = pneg %p32
        $region26: #{vgg_forward.25} parent=23 // pred_check_branch
          %133 = sbr.rel (%p131) target = $region28
        $region27: #{vgg_forward.25} parent=23 // pred_region
          %p134 = scmp.lt.s32.totalorder %s12, 1
          %s135 = scalar_select %p134, %s12, 1
          %s136 = smul.addr %s135, 2
          %s137 = smul.addr %s136, 4
          %s138 = scalar_lea.vmem %s0, %s137
        $region28: #{vgg_forward.25} parent=23 // pred_fallthru
          _
      $region24: #{vgg_forward.25} parent=5 // pred_fallthru
        _
      %p139 = scmp.le.s32.totalorder 1, %s12
      %p140 = scmp.lt.s32.totalorder %s12, 3
      %p141 = pnand %p139, %p140
      %p142 = pneg %p141
      // Predicated region
      $region29: #{vgg_forward.25} parent=5 // pred_check
        _
      $region30: #{vgg_forward.25} parent=5 // pred_check_branch
        %144 = sbr.rel (%p141) target = $region32
      $region31: #{vgg_forward.25} parent=5 // pred_region
        %s145 = ssub.s32 %s12, 1
        %p146 = scmp.lt.s32.totalorder %s17, 1
        %s147 = scalar_select %p146, %s17, 1
        %s148 = smul.addr %s147, 2
        %s149 = smul.addr %s148, 4
        %s150 = scalar_lea.vmem %s0, %s149
        %p151 = pneg %p38
        %p152 = pneg %p35
        %p153 = pneg %p59
        %p154 = pneg %p56
        %p155 = pneg %p80
        %p156 = pneg %p77
        %p157 = pneg %p106
        %p158 = pneg %p103
        %s159 = sand.u32 %s93, 1
        %s160 = scalar_lea.sflag [#allocation3], %s159
        %s161 = sand.u32 %s93, 1
        %s162 = smul.addr %s161, 4
        %s163 = scalar_lea.vmem [#allocation2], %s162
        %p164 = scmp.lt.s32.totalorder %s17, 1
        %s165 = scalar_select %p164, %s17, 1
        %s166 = smul.addr %s165, 2
        %s167 = smul.addr %s166, 4
        %s168 = scalar_lea.vmem %s0, %s167
        %v170 = vld [vmem:[%s168] sm:$0x33]
        %v171 = vld [vmem:[%s1] sm:$0xf]
        %v172 = vld [vmem:[%s1 + $0x4] sm:$0xf]
        %v173 = vld [vmem:[%s1 + $0x8] sm:$0xf]
        %v174 = vld [vmem:[%s1 + $0xc] sm:$0xf]
        %v175 = vld [vmem:[%s1 + $0x10] sm:$0xf]
        %v176 = vld [vmem:[%s1 + $0x14] sm:$0xf]
        %v177 = vld [vmem:[%s1 + $0x18] sm:$0xf]
        %v178 = vld [vmem:[%s1 + $0x1c] sm:$0xf]
        %v179 = vld [vmem:[%s1 + $0x20] sm:$0xf]
        %v180 = vld [vmem:[%s1 + $0x24] sm:$0xf]
        %v181 = vld [vmem:[%s1 + $0x28] sm:$0xf]
        %v182 = vld [vmem:[%s1 + $0x2c] sm:$0xf]
        %v183 = vld [vmem:[%s1 + $0x30] sm:$0xf]
        %v184 = vld [vmem:[%s1 + $0x34] sm:$0xf]
        %v185 = vld [vmem:[%s1 + $0x38] sm:$0xf]
        %v186 = vld [vmem:[%s1 + $0x3c] sm:$0xf]
        %v187 = vld [vmem:[%s1 + $0x40] sm:$0xf]
        %v188 = vld [vmem:[%s1 + $0x44] sm:$0xf]
        %v189 = vld [vmem:[%s1 + $0x48] sm:$0xf]
        %v190 = vld [vmem:[%s1 + $0x4c] sm:$0xf]
        %v191 = vld [vmem:[%s1 + $0x50] sm:$0xf]
        %v192 = vld [vmem:[%s1 + $0x54] sm:$0xf]
        %v193 = vld [vmem:[%s1 + $0x58] sm:$0xf]
        %v194 = vld [vmem:[%s1 + $0x5c] sm:$0xf]
        %v195 = vld [vmem:[%s168] sm:$0x66]
        %s196 = scalar_lea.vmem %s1, 96
        %v197 = vld [vmem:[%s196] sm:$0xf]
        %v198 = vld [vmem:[%s196 + $0x4] sm:$0xf]
        %v199 = vld [vmem:[%s196 + $0x8] sm:$0xf]
        %v200 = vld [vmem:[%s196 + $0xc] sm:$0xf]
        %v201 = vld [vmem:[%s196 + $0x10] sm:$0xf]
        %v202 = vld [vmem:[%s196 + $0x14] sm:$0xf]
        %v203 = vld [vmem:[%s196 + $0x18] sm:$0xf]
        %v204 = vld [vmem:[%s196 + $0x1c] sm:$0xf]
        %v205 = vld [vmem:[%s196 + $0x20] sm:$0xf]
        %v206 = vld [vmem:[%s196 + $0x24] sm:$0xf]
        %v207 = vld [vmem:[%s196 + $0x28] sm:$0xf]
        %v208 = vld [vmem:[%s196 + $0x2c] sm:$0xf]
        %v209 = vld [vmem:[%s196 + $0x30] sm:$0xf]
        %v210 = vld [vmem:[%s196 + $0x34] sm:$0xf]
        %v211 = vld [vmem:[%s196 + $0x38] sm:$0xf]
        %v212 = vld [vmem:[%s196 + $0x3c] sm:$0xf]
        %v213 = vld [vmem:[%s196 + $0x40] sm:$0xf]
        %v214 = vld [vmem:[%s196 + $0x44] sm:$0xf]
        %v215 = vld [vmem:[%s196 + $0x48] sm:$0xf]
        %v216 = vld [vmem:[%s196 + $0x4c] sm:$0xf]
        %v217 = vld [vmem:[%s196 + $0x50] sm:$0xf]
        %v218 = vld [vmem:[%s196 + $0x54] sm:$0xf]
        %v219 = vld [vmem:[%s196 + $0x58] sm:$0xf]
        %v220 = vld [vmem:[%s196 + $0x5c] sm:$0xf]
        %v222 = vunpack.c.l.b16 %v195
        %v223 = vunpack.c.h.b16 %v195
        %v224 = vpack.c.b16 %v222, %v222
        %v225 = vpack.c.b16 %v223, %v223
        %v226 = vrot.slane %v224, 1
        %v227 = vrot.slane %v225, 1
        %v253 = vunpack.c.l.b16 %v197
        %v254 = vunpack.c.l.b16 %v198
        %v255 = vunpack.c.l.b16 %v199
        %v256 = vunpack.c.l.b16 %v200
        %v257 = vunpack.c.l.b16 %v201
        %v258 = vunpack.c.l.b16 %v202
        %v259 = vunpack.c.l.b16 %v203
        %v260 = vunpack.c.l.b16 %v204
        %v261 = vunpack.c.l.b16 %v205
        %v262 = vunpack.c.l.b16 %v206
        %v263 = vunpack.c.l.b16 %v207
        %v264 = vunpack.c.l.b16 %v208
        %v265 = vunpack.c.l.b16 %v209
        %v266 = vunpack.c.l.b16 %v210
        %v267 = vunpack.c.l.b16 %v211
        %v268 = vunpack.c.l.b16 %v212
        %v269 = vunpack.c.l.b16 %v213
        %v270 = vunpack.c.l.b16 %v214
        %v271 = vunpack.c.l.b16 %v215
        %v272 = vunpack.c.l.b16 %v216
        %v273 = vunpack.c.l.b16 %v217
        %v274 = vunpack.c.l.b16 %v218
        %v275 = vunpack.c.l.b16 %v219
        %v276 = vunpack.c.l.b16 %v220
        %v277 = vpack.c.b16 %v254, %v253
        %v278 = vpack.c.b16 %v256, %v255
        %v279 = vpack.c.b16 %v258, %v257
        %v280 = vpack.c.b16 %v260, %v259
        %v281 = vpack.c.b16 %v262, %v261
        %v282 = vpack.c.b16 %v264, %v263
        %v283 = vpack.c.b16 %v266, %v265
        %v284 = vpack.c.b16 %v268, %v267
        %v285 = vpack.c.b16 %v270, %v269
        %v286 = vpack.c.b16 %v272, %v271
        %v287 = vpack.c.b16 %v274, %v273
        %v288 = vpack.c.b16 %v276, %v275
        %vm301 = vcmask 523264
        %v303 = vsel %vm301, %v227, 0
        %305 = vmatprep.subr.bf16.mxu0 0
        %306 = vmatpush1.bf16.msra.mxu0 %v284
        %307 = vmatprep.subr.bf16.mxu0 0
        %308 = vmatpush1.bf16.msra.mxu0 %v283
        %309 = vmatprep.subr.bf16.mxu0 0
        %310 = vmatpush1.bf16.msra.mxu0 %v282
        %311 = vmatprep.subr.bf16.mxu0 0
        %312 = vmatpush1.bf16.msra.mxu0 %v281
        %313 = vmatprep.subr.bf16.mxu0 0
        %314 = vmatpush1.bf16.msra.mxu0 %v280
        %315 = vmatprep.subr.bf16.mxu0 0
        %316 = vmatpush1.bf16.msra.mxu0 %v279
        %317 = vmatprep.subr.bf16.mxu0 0
        %318 = vmatpush1.bf16.msra.mxu0 %v278
        %319 = vmatprep.subr.bf16.mxu0 0
        %320 = vmatpush1.bf16.msra.mxu0 %v277
        %321 = vmatprep.subr.bf16.mxu0 0
        %322 = vmatpush2.bf16.msra.mxu0 0
        %323 = vmatprep.subr.bf16.mxu0 0
        %324 = vmatpush2.bf16.msra.mxu0 0
        %325 = vmatprep.subr.bf16.mxu0 0
        %326 = vmatpush2.bf16.msra.mxu0 0
        %327 = vmatprep.subr.bf16.mxu0 0
        %328 = vmatpush2.bf16.msra.mxu0 0
        %329 = vmatprep.subr.bf16.mxu0 0
        %330 = vmatpush2.bf16.msra.mxu0 %v288
        %331 = vmatprep.subr.bf16.mxu0 0
        %332 = vmatpush2.bf16.msra.mxu0 %v287
        %333 = vmatprep.subr.bf16.mxu0 0
        %334 = vmatpush2.bf16.msra.mxu0 %v286
        %335 = vmatprep.subr.bf16.mxu0 0
        %336 = vmatpush2.bf16.msra.mxu0 %v285
        %337 = vmatprep.mubr.bf16.mxu0 %v303
        %338 = vmatmul.mubr.bf16.gmra.mxu0 %v226
        %v339 = vpop.f32.mrf.mxu0
        %v340 = vadd.f32 0.0, %v339
        %v341 = vpop.f32.mrf.mxu0
        %v342 = vpop.f32.mrf.mxu0
        %v343 = vpop.f32.mrf.mxu0
        %344 = vdwg.mxu0
        %v346 = vunpack.c.l.b16 %v170
        %v347 = vunpack.c.h.b16 %v170
        %v348 = vpack.c.b16 %v346, %v346
        %v349 = vpack.c.b16 %v347, %v347
        %v375 = vunpack.c.l.b16 %v171
        %v376 = vunpack.c.l.b16 %v172
        %v377 = vunpack.c.l.b16 %v173
        %v378 = vunpack.c.l.b16 %v174
        %v379 = vunpack.c.l.b16 %v175
        %v380 = vunpack.c.l.b16 %v176
        %v381 = vunpack.c.l.b16 %v177
        %v382 = vunpack.c.l.b16 %v178
        %v383 = vunpack.c.l.b16 %v179
        %v384 = vunpack.c.l.b16 %v180
        %v385 = vunpack.c.l.b16 %v181
        %v386 = vunpack.c.l.b16 %v182
        %v387 = vunpack.c.l.b16 %v183
        %v388 = vunpack.c.l.b16 %v184
        %v389 = vunpack.c.l.b16 %v185
        %v390 = vunpack.c.l.b16 %v186
        %v391 = vunpack.c.l.b16 %v187
        %v392 = vunpack.c.l.b16 %v188
        %v393 = vunpack.c.l.b16 %v189
        %v394 = vunpack.c.l.b16 %v190
        %v395 = vunpack.c.l.b16 %v191
        %v396 = vunpack.c.l.b16 %v192
        %v397 = vunpack.c.l.b16 %v193
        %v398 = vunpack.c.l.b16 %v194
        %v399 = vpack.c.b16 %v376, %v375
        %v400 = vpack.c.b16 %v378, %v377
        %v401 = vpack.c.b16 %v380, %v379
        %v402 = vpack.c.b16 %v382, %v381
        %v403 = vpack.c.b16 %v384, %v383
        %v404 = vpack.c.b16 %v386, %v385
        %v405 = vpack.c.b16 %v388, %v387
        %v406 = vpack.c.b16 %v390, %v389
        %v407 = vpack.c.b16 %v392, %v391
        %v408 = vpack.c.b16 %v394, %v393
        %v409 = vpack.c.b16 %v396, %v395
        %v410 = vpack.c.b16 %v398, %v397
        %v424 = vsel %vm301, %v349, 0
        %426 = vmatprep.subr.bf16.mxu0 0
        %427 = vmatpush1.bf16.msra.mxu0 %v406
        %428 = vmatprep.subr.bf16.mxu0 0
        %429 = vmatpush1.bf16.msra.mxu0 %v405
        %430 = vmatprep.subr.bf16.mxu0 0
        %431 = vmatpush1.bf16.msra.mxu0 %v404
        %432 = vmatprep.subr.bf16.mxu0 0
        %433 = vmatpush1.bf16.msra.mxu0 %v403
        %434 = vmatprep.subr.bf16.mxu0 0
        %435 = vmatpush1.bf16.msra.mxu0 %v402
        %436 = vmatprep.subr.bf16.mxu0 0
        %437 = vmatpush1.bf16.msra.mxu0 %v401
        %438 = vmatprep.subr.bf16.mxu0 0
        %439 = vmatpush1.bf16.msra.mxu0 %v400
        %440 = vmatprep.subr.bf16.mxu0 0
        %441 = vmatpush1.bf16.msra.mxu0 %v399
        %442 = vmatprep.subr.bf16.mxu0 0
        %443 = vmatpush2.bf16.msra.mxu0 0
        %444 = vmatprep.subr.bf16.mxu0 0
        %445 = vmatpush2.bf16.msra.mxu0 0
        %446 = vmatprep.subr.bf16.mxu0 0
        %447 = vmatpush2.bf16.msra.mxu0 0
        %448 = vmatprep.subr.bf16.mxu0 0
        %449 = vmatpush2.bf16.msra.mxu0 0
        %450 = vmatprep.subr.bf16.mxu0 0
        %451 = vmatpush2.bf16.msra.mxu0 %v410
        %452 = vmatprep.subr.bf16.mxu0 0
        %453 = vmatpush2.bf16.msra.mxu0 %v409
        %454 = vmatprep.subr.bf16.mxu0 0
        %455 = vmatpush2.bf16.msra.mxu0 %v408
        %456 = vmatprep.subr.bf16.mxu0 0
        %457 = vmatpush2.bf16.msra.mxu0 %v407
        %458 = vmatprep.mubr.bf16.mxu0 %v424
        %459 = vmatmul.mubr.bf16.gmra.mxu0 %v348
        %v460 = vpop.f32.mrf.mxu0
        %v461 = vadd.f32 %v340, %v460
        %v462 = vpop.f32.mrf.mxu0
        %v463 = vpop.f32.mrf.mxu0
        %v464 = vpop.f32.mrf.mxu0
        %465 = vdwg.mxu0
        %v466 = vld [vmem:[%s168] sm:$0xcc]
        %s467 = scalar_lea.vmem %s1, 192
        %v468 = vld [vmem:[%s467] sm:$0xf]
        %v469 = vld [vmem:[%s467 + $0x4] sm:$0xf]
        %v470 = vld [vmem:[%s467 + $0x8] sm:$0xf]
        %v471 = vld [vmem:[%s467 + $0xc] sm:$0xf]
        %v472 = vld [vmem:[%s467 + $0x10] sm:$0xf]
        %v473 = vld [vmem:[%s467 + $0x14] sm:$0xf]
        %v474 = vld [vmem:[%s467 + $0x18] sm:$0xf]
        %v475 = vld [vmem:[%s467 + $0x1c] sm:$0xf]
        %v476 = vld [vmem:[%s467 + $0x20] sm:$0xf]
        %v477 = vld [vmem:[%s467 + $0x24] sm:$0xf]
        %v478 = vld [vmem:[%s467 + $0x28] sm:$0xf]
        %v479 = vld [vmem:[%s467 + $0x2c] sm:$0xf]
        %v480 = vld [vmem:[%s467 + $0x30] sm:$0xf]
        %v481 = vld [vmem:[%s467 + $0x34] sm:$0xf]
        %v482 = vld [vmem:[%s467 + $0x38] sm:$0xf]
        %v483 = vld [vmem:[%s467 + $0x3c] sm:$0xf]
        %v484 = vld [vmem:[%s467 + $0x40] sm:$0xf]
        %v485 = vld [vmem:[%s467 + $0x44] sm:$0xf]
        %v486 = vld [vmem:[%s467 + $0x48] sm:$0xf]
        %v487 = vld [vmem:[%s467 + $0x4c] sm:$0xf]
        %v488 = vld [vmem:[%s467 + $0x50] sm:$0xf]
        %v489 = vld [vmem:[%s467 + $0x54] sm:$0xf]
        %v490 = vld [vmem:[%s467 + $0x58] sm:$0xf]
        %v491 = vld [vmem:[%s467 + $0x5c] sm:$0xf]
        %v493 = vunpack.c.l.b16 %v466
        %v494 = vunpack.c.h.b16 %v466
        %v495 = vpack.c.b16 %v493, %v493
        %v496 = vpack.c.b16 %v494, %v494
        %v497 = vrot.slane %v495, 2
        %v498 = vrot.slane %v496, 2
        %v524 = vunpack.c.l.b16 %v468
        %v525 = vunpack.c.l.b16 %v469
        %v526 = vunpack.c.l.b16 %v470
        %v527 = vunpack.c.l.b16 %v471
        %v528 = vunpack.c.l.b16 %v472
        %v529 = vunpack.c.l.b16 %v473
        %v530 = vunpack.c.l.b16 %v474
        %v531 = vunpack.c.l.b16 %v475
        %v532 = vunpack.c.l.b16 %v476
        %v533 = vunpack.c.l.b16 %v477
        %v534 = vunpack.c.l.b16 %v478
        %v535 = vunpack.c.l.b16 %v479
        %v536 = vunpack.c.l.b16 %v480
        %v537 = vunpack.c.l.b16 %v481
        %v538 = vunpack.c.l.b16 %v482
        %v539 = vunpack.c.l.b16 %v483
        %v540 = vunpack.c.l.b16 %v484
        %v541 = vunpack.c.l.b16 %v485
        %v542 = vunpack.c.l.b16 %v486
        %v543 = vunpack.c.l.b16 %v487
        %v544 = vunpack.c.l.b16 %v488
        %v545 = vunpack.c.l.b16 %v489
        %v546 = vunpack.c.l.b16 %v490
        %v547 = vunpack.c.l.b16 %v491
        %v548 = vpack.c.b16 %v525, %v524
        %v549 = vpack.c.b16 %v527, %v526
        %v550 = vpack.c.b16 %v529, %v528
        %v551 = vpack.c.b16 %v531, %v530
        %v552 = vpack.c.b16 %v533, %v532
        %v553 = vpack.c.b16 %v535, %v534
        %v554 = vpack.c.b16 %v537, %v536
        %v555 = vpack.c.b16 %v539, %v538
        %v556 = vpack.c.b16 %v541, %v540
        %v557 = vpack.c.b16 %v543, %v542
        %v558 = vpack.c.b16 %v545, %v544
        %v559 = vpack.c.b16 %v547, %v546
        %v573 = vsel %vm301, %v498, 0
        %575 = vmatprep.subr.bf16.mxu0 0
        %576 = vmatpush1.bf16.msra.mxu0 %v555
        %577 = vmatprep.subr.bf16.mxu0 0
        %578 = vmatpush1.bf16.msra.mxu0 %v554
        %579 = vmatprep.subr.bf16.mxu0 0
        %580 = vmatpush1.bf16.msra.mxu0 %v553
        %581 = vmatprep.subr.bf16.mxu0 0
        %582 = vmatpush1.bf16.msra.mxu0 %v552
        %583 = vmatprep.subr.bf16.mxu0 0
        %584 = vmatpush1.bf16.msra.mxu0 %v551
        %585 = vmatprep.subr.bf16.mxu0 0
        %586 = vmatpush1.bf16.msra.mxu0 %v550
        %587 = vmatprep.subr.bf16.mxu0 0
        %588 = vmatpush1.bf16.msra.mxu0 %v549
        %589 = vmatprep.subr.bf16.mxu0 0
        %590 = vmatpush1.bf16.msra.mxu0 %v548
        %591 = vmatprep.subr.bf16.mxu0 0
        %592 = vmatpush2.bf16.msra.mxu0 0
        %593 = vmatprep.subr.bf16.mxu0 0
        %594 = vmatpush2.bf16.msra.mxu0 0
        %595 = vmatprep.subr.bf16.mxu0 0
        %596 = vmatpush2.bf16.msra.mxu0 0
        %597 = vmatprep.subr.bf16.mxu0 0
        %598 = vmatpush2.bf16.msra.mxu0 0
        %599 = vmatprep.subr.bf16.mxu0 0
        %600 = vmatpush2.bf16.msra.mxu0 %v559
        %601 = vmatprep.subr.bf16.mxu0 0
        %602 = vmatpush2.bf16.msra.mxu0 %v558
        %603 = vmatprep.subr.bf16.mxu0 0
        %604 = vmatpush2.bf16.msra.mxu0 %v557
        %605 = vmatprep.subr.bf16.mxu0 0
        %606 = vmatpush2.bf16.msra.mxu0 %v556
        %607 = vmatprep.mubr.bf16.mxu0 %v573
        %608 = vmatmul.mubr.bf16.gmra.mxu0 %v497
        %v609 = vpop.f32.mrf.mxu0
        %v610 = vadd.f32 0.0, %v609
        %v611 = vpop.f32.mrf.mxu0
        %v612 = vpop.f32.mrf.mxu0
        %v613 = vpop.f32.mrf.mxu0
        %614 = vdwg.mxu0
        %v615 = vadd.f32 %v461, %v610
        %v616 = vld [vmem:[%s2] sm:$0x1]
        %v618 = vlaneseq
        %v619 = vshrl.u32 %v618, 7
        %v620 = vsub.s32 0, %v619
        %v621 = vrot.slane %v616, %v620
        %v623 = vadd.f32 %v615, %v621
        %v624 = vmax.f32 %v623, 0.0
        %vm625 = vcmask 519168
        %626 = vst.msk [vmem:[%s163] sm:$0xf] %vm625, %v624
        %s627 = sand.u32 %s93, 1
        %s628 = scalar_lea.sflag [#allocation3], %s627
        %s629 = sand.u32 %s93, 1
        %s630 = smul.addr %s629, 4
        %s631 = scalar_lea.vmem [#allocation2], %s630
        // Predicated region
        $region33: #{vgg_forward.25} parent=31 // pred_check
          %p632 = pneg %p103
        $region34: #{vgg_forward.25} parent=31 // pred_check_branch
          %634 = sbr.rel (%p632) target = $region36
        $region35: #{vgg_forward.25} parent=31 // pred_region
          %s636 = ssub.s32 64, 64
          %637 = vsyncadd %s628, %s636
          %s638 = smul.addr %s17, 64
          %s639 = scalar_lea.hbm %s3, %s638
          %s641 = sshll.u32 %s631, 4
          %s642 = int_to_ptr.vmem [resolvable:$true] %s641
          %644 = dma.vmem_to_hbm [thread:$0]  %s642, 64, %s639, %s628
        $region36: #{vgg_forward.25} parent=31 // pred_fallthru
          _
      $region32: #{vgg_forward.25} parent=5 // pred_fallthru
        _
      %p645 = scmp.le.s32.totalorder 2, %s12
      // Predicated region
      $region37: #{vgg_forward.25} parent=5 // pred_check
        %p646 = pneg %p645
      $region38: #{vgg_forward.25} parent=5 // pred_check_branch
        %648 = sbr.rel (%p646) target = $region40
      $region39: #{vgg_forward.25} parent=5 // pred_region
        %s649 = ssub.s32 %s12, 2
        // Predicated region
        $region41: #{vgg_forward.25} parent=39 // pred_check
          %p650 = pneg %p109
        $region42: #{vgg_forward.25} parent=39 // pred_check_branch
          %652 = sbr.rel (%p650) target = $region44
        $region43: #{vgg_forward.25} parent=39 // pred_region
          %s653 = sand.u32 %s94, 1
          %s654 = scalar_lea.sflag [#allocation3], %s653
          %s655 = sand.u32 %s94, 1
          %s656 = smul.addr %s655, 4
          %s657 = scalar_lea.vmem [#allocation2], %s656
          %658 = dma.done %s654, 64
        $region44: #{vgg_forward.25} parent=39 // pred_fallthru
          _
      $region40: #{vgg_forward.25} parent=5 // pred_fallthru
        _
    $region6: #{vgg_forward.25} parent=1 // loop_footer
      %s16 = sadd.s32 1, %s12
    $region7: #{vgg_forward.25} parent=1 // loop_footer_branch
      %11 = sbr.rel target = $region3
    $region8: #{vgg_forward.25} parent=1 // loop_exit
      _
    %659 = vsyncpa [#allocation3], 1
    %s660 = scalar_lea.sflag [#allocation3], 1
    %661 = vsyncpa %s660, 1

</llo_original>
